<compile_context>
chip_gen: v5e
topology: v5e:2x2
jax: 0.10.0
libtpu: 0.0.40
codegen_flags: <defaults>
</compile_context>

<pallas_src>
import functools

import jax
import jax.numpy as jnp
from jax import lax
from jax.experimental import pallas as pl
from jax.experimental.pallas import tpu as pltpu

LEAKY_SLOPE = 0.2
KSIZE = 5
STRIDE = 2
PAD = 2
LANE = 128
ROW_TILE = 16                   # bf16 packs 16 rows per vreg sublane tile
FUSE_MAX_POSITIONS = 16         # fuse the remaining layers once a layer's
                                # output has <= this many spatial positions
VMEM_LIMIT = 32 * 1024 * 1024   # explicit scoped-VMEM budget (> v5e 16MiB
                                # default, < v7x ~48MiB guidance)


def _round_up(x, m):
    return (x + m - 1) // m * m


def _conv_out(sz):
    return (sz + 2 * PAD - KSIZE) // STRIDE + 1


# -------------------- single-buffered resident operands -------------------- #
@functools.lru_cache(maxsize=None)
def _supports_single_buffering():
    """Probe whether this jax build accepts pl.Buffered(1) on a BlockSpec.
    Resident weights then use a single VMEM buffer instead of being
    double-buffered; fall back silently to the default otherwise."""
    if not hasattr(pl, "Buffered"):
        return False
    try:
        def k(x_ref, w_ref, o_ref):
            o_ref[...] = x_ref[...] + w_ref[...]

        probe = pl.pallas_call(
            k,
            out_shape=jax.ShapeDtypeStruct((32, 128), jnp.float32),
            grid_spec=pltpu.PrefetchScalarGridSpec(
                num_scalar_prefetch=0,
                grid=(2,),
                in_specs=[
                    pl.BlockSpec((16, 128), lambda i: (i, 0)),
                    pl.BlockSpec((16, 128), lambda i: (0, 0),
                                 pipeline_mode=pl.Buffered(1)),
                ],
                out_specs=pl.BlockSpec((16, 128), lambda i: (i, 0)),
            ),
            compiler_params=pltpu.CompilerParams(
                dimension_semantics=("arbitrary",)),
        )
        jax.block_until_ready(
            probe(jnp.zeros((32, 128), jnp.float32),
                  jnp.zeros((16, 128), jnp.float32)))
        return True
    except Exception:   # any failure -> default double buffering
        return False


def _resident_spec(shape, index_map):
    """BlockSpec for an operand whose block is constant across the grid
    (weights / bias): fetch once, keep a single VMEM buffer when supported."""
    if _supports_single_buffering():
        return pl.BlockSpec(shape, index_map, pipeline_mode=pl.Buffered(1))
    return pl.BlockSpec(shape, index_map)


# ----------------------------- Pallas kernels ------------------------------ #
def _mm_bias_lrelu_kernel(a_ref, w_ref, b_ref, o_ref):
    """(TM, Kp)bf16 @ (Kp, Cp)bf16 -> f32 acc, + bias, LeakyReLU(0.2)."""
    acc = jnp.dot(a_ref[...], w_ref[...], preferred_element_type=jnp.float32)
    acc = acc + b_ref[...]
    o_ref[...] = jnp.where(acc >= 0.0, acc, LEAKY_SLOPE * acc).astype(o_ref.dtype)


def _make_fused_kernel(meta, np_rows):
    """Chained conv layers with all weights resident in VMEM.

    Layer 0 consumes a pre-built patch matrix (rows grouped spatial-major,
    np_rows rows per output position).  Every later layer builds its im2col
    IN-KERNEL: for each output position it lane-concatenates the previous
    layer's per-position feature blocks (or zeros for padding taps) and runs
    one MXU matmul + bias + LeakyReLU.  No intermediate activation or patch
    tensor ever leaves VMEM.
    """
    n_layers = len(meta)

    def kernel(*refs):
        p_ref, o_ref = refs[0], refs[-1]
        wb = refs[1:1 + 2 * n_layers]

        def mm(a, w, b, keep_f32):
            acc = jnp.dot(a, w, preferred_element_type=jnp.float32) + b
            acc = jnp.where(acc >= 0.0, acc, LEAKY_SLOPE * acc)
            return acc if keep_f32 else acc.astype(jnp.bfloat16)

        # first fused layer: one matmul covers all of its output positions
        h0 = mm(p_ref[...], wb[0][...], wb[1][...], n_layers == 1)
        feats = [h0[p * np_rows:(p + 1) * np_rows, :]
                 for p in range(meta[0]["n_pos"])]
        hi, wi = meta[0]["ho"], meta[0]["wo"]

        # later layers: in-kernel im2col over the per-position feature list
        for li in range(1, n_layers):
            m = meta[li]
            w = wb[2 * li][...]
            b = wb[2 * li + 1][...]
            zero = jnp.zeros((np_rows, feats[0].shape[-1]), feats[0].dtype)
            nxt = []
            for oh in range(m["ho"]):
                for ow in range(m["wo"]):
                    pieces = []
                    for ih, iw in m["taps"]:
                        y = STRIDE * oh + ih - PAD
                        x = STRIDE * ow + iw - PAD
                        pieces.append(feats[y * wi + x]
                                      if (0 <= y < hi and 0 <= x < wi) else zero)
                    a = pieces[0] if len(pieces) == 1 else jnp.concatenate(pieces, -1)
                    nxt.append(mm(a, w, b, li == n_layers - 1))
            feats, hi, wi = nxt, m["ho"], m["wo"]

        for p, f in enumerate(feats):
            o_ref[pl.ds(p * np_rows, np_rows), :] = f.astype(o_ref.dtype)

    return kernel


# ------------------------- per-layer tiled conv ---------------------------- #
def _choose_row_tile(M, Kp, Cp, out_bytes, budget_bytes=24 * 1024 * 1024):
    """M tile: multiple of 32, capped so (2x a-tile + weight + 2x out-tile)
    fits the VMEM budget, and split into >= 2 grid steps when possible so both
    v7x TensorCores get work."""
    cap = 512
    while cap > 32:
        need = 2 * cap * Kp * 2 + Kp * Cp * 2 + 2 * cap * Cp * out_bytes + Cp * 4
        if need <= budget_bytes:
            break
        cap //= 2
    if M <= cap:
        tm = _round_up(max(pl.cdiv(M, 2), 1), 32)
        tm = min(tm, _round_up(M, 32))
    else:
        tm = cap
    return max(tm, 32)


def conv2d_lrelu_pallas(x, packed, *, out_dtype=jnp.bfloat16):
    """x: (N, H, W, Cin) bf16; packed: lane-dense pre-packed weight/bias."""
    N, H, W, Cin = x.shape
    Cout = packed["cout"]
    Kp, Cp = packed["w"].shape
    Ho, Wo = _conv_out(H), _conv_out(W)
    K = Cin * KSIZE * KSIZE

    # im2col glue (feature order = channel-major, tap-minor: k = c*25+ih*5+iw,
    # matching the pre-packed weight layout).
    # TODO(synk): for large images, band the input via BlockSpec and form the
    # 25 shifted reads in-kernel to avoid the stride^2-inflated patch tensor.
    patches = lax.conv_general_dilated_patches(
        x, filter_shape=(KSIZE, KSIZE), window_strides=(STRIDE, STRIDE),
        padding=((PAD, PAD), (PAD, PAD)),
        dimension_numbers=("NHWC", "HWIO", "NHWC"))
    M = N * Ho * Wo
    patches = patches.reshape(M, K).astype(jnp.bfloat16)

    out_bytes = 4 if out_dtype == jnp.float32 else 2
    TM = _choose_row_tile(M, Kp, Cp, out_bytes)
    Mp = _round_up(M, TM)
    a = jnp.pad(patches, ((0, Mp - M), (0, Kp - K)))

    out = pl.pallas_call(
        _mm_bias_lrelu_kernel,
        out_shape=jax.ShapeDtypeStruct((Mp, Cp), out_dtype),
        grid_spec=pltpu.PrefetchScalarGridSpec(
            num_scalar_prefetch=0,
            grid=(Mp // TM,),
            in_specs=[
                pl.BlockSpec((TM, Kp), lambda i: (i, 0)),
                _resident_spec((Kp, Cp), lambda i: (0, 0)),
                _resident_spec((1, Cp), lambda i: (0, 0)),
            ],
            out_specs=pl.BlockSpec((TM, Cp), lambda i: (i, 0)),
        ),
        compiler_params=pltpu.CompilerParams(
            dimension_semantics=("parallel",),
            vmem_limit_bytes=VMEM_LIMIT),
    )(a, packed["w"], packed["b"])
    # Cp == Cout for every layer except layer 1 (Cout=64), so the channel
    # slice is a no-op there; only padded rows get dropped.
    return out[:M, :Cout].reshape(N, Ho, Wo, Cout)


# ------------------------- fused small-spatial stage ----------------------- #
def fused_layers_pallas(x, fp):
    """Run all remaining layers in one pallas_call.  x: (N, Hi, Wi, Cin) bf16
    (the input of the first fused layer).  Returns NCHW-flattened output."""
    meta, arrays = fp["meta"], fp["arrays"]
    N = x.shape[0]
    np_rows = _round_up(N, ROW_TILE)
    m0 = meta[0]
    K0 = x.shape[-1] * KSIZE * KSIZE
    K0p = arrays[0][0].shape[0]

    patches = lax.conv_general_dilated_patches(
        x, filter_shape=(KSIZE, KSIZE), window_strides=(STRIDE, STRIDE),
        padding=((PAD, PAD), (PAD, PAD)),
        dimension_numbers=("NHWC", "HWIO", "NHWC"))        # (N, Ho, Wo, K0)
    # rows ordered spatial-major / batch-minor so each output position is a
    # contiguous ROW_TILE-aligned block inside the kernel.
    patches = jnp.transpose(patches, (1, 2, 0, 3)).reshape(m0["n_pos"], N, K0)
    patches = jnp.pad(patches.astype(jnp.bfloat16),
                      ((0, 0), (0, np_rows - N), (0, K0p - K0)))
    patches = patches.reshape(m0["n_pos"] * np_rows, K0p)

    n_pos_final = meta[-1]["n_pos"]
    cout_final = meta[-1]["cout"]
    cp_final = arrays[-1][0].shape[1]

    inputs = [patches]
    in_specs = [pl.BlockSpec(patches.shape, lambda i: (0, 0))]
    for w, b in arrays:
        inputs += [w, b]
        in_specs += [_resident_spec(w.shape, lambda i: (0, 0)),
                     _resident_spec(b.shape, lambda i: (0, 0))]

    out = pl.pallas_call(
        _make_fused_kernel(meta, np_rows),
        out_shape=jax.ShapeDtypeStruct((n_pos_final * np_rows, cp_final),
                                       jnp.float32),
        grid_spec=pltpu.PrefetchScalarGridSpec(
            num_scalar_prefetch=0,
            grid=(1,),
            in_specs=in_specs,
            out_specs=pl.BlockSpec((n_pos_final * np_rows, cp_final),
                                   lambda i: (0, 0)),
        ),
        compiler_params=pltpu.CompilerParams(
            dimension_semantics=("arbitrary",),
            vmem_limit_bytes=VMEM_LIMIT),
    )(*inputs)

    # (P, Np, Cp) -> (N, Cout, P) -> flatten in NCHW order (matches nn.Flatten)
    out = out.reshape(n_pos_final, np_rows, cp_final)[:, :N, :cout_final]
    return jnp.transpose(out, (1, 2, 0)).reshape(N, cout_final * n_pos_final)


# --------------------------- parameter packing ------------------------------ #
def pack_params(params, input_hw, fuse_max_positions=FUSE_MAX_POSITIONS):
    """One-time packing of torch-layout conv params into lane-dense bf16
    matmul operands + the layer-fusion plan for this input size.  Keeps every
    weight re-layout / pad out of the per-forward graph."""
    _supports_single_buffering()      # warm the probe outside any jit trace

    h, w_sp = input_hw
    head, idx, n = [], 0, len(params)

    # layers handled by the tiled per-layer conv kernel
    while idx < n:
        ho, wo = _conv_out(h), _conv_out(w_sp)
        if ho * wo <= fuse_max_positions:
            break                      # remaining layers -> single fused kernel
        wt, bias = params[idx]
        cout, cin = wt.shape[0], wt.shape[1]
        k = cin * KSIZE * KSIZE
        kp, cp = _round_up(k, LANE), _round_up(cout, LANE)
        wm = jnp.asarray(wt, jnp.float32).reshape(cout, k).T   # k = c*25+ih*5+iw
        head.append(dict(
            w=jnp.pad(wm, ((0, kp - k), (0, cp - cout))).astype(jnp.bfloat16),
            b=jnp.pad(jnp.asarray(bias, jnp.float32),
                      (0, cp - cout)).reshape(1, cp),
            cout=cout))
        h, w_sp = ho, wo
        idx += 1

    fused = None
    if idx < n:
        meta, arrays = [], []
        hi, wi, cp_prev = h, w_sp, None
        for j in range(idx, n):
            wt, bias = params[j]
            cout, cin = wt.shape[0], wt.shape[1]
            ho, wo = _conv_out(hi), _conv_out(wi)
            cp = _round_up(cout, LANE)
            wt32 = jnp.asarray(wt, jnp.float32)
            if j == idx:
                k = cin * KSIZE * KSIZE
                kp = _round_up(k, LANE)
                wm = jnp.pad(wt32.reshape(cout, k).T,
                             ((0, kp - k), (0, cp - cout)))
                taps = None
            else:
                # only taps that can hit a real (non-padding) input position:
                # a 1x1 input keeps just the centre tap (K = Cin, not 25*Cin).
                taps = [(ih, iw) for ih in range(KSIZE) for iw in range(KSIZE)
                        if any(0 <= STRIDE * oh + ih - PAD < hi for oh in range(ho))
                        and any(0 <= STRIDE * ow + iw - PAD < wi for ow in range(wo))]
                blocks = [jnp.pad(wt32[:, :, ih, iw].T,
                                  ((0, cp_prev - cin), (0, cp - cout)))
                          for ih, iw in taps]
                wm = jnp.concatenate(blocks, axis=0)
            arrays.append((wm.astype(jnp.bfloat16),
                           jnp.pad(jnp.asarray(bias, jnp.float32),
                                   (0, cp - cout)).reshape(1, cp)))
            meta.append(dict(ho=ho, wo=wo, n_pos=ho * wo, taps=taps, cout=cout))
            hi, wi, cp_prev = ho, wo, cp
        fused = dict(meta=meta, arrays=arrays)

    return dict(head=head, fused=fused)


# ------------------------------ init / forward ----------------------------- #
def spectral_normalize(w, n_iter=10, eps=1e-12):
    """Divide the conv weight by its spectral norm (deterministic power
    iteration on the (Cout, Cin*kh*kw) reshape)."""
    # TODO(synk): torch spectral_norm keeps a persistent random `u` updated once
    # per forward; approximated once at init time here (eval semantics).
    cout = w.shape[0]
    wm = w.reshape(cout, -1)
    u = jnp.ones((cout,), w.dtype) / jnp.sqrt(jnp.asarray(cout, w.dtype))
    v = wm.T @ u
    v = v / (jnp.linalg.norm(v) + eps)
    for _ in range(n_iter):
        u = wm @ v
        u = u / (jnp.linalg.norm(u) + eps)
        v = wm.T @ u
        v = v / (jnp.linalg.norm(v) + eps)
    sigma = u @ (wm @ v)
    return w / sigma


def init_params(key, in_channels=4):
    channels = [in_channels, 64, 128, 256, 256, 256, 256]
    params = []
    for i in range(6):
        key, k_w, k_b = jax.random.split(key, 3)
        cin, cout = channels[i], channels[i + 1]
        w = jax.random.normal(k_w, (cout, cin, 5, 5), jnp.float32) / jnp.sqrt(cin * 25.0)
        b = 0.01 * jax.random.normal(k_b, (cout,), jnp.float32)
        params.append((spectral_normalize(w), b))
    return params


def sn_patchgan_discriminator(packed, images, masks):
    """images: (N, 3, H, W) in [0, 255]; masks: (N, H, W). Returns (N, flat)."""
    imgs = images.astype(jnp.float32) / 255.0 * 2.0 - 1.0   # normalize to [-1, 1]
    m = masks.astype(jnp.float32)[:, None, :, :]            # unsqueeze dim=1
    x = jnp.concatenate([imgs, m], axis=1)                  # (N, 4, H, W)
    # TODO(synk): training-mode gaussian noise (randn_like*0.1) omitted; eval semantics.
    x = jnp.transpose(x, (0, 2, 3, 1)).astype(jnp.bfloat16)  # NCHW -> NHWC, bf16 MXU

    head, fused = packed["head"], packed["fused"]
    for li, layer in enumerate(head):
        last = fused is None and li == len(head) - 1
        x = conv2d_lrelu_pallas(
            x, layer, out_dtype=jnp.float32 if last else jnp.bfloat16)

    if fused is not None:
        return fused_layers_pallas(x, fused)

    x = jnp.transpose(x, (0, 3, 1, 2))        # nn.Flatten flattens in NCHW order
    return x.reshape(x.shape[0], -1)


if __name__ == "__main__":
    key = jax.random.PRNGKey(0)
    k_p, k_i, k_m = jax.random.split(key, 3)
    params = init_params(k_p, in_channels=4)

    N, H, W = 2, 16, 16
    images = jax.random.uniform(k_i, (N, 3, H, W), jnp.float32, 0.0, 255.0)
    masks = (jax.random.uniform(k_m, (N, H, W)) > 0.5).astype(jnp.float32)

    packed = pack_params(params, (H, W))
    fwd = jax.jit(functools.partial(sn_patchgan_discriminator, packed))
    out = jax.block_until_ready(fwd(images, masks))

    # 16 -> 8 -> 4 -> 2 -> 1 -> 1 -> 1 spatial; 256 channels -> flat (N, 256)
    assert out.shape == (N, 256), out.shape
    assert bool(jnp.all(jnp.isfinite(out)))
    print("KERNEL_OK")
</pallas_src>

<mosaic_0001>
module attributes {stable_mosaic.version = 11 : i64} {
  func.func @k(%arg0: i32, %arg1: memref<16x128xf32, #tpu.memory_space<vmem>>, %arg2: memref<16x128xf32, #tpu.memory_space<vmem>>, %arg3: memref<16x128xf32, #tpu.memory_space<vmem>>) attributes {dimension_semantics = [#tpu.dimension_semantics<arbitrary>], iteration_bounds = array<i64: 2>, scalar_prefetch = 0 : i64, scratch_operands = 0 : i64, tpu.core_type = #tpu.core_type<tc>, window_params = [{transform_indices = @transform_0, window_bounds = array<i64: 16, 128>}, {pipeline_mode = #tpu.pipeline_mode<synchronous>, transform_indices = @transform_1, window_bounds = array<i64: 16, 128>}, {transform_indices = @transform_2, window_bounds = array<i64: 16, 128>}]} {
    %c0 = arith.constant 0 : index
    %c0_0 = arith.constant 0 : index
    %0 = vector.load %arg1[%c0, %c0_0] : memref<16x128xf32, #tpu.memory_space<vmem>>, vector<16x128xf32>
    %c0_1 = arith.constant 0 : index
    %c0_2 = arith.constant 0 : index
    %1 = vector.load %arg2[%c0_1, %c0_2] : memref<16x128xf32, #tpu.memory_space<vmem>>, vector<16x128xf32>
    %2 = arith.addf %0, %1 : vector<16x128xf32>
    %c0_3 = arith.constant 0 : index
    %c0_4 = arith.constant 0 : index
    %3 = vector.load %arg3[%c0_3, %c0_4] : memref<16x128xf32, #tpu.memory_space<vmem>>, vector<16x128xf32>
    tpu.vector_store %arg3[%c0_3, %c0_4], %2 {strides = array<i32>} : memref<16x128xf32, #tpu.memory_space<vmem>>, vector<16x128xf32>,
    return
  }
  func.func @transform_0(%arg0: i32) -> (i32, i32) {
    %c0_i32 = arith.constant 0 : i32
    %c0_i32_0 = arith.constant 0 : i32
    return %arg0, %c0_i32 : i32, i32
  }
  func.func @transform_1(%arg0: i32) -> (i32, i32) {
    %c0_i32 = arith.constant 0 : i32
    %c0_i32_0 = arith.constant 0 : i32
    %c0_i32_1 = arith.constant 0 : i32
    return %c0_i32, %c0_i32_0 : i32, i32
  }
  func.func @transform_2(%arg0: i32) -> (i32, i32) {
    %c0_i32 = arith.constant 0 : i32
    %c0_i32_0 = arith.constant 0 : i32
    return %arg0, %c0_i32 : i32, i32
  }
}

module attributes {stable_mosaic.version = 11 : i64} {
  func.func @_mm_bias_lrelu_kernel(%arg0: i32, %arg1: memref<64x128xbf16, #tpu.memory_space<vmem>>, %arg2: memref<128x128xbf16, #tpu.memory_space<vmem>>, %arg3: memref<1x128xf32, #tpu.memory_space<vmem>>, %arg4: memref<64x128xbf16, #tpu.memory_space<vmem>>) attributes {dimension_semantics = [#tpu.dimension_semantics<parallel>], iteration_bounds = array<i64: 2>, scalar_prefetch = 0 : i64, scratch_operands = 0 : i64, tpu.core_type = #tpu.core_type<tc>, window_params = [{transform_indices = @transform_0, window_bounds = array<i64: 64, 128>}, {pipeline_mode = #tpu.pipeline_mode<synchronous>, transform_indices = @transform_1, window_bounds = array<i64: 128, 128>}, {pipeline_mode = #tpu.pipeline_mode<synchronous>, transform_indices = @transform_2, window_bounds = array<i64: 1, 128>}, {transform_indices = @transform_3, window_bounds = array<i64: 64, 128>}]} {
    %c0 = arith.constant 0 : index
    %c0_0 = arith.constant 0 : index
    %0 = vector.load %arg1[%c0, %c0_0] : memref<64x128xbf16, #tpu.memory_space<vmem>>, vector<64x128xbf16>
    %c0_1 = arith.constant 0 : index
    %c0_2 = arith.constant 0 : index
    %1 = vector.load %arg2[%c0_1, %c0_2] : memref<128x128xbf16, #tpu.memory_space<vmem>>, vector<128x128xbf16>
    %cst = arith.constant dense<0.000000e+00> : vector<64x128xf32>
    %2 = tpu.matmul %0, %1, %cst {dimension_numbers = #tpu.dot_dimension_numbers<[1], [0], [0], [1], [0, 0, 1, 1], [], []>} : vector<64x128xbf16>, vector<128x128xbf16>, vector<64x128xf32> -> vector<64x128xf32>
    %c0_3 = arith.constant 0 : index
    %c0_4 = arith.constant 0 : index
    %3 = vector.load %arg3[%c0_3, %c0_4] : memref<1x128xf32, #tpu.memory_space<vmem>>, vector<1x128xf32>
    %4 = vector.broadcast %3 : vector<1x128xf32> to vector<64x128xf32>
    %5 = arith.addf %2, %4 : vector<64x128xf32>
    %cst_5 = arith.constant 0.000000e+00 : f32
    %6 = vector.broadcast %cst_5 : f32 to vector<64x128xf32>
    %7 = arith.cmpf oge, %5, %6 : vector<64x128xf32>
    %cst_6 = arith.constant 2.000000e-01 : f32
    %8 = vector.broadcast %cst_6 : f32 to vector<64x128xf32>
    %9 = arith.mulf %8, %5 : vector<64x128xf32>
    %10 = arith.select %7, %5, %9 : vector<64x128xi1>, vector<64x128xf32>
    %11 = arith.truncf %10 : vector<64x128xf32> to vector<64x128xbf16>
    %c0_7 = arith.constant 0 : index
    %c0_8 = arith.constant 0 : index
    %12 = vector.load %arg4[%c0_7, %c0_8] : memref<64x128xbf16, #tpu.memory_space<vmem>>, vector<64x128xbf16>
    tpu.vector_store %arg4[%c0_7, %c0_8], %11 {strides = array<i32>} : memref<64x128xbf16, #tpu.memory_space<vmem>>, vector<64x128xbf16>,
    return
  }
  func.func @transform_0(%arg0: i32) -> (i32, i32) {
    %c0_i32 = arith.constant 0 : i32
    %c0_i32_0 = arith.constant 0 : i32
    return %arg0, %c0_i32 : i32, i32
  }
  func.func @transform_1(%arg0: i32) -> (i32, i32) {
    %c0_i32 = arith.constant 0 : i32
    %c0_i32_0 = arith.constant 0 : i32
    %c0_i32_1 = arith.constant 0 : i32
    return %c0_i32, %c0_i32_0 : i32, i32
  }
  func.func @transform_2(%arg0: i32) -> (i32, i32) {
    %c0_i32 = arith.constant 0 : i32
    %c0_i32_0 = arith.constant 0 : i32
    %c0_i32_1 = arith.constant 0 : i32
    return %c0_i32, %c0_i32_0 : i32, i32
  }
  func.func @transform_3(%arg0: i32) -> (i32, i32) {
    %c0_i32 = arith.constant 0 : i32
    %c0_i32_0 = arith.constant 0 : i32
    return %arg0, %c0_i32 : i32, i32
  }
}

module attributes {stable_mosaic.version = 11 : i64} {
  func.func @kernel(%arg0: i32, %arg1: memref<256x1664xbf16, #tpu.memory_space<vmem>>, %arg2: memref<1664x128xbf16, #tpu.memory_space<vmem>>, %arg3: memref<1x128xf32, #tpu.memory_space<vmem>>, %arg4: memref<3200x256xbf16, #tpu.memory_space<vmem>>, %arg5: memref<1x256xf32, #tpu.memory_space<vmem>>, %arg6: memref<1024x256xbf16, #tpu.memory_space<vmem>>, %arg7: memref<1x256xf32, #tpu.memory_space<vmem>>, %arg8: memref<256x256xbf16, #tpu.memory_space<vmem>>, %arg9: memref<1x256xf32, #tpu.memory_space<vmem>>, %arg10: memref<256x256xbf16, #tpu.memory_space<vmem>>, %arg11: memref<1x256xf32, #tpu.memory_space<vmem>>, %arg12: memref<16x256xf32, #tpu.memory_space<vmem>>) attributes {dimension_semantics = [#tpu.dimension_semantics<arbitrary>], iteration_bounds = array<i64: 1>, scalar_prefetch = 0 : i64, scratch_operands = 0 : i64, tpu.core_type = #tpu.core_type<tc>, window_params = [{pipeline_mode = #tpu.pipeline_mode<synchronous>, transform_indices = @transform_0, window_bounds = array<i64: 256, 1664>}, {pipeline_mode = #tpu.pipeline_mode<synchronous>, transform_indices = @transform_1, window_bounds = array<i64: 1664, 128>}, {pipeline_mode = #tpu.pipeline_mode<synchronous>, transform_indices = @transform_2, window_bounds = array<i64: 1, 128>}, {pipeline_mode = #tpu.pipeline_mode<synchronous>, transform_indices = @transform_3, window_bounds = array<i64: 3200, 256>}, {pipeline_mode = #tpu.pipeline_mode<synchronous>, transform_indices = @transform_4, window_bounds = array<i64: 1, 256>}, {pipeline_mode = #tpu.pipeline_mode<synchronous>, transform_indices = @transform_5, window_bounds = array<i64: 1024, 256>}, {pipeline_mode = #tpu.pipeline_mode<synchronous>, transform_indices = @transform_6, window_bounds = array<i64: 1, 256>}, {pipeline_mode = #tpu.pipeline_mode<synchronous>, transform_indices = @transform_7, window_bounds = array<i64: 256, 256>}, {pipeline_mode = #tpu.pipeline_mode<synchronous>, transform_indices = @transform_8, window_bounds = array<i64: 1, 256>}, {pipeline_mode = #tpu.pipeline_mode<synchronous>, transform_indices = @transform_9, window_bounds = array<i64: 256, 256>}, {pipeline_mode = #tpu.pipeline_mode<synchronous>, transform_indices = @transform_10, window_bounds = array<i64: 1, 256>}, {pipeline_mode = #tpu.pipeline_mode<synchronous>, transform_indices = @transform_11, window_bounds = array<i64: 16, 256>}]} {
    %c0 = arith.constant 0 : index
    %c0_0 = arith.constant 0 : index
    %0 = vector.load %arg1[%c0, %c0_0] : memref<256x1664xbf16, #tpu.memory_space<vmem>>, vector<256x1664xbf16>
    %c0_1 = arith.constant 0 : index
    %c0_2 = arith.constant 0 : index
    %1 = vector.load %arg2[%c0_1, %c0_2] : memref<1664x128xbf16, #tpu.memory_space<vmem>>, vector<1664x128xbf16>
    %c0_3 = arith.constant 0 : index
    %c0_4 = arith.constant 0 : index
    %2 = vector.load %arg3[%c0_3, %c0_4] : memref<1x128xf32, #tpu.memory_space<vmem>>, vector<1x128xf32>
    %cst = arith.constant dense<0.000000e+00> : vector<256x128xf32>
    %3 = tpu.matmul %0, %1, %cst {dimension_numbers = #tpu.dot_dimension_numbers<[1], [0], [0], [1], [0, 0, 1, 1], [], []>} : vector<256x1664xbf16>, vector<1664x128xbf16>, vector<256x128xf32> -> vector<256x128xf32>
    %4 = vector.broadcast %2 : vector<1x128xf32> to vector<256x128xf32>
    %5 = arith.addf %3, %4 : vector<256x128xf32>
    %cst_5 = arith.constant 0.000000e+00 : f32
    %6 = vector.broadcast %cst_5 : f32 to vector<256x128xf32>
    %7 = arith.cmpf oge, %5, %6 : vector<256x128xf32>
    %cst_6 = arith.constant 2.000000e-01 : f32
    %8 = vector.broadcast %cst_6 : f32 to vector<256x128xf32>
    %9 = arith.mulf %8, %5 : vector<256x128xf32>
    %10 = arith.select %7, %5, %9 : vector<256x128xi1>, vector<256x128xf32>
    %11 = arith.truncf %10 : vector<256x128xf32> to vector<256x128xbf16>
    %12 = vector.extract_strided_slice %11 {offsets = [0, 0], sizes = [16, 128], strides = [1, 1]} : vector<256x128xbf16> to vector<16x128xbf16>
    %13 = vector.extract_strided_slice %11 {offsets = [16, 0], sizes = [16, 128], strides = [1, 1]} : vector<256x128xbf16> to vector<16x128xbf16>
    %14 = vector.extract_strided_slice %11 {offsets = [32, 0], sizes = [16, 128], strides = [1, 1]} : vector<256x128xbf16> to vector<16x128xbf16>
    %15 = vector.extract_strided_slice %11 {offsets = [48, 0], sizes = [16, 128], strides = [1, 1]} : vector<256x128xbf16> to vector<16x128xbf16>
    %16 = vector.extract_strided_slice %11 {offsets = [64, 0], sizes = [16, 128], strides = [1, 1]} : vector<256x128xbf16> to vector<16x128xbf16>
    %17 = vector.extract_strided_slice %11 {offsets = [80, 0], sizes = [16, 128], strides = [1, 1]} : vector<256x128xbf16> to vector<16x128xbf16>
    %18 = vector.extract_strided_slice %11 {offsets = [96, 0], sizes = [16, 128], strides = [1, 1]} : vector<256x128xbf16> to vector<16x128xbf16>
    %19 = vector.extract_strided_slice %11 {offsets = [112, 0], sizes = [16, 128], strides = [1, 1]} : vector<256x128xbf16> to vector<16x128xbf16>
    %20 = vector.extract_strided_slice %11 {offsets = [128, 0], sizes = [16, 128], strides = [1, 1]} : vector<256x128xbf16> to vector<16x128xbf16>
    %21 = vector.extract_strided_slice %11 {offsets = [144, 0], sizes = [16, 128], strides = [1, 1]} : vector<256x128xbf16> to vector<16x128xbf16>
    %22 = vector.extract_strided_slice %11 {offsets = [160, 0], sizes = [16, 128], strides = [1, 1]} : vector<256x128xbf16> to vector<16x128xbf16>
    %23 = vector.extract_strided_slice %11 {offsets = [176, 0], sizes = [16, 128], strides = [1, 1]} : vector<256x128xbf16> to vector<16x128xbf16>
    %24 = vector.extract_strided_slice %11 {offsets = [192, 0], sizes = [16, 128], strides = [1, 1]} : vector<256x128xbf16> to vector<16x128xbf16>
    %25 = vector.extract_strided_slice %11 {offsets = [208, 0], sizes = [16, 128], strides = [1, 1]} : vector<256x128xbf16> to vector<16x128xbf16>
    %26 = vector.extract_strided_slice %11 {offsets = [224, 0], sizes = [16, 128], strides = [1, 1]} : vector<256x128xbf16> to vector<16x128xbf16>
    %27 = vector.extract_strided_slice %11 {offsets = [240, 0], sizes = [16, 128], strides = [1, 1]} : vector<256x128xbf16> to vector<16x128xbf16>
    %c0_7 = arith.constant 0 : index
    %c0_8 = arith.constant 0 : index
    %28 = vector.load %arg4[%c0_7, %c0_8] : memref<3200x256xbf16, #tpu.memory_space<vmem>>, vector<3200x256xbf16>
    %c0_9 = arith.constant 0 : index
    %c0_10 = arith.constant 0 : index
    %29 = vector.load %arg5[%c0_9, %c0_10] : memref<1x256xf32, #tpu.memory_space<vmem>>, vector<1x256xf32>
    %cst_11 = arith.constant 0.000000e+00 : bf16
    %30 = vector.broadcast %cst_11 : bf16 to vector<16x128xbf16>
    %31 = tpu.concatenate %30, %30, %30, %30, %30, %30, %30, %30, %30, %30, %30, %30, %12, %13, %14, %30 in 1 : vector<16x128xbf16>, vector<16x128xbf16>, vector<16x128xbf16>, vector<16x128xbf16>, vector<16x128xbf16>, vector<16x128xbf16>, vector<16x128xbf16>, vector<16x128xbf16>, vector<16x128xbf16>, vector<16x128xbf16>, vector<16x128xbf16>, vector<16x128xbf16>, vector<16x128xbf16>, vector<16x128xbf16>, vector<16x128xbf16>, vector<16x128xbf16> -> vector<16x2048xbf16>
    %32 = tpu.concatenate %30, %16, %17, %18, %30, %30, %20, %21, %22 in 1 : vector<16x128xbf16>, vector<16x128xbf16>, vector<16x128xbf16>, vector<16x128xbf16>, vector<16x128xbf16>, vector<16x128xbf16>, vector<16x128xbf16>, vector<16x128xbf16>, vector<16x128xbf16> -> vector<16x1152xbf16>
    %33 = tpu.concatenate %31, %32 in 1 : vector<16x2048xbf16>, vector<16x1152xbf16> -> vector<16x3200xbf16>
    %cst_12 = arith.constant dense<0.000000e+00> : vector<16x256xf32>
    %34 = tpu.matmul %33, %28, %cst_12 {dimension_numbers = #tpu.dot_dimension_numbers<[1], [0], [0], [1], [0, 0, 1, 1], [], []>} : vector<16x3200xbf16>, vector<3200x256xbf16>, vector<16x256xf32> -> vector<16x256xf32>
    %35 = vector.broadcast %29 : vector<1x256xf32> to vector<16x256xf32>
    %36 = arith.addf %34, %35 : vector<16x256xf32>
    %cst_13 = arith.constant 0.000000e+00 : f32
    %37 = vector.broadcast %cst_13 : f32 to vector<16x256xf32>
    %38 = arith.cmpf oge, %36, %37 : vector<16x256xf32>
    %cst_14 = arith.constant 2.000000e-01 : f32
    %39 = vector.broadcast %cst_14 : f32 to vector<16x256xf32>
    %40 = arith.mulf %39, %36 : vector<16x256xf32>
    %41 = arith.select %38, %36, %40 : vector<16x256xi1>, vector<16x256xf32>
    %42 = arith.truncf %41 : vector<16x256xf32> to vector<16x256xbf16>
    %43 = tpu.concatenate %30, %30, %30, %30, %30, %30, %30, %30, %30, %30, %12, %13, %14, %15, %30, %16 in 1 : vector<16x128xbf16>, vector<16x128xbf16>, vector<16x128xbf16>, vector<16x128xbf16>, vector<16x128xbf16>, vector<16x128xbf16>, vector<16x128xbf16>, vector<16x128xbf16>, vector<16x128xbf16>, vector<16x128xbf16>, vector<16x128xbf16>, vector<16x128xbf16>, vector<16x128xbf16>, vector<16x128xbf16>, vector<16x128xbf16>, vector<16x128xbf16> -> vector<16x2048xbf16>
    %44 = tpu.concatenate %17, %18, %19, %30, %20, %21, %22, %23, %30 in 1 : vector<16x128xbf16>, vector<16x128xbf16>, vector<16x128xbf16>, vector<16x128xbf16>, vector<16x128xbf16>, vector<16x128xbf16>, vector<16x128xbf16>, vector<16x128xbf16>, vector<16x128xbf16> -> vector<16x1152xbf16>
    %45 = tpu.concatenate %43, %44 in 1 : vector<16x2048xbf16>, vector<16x1152xbf16> -> vector<16x3200xbf16>
    %cst_15 = arith.constant dense<0.000000e+00> : vector<16x256xf32>
    %46 = tpu.matmul %45, %28, %cst_15 {dimension_numbers = #tpu.dot_dimension_numbers<[1], [0], [0], [1], [0, 0, 1, 1], [], []>} : vector<16x3200xbf16>, vector<3200x256xbf16>, vector<16x256xf32> -> vector<16x256xf32>
    %47 = vector.broadcast %29 : vector<1x256xf32> to vector<16x256xf32>
    %48 = arith.addf %46, %47 : vector<16x256xf32>
    %cst_16 = arith.constant 0.000000e+00 : f32
    %49 = vector.broadcast %cst_16 : f32 to vector<16x256xf32>
    %50 = arith.cmpf oge, %48, %49 : vector<16x256xf32>
    %cst_17 = arith.constant 2.000000e-01 : f32
    %51 = vector.broadcast %cst_17 : f32 to vector<16x256xf32>
    %52 = arith.mulf %51, %48 : vector<16x256xf32>
    %53 = arith.select %50, %48, %52 : vector<16x256xi1>, vector<16x256xf32>
    %54 = arith.truncf %53 : vector<16x256xf32> to vector<16x256xbf16>
    %55 = tpu.concatenate %30, %30, %12, %13, %14, %30, %30, %16, %17, %18, %30, %30, %20, %21, %22, %30 in 1 : vector<16x128xbf16>, vector<16x128xbf16>, vector<16x128xbf16>, vector<16x128xbf16>, vector<16x128xbf16>, vector<16x128xbf16>, vector<16x128xbf16>, vector<16x128xbf16>, vector<16x128xbf16>, vector<16x128xbf16>, vector<16x128xbf16>, vector<16x128xbf16>, vector<16x128xbf16>, vector<16x128xbf16>, vector<16x128xbf16>, vector<16x128xbf16> -> vector<16x2048xbf16>
    %56 = tpu.concatenate %30, %24, %25, %26, %30, %30, %30, %30, %30 in 1 : vector<16x128xbf16>, vector<16x128xbf16>, vector<16x128xbf16>, vector<16x128xbf16>, vector<16x128xbf16>, vector<16x128xbf16>, vector<16x128xbf16>, vector<16x128xbf16>, vector<16x128xbf16> -> vector<16x1152xbf16>
    %57 = tpu.concatenate %55, %56 in 1 : vector<16x2048xbf16>, vector<16x1152xbf16> -> vector<16x3200xbf16>
    %cst_18 = arith.constant dense<0.000000e+00> : vector<16x256xf32>
    %58 = tpu.matmul %57, %28, %cst_18 {dimension_numbers = #tpu.dot_dimension_numbers<[1], [0], [0], [1], [0, 0, 1, 1], [], []>} : vector<16x3200xbf16>, vector<3200x256xbf16>, vector<16x256xf32> -> vector<16x256xf32>
    %59 = vector.broadcast %29 : vector<1x256xf32> to vector<16x256xf32>
    %60 = arith.addf %58, %59 : vector<16x256xf32>
    %cst_19 = arith.constant 0.000000e+00 : f32
    %61 = vector.broadcast %cst_19 : f32 to vector<16x256xf32>
    %62 = arith.cmpf oge, %60, %61 : vector<16x256xf32>
    %cst_20 = arith.constant 2.000000e-01 : f32
    %63 = vector.broadcast %cst_20 : f32 to vector<16x256xf32>
    %64 = arith.mulf %63, %60 : vector<16x256xf32>
    %65 = arith.select %62, %60, %64 : vector<16x256xi1>, vector<16x256xf32>
    %66 = arith.truncf %65 : vector<16x256xf32> to vector<16x256xbf16>
    %67 = tpu.concatenate %12, %13, %14, %15, %30, %16, %17, %18, %19, %30, %20, %21, %22, %23, %30, %24 in 1 : vector<16x128xbf16>, vector<16x128xbf16>, vector<16x128xbf16>, vector<16x128xbf16>, vector<16x128xbf16>, vector<16x128xbf16>, vector<16x128xbf16>, vector<16x128xbf16>, vector<16x128xbf16>, vector<16x128xbf16>, vector<16x128xbf16>, vector<16x128xbf16>, vector<16x128xbf16>, vector<16x128xbf16>, vector<16x128xbf16>, vector<16x128xbf16> -> vector<16x2048xbf16>
    %68 = tpu.concatenate %25, %26, %27, %30, %30, %30, %30, %30, %30 in 1 : vector<16x128xbf16>, vector<16x128xbf16>, vector<16x128xbf16>, vector<16x128xbf16>, vector<16x128xbf16>, vector<16x128xbf16>, vector<16x128xbf16>, vector<16x128xbf16>, vector<16x128xbf16> -> vector<16x1152xbf16>
    %69 = tpu.concatenate %67, %68 in 1 : vector<16x2048xbf16>, vector<16x1152xbf16> -> vector<16x3200xbf16>
    %cst_21 = arith.constant dense<0.000000e+00> : vector<16x256xf32>
    %70 = tpu.matmul %69, %28, %cst_21 {dimension_numbers = #tpu.dot_dimension_numbers<[1], [0], [0], [1], [0, 0, 1, 1], [], []>} : vector<16x3200xbf16>, vector<3200x256xbf16>, vector<16x256xf32> -> vector<16x256xf32>
    %71 = vector.broadcast %29 : vector<1x256xf32> to vector<16x256xf32>
    %72 = arith.addf %70, %71 : vector<16x256xf32>
    %cst_22 = arith.constant 0.000000e+00 : f32
    %73 = vector.broadcast %cst_22 : f32 to vector<16x256xf32>
    %74 = arith.cmpf oge, %72, %73 : vector<16x256xf32>
    %cst_23 = arith.constant 2.000000e-01 : f32
    %75 = vector.broadcast %cst_23 : f32 to vector<16x256xf32>
    %76 = arith.mulf %75, %72 : vector<16x256xf32>
    %77 = arith.select %74, %72, %76 : vector<16x256xi1>, vector<16x256xf32>
    %78 = arith.truncf %77 : vector<16x256xf32> to vector<16x256xbf16>
    %c0_24 = arith.constant 0 : index
    %c0_25 = arith.constant 0 : index
    %79 = vector.load %arg6[%c0_24, %c0_25] : memref<1024x256xbf16, #tpu.memory_space<vmem>>, vector<1024x256xbf16>
    %c0_26 = arith.constant 0 : index
    %c0_27 = arith.constant 0 : index
    %80 = vector.load %arg7[%c0_26, %c0_27] : memref<1x256xf32, #tpu.memory_space<vmem>>, vector<1x256xf32>
    %81 = tpu.concatenate %42, %54, %66, %78 in 1 : vector<16x256xbf16>, vector<16x256xbf16>, vector<16x256xbf16>, vector<16x256xbf16> -> vector<16x1024xbf16>
    %cst_28 = arith.constant dense<0.000000e+00> : vector<16x256xf32>
    %82 = tpu.matmul %81, %79, %cst_28 {dimension_numbers = #tpu.dot_dimension_numbers<[1], [0], [0], [1], [0, 0, 1, 1], [], []>} : vector<16x1024xbf16>, vector<1024x256xbf16>, vector<16x256xf32> -> vector<16x256xf32>
    %83 = vector.broadcast %80 : vector<1x256xf32> to vector<16x256xf32>
    %84 = arith.addf %82, %83 : vector<16x256xf32>
    %cst_29 = arith.constant 0.000000e+00 : f32
    %85 = vector.broadcast %cst_29 : f32 to vector<16x256xf32>
    %86 = arith.cmpf oge, %84, %85 : vector<16x256xf32>
    %cst_30 = arith.constant 2.000000e-01 : f32
    %87 = vector.broadcast %cst_30 : f32 to vector<16x256xf32>
    %88 = arith.mulf %87, %84 : vector<16x256xf32>
    %89 = arith.select %86, %84, %88 : vector<16x256xi1>, vector<16x256xf32>
    %90 = arith.truncf %89 : vector<16x256xf32> to vector<16x256xbf16>
    %c0_31 = arith.constant 0 : index
    %c0_32 = arith.constant 0 : index
    %91 = vector.load %arg8[%c0_31, %c0_32] : memref<256x256xbf16, #tpu.memory_space<vmem>>, vector<256x256xbf16>
    %c0_33 = arith.constant 0 : index
    %c0_34 = arith.constant 0 : index
    %92 = vector.load %arg9[%c0_33, %c0_34] : memref<1x256xf32, #tpu.memory_space<vmem>>, vector<1x256xf32>
    %cst_35 = arith.constant dense<0.000000e+00> : vector<16x256xf32>
    %93 = tpu.matmul %90, %91, %cst_35 {dimension_numbers = #tpu.dot_dimension_numbers<[1], [0], [0], [1], [0, 0, 1, 1], [], []>} : vector<16x256xbf16>, vector<256x256xbf16>, vector<16x256xf32> -> vector<16x256xf32>
    %94 = vector.broadcast %92 : vector<1x256xf32> to vector<16x256xf32>
    %95 = arith.addf %93, %94 : vector<16x256xf32>
    %cst_36 = arith.constant 0.000000e+00 : f32
    %96 = vector.broadcast %cst_36 : f32 to vector<16x256xf32>
    %97 = arith.cmpf oge, %95, %96 : vector<16x256xf32>
    %cst_37 = arith.constant 2.000000e-01 : f32
    %98 = vector.broadcast %cst_37 : f32 to vector<16x256xf32>
    %99 = arith.mulf %98, %95 : vector<16x256xf32>
    %100 = arith.select %97, %95, %99 : vector<16x256xi1>, vector<16x256xf32>
    %101 = arith.truncf %100 : vector<16x256xf32> to vector<16x256xbf16>
    %c0_38 = arith.constant 0 : index
    %c0_39 = arith.constant 0 : index
    %102 = vector.load %arg10[%c0_38, %c0_39] : memref<256x256xbf16, #tpu.memory_space<vmem>>, vector<256x256xbf16>
    %c0_40 = arith.constant 0 : index
    %c0_41 = arith.constant 0 : index
    %103 = vector.load %arg11[%c0_40, %c0_41] : memref<1x256xf32, #tpu.memory_space<vmem>>, vector<1x256xf32>
    %cst_42 = arith.constant dense<0.000000e+00> : vector<16x256xf32>
    %104 = tpu.matmul %101, %102, %cst_42 {dimension_numbers = #tpu.dot_dimension_numbers<[1], [0], [0], [1], [0, 0, 1, 1], [], []>} : vector<16x256xbf16>, vector<256x256xbf16>, vector<16x256xf32> -> vector<16x256xf32>
    %105 = vector.broadcast %103 : vector<1x256xf32> to vector<16x256xf32>
    %106 = arith.addf %104, %105 : vector<16x256xf32>
    %cst_43 = arith.constant 0.000000e+00 : f32
    %107 = vector.broadcast %cst_43 : f32 to vector<16x256xf32>
    %108 = arith.cmpf oge, %106, %107 : vector<16x256xf32>
    %cst_44 = arith.constant 2.000000e-01 : f32
    %109 = vector.broadcast %cst_44 : f32 to vector<16x256xf32>
    %110 = arith.mulf %109, %106 : vector<16x256xf32>
    %111 = arith.select %108, %106, %110 : vector<16x256xi1>, vector<16x256xf32>
    %c0_45 = arith.constant 0 : index
    %c0_46 = arith.constant 0 : index
    %112 = vector.load %arg12[%c0_45, %c0_46] : memref<16x256xf32, #tpu.memory_space<vmem>>, vector<16x256xf32>
    tpu.vector_store %arg12[%c0_45, %c0_46], %111 {strides = array<i32>} : memref<16x256xf32, #tpu.memory_space<vmem>>, vector<16x256xf32>,
    return
  }
  func.func @transform_0(%arg0: i32) -> (i32, i32) {
    %c0_i32 = arith.constant 0 : i32
    %c0_i32_0 = arith.constant 0 : i32
    %c0_i32_1 = arith.constant 0 : i32
    return %c0_i32, %c0_i32_0 : i32, i32
  }
  func.func @transform_1(%arg0: i32) -> (i32, i32) {
    %c0_i32 = arith.constant 0 : i32
    %c0_i32_0 = arith.constant 0 : i32
    %c0_i32_1 = arith.constant 0 : i32
    return %c0_i32, %c0_i32_0 : i32, i32
  }
  func.func @transform_2(%arg0: i32) -> (i32, i32) {
    %c0_i32 = arith.constant 0 : i32
    %c0_i32_0 = arith.constant 0 : i32
    %c0_i32_1 = arith.constant 0 : i32
    return %c0_i32, %c0_i32_0 : i32, i32
  }
  func.func @transform_3(%arg0: i32) -> (i32, i32) {
    %c0_i32 = arith.constant 0 : i32
    %c0_i32_0 = arith.constant 0 : i32
    %c0_i32_1 = arith.constant 0 : i32
    return %c0_i32, %c0_i32_0 : i32, i32
  }
  func.func @transform_4(%arg0: i32) -> (i32, i32) {
    %c0_i32 = arith.constant 0 : i32
    %c0_i32_0 = arith.constant 0 : i32
    %c0_i32_1 = arith.constant 0 : i32
    return %c0_i32, %c0_i32_0 : i32, i32
  }
  func.func @transform_5(%arg0: i32) -> (i32, i32) {
    %c0_i32 = arith.constant 0 : i32
    %c0_i32_0 = arith.constant 0 : i32
    %c0_i32_1 = arith.constant 0 : i32
    return %c0_i32, %c0_i32_0 : i32, i32
  }
  func.func @transform_6(%arg0: i32) -> (i32, i32) {
    %c0_i32 = arith.constant 0 : i32
    %c0_i32_0 = arith.constant 0 : i32
    %c0_i32_1 = arith.constant 0 : i32
    return %c0_i32, %c0_i32_0 : i32, i32
  }
  func.func @transform_7(%arg0: i32) -> (i32, i32) {
    %c0_i32 = arith.constant 0 : i32
    %c0_i32_0 = arith.constant 0 : i32
    %c0_i32_1 = arith.constant 0 : i32
    return %c0_i32, %c0_i32_0 : i32, i32
  }
  func.func @transform_8(%arg0: i32) -> (i32, i32) {
    %c0_i32 = arith.constant 0 : i32
    %c0_i32_0 = arith.constant 0 : i32
    %c0_i32_1 = arith.constant 0 : i32
    return %c0_i32, %c0_i32_0 : i32, i32
  }
  func.func @transform_9(%arg0: i32) -> (i32, i32) {
    %c0_i32 = arith.constant 0 : i32
    %c0_i32_0 = arith.constant 0 : i32
    %c0_i32_1 = arith.constant 0 : i32
    return %c0_i32, %c0_i32_0 : i32, i32
  }
  func.func @transform_10(%arg0: i32) -> (i32, i32) {
    %c0_i32 = arith.constant 0 : i32
    %c0_i32_0 = arith.constant 0 : i32
    %c0_i32_1 = arith.constant 0 : i32
    return %c0_i32, %c0_i32_0 : i32, i32
  }
  func.func @transform_11(%arg0: i32) -> (i32, i32) {
    %c0_i32 = arith.constant 0 : i32
    %c0_i32_0 = arith.constant 0 : i32
    %c0_i32_1 = arith.constant 0 : i32
    return %c0_i32, %c0_i32_0 : i32, i32
  }
}

</mosaic_0001>

<llo_original>
// kernel: tpu_custom_call.1
$region0: #{tpu_custom_call.1}
  #allocation0 [shape = 'u32[]', space=smem, size = 0x4, offset = 0x4, fixed_abs, tag = 'smem constant byte address 0x4 - core index']
  #allocation1 [shape = 'u32[72,128]{1,0:T(1,128)}', space=vmem, size = 0x9000, scoped, tag = 'internal scratch']
  %s0 = inlined_call_operand.hbm [shape: f32[32,128], index: 0, kind: input, shape index: {}]
  %s1 = inlined_call_operand.hbm [shape: f32[16,128], index: 1, kind: input, shape index: {}]
  %s2 = inlined_call_operand.hbm [shape: f32[32,128], index: 2, kind: output, shape index: {}]
  %s3 = sld [smem:[#allocation0]]
  $region49: #{tpu_custom_call.1} parent=0
    _
  %s5 = ssub.s32 1, %s3
  %s6 = scalar_select 0, %s5, %s3
  $region1: #{tpu_custom_call.1} parent=0
    #allocation2 [shape = 'u8[16384]{0}', space=vmem, size = 0x4000, scoped, tag = 'input window, operand 0']
    #allocation3 [shape = 's32[2]{0}', space=sflag, size = 0x8, scoped, tag = 'scoped memory for tpu_custom_call.1']
    #allocation4 [shape = 's32[2]{0}', space=sflag, size = 0x8, scoped, tag = 'scoped memory for tpu_custom_call.1']
    #allocation5 [shape = 'u8[8192]{0}', space=vmem, size = 0x2000, scoped, tag = 'input window, operand 1, single buffered']
    #allocation6 [shape = 's32[1]{0}', space=sflag, size = 0x4, scoped, tag = 'scoped memory for tpu_custom_call.1']
    #allocation7 [shape = 'u8[16384]{0}', space=vmem, size = 0x4000, scoped, tag = 'output window, operand 0']
    %7 = vsyncpa [#allocation3], 0
    %s8 = scalar_lea.sflag [#allocation3], 1
    %9 = vsyncpa %s8, 0
    %10 = vsyncpa [#allocation6], 0
    %11 = vsyncpa [#allocation4], 0
    %s12 = scalar_lea.sflag [#allocation4], 1
    %13 = vsyncpa %s12, 0
    loop: start=0, step=1, limit=4
    $region2: #{tpu_custom_call.1} parent=1 // loop_pre_header
      _
    $region3: #{tpu_custom_call.1} parent=1 // loop_header
      %s15 = sphi 0, %s19
      %p16 = scmp.ge.s32.totalorder %s15, 4
      %s25 = sphi 0, %s27
      %s28 = sphi 0, %s25
      %s29 = sphi 0, %s28
      %s45 = sphi 0, %s29
      %s49 = sphi 0, %s49
      %s51 = sphi 0, %s49
      %s52 = sphi 0, %s51
      %s66 = sphi 0, %s52
      %s72 = sphi 0, %s74
      %s75 = sphi 0, %s72
      %s76 = sphi 0, %s75
      %s92 = sphi 0, %s76
    $region4: #{tpu_custom_call.1} parent=1 // loop_header_branch
      %18 = sbr.rel (%p16) target = $region8
    $region5: #{tpu_custom_call.1} parent=1 // loop_body
      %s20 = ssub.s32 %s15, 1
      %s21 = ssub.s32 %s15, 2
      %s22 = sadd.s32 %s15, 1
      %s23 = ssub.s32 %s15, %s22
      %p24 = scmp.eq.s32.totalorder %s23, 0
      %s26 = sadd.s32 %s25, 1
      %s27 = scalar_select %p24, %s25, %s26
      %p30 = pneg %p24
      %p31 = scmp.eq.s32.totalorder %s15, 1
      %p32 = por %p30, %p31
      %p33 = scmp.ne.s32.totalorder %s25, %s28
      %p34 = scmp.eq.s32.totalorder %s15, 0
      %p35 = por %p33, %p34
      %p36 = scmp.ne.s32.totalorder %s25, %s28
      %p37 = scmp.eq.s32.totalorder %s20, 1
      %p38 = por %p36, %p37
      %p39 = scmp.ne.s32.totalorder %s28, %s29
      %p40 = scmp.eq.s32.totalorder %s20, 0
      %p41 = por %p39, %p40
      %p42 = scmp.ne.s32.totalorder %s28, %s29
      %p43 = scmp.eq.s32.totalorder %s21, 1
      %p44 = por %p42, %p43
      %p46 = scmp.ne.s32.totalorder %s29, %s45
      %p47 = scmp.eq.s32.totalorder %s21, 0
      %p48 = por %p46, %p47
      %s50 = sadd.s32 %s49, 1
      %p53 = scmp.eq.s32.totalorder %s15, 1
      %p54 = scmp.ne.s32.totalorder %s49, %s51
      %p55 = scmp.eq.s32.totalorder %s15, 0
      %p56 = por %p54, %p55
      %p57 = scmp.ne.s32.totalorder %s49, %s51
      %p58 = scmp.eq.s32.totalorder %s20, 1
      %p59 = por %p57, %p58
      %p60 = scmp.ne.s32.totalorder %s51, %s52
      %p61 = scmp.eq.s32.totalorder %s20, 0
      %p62 = por %p60, %p61
      %p63 = scmp.ne.s32.totalorder %s51, %s52
      %p64 = scmp.eq.s32.totalorder %s21, 1
      %p65 = por %p63, %p64
      %p67 = scmp.ne.s32.totalorder %s52, %s66
      %p68 = scmp.eq.s32.totalorder %s21, 0
      %p69 = por %p67, %p68
      %s70 = ssub.s32 %s15, %s22
      %p71 = scmp.eq.s32.totalorder %s70, 0
      %s73 = sadd.s32 %s72, 1
      %s74 = scalar_select %p71, %s72, %s73
      %p77 = pneg %p71
      %p78 = scmp.eq.s32.totalorder %s15, 1
      %p79 = por %p77, %p78
      %p80 = scmp.ne.s32.totalorder %s72, %s75
      %p81 = scmp.eq.s32.totalorder %s15, 0
      %p82 = por %p80, %p81
      %p83 = scmp.ne.s32.totalorder %s72, %s75
      %p84 = scmp.eq.s32.totalorder %s20, 1
      %p85 = por %p83, %p84
      %p86 = scmp.ne.s32.totalorder %s75, %s76
      %p87 = scmp.eq.s32.totalorder %s20, 0
      %p88 = por %p86, %p87
      %p89 = scmp.ne.s32.totalorder %s75, %s76
      %p90 = scmp.eq.s32.totalorder %s21, 1
      %p91 = por %p89, %p90
      %p93 = scmp.ne.s32.totalorder %s76, %s92
      %p94 = scmp.eq.s32.totalorder %s21, 0
      %p95 = por %p93, %p94
      %p96 = scmp.le.s32.totalorder 1, %s15
      %p97 = scmp.lt.s32.totalorder %s15, 3
      %p98 = pnand %p96, %p97
      %p99 = pneg %p98
      // Predicated region
      $region9: #{tpu_custom_call.1} parent=5 // pred_check
        _
      $region10: #{tpu_custom_call.1} parent=5 // pred_check_branch
        %101 = sbr.rel (%p98) target = $region12
      $region11: #{tpu_custom_call.1} parent=5 // pred_region
        %s102 = ssub.s32 %s15, 1
        // Predicated region
        $region13: #{tpu_custom_call.1} parent=11 // pred_check
          %p103 = pneg %p62
        $region14: #{tpu_custom_call.1} parent=11 // pred_check_branch
          %105 = sbr.rel (%p103) target = $region16
        $region15: #{tpu_custom_call.1} parent=11 // pred_region
          %107 = vsyncadd [#allocation6], 0
          %s108 = sshll.u32 %s1, 4
          %s109 = int_to_ptr.hbm [resolvable:$true] %s108
          %s110 = sshll.u32 [#allocation5], 4
          %s111 = int_to_ptr.vmem [resolvable:$true] %s110
          %116 = dma.hbm_to_vmem [thread:$0]  %s109, 256, %s111, [#allocation6], 128, 128, 8
        $region16: #{tpu_custom_call.1} parent=11 // pred_fallthru
          _
      $region12: #{tpu_custom_call.1} parent=5 // pred_fallthru
        _
      %p117 = scmp.lt.s32.totalorder %s15, 2
      // Predicated region
      $region17: #{tpu_custom_call.1} parent=5 // pred_check
        %p118 = pneg %p117
      $region18: #{tpu_custom_call.1} parent=5 // pred_check_branch
        %120 = sbr.rel (%p118) target = $region20
      $region19: #{tpu_custom_call.1} parent=5 // pred_region
        // Predicated region
        $region21: #{tpu_custom_call.1} parent=19 // pred_check
          %p121 = pneg %p35
        $region22: #{tpu_custom_call.1} parent=19 // pred_check_branch
          %123 = sbr.rel (%p121) target = $region24
        $region23: #{tpu_custom_call.1} parent=19 // pred_region
          %s124 = sand.u32 %s25, 1
          %s125 = scalar_lea.sflag [#allocation3], %s124
          %s126 = sand.u32 %s25, 1
          %s127 = smul.addr %s126, 16
          %s128 = scalar_lea.vmem [#allocation2], %s127
          %s129 = smul.u32 2, %s15
          %131 = vsyncadd %s125, 0
          %s132 = smul.addr %s129, 8
          %s133 = scalar_lea.hbm %s0, %s132
          %s134 = sshll.u32 %s133, 4
          %s135 = int_to_ptr.hbm [resolvable:$true] %s134
          %s136 = sshll.u32 %s128, 4
          %s137 = int_to_ptr.vmem [resolvable:$true] %s136
          %142 = dma.hbm_to_vmem [thread:$0]  %s135, 256, %s137, %s125, 128, 128, 8
        $region24: #{tpu_custom_call.1} parent=19 // pred_fallthru
          _
      $region20: #{tpu_custom_call.1} parent=5 // pred_fallthru
        _
      %p143 = scmp.le.s32.totalorder 1, %s15
      %p144 = scmp.lt.s32.totalorder %s15, 3
      %p145 = pnand %p143, %p144
      %p146 = pneg %p145
      // Predicated region
      $region25: #{tpu_custom_call.1} parent=5 // pred_check
        _
      $region26: #{tpu_custom_call.1} parent=5 // pred_check_branch
        %148 = sbr.rel (%p145) target = $region28
      $region27: #{tpu_custom_call.1} parent=5 // pred_region
        %s149 = ssub.s32 %s15, 1
        %s150 = sand.u32 %s28, 1
        %s151 = scalar_lea.sflag [#allocation3], %s150
        %s152 = sand.u32 %s28, 1
        %s153 = smul.addr %s152, 16
        %s154 = scalar_lea.vmem [#allocation2], %s153
        // Predicated region
        $region29: #{tpu_custom_call.1} parent=27 // pred_check
          %p155 = pneg %p41
        $region30: #{tpu_custom_call.1} parent=27 // pred_check_branch
          %157 = sbr.rel (%p155) target = $region32
        $region31: #{tpu_custom_call.1} parent=27 // pred_region
          %159 = dma.done %s151, 256
        $region32: #{tpu_custom_call.1} parent=27 // pred_fallthru
          _
        // Predicated region
        $region33: #{tpu_custom_call.1} parent=27 // pred_check
          %p160 = pneg %p62
        $region34: #{tpu_custom_call.1} parent=27 // pred_check_branch
          %162 = sbr.rel (%p160) target = $region36
        $region35: #{tpu_custom_call.1} parent=27 // pred_region
          %164 = dma.done [#allocation6], 256
        $region36: #{tpu_custom_call.1} parent=27 // pred_fallthru
          _
        %s165 = sand.u32 %s28, 1
        %s166 = scalar_lea.sflag [#allocation3], %s165
        %s167 = sand.u32 %s28, 1
        %s168 = smul.addr %s167, 16
        %s169 = scalar_lea.vmem [#allocation2], %s168
        %p170 = pneg %p41
        %p171 = pneg %p38
        %p172 = pneg %p62
        %p173 = pneg %p59
        %p174 = pneg %p88
        %p175 = pneg %p85
        %s176 = sand.u32 %s75, 1
        %s177 = scalar_lea.sflag [#allocation4], %s176
        %s178 = sand.u32 %s75, 1
        %s179 = smul.addr %s178, 16
        %s180 = scalar_lea.vmem [#allocation7], %s179
        %s181 = smul.u32 2, %s20
        %s182 = smul.u32 2, %s20
        %v183 = vld [vmem:[%s154] sm:$0xff]
        %v184 = vld [vmem:[%s154 + $0x8] sm:$0xff]
        %v185 = vld [vmem:[#allocation5] sm:$0xff]
        %v186 = vld [vmem:[#allocation5 + $0x8] sm:$0xff]
        %v187 = vadd.f32 %v183, %v185
        %v188 = vadd.f32 %v184, %v186
        %189 = vst [vmem:[%s180] sm:$0xff] %v187
        %190 = vst [vmem:[%s180 + $0x8] sm:$0xff] %v188
        %s191 = sand.u32 %s75, 1
        %s192 = scalar_lea.sflag [#allocation4], %s191
        %s193 = sand.u32 %s75, 1
        %s194 = smul.addr %s193, 16
        %s195 = scalar_lea.vmem [#allocation7], %s194
        // Predicated region
        $region37: #{tpu_custom_call.1} parent=27 // pred_check
          %p196 = pneg %p85
        $region38: #{tpu_custom_call.1} parent=27 // pred_check_branch
          %198 = sbr.rel (%p196) target = $region40
        $region39: #{tpu_custom_call.1} parent=27 // pred_region
          %s199 = smul.u32 2, %s20
          %201 = vsyncadd %s192, 0
          %s202 = smul.addr %s199, 8
          %s203 = scalar_lea.hbm %s2, %s202
          %s204 = sshll.u32 %s195, 4
          %s205 = int_to_ptr.vmem [resolvable:$true] %s204
          %s206 = sshll.u32 %s203, 4
          %s207 = int_to_ptr.hbm [resolvable:$true] %s206
          %212 = dma.vmem_to_hbm [thread:$0]  %s205, 256, %s207, %s192, 128, 128, 8
        $region40: #{tpu_custom_call.1} parent=27 // pred_fallthru
          _
      $region28: #{tpu_custom_call.1} parent=5 // pred_fallthru
        _
      %p213 = scmp.le.s32.totalorder 2, %s15
      // Predicated region
      $region41: #{tpu_custom_call.1} parent=5 // pred_check
        %p214 = pneg %p213
      $region42: #{tpu_custom_call.1} parent=5 // pred_check_branch
        %216 = sbr.rel (%p214) target = $region44
      $region43: #{tpu_custom_call.1} parent=5 // pred_region
        %s217 = ssub.s32 %s15, 2
        // Predicated region
        $region45: #{tpu_custom_call.1} parent=43 // pred_check
          %p218 = pneg %p91
        $region46: #{tpu_custom_call.1} parent=43 // pred_check_branch
          %220 = sbr.rel (%p218) target = $region48
        $region47: #{tpu_custom_call.1} parent=43 // pred_region
          %s221 = sand.u32 %s76, 1
          %s222 = scalar_lea.sflag [#allocation4], %s221
          %s223 = sand.u32 %s76, 1
          %s224 = smul.addr %s223, 16
          %s225 = scalar_lea.vmem [#allocation7], %s224
          %227 = dma.done %s222, 256
        $region48: #{tpu_custom_call.1} parent=43 // pred_fallthru
          _
      $region44: #{tpu_custom_call.1} parent=5 // pred_fallthru
        _
    $region6: #{tpu_custom_call.1} parent=1 // loop_footer
      %s19 = sadd.s32 1, %s15
    $region7: #{tpu_custom_call.1} parent=1 // loop_footer_branch
      %14 = sbr.rel target = $region3
    $region8: #{tpu_custom_call.1} parent=1 // loop_exit
      _
    %228 = vsyncpa [#allocation3], 1
    %s229 = scalar_lea.sflag [#allocation3], 1
    %230 = vsyncpa %s229, 1
    %231 = vsyncpa [#allocation6], 1
    %232 = vsyncpa [#allocation4], 1
    %s233 = scalar_lea.sflag [#allocation4], 1
    %234 = vsyncpa %s233, 1

// kernel: sn_patchgan_discriminator.2
$region0: #{sn_patchgan_discriminator.2}
  #allocation0 [shape = 'u32[]', space=smem, size = 0x4, offset = 0x4, fixed_abs, tag = 'smem constant byte address 0x4 - core index']
  #allocation1 [shape = 'u32[72,128]{1,0:T(1,128)}', space=vmem, size = 0x9000, scoped, tag = 'internal scratch']
  %s0 = inlined_call_operand.vmem [shape: bf16[128,128], index: 0, kind: input, shape index: {}]
  %s1 = inlined_call_operand.hbm [shape: bf16[128,128], index: 1, kind: input, shape index: {}]
  %s2 = inlined_call_operand.hbm [shape: f32[1,128], index: 2, kind: input, shape index: {}]
  %s3 = inlined_call_operand.vmem [shape: bf16[128,128], index: 3, kind: output, shape index: {}]
  %s4 = sld [smem:[#allocation0]]
  $region53: #{sn_patchgan_discriminator.2} parent=0
    _
  %s6 = ssub.s32 1, %s4
  %s7 = scalar_select 0, %s6, %s4
  $region1: #{sn_patchgan_discriminator.2} parent=0
    #allocation2 [shape = 'u8[32768]{0}', space=vmem, size = 0x8000, scoped, tag = 'input window, operand 1, single buffered']
    #allocation3 [shape = 's32[2]{0}', space=sflag, size = 0x8, scoped, tag = 'scoped memory for sn_patchgan_discriminator.2']
    #allocation4 [shape = 'u8[512]{0}', space=vmem, size = 0x400, scoped, tag = 'input window, operand 2, single buffered']
    #allocation5 [shape = 's32[1]{0}', space=sflag, size = 0x4, scoped, tag = 'scoped memory for sn_patchgan_discriminator.2']
    %8 = vsyncpa [#allocation3], 0
    %9 = vsyncpa [#allocation5], 0
    loop: start=0, step=1, limit=4
    $region2: #{sn_patchgan_discriminator.2} parent=1 // loop_pre_header
      _
    $region3: #{sn_patchgan_discriminator.2} parent=1 // loop_header
      %s11 = sphi 0, %s15
      %p12 = scmp.ge.s32.totalorder %s11, 4
      %s21 = sphi 0, %s23
      %s24 = sphi 0, %s21
      %s25 = sphi 0, %s24
      %s41 = sphi 0, %s25
      %s45 = sphi 0, %s45
      %s47 = sphi 0, %s45
      %s48 = sphi 0, %s47
      %s62 = sphi 0, %s48
      %s66 = sphi 0, %s66
      %s68 = sphi 0, %s66
      %s69 = sphi 0, %s68
      %s83 = sphi 0, %s69
      %s89 = sphi 0, %s91
      %s92 = sphi 0, %s89
      %s93 = sphi 0, %s92
      %s109 = sphi 0, %s93
    $region4: #{sn_patchgan_discriminator.2} parent=1 // loop_header_branch
      %14 = sbr.rel (%p12) target = $region8
    $region5: #{sn_patchgan_discriminator.2} parent=1 // loop_body
      %s16 = ssub.s32 %s11, 1
      %s17 = ssub.s32 %s11, 2
      %s18 = sadd.s32 %s11, 1
      %s19 = ssub.s32 %s11, %s18
      %p20 = scmp.eq.s32.totalorder %s19, 0
      %s22 = sadd.s32 %s21, 1
      %s23 = scalar_select %p20, %s21, %s22
      %p26 = pneg %p20
      %p27 = scmp.eq.s32.totalorder %s11, 1
      %p28 = por %p26, %p27
      %p29 = scmp.ne.s32.totalorder %s21, %s24
      %p30 = scmp.eq.s32.totalorder %s11, 0
      %p31 = por %p29, %p30
      %p32 = scmp.ne.s32.totalorder %s21, %s24
      %p33 = scmp.eq.s32.totalorder %s16, 1
      %p34 = por %p32, %p33
      %p35 = scmp.ne.s32.totalorder %s24, %s25
      %p36 = scmp.eq.s32.totalorder %s16, 0
      %p37 = por %p35, %p36
      %p38 = scmp.ne.s32.totalorder %s24, %s25
      %p39 = scmp.eq.s32.totalorder %s17, 1
      %p40 = por %p38, %p39
      %p42 = scmp.ne.s32.totalorder %s25, %s41
      %p43 = scmp.eq.s32.totalorder %s17, 0
      %p44 = por %p42, %p43
      %s46 = sadd.s32 %s45, 1
      %p49 = scmp.eq.s32.totalorder %s11, 1
      %p50 = scmp.ne.s32.totalorder %s45, %s47
      %p51 = scmp.eq.s32.totalorder %s11, 0
      %p52 = por %p50, %p51
      %p53 = scmp.ne.s32.totalorder %s45, %s47
      %p54 = scmp.eq.s32.totalorder %s16, 1
      %p55 = por %p53, %p54
      %p56 = scmp.ne.s32.totalorder %s47, %s48
      %p57 = scmp.eq.s32.totalorder %s16, 0
      %p58 = por %p56, %p57
      %p59 = scmp.ne.s32.totalorder %s47, %s48
      %p60 = scmp.eq.s32.totalorder %s17, 1
      %p61 = por %p59, %p60
      %p63 = scmp.ne.s32.totalorder %s48, %s62
      %p64 = scmp.eq.s32.totalorder %s17, 0
      %p65 = por %p63, %p64
      %s67 = sadd.s32 %s66, 1
      %p70 = scmp.eq.s32.totalorder %s11, 1
      %p71 = scmp.ne.s32.totalorder %s66, %s68
      %p72 = scmp.eq.s32.totalorder %s11, 0
      %p73 = por %p71, %p72
      %p74 = scmp.ne.s32.totalorder %s66, %s68
      %p75 = scmp.eq.s32.totalorder %s16, 1
      %p76 = por %p74, %p75
      %p77 = scmp.ne.s32.totalorder %s68, %s69
      %p78 = scmp.eq.s32.totalorder %s16, 0
      %p79 = por %p77, %p78
      %p80 = scmp.ne.s32.totalorder %s68, %s69
      %p81 = scmp.eq.s32.totalorder %s17, 1
      %p82 = por %p80, %p81
      %p84 = scmp.ne.s32.totalorder %s69, %s83
      %p85 = scmp.eq.s32.totalorder %s17, 0
      %p86 = por %p84, %p85
      %s87 = ssub.s32 %s11, %s18
      %p88 = scmp.eq.s32.totalorder %s87, 0
      %s90 = sadd.s32 %s89, 1
      %s91 = scalar_select %p88, %s89, %s90
      %p94 = pneg %p88
      %p95 = scmp.eq.s32.totalorder %s11, 1
      %p96 = por %p94, %p95
      %p97 = scmp.ne.s32.totalorder %s89, %s92
      %p98 = scmp.eq.s32.totalorder %s11, 0
      %p99 = por %p97, %p98
      %p100 = scmp.ne.s32.totalorder %s89, %s92
      %p101 = scmp.eq.s32.totalorder %s16, 1
      %p102 = por %p100, %p101
      %p103 = scmp.ne.s32.totalorder %s92, %s93
      %p104 = scmp.eq.s32.totalorder %s16, 0
      %p105 = por %p103, %p104
      %p106 = scmp.ne.s32.totalorder %s92, %s93
      %p107 = scmp.eq.s32.totalorder %s17, 1
      %p108 = por %p106, %p107
      %p110 = scmp.ne.s32.totalorder %s93, %s109
      %p111 = scmp.eq.s32.totalorder %s17, 0
      %p112 = por %p110, %p111
      %p113 = scmp.le.s32.totalorder 1, %s11
      %p114 = scmp.lt.s32.totalorder %s11, 3
      %p115 = pnand %p113, %p114
      %p116 = pneg %p115
      // Predicated region
      $region9: #{sn_patchgan_discriminator.2} parent=5 // pred_check
        _
      $region10: #{sn_patchgan_discriminator.2} parent=5 // pred_check_branch
        %118 = sbr.rel (%p115) target = $region12
      $region11: #{sn_patchgan_discriminator.2} parent=5 // pred_region
        %s119 = ssub.s32 %s11, 1
        // Predicated region
        $region13: #{sn_patchgan_discriminator.2} parent=11 // pred_check
          %p120 = pneg %p58
        $region14: #{sn_patchgan_discriminator.2} parent=11 // pred_check_branch
          %122 = sbr.rel (%p120) target = $region16
        $region15: #{sn_patchgan_discriminator.2} parent=11 // pred_region
          %124 = vsyncadd [#allocation3], 0
          %s125 = sshll.u32 %s1, 4
          %s126 = int_to_ptr.hbm [resolvable:$true] %s125
          %s127 = sshll.u32 [#allocation2], 4
          %s128 = int_to_ptr.vmem [resolvable:$true] %s127
          %133 = dma.hbm_to_vmem [thread:$0]  %s126, 1024, %s128, [#allocation3], 64, 64, 4
        $region16: #{sn_patchgan_discriminator.2} parent=11 // pred_fallthru
          _
        // Predicated region
        $region17: #{sn_patchgan_discriminator.2} parent=11 // pred_check
          %p134 = pneg %p79
        $region18: #{sn_patchgan_discriminator.2} parent=11 // pred_check_branch
          %136 = sbr.rel (%p134) target = $region20
        $region19: #{sn_patchgan_discriminator.2} parent=11 // pred_region
          %138 = vsyncadd [#allocation5], 0
          %s140 = sshll.u32 %s2, 4
          %s141 = int_to_ptr.hbm [resolvable:$true] %s140
          %s142 = sshll.u32 [#allocation4], 4
          %s143 = int_to_ptr.vmem [resolvable:$true] %s142
          %145 = dma.hbm_to_vmem [thread:$0]  %s141, 16, %s143, [#allocation5]
        $region20: #{sn_patchgan_discriminator.2} parent=11 // pred_fallthru
          _
      $region12: #{sn_patchgan_discriminator.2} parent=5 // pred_fallthru
        _
      %p146 = scmp.lt.s32.totalorder %s11, 2
      // Predicated region
      $region21: #{sn_patchgan_discriminator.2} parent=5 // pred_check
        %p147 = pneg %p146
      $region22: #{sn_patchgan_discriminator.2} parent=5 // pred_check_branch
        %149 = sbr.rel (%p147) target = $region24
      $region23: #{sn_patchgan_discriminator.2} parent=5 // pred_region
        // Predicated region
        $region25: #{sn_patchgan_discriminator.2} parent=23 // pred_check
          %p150 = pneg %p31
        $region26: #{sn_patchgan_discriminator.2} parent=23 // pred_check_branch
          %152 = sbr.rel (%p150) target = $region28
        $region27: #{sn_patchgan_discriminator.2} parent=23 // pred_region
          %s153 = smul.u32 8, %s11
          %p154 = scmp.lt.s32.totalorder %s153, 15
          %s155 = scalar_select %p154, %s153, 15
          %s156 = smul.addr %s155, 4
          %s157 = scalar_lea.vmem %s0, %s156
          %s158 = smul.u32 8, %s11
        $region28: #{sn_patchgan_discriminator.2} parent=23 // pred_fallthru
          _
      $region24: #{sn_patchgan_discriminator.2} parent=5 // pred_fallthru
        _
      %p159 = scmp.le.s32.totalorder 1, %s11
      %p160 = scmp.lt.s32.totalorder %s11, 3
      %p161 = pnand %p159, %p160
      %p162 = pneg %p161
      // Predicated region
      $region29: #{sn_patchgan_discriminator.2} parent=5 // pred_check
        _
      $region30: #{sn_patchgan_discriminator.2} parent=5 // pred_check_branch
        %164 = sbr.rel (%p161) target = $region32
      $region31: #{sn_patchgan_discriminator.2} parent=5 // pred_region
        %s165 = ssub.s32 %s11, 1
        // Predicated region
        $region33: #{sn_patchgan_discriminator.2} parent=31 // pred_check
          %p166 = pneg %p58
        $region34: #{sn_patchgan_discriminator.2} parent=31 // pred_check_branch
          %168 = sbr.rel (%p166) target = $region36
        $region35: #{sn_patchgan_discriminator.2} parent=31 // pred_region
          %170 = dma.done [#allocation3], 1024
        $region36: #{sn_patchgan_discriminator.2} parent=31 // pred_fallthru
          _
        // Predicated region
        $region37: #{sn_patchgan_discriminator.2} parent=31 // pred_check
          %p171 = pneg %p79
        $region38: #{sn_patchgan_discriminator.2} parent=31 // pred_check_branch
          %173 = sbr.rel (%p171) target = $region40
        $region39: #{sn_patchgan_discriminator.2} parent=31 // pred_region
          %175 = dma.done [#allocation5], 16
        $region40: #{sn_patchgan_discriminator.2} parent=31 // pred_fallthru
          _
        %s176 = smul.u32 8, %s16
        %p177 = scmp.lt.s32.totalorder %s176, 15
        %s178 = scalar_select %p177, %s176, 15
        %s179 = smul.addr %s178, 4
        %s180 = scalar_lea.vmem %s0, %s179
        %p181 = pneg %p37
        %p182 = pneg %p34
        %p183 = pneg %p58
        %p184 = pneg %p55
        %p185 = pneg %p79
        %p186 = pneg %p76
        %p187 = pneg %p105
        %p188 = pneg %p102
        %s189 = smul.u32 8, %s16
        %p190 = scmp.lt.s32.totalorder %s189, 15
        %s191 = scalar_select %p190, %s189, 15
        %s192 = smul.addr %s191, 4
        %s193 = scalar_lea.vmem %s3, %s192
        %s194 = smul.u32 8, %s16
        %p195 = scmp.lt.s32.totalorder %s194, 15
        %s196 = scalar_select %p195, %s194, 15
        %s197 = smul.addr %s196, 4
        %s198 = scalar_lea.vmem %s0, %s197
        %s199 = smul.u32 8, %s16
        %s200 = smul.u32 8, %s16
        %p201 = scmp.lt.s32.totalorder %s200, 15
        %s202 = scalar_select %p201, %s200, 15
        %s203 = smul.addr %s202, 4
        %s204 = scalar_lea.vmem %s3, %s203
        %s205 = smul.u32 8, %s16
        %v206 = vld [vmem:[%s198] sm:$0xf]
        %v207 = vld [vmem:[%s198 + $0x4] sm:$0xf]
        %v208 = vld [vmem:[%s198 + $0x8] sm:$0xf]
        %v209 = vld [vmem:[%s198 + $0xc] sm:$0xf]
        %v210 = vld [vmem:[%s198 + $0x10] sm:$0xf]
        %v211 = vld [vmem:[%s198 + $0x14] sm:$0xf]
        %v212 = vld [vmem:[%s198 + $0x18] sm:$0xf]
        %v213 = vld [vmem:[%s198 + $0x1c] sm:$0xf]
        %v214 = vld [vmem:[#allocation2] sm:$0xf]
        %v215 = vld [vmem:[#allocation2 + $0x4] sm:$0xf]
        %v216 = vld [vmem:[#allocation2 + $0x8] sm:$0xf]
        %v217 = vld [vmem:[#allocation2 + $0xc] sm:$0xf]
        %v218 = vld [vmem:[#allocation2 + $0x10] sm:$0xf]
        %v219 = vld [vmem:[#allocation2 + $0x14] sm:$0xf]
        %v220 = vld [vmem:[#allocation2 + $0x18] sm:$0xf]
        %v221 = vld [vmem:[#allocation2 + $0x1c] sm:$0xf]
        %v222 = vld [vmem:[#allocation2 + $0x20] sm:$0xf]
        %v223 = vld [vmem:[#allocation2 + $0x24] sm:$0xf]
        %v224 = vld [vmem:[#allocation2 + $0x28] sm:$0xf]
        %v225 = vld [vmem:[#allocation2 + $0x2c] sm:$0xf]
        %v226 = vld [vmem:[#allocation2 + $0x30] sm:$0xf]
        %v227 = vld [vmem:[#allocation2 + $0x34] sm:$0xf]
        %v228 = vld [vmem:[#allocation2 + $0x38] sm:$0xf]
        %v229 = vld [vmem:[#allocation2 + $0x3c] sm:$0xf]
        %v230 = vld [vmem:[#allocation4] sm:$0x1]
        %v232 = vperm.slane %v230, 0
        %v242 = vunpack.c.l.b16 %v206
        %v243 = vunpack.c.l.b16 %v207
        %v244 = vunpack.c.l.b16 %v208
        %v245 = vunpack.c.l.b16 %v209
        %v246 = vunpack.c.l.b16 %v210
        %v247 = vunpack.c.l.b16 %v211
        %v248 = vunpack.c.l.b16 %v212
        %v249 = vunpack.c.l.b16 %v213
        %v250 = vpack.c.b16 %v243, %v242
        %v251 = vpack.c.b16 %v245, %v244
        %v252 = vpack.c.b16 %v247, %v246
        %v253 = vpack.c.b16 %v249, %v248
        %v274 = vunpack.c.l.b16 %v214
        %v275 = vunpack.c.l.b16 %v215
        %v276 = vunpack.c.l.b16 %v216
        %v277 = vunpack.c.l.b16 %v217
        %v278 = vunpack.c.l.b16 %v218
        %v279 = vunpack.c.l.b16 %v219
        %v280 = vunpack.c.l.b16 %v220
        %v281 = vunpack.c.l.b16 %v221
        %v282 = vunpack.c.l.b16 %v222
        %v283 = vunpack.c.l.b16 %v223
        %v284 = vunpack.c.l.b16 %v224
        %v285 = vunpack.c.l.b16 %v225
        %v286 = vunpack.c.l.b16 %v226
        %v287 = vunpack.c.l.b16 %v227
        %v288 = vunpack.c.l.b16 %v228
        %v289 = vunpack.c.l.b16 %v229
        %v290 = vpack.c.b16 %v275, %v274
        %v291 = vpack.c.b16 %v277, %v276
        %v292 = vpack.c.b16 %v279, %v278
        %v293 = vpack.c.b16 %v281, %v280
        %v294 = vpack.c.b16 %v283, %v282
        %v295 = vpack.c.b16 %v285, %v284
        %v296 = vpack.c.b16 %v287, %v286
        %v297 = vpack.c.b16 %v289, %v288
        %306 = vmatpush.bf16.msra.mxu0 %v297
        %307 = vmatpush.bf16.msra.mxu0 %v296
        %308 = vmatpush.bf16.msra.mxu0 %v295
        %309 = vmatpush.bf16.msra.mxu0 %v294
        %310 = vmatpush.bf16.msra.mxu0 %v293
        %311 = vmatpush.bf16.msra.mxu0 %v292
        %312 = vmatpush.bf16.msra.mxu0 %v291
        %313 = vmatpush.bf16.msra.mxu0 %v290
        %314 = vmatmul.bf16.gmra.mxu0 %v250
        %v315 = vpop.f32.mrf.mxu0
        %v316 = vadd.f32 %v232, %v315
        %v317 = vpop.f32.mrf.mxu0
        %v318 = vadd.f32 %v232, %v317
        %319 = vmatmul.bf16.gmra.mxu0 %v251
        %v320 = vpop.f32.mrf.mxu0
        %v321 = vadd.f32 %v232, %v320
        %v322 = vpop.f32.mrf.mxu0
        %v323 = vadd.f32 %v232, %v322
        %324 = vmatmul.bf16.gmra.mxu0 %v252
        %v325 = vpop.f32.mrf.mxu0
        %v326 = vadd.f32 %v232, %v325
        %v327 = vpop.f32.mrf.mxu0
        %v328 = vadd.f32 %v232, %v327
        %329 = vmatmul.bf16.gmra.mxu0 %v253
        %v330 = vpop.f32.mrf.mxu0
        %v331 = vadd.f32 %v232, %v330
        %v332 = vpop.f32.mrf.mxu0
        %v333 = vadd.f32 %v232, %v332
        %334 = vdwg.mxu0
        %vm335 = vcmp.ge.f32.partialorder %v316, 0.0
        %vm336 = vcmp.ge.f32.partialorder %v318, 0.0
        %vm337 = vcmp.ge.f32.partialorder %v321, 0.0
        %vm338 = vcmp.ge.f32.partialorder %v323, 0.0
        %vm339 = vcmp.ge.f32.partialorder %v326, 0.0
        %vm340 = vcmp.ge.f32.partialorder %v328, 0.0
        %vm341 = vcmp.ge.f32.partialorder %v331, 0.0
        %vm342 = vcmp.ge.f32.partialorder %v333, 0.0
        %v343 = vmul.f32 %v316, 0.2
        %v344 = vmul.f32 %v318, 0.2
        %v345 = vmul.f32 %v321, 0.2
        %v346 = vmul.f32 %v323, 0.2
        %v347 = vmul.f32 %v326, 0.2
        %v348 = vmul.f32 %v328, 0.2
        %v349 = vmul.f32 %v331, 0.2
        %v350 = vmul.f32 %v333, 0.2
        %v351 = vsel %vm335, %v316, %v343
        %v352 = vsel %vm336, %v318, %v344
        %v353 = vsel %vm337, %v321, %v345
        %v354 = vsel %vm338, %v323, %v346
        %v355 = vsel %vm339, %v326, %v347
        %v356 = vsel %vm340, %v328, %v348
        %v357 = vsel %vm341, %v331, %v349
        %v358 = vsel %vm342, %v333, %v350
        %v359 = vpack.c.bf16 %v351, %v351
        %v360 = vpack.c.bf16 %v352, %v352
        %v361 = vpack.c.bf16 %v353, %v353
        %v362 = vpack.c.bf16 %v354, %v354
        %v363 = vpack.c.bf16 %v355, %v355
        %v364 = vpack.c.bf16 %v356, %v356
        %v365 = vpack.c.bf16 %v357, %v357
        %v366 = vpack.c.bf16 %v358, %v358
        %367 = vst [vmem:[%s204] sm:$0xf] %v359
        %368 = vst [vmem:[%s204 + $0x4] sm:$0xf] %v360
        %369 = vst [vmem:[%s204 + $0x8] sm:$0xf] %v361
        %370 = vst [vmem:[%s204 + $0xc] sm:$0xf] %v362
        %371 = vst [vmem:[%s204 + $0x10] sm:$0xf] %v363
        %372 = vst [vmem:[%s204 + $0x14] sm:$0xf] %v364
        %373 = vst [vmem:[%s204 + $0x18] sm:$0xf] %v365
        %374 = vst [vmem:[%s204 + $0x1c] sm:$0xf] %v366
        %s375 = smul.u32 8, %s16
        %p376 = scmp.lt.s32.totalorder %s375, 15
        %s377 = scalar_select %p376, %s375, 15
        %s378 = smul.addr %s377, 4
        %s379 = scalar_lea.vmem %s3, %s378
        // Predicated region
        $region41: #{sn_patchgan_discriminator.2} parent=31 // pred_check
          %p380 = pneg %p102
        $region42: #{sn_patchgan_discriminator.2} parent=31 // pred_check_branch
          %382 = sbr.rel (%p380) target = $region44
        $region43: #{sn_patchgan_discriminator.2} parent=31 // pred_region
          %s383 = smul.u32 8, %s16
        $region44: #{sn_patchgan_discriminator.2} parent=31 // pred_fallthru
          _
      $region32: #{sn_patchgan_discriminator.2} parent=5 // pred_fallthru
        _
      %p384 = scmp.le.s32.totalorder 2, %s11
      // Predicated region
      $region45: #{sn_patchgan_discriminator.2} parent=5 // pred_check
        %p385 = pneg %p384
      $region46: #{sn_patchgan_discriminator.2} parent=5 // pred_check_branch
        %387 = sbr.rel (%p385) target = $region48
      $region47: #{sn_patchgan_discriminator.2} parent=5 // pred_region
        %s388 = ssub.s32 %s11, 2
        // Predicated region
        $region49: #{sn_patchgan_discriminator.2} parent=47 // pred_check
          %p389 = pneg %p108
        $region50: #{sn_patchgan_discriminator.2} parent=47 // pred_check_branch
          %391 = sbr.rel (%p389) target = $region52
        $region51: #{sn_patchgan_discriminator.2} parent=47 // pred_region
          %s392 = smul.u32 8, %s17
          %p393 = scmp.lt.s32.totalorder %s392, 15
          %s394 = scalar_select %p393, %s392, 15
          %s395 = smul.addr %s394, 4
          %s396 = scalar_lea.vmem %s3, %s395
        $region52: #{sn_patchgan_discriminator.2} parent=47 // pred_fallthru
          _
      $region48: #{sn_patchgan_discriminator.2} parent=5 // pred_fallthru
        _
    $region6: #{sn_patchgan_discriminator.2} parent=1 // loop_footer
      %s15 = sadd.s32 1, %s11
    $region7: #{sn_patchgan_discriminator.2} parent=1 // loop_footer_branch
      %10 = sbr.rel target = $region3
    $region8: #{sn_patchgan_discriminator.2} parent=1 // loop_exit
      _
    %397 = vsyncpa [#allocation3], 1
    %s398 = scalar_lea.sflag [#allocation3], 1
    %399 = vsyncpa %s398, 1
    %400 = vsyncpa [#allocation5], 1

// kernel: sn_patchgan_discriminator.3
$region0: #{sn_patchgan_discriminator.3}
  #allocation0 [shape = 'u32[]', space=smem, size = 0x4, offset = 0x4, fixed_abs, tag = 'smem constant byte address 0x4 - core index']
  #allocation1 [shape = 'u32[72,128]{1,0:T(1,128)}', space=vmem, size = 0x9000, scoped, tag = 'internal scratch']
  %s0 = inlined_call_operand.vmem [shape: bf16[256,1664], index: 0, kind: input, shape index: {}]
  %s1 = inlined_call_operand.vmem [shape: bf16[1664,128], index: 1, kind: input, shape index: {}]
  %s2 = inlined_call_operand.vmem [shape: f32[1,128], index: 2, kind: input, shape index: {}]
  %s3 = inlined_call_operand.vmem [shape: bf16[3200,256], index: 3, kind: input, shape index: {}]
  %s4 = inlined_call_operand.vmem [shape: f32[1,256], index: 4, kind: input, shape index: {}]
  %s5 = inlined_call_operand.vmem [shape: bf16[1024,256], index: 5, kind: input, shape index: {}]
  %s6 = inlined_call_operand.vmem [shape: f32[1,256], index: 6, kind: input, shape index: {}]
  %s7 = inlined_call_operand.vmem [shape: bf16[256,256], index: 7, kind: input, shape index: {}]
  %s8 = inlined_call_operand.vmem [shape: f32[1,256], index: 8, kind: input, shape index: {}]
  %s9 = inlined_call_operand.vmem [shape: bf16[256,256], index: 9, kind: input, shape index: {}]
  %s10 = inlined_call_operand.vmem [shape: f32[1,256], index: 10, kind: input, shape index: {}]
  %s11 = inlined_call_operand.vmem [shape: f32[16,256], index: 11, kind: output, shape index: {}]
  %s12 = sld [smem:[#allocation0]]
  $region54: #{sn_patchgan_discriminator.3} parent=0
    _
  %s14 = ssub.s32 1, %s12
  %s15 = scalar_select 0, %s14, %s12
  // Predicated region
  $region2: #{sn_patchgan_discriminator.3} parent=0 // pred_check
    _
  $region3: #{sn_patchgan_discriminator.3} parent=0 // pred_check_branch
    %17 = sbr.rel (0) target = $region5
  $region4: #{sn_patchgan_discriminator.3} parent=0 // pred_region
    _
  $region5: #{sn_patchgan_discriminator.3} parent=0 // pred_fallthru
    _
  // Predicated region
  $region6: #{sn_patchgan_discriminator.3} parent=0 // pred_check
    _
  $region7: #{sn_patchgan_discriminator.3} parent=0 // pred_check_branch
    %19 = sbr.rel (0) target = $region9
  $region8: #{sn_patchgan_discriminator.3} parent=0 // pred_region
    _
  $region9: #{sn_patchgan_discriminator.3} parent=0 // pred_fallthru
    _
  // Predicated region
  $region10: #{sn_patchgan_discriminator.3} parent=0 // pred_check
    _
  $region11: #{sn_patchgan_discriminator.3} parent=0 // pred_check_branch
    %21 = sbr.rel (0) target = $region13
  $region12: #{sn_patchgan_discriminator.3} parent=0 // pred_region
    _
  $region13: #{sn_patchgan_discriminator.3} parent=0 // pred_fallthru
    _
  // Predicated region
  $region14: #{sn_patchgan_discriminator.3} parent=0 // pred_check
    _
  $region15: #{sn_patchgan_discriminator.3} parent=0 // pred_check_branch
    %23 = sbr.rel (0) target = $region17
  $region16: #{sn_patchgan_discriminator.3} parent=0 // pred_region
    _
  $region17: #{sn_patchgan_discriminator.3} parent=0 // pred_fallthru
    _
  // Predicated region
  $region18: #{sn_patchgan_discriminator.3} parent=0 // pred_check
    _
  $region19: #{sn_patchgan_discriminator.3} parent=0 // pred_check_branch
    %25 = sbr.rel (0) target = $region21
  $region20: #{sn_patchgan_discriminator.3} parent=0 // pred_region
    _
  $region21: #{sn_patchgan_discriminator.3} parent=0 // pred_fallthru
    _
  // Predicated region
  $region22: #{sn_patchgan_discriminator.3} parent=0 // pred_check
    _
  $region23: #{sn_patchgan_discriminator.3} parent=0 // pred_check_branch
    %27 = sbr.rel (0) target = $region25
  $region24: #{sn_patchgan_discriminator.3} parent=0 // pred_region
    _
  $region25: #{sn_patchgan_discriminator.3} parent=0 // pred_fallthru
    _
  // Predicated region
  $region26: #{sn_patchgan_discriminator.3} parent=0 // pred_check
    _
  $region27: #{sn_patchgan_discriminator.3} parent=0 // pred_check_branch
    %29 = sbr.rel (0) target = $region29
  $region28: #{sn_patchgan_discriminator.3} parent=0 // pred_region
    _
  $region29: #{sn_patchgan_discriminator.3} parent=0 // pred_fallthru
    _
  // Predicated region
  $region30: #{sn_patchgan_discriminator.3} parent=0 // pred_check
    _
  $region31: #{sn_patchgan_discriminator.3} parent=0 // pred_check_branch
    %31 = sbr.rel (0) target = $region33
  $region32: #{sn_patchgan_discriminator.3} parent=0 // pred_region
    _
  $region33: #{sn_patchgan_discriminator.3} parent=0 // pred_fallthru
    _
  // Predicated region
  $region34: #{sn_patchgan_discriminator.3} parent=0 // pred_check
    _
  $region35: #{sn_patchgan_discriminator.3} parent=0 // pred_check_branch
    %33 = sbr.rel (0) target = $region37
  $region36: #{sn_patchgan_discriminator.3} parent=0 // pred_region
    _
  $region37: #{sn_patchgan_discriminator.3} parent=0 // pred_fallthru
    _
  // Predicated region
  $region38: #{sn_patchgan_discriminator.3} parent=0 // pred_check
    _
  $region39: #{sn_patchgan_discriminator.3} parent=0 // pred_check_branch
    %35 = sbr.rel (0) target = $region41
  $region40: #{sn_patchgan_discriminator.3} parent=0 // pred_region
    _
  $region41: #{sn_patchgan_discriminator.3} parent=0 // pred_fallthru
    _
  // Predicated region
  $region42: #{sn_patchgan_discriminator.3} parent=0 // pred_check
    _
  $region43: #{sn_patchgan_discriminator.3} parent=0 // pred_check_branch
    %37 = sbr.rel (0) target = $region45
  $region44: #{sn_patchgan_discriminator.3} parent=0 // pred_region
    _
  $region45: #{sn_patchgan_discriminator.3} parent=0 // pred_fallthru
    _
  %v39 = vld [vmem:[%s0] sm:$0xff]
  %v40 = vld [vmem:[%s0 + $0x8] sm:$0xff]
  %v41 = vld [vmem:[%s0 + $0x10] sm:$0xff]
  %v42 = vld [vmem:[%s0 + $0x18] sm:$0xff]
  %v43 = vld [vmem:[%s0 + $0x20] sm:$0xff]
  %v44 = vld [vmem:[%s0 + $0x28] sm:$0xff]
  %v45 = vld [vmem:[%s0 + $0x30] sm:$0xf]
  %v46 = vld [vmem:[%s0 + $0x34] sm:$0xff]
  %v47 = vld [vmem:[%s0 + $0x3c] sm:$0xff]
  %v48 = vld [vmem:[%s0 + $0x44] sm:$0xff]
  %v49 = vld [vmem:[%s0 + $0x4c] sm:$0xff]
  %v50 = vld [vmem:[%s0 + $0x54] sm:$0xff]
  %v51 = vld [vmem:[%s0 + $0x5c] sm:$0xff]
  %v52 = vld [vmem:[%s0 + $0x64] sm:$0xf]
  %v53 = vld [vmem:[%s0 + $0x68] sm:$0xff]
  %v54 = vld [vmem:[%s0 + $0x70] sm:$0xff]
  %v55 = vld [vmem:[%s0 + $0x78] sm:$0xff]
  %v56 = vld [vmem:[%s0 + $0x80] sm:$0xff]
  %v57 = vld [vmem:[%s0 + $0x88] sm:$0xff]
  %v58 = vld [vmem:[%s0 + $0x90] sm:$0xff]
  %v59 = vld [vmem:[%s0 + $0x98] sm:$0xf]
  %v60 = vld [vmem:[%s0 + $0x9c] sm:$0xff]
  %v61 = vld [vmem:[%s0 + $0xa4] sm:$0xff]
  %v62 = vld [vmem:[%s0 + $0xac] sm:$0xff]
  %v63 = vld [vmem:[%s0 + $0xb4] sm:$0xff]
  %v64 = vld [vmem:[%s0 + $0xbc] sm:$0xff]
  %v65 = vld [vmem:[%s0 + $0xc4] sm:$0xff]
  %v66 = vld [vmem:[%s0 + $0xcc] sm:$0xf]
  %v67 = vld [vmem:[%s0 + $0xd0] sm:$0xff]
  %v68 = vld [vmem:[%s0 + $0xd8] sm:$0xff]
  %v69 = vld [vmem:[%s0 + $0xe0] sm:$0xff]
  %v70 = vld [vmem:[%s0 + $0xe8] sm:$0xff]
  %v71 = vld [vmem:[%s0 + $0xf0] sm:$0xff]
  %v72 = vld [vmem:[%s0 + $0xf8] sm:$0xff]
  %v73 = vld [vmem:[%s0 + $0x100] sm:$0xf]
  %v74 = vld [vmem:[%s0 + $0x104] sm:$0xff]
  %v75 = vld [vmem:[%s0 + $0x10c] sm:$0xff]
  %v76 = vld [vmem:[%s0 + $0x114] sm:$0xff]
  %v77 = vld [vmem:[%s0 + $0x11c] sm:$0xff]
  %v78 = vld [vmem:[%s0 + $0x124] sm:$0xff]
  %v79 = vld [vmem:[%s0 + $0x12c] sm:$0xff]
  %v80 = vld [vmem:[%s0 + $0x134] sm:$0xf]
  %v81 = vld [vmem:[%s0 + $0x138] sm:$0xff]
  %v82 = vld [vmem:[%s0 + $0x140] sm:$0xff]
  %v83 = vld [vmem:[%s0 + $0x148] sm:$0xff]
  %v84 = vld [vmem:[%s0 + $0x150] sm:$0xff]
  %v85 = vld [vmem:[%s0 + $0x158] sm:$0xff]
  %v86 = vld [vmem:[%s0 + $0x160] sm:$0xff]
  %v87 = vld [vmem:[%s0 + $0x168] sm:$0xf]
  %v88 = vld [vmem:[%s0 + $0x16c] sm:$0xff]
  %v89 = vld [vmem:[%s0 + $0x174] sm:$0xff]
  %v90 = vld [vmem:[%s0 + $0x17c] sm:$0xff]
  %v91 = vld [vmem:[%s0 + $0x184] sm:$0xff]
  %v92 = vld [vmem:[%s0 + $0x18c] sm:$0xff]
  %v93 = vld [vmem:[%s0 + $0x194] sm:$0xff]
  %v94 = vld [vmem:[%s0 + $0x19c] sm:$0xf]
  %v95 = vld [vmem:[%s0 + $0x1a0] sm:$0xff]
  %v96 = vld [vmem:[%s0 + $0x1a8] sm:$0xff]
  %v97 = vld [vmem:[%s0 + $0x1b0] sm:$0xff]
  %v98 = vld [vmem:[%s0 + $0x1b8] sm:$0xff]
  %v99 = vld [vmem:[%s0 + $0x1c0] sm:$0xff]
  %v100 = vld [vmem:[%s0 + $0x1c8] sm:$0xff]
  %v101 = vld [vmem:[%s0 + $0x1d0] sm:$0xf]
  %v102 = vld [vmem:[%s0 + $0x1d4] sm:$0xff]
  %v103 = vld [vmem:[%s0 + $0x1dc] sm:$0xff]
  %v104 = vld [vmem:[%s0 + $0x1e4] sm:$0xff]
  %v105 = vld [vmem:[%s0 + $0x1ec] sm:$0xff]
  %v106 = vld [vmem:[%s0 + $0x1f4] sm:$0xff]
  %v107 = vld [vmem:[%s0 + $0x1fc] sm:$0xff]
  %v108 = vld [vmem:[%s0 + $0x204] sm:$0xf]
  %v109 = vld [vmem:[%s0 + $0x208] sm:$0xff]
  %v110 = vld [vmem:[%s0 + $0x210] sm:$0xff]
  %v111 = vld [vmem:[%s0 + $0x218] sm:$0xff]
  %v112 = vld [vmem:[%s0 + $0x220] sm:$0xff]
  %v113 = vld [vmem:[%s0 + $0x228] sm:$0xff]
  %v114 = vld [vmem:[%s0 + $0x230] sm:$0xff]
  %v115 = vld [vmem:[%s0 + $0x238] sm:$0xf]
  %v116 = vld [vmem:[%s0 + $0x23c] sm:$0xff]
  %v117 = vld [vmem:[%s0 + $0x244] sm:$0xff]
  %v118 = vld [vmem:[%s0 + $0x24c] sm:$0xff]
  %v119 = vld [vmem:[%s0 + $0x254] sm:$0xff]
  %v120 = vld [vmem:[%s0 + $0x25c] sm:$0xff]
  %v121 = vld [vmem:[%s0 + $0x264] sm:$0xff]
  %v122 = vld [vmem:[%s0 + $0x26c] sm:$0xf]
  %v123 = vld [vmem:[%s0 + $0x270] sm:$0xff]
  %v124 = vld [vmem:[%s0 + $0x278] sm:$0xff]
  %v125 = vld [vmem:[%s0 + $0x280] sm:$0xff]
  %v126 = vld [vmem:[%s0 + $0x288] sm:$0xff]
  %v127 = vld [vmem:[%s0 + $0x290] sm:$0xff]
  %v128 = vld [vmem:[%s0 + $0x298] sm:$0xff]
  %v129 = vld [vmem:[%s0 + $0x2a0] sm:$0xf]
  %v130 = vld [vmem:[%s0 + $0x2a4] sm:$0xff]
  %v131 = vld [vmem:[%s0 + $0x2ac] sm:$0xff]
  %v132 = vld [vmem:[%s0 + $0x2b4] sm:$0xff]
  %v133 = vld [vmem:[%s0 + $0x2bc] sm:$0xff]
  %v134 = vld [vmem:[%s0 + $0x2c4] sm:$0xff]
  %v135 = vld [vmem:[%s0 + $0x2cc] sm:$0xff]
  %v136 = vld [vmem:[%s0 + $0x2d4] sm:$0xf]
  %v137 = vld [vmem:[%s0 + $0x2d8] sm:$0xff]
  %v138 = vld [vmem:[%s0 + $0x2e0] sm:$0xff]
  %v139 = vld [vmem:[%s0 + $0x2e8] sm:$0xff]
  %v140 = vld [vmem:[%s0 + $0x2f0] sm:$0xff]
  %v141 = vld [vmem:[%s0 + $0x2f8] sm:$0xff]
  %v142 = vld [vmem:[%s0 + $0x300] sm:$0xff]
  %v143 = vld [vmem:[%s0 + $0x308] sm:$0xf]
  %v144 = vld [vmem:[%s0 + $0x30c] sm:$0xff]
  %v145 = vld [vmem:[%s0 + $0x314] sm:$0xff]
  %v146 = vld [vmem:[%s0 + $0x31c] sm:$0xff]
  %v147 = vld [vmem:[%s0 + $0x324] sm:$0xff]
  %v148 = vld [vmem:[%s0 + $0x32c] sm:$0xff]
  %v149 = vld [vmem:[%s0 + $0x334] sm:$0xff]
  %v150 = vld [vmem:[%s0 + $0x33c] sm:$0xf]
  %v151 = vld [vmem:[%s0 + $0x340] sm:$0xff]
  %v152 = vld [vmem:[%s0 + $0x348] sm:$0xff]
  %v153 = vld [vmem:[%s0 + $0x350] sm:$0xff]
  %v154 = vld [vmem:[%s0 + $0x358] sm:$0xff]
  %v155 = vld [vmem:[%s0 + $0x360] sm:$0xff]
  %v156 = vld [vmem:[%s0 + $0x368] sm:$0xff]
  %v157 = vld [vmem:[%s0 + $0x370] sm:$0xf]
  %v158 = vld [vmem:[%s0 + $0x374] sm:$0xff]
  %v159 = vld [vmem:[%s0 + $0x37c] sm:$0xff]
  %v160 = vld [vmem:[%s0 + $0x384] sm:$0xff]
  %v161 = vld [vmem:[%s0 + $0x38c] sm:$0xff]
  %v162 = vld [vmem:[%s0 + $0x394] sm:$0xff]
  %v163 = vld [vmem:[%s0 + $0x39c] sm:$0xff]
  %v164 = vld [vmem:[%s0 + $0x3a4] sm:$0xf]
  %v165 = vld [vmem:[%s0 + $0x3a8] sm:$0xff]
  %v166 = vld [vmem:[%s0 + $0x3b0] sm:$0xff]
  %v167 = vld [vmem:[%s0 + $0x3b8] sm:$0xff]
  %v168 = vld [vmem:[%s0 + $0x3c0] sm:$0xff]
  %v169 = vld [vmem:[%s0 + $0x3c8] sm:$0xff]
  %v170 = vld [vmem:[%s0 + $0x3d0] sm:$0xff]
  %v171 = vld [vmem:[%s0 + $0x3d8] sm:$0xf]
  %v172 = vld [vmem:[%s0 + $0x3dc] sm:$0xff]
  %v173 = vld [vmem:[%s0 + $0x3e4] sm:$0xff]
  %v174 = vld [vmem:[%s0 + $0x3ec] sm:$0xff]
  %v175 = vld [vmem:[%s0 + $0x3f4] sm:$0xff]
  %v176 = vld [vmem:[%s0 + $0x3fc] sm:$0xff]
  %v177 = vld [vmem:[%s0 + $0x404] sm:$0xff]
  %v178 = vld [vmem:[%s0 + $0x40c] sm:$0xf]
  %v179 = vld [vmem:[%s0 + $0x410] sm:$0xff]
  %v180 = vld [vmem:[%s0 + $0x418] sm:$0xff]
  %v181 = vld [vmem:[%s0 + $0x420] sm:$0xff]
  %v182 = vld [vmem:[%s0 + $0x428] sm:$0xff]
  %v183 = vld [vmem:[%s0 + $0x430] sm:$0xff]
  %v184 = vld [vmem:[%s0 + $0x438] sm:$0xff]
  %v185 = vld [vmem:[%s0 + $0x440] sm:$0xf]
  %v186 = vld [vmem:[%s0 + $0x444] sm:$0xff]
  %v187 = vld [vmem:[%s0 + $0x44c] sm:$0xff]
  %v188 = vld [vmem:[%s0 + $0x454] sm:$0xff]
  %v189 = vld [vmem:[%s0 + $0x45c] sm:$0xff]
  %v190 = vld [vmem:[%s0 + $0x464] sm:$0xff]
  %v191 = vld [vmem:[%s0 + $0x46c] sm:$0xff]
  %v192 = vld [vmem:[%s0 + $0x474] sm:$0xf]
  %v193 = vld [vmem:[%s0 + $0x478] sm:$0xff]
  %v194 = vld [vmem:[%s0 + $0x480] sm:$0xff]
  %v195 = vld [vmem:[%s0 + $0x488] sm:$0xff]
  %v196 = vld [vmem:[%s0 + $0x490] sm:$0xff]
  %v197 = vld [vmem:[%s0 + $0x498] sm:$0xff]
  %v198 = vld [vmem:[%s0 + $0x4a0] sm:$0xff]
  %v199 = vld [vmem:[%s0 + $0x4a8] sm:$0xf]
  %v200 = vld [vmem:[%s0 + $0x4ac] sm:$0xff]
  %v201 = vld [vmem:[%s0 + $0x4b4] sm:$0xff]
  %v202 = vld [vmem:[%s0 + $0x4bc] sm:$0xff]
  %v203 = vld [vmem:[%s0 + $0x4c4] sm:$0xff]
  %v204 = vld [vmem:[%s0 + $0x4cc] sm:$0xff]
  %v205 = vld [vmem:[%s0 + $0x4d4] sm:$0xff]
  %v206 = vld [vmem:[%s0 + $0x4dc] sm:$0xf]
  %v207 = vld [vmem:[%s0 + $0x4e0] sm:$0xff]
  %v208 = vld [vmem:[%s0 + $0x4e8] sm:$0xff]
  %v209 = vld [vmem:[%s0 + $0x4f0] sm:$0xff]
  %v210 = vld [vmem:[%s0 + $0x4f8] sm:$0xff]
  %v211 = vld [vmem:[%s0 + $0x500] sm:$0xff]
  %v212 = vld [vmem:[%s0 + $0x508] sm:$0xff]
  %v213 = vld [vmem:[%s0 + $0x510] sm:$0xf]
  %v214 = vld [vmem:[%s0 + $0x514] sm:$0xff]
  %v215 = vld [vmem:[%s0 + $0x51c] sm:$0xff]
  %v216 = vld [vmem:[%s0 + $0x524] sm:$0xff]
  %v217 = vld [vmem:[%s0 + $0x52c] sm:$0xff]
  %v218 = vld [vmem:[%s0 + $0x534] sm:$0xff]
  %v219 = vld [vmem:[%s0 + $0x53c] sm:$0xff]
  %v220 = vld [vmem:[%s0 + $0x544] sm:$0xf]
  %v221 = vld [vmem:[%s0 + $0x548] sm:$0xff]
  %v222 = vld [vmem:[%s0 + $0x550] sm:$0xff]
  %v223 = vld [vmem:[%s0 + $0x558] sm:$0xff]
  %v224 = vld [vmem:[%s0 + $0x560] sm:$0xff]
  %v225 = vld [vmem:[%s0 + $0x568] sm:$0xff]
  %v226 = vld [vmem:[%s0 + $0x570] sm:$0xff]
  %v227 = vld [vmem:[%s0 + $0x578] sm:$0xf]
  %v228 = vld [vmem:[%s0 + $0x57c] sm:$0xff]
  %v229 = vld [vmem:[%s0 + $0x584] sm:$0xff]
  %v230 = vld [vmem:[%s0 + $0x58c] sm:$0xff]
  %v231 = vld [vmem:[%s0 + $0x594] sm:$0xff]
  %v232 = vld [vmem:[%s0 + $0x59c] sm:$0xff]
  %v233 = vld [vmem:[%s0 + $0x5a4] sm:$0xff]
  %v234 = vld [vmem:[%s0 + $0x5ac] sm:$0xf]
  %v235 = vld [vmem:[%s0 + $0x5b0] sm:$0xff]
  %v236 = vld [vmem:[%s0 + $0x5b8] sm:$0xff]
  %v237 = vld [vmem:[%s0 + $0x5c0] sm:$0xff]
  %v238 = vld [vmem:[%s0 + $0x5c8] sm:$0xff]
  %v239 = vld [vmem:[%s0 + $0x5d0] sm:$0xff]
  %v240 = vld [vmem:[%s0 + $0x5d8] sm:$0xff]
  %v241 = vld [vmem:[%s0 + $0x5e0] sm:$0xf]
  %v242 = vld [vmem:[%s0 + $0x5e4] sm:$0xff]
  %v243 = vld [vmem:[%s0 + $0x5ec] sm:$0xff]
  %v244 = vld [vmem:[%s0 + $0x5f4] sm:$0xff]
  %v245 = vld [vmem:[%s0 + $0x5fc] sm:$0xff]
  %v246 = vld [vmem:[%s0 + $0x604] sm:$0xff]
  %v247 = vld [vmem:[%s0 + $0x60c] sm:$0xff]
  %v248 = vld [vmem:[%s0 + $0x614] sm:$0xf]
  %v249 = vld [vmem:[%s0 + $0x618] sm:$0xff]
  %v250 = vld [vmem:[%s0 + $0x620] sm:$0xff]
  %v251 = vld [vmem:[%s0 + $0x628] sm:$0xff]
  %v252 = vld [vmem:[%s0 + $0x630] sm:$0xff]
  %v253 = vld [vmem:[%s0 + $0x638] sm:$0xff]
  %v254 = vld [vmem:[%s0 + $0x640] sm:$0xff]
  %v255 = vld [vmem:[%s0 + $0x648] sm:$0xf]
  %v256 = vld [vmem:[%s0 + $0x64c] sm:$0xff]
  %v257 = vld [vmem:[%s0 + $0x654] sm:$0xff]
  %v258 = vld [vmem:[%s0 + $0x65c] sm:$0xff]
  %v259 = vld [vmem:[%s0 + $0x664] sm:$0xff]
  %v260 = vld [vmem:[%s0 + $0x66c] sm:$0xff]
  %v261 = vld [vmem:[%s0 + $0x674] sm:$0xff]
  %v262 = vld [vmem:[%s0 + $0x67c] sm:$0xf]
  %v263 = vld [vmem:[%s1] sm:$0xf]
  %v264 = vld [vmem:[%s1 + $0x4] sm:$0xf]
  %v265 = vld [vmem:[%s1 + $0x8] sm:$0xf]
  %v266 = vld [vmem:[%s1 + $0xc] sm:$0xf]
  %v267 = vld [vmem:[%s1 + $0x10] sm:$0xf]
  %v268 = vld [vmem:[%s1 + $0x14] sm:$0xf]
  %v269 = vld [vmem:[%s1 + $0x18] sm:$0xf]
  %v270 = vld [vmem:[%s1 + $0x1c] sm:$0xf]
  %v271 = vld [vmem:[%s1 + $0x20] sm:$0xf]
  %v272 = vld [vmem:[%s1 + $0x24] sm:$0xf]
  %v273 = vld [vmem:[%s1 + $0x28] sm:$0xf]
  %v274 = vld [vmem:[%s1 + $0x2c] sm:$0xf]
  %v275 = vld [vmem:[%s1 + $0x30] sm:$0xf]
  %v276 = vld [vmem:[%s1 + $0x34] sm:$0xf]
  %v277 = vld [vmem:[%s1 + $0x38] sm:$0xf]
  %v278 = vld [vmem:[%s1 + $0x3c] sm:$0xf]
  %v279 = vld [vmem:[%s1 + $0x40] sm:$0xf]
  %v280 = vld [vmem:[%s1 + $0x44] sm:$0xf]
  %v281 = vld [vmem:[%s1 + $0x48] sm:$0xf]
  %v282 = vld [vmem:[%s1 + $0x4c] sm:$0xf]
  %v283 = vld [vmem:[%s1 + $0x50] sm:$0xf]
  %v284 = vld [vmem:[%s1 + $0x54] sm:$0xf]
  %v285 = vld [vmem:[%s1 + $0x58] sm:$0xf]
  %v286 = vld [vmem:[%s1 + $0x5c] sm:$0xf]
  %v287 = vld [vmem:[%s1 + $0x60] sm:$0xf]
  %v288 = vld [vmem:[%s1 + $0x64] sm:$0xf]
  %v289 = vld [vmem:[%s1 + $0x68] sm:$0xf]
  %v290 = vld [vmem:[%s1 + $0x6c] sm:$0xf]
  %v291 = vld [vmem:[%s1 + $0x70] sm:$0xf]
  %v292 = vld [vmem:[%s1 + $0x74] sm:$0xf]
  %v293 = vld [vmem:[%s1 + $0x78] sm:$0xf]
  %v294 = vld [vmem:[%s1 + $0x7c] sm:$0xf]
  %v295 = vld [vmem:[%s1 + $0x80] sm:$0xf]
  %v296 = vld [vmem:[%s1 + $0x84] sm:$0xf]
  %v297 = vld [vmem:[%s1 + $0x88] sm:$0xf]
  %v298 = vld [vmem:[%s1 + $0x8c] sm:$0xf]
  %v299 = vld [vmem:[%s1 + $0x90] sm:$0xf]
  %v300 = vld [vmem:[%s1 + $0x94] sm:$0xf]
  %v301 = vld [vmem:[%s1 + $0x98] sm:$0xf]
  %v302 = vld [vmem:[%s1 + $0x9c] sm:$0xf]
  %v303 = vld [vmem:[%s1 + $0xa0] sm:$0xf]
  %v304 = vld [vmem:[%s1 + $0xa4] sm:$0xf]
  %v305 = vld [vmem:[%s1 + $0xa8] sm:$0xf]
  %v306 = vld [vmem:[%s1 + $0xac] sm:$0xf]
  %v307 = vld [vmem:[%s1 + $0xb0] sm:$0xf]
  %v308 = vld [vmem:[%s1 + $0xb4] sm:$0xf]
  %v309 = vld [vmem:[%s1 + $0xb8] sm:$0xf]
  %v310 = vld [vmem:[%s1 + $0xbc] sm:$0xf]
  %v311 = vld [vmem:[%s1 + $0xc0] sm:$0xf]
  %v312 = vld [vmem:[%s1 + $0xc4] sm:$0xf]
  %v313 = vld [vmem:[%s1 + $0xc8] sm:$0xf]
  %v314 = vld [vmem:[%s1 + $0xcc] sm:$0xf]
  %v315 = vld [vmem:[%s1 + $0xd0] sm:$0xf]
  %v316 = vld [vmem:[%s1 + $0xd4] sm:$0xf]
  %v317 = vld [vmem:[%s1 + $0xd8] sm:$0xf]
  %v318 = vld [vmem:[%s1 + $0xdc] sm:$0xf]
  %v319 = vld [vmem:[%s1 + $0xe0] sm:$0xf]
  %v320 = vld [vmem:[%s1 + $0xe4] sm:$0xf]
  %v321 = vld [vmem:[%s1 + $0xe8] sm:$0xf]
  %v322 = vld [vmem:[%s1 + $0xec] sm:$0xf]
  %v323 = vld [vmem:[%s1 + $0xf0] sm:$0xf]
  %v324 = vld [vmem:[%s1 + $0xf4] sm:$0xf]
  %v325 = vld [vmem:[%s1 + $0xf8] sm:$0xf]
  %v326 = vld [vmem:[%s1 + $0xfc] sm:$0xf]
  %v327 = vld [vmem:[%s1 + $0x100] sm:$0xf]
  %v328 = vld [vmem:[%s1 + $0x104] sm:$0xf]
  %v329 = vld [vmem:[%s1 + $0x108] sm:$0xf]
  %v330 = vld [vmem:[%s1 + $0x10c] sm:$0xf]
  %v331 = vld [vmem:[%s1 + $0x110] sm:$0xf]
  %v332 = vld [vmem:[%s1 + $0x114] sm:$0xf]
  %v333 = vld [vmem:[%s1 + $0x118] sm:$0xf]
  %v334 = vld [vmem:[%s1 + $0x11c] sm:$0xf]
  %v335 = vld [vmem:[%s1 + $0x120] sm:$0xf]
  %v336 = vld [vmem:[%s1 + $0x124] sm:$0xf]
  %v337 = vld [vmem:[%s1 + $0x128] sm:$0xf]
  %v338 = vld [vmem:[%s1 + $0x12c] sm:$0xf]
  %v339 = vld [vmem:[%s1 + $0x130] sm:$0xf]
  %v340 = vld [vmem:[%s1 + $0x134] sm:$0xf]
  %v341 = vld [vmem:[%s1 + $0x138] sm:$0xf]
  %v342 = vld [vmem:[%s1 + $0x13c] sm:$0xf]
  %v343 = vld [vmem:[%s1 + $0x140] sm:$0xf]
  %v344 = vld [vmem:[%s1 + $0x144] sm:$0xf]
  %v345 = vld [vmem:[%s1 + $0x148] sm:$0xf]
  %v346 = vld [vmem:[%s1 + $0x14c] sm:$0xf]
  %v347 = vld [vmem:[%s1 + $0x150] sm:$0xf]
  %v348 = vld [vmem:[%s1 + $0x154] sm:$0xf]
  %v349 = vld [vmem:[%s1 + $0x158] sm:$0xf]
  %v350 = vld [vmem:[%s1 + $0x15c] sm:$0xf]
  %v351 = vld [vmem:[%s1 + $0x160] sm:$0xf]
  %v352 = vld [vmem:[%s1 + $0x164] sm:$0xf]
  %v353 = vld [vmem:[%s1 + $0x168] sm:$0xf]
  %v354 = vld [vmem:[%s1 + $0x16c] sm:$0xf]
  %v355 = vld [vmem:[%s1 + $0x170] sm:$0xf]
  %v356 = vld [vmem:[%s1 + $0x174] sm:$0xf]
  %v357 = vld [vmem:[%s1 + $0x178] sm:$0xf]
  %v358 = vld [vmem:[%s1 + $0x17c] sm:$0xf]
  %v359 = vld [vmem:[%s1 + $0x180] sm:$0xf]
  %v360 = vld [vmem:[%s1 + $0x184] sm:$0xf]
  %v361 = vld [vmem:[%s1 + $0x188] sm:$0xf]
  %v362 = vld [vmem:[%s1 + $0x18c] sm:$0xf]
  %v363 = vld [vmem:[%s1 + $0x190] sm:$0xf]
  %v364 = vld [vmem:[%s1 + $0x194] sm:$0xf]
  %v365 = vld [vmem:[%s1 + $0x198] sm:$0xf]
  %v366 = vld [vmem:[%s1 + $0x19c] sm:$0xf]
  %v367 = vld [vmem:[%s1 + $0x1a0] sm:$0xf]
  %v368 = vld [vmem:[%s1 + $0x1a4] sm:$0xf]
  %v369 = vld [vmem:[%s1 + $0x1a8] sm:$0xf]
  %v370 = vld [vmem:[%s1 + $0x1ac] sm:$0xf]
  %v371 = vld [vmem:[%s1 + $0x1b0] sm:$0xf]
  %v372 = vld [vmem:[%s1 + $0x1b4] sm:$0xf]
  %v373 = vld [vmem:[%s1 + $0x1b8] sm:$0xf]
  %v374 = vld [vmem:[%s1 + $0x1bc] sm:$0xf]
  %v375 = vld [vmem:[%s1 + $0x1c0] sm:$0xf]
  %v376 = vld [vmem:[%s1 + $0x1c4] sm:$0xf]
  %v377 = vld [vmem:[%s1 + $0x1c8] sm:$0xf]
  %v378 = vld [vmem:[%s1 + $0x1cc] sm:$0xf]
  %v379 = vld [vmem:[%s1 + $0x1d0] sm:$0xf]
  %v380 = vld [vmem:[%s1 + $0x1d4] sm:$0xf]
  %v381 = vld [vmem:[%s1 + $0x1d8] sm:$0xf]
  %v382 = vld [vmem:[%s1 + $0x1dc] sm:$0xf]
  %v383 = vld [vmem:[%s1 + $0x1e0] sm:$0xf]
  %v384 = vld [vmem:[%s1 + $0x1e4] sm:$0xf]
  %v385 = vld [vmem:[%s1 + $0x1e8] sm:$0xf]
  %v386 = vld [vmem:[%s1 + $0x1ec] sm:$0xf]
  %v387 = vld [vmem:[%s1 + $0x1f0] sm:$0xf]
  %v388 = vld [vmem:[%s1 + $0x1f4] sm:$0xf]
  %v389 = vld [vmem:[%s1 + $0x1f8] sm:$0xf]
  %v390 = vld [vmem:[%s1 + $0x1fc] sm:$0xf]
  %v391 = vld [vmem:[%s1 + $0x200] sm:$0xf]
  %v392 = vld [vmem:[%s1 + $0x204] sm:$0xf]
  %v393 = vld [vmem:[%s1 + $0x208] sm:$0xf]
  %v394 = vld [vmem:[%s1 + $0x20c] sm:$0xf]
  %v395 = vld [vmem:[%s1 + $0x210] sm:$0xf]
  %v396 = vld [vmem:[%s1 + $0x214] sm:$0xf]
  %v397 = vld [vmem:[%s1 + $0x218] sm:$0xf]
  %v398 = vld [vmem:[%s1 + $0x21c] sm:$0xf]
  %v399 = vld [vmem:[%s1 + $0x220] sm:$0xf]
  %v400 = vld [vmem:[%s1 + $0x224] sm:$0xf]
  %v401 = vld [vmem:[%s1 + $0x228] sm:$0xf]
  %v402 = vld [vmem:[%s1 + $0x22c] sm:$0xf]
  %v403 = vld [vmem:[%s1 + $0x230] sm:$0xf]
  %v404 = vld [vmem:[%s1 + $0x234] sm:$0xf]
  %v405 = vld [vmem:[%s1 + $0x238] sm:$0xf]
  %v406 = vld [vmem:[%s1 + $0x23c] sm:$0xf]
  %v407 = vld [vmem:[%s1 + $0x240] sm:$0xf]
  %v408 = vld [vmem:[%s1 + $0x244] sm:$0xf]
  %v409 = vld [vmem:[%s1 + $0x248] sm:$0xf]
  %v410 = vld [vmem:[%s1 + $0x24c] sm:$0xf]
  %v411 = vld [vmem:[%s1 + $0x250] sm:$0xf]
  %v412 = vld [vmem:[%s1 + $0x254] sm:$0xf]
  %v413 = vld [vmem:[%s1 + $0x258] sm:$0xf]
  %v414 = vld [vmem:[%s1 + $0x25c] sm:$0xf]
  %v415 = vld [vmem:[%s1 + $0x260] sm:$0xf]
  %v416 = vld [vmem:[%s1 + $0x264] sm:$0xf]
  %v417 = vld [vmem:[%s1 + $0x268] sm:$0xf]
  %v418 = vld [vmem:[%s1 + $0x26c] sm:$0xf]
  %v419 = vld [vmem:[%s1 + $0x270] sm:$0xf]
  %v420 = vld [vmem:[%s1 + $0x274] sm:$0xf]
  %v421 = vld [vmem:[%s1 + $0x278] sm:$0xf]
  %v422 = vld [vmem:[%s1 + $0x27c] sm:$0xf]
  %v423 = vld [vmem:[%s1 + $0x280] sm:$0xf]
  %v424 = vld [vmem:[%s1 + $0x284] sm:$0xf]
  %v425 = vld [vmem:[%s1 + $0x288] sm:$0xf]
  %v426 = vld [vmem:[%s1 + $0x28c] sm:$0xf]
  %v427 = vld [vmem:[%s1 + $0x290] sm:$0xf]
  %v428 = vld [vmem:[%s1 + $0x294] sm:$0xf]
  %v429 = vld [vmem:[%s1 + $0x298] sm:$0xf]
  %v430 = vld [vmem:[%s1 + $0x29c] sm:$0xf]
  %v431 = vld [vmem:[%s1 + $0x2a0] sm:$0xf]
  %v432 = vld [vmem:[%s1 + $0x2a4] sm:$0xf]
  %v433 = vld [vmem:[%s1 + $0x2a8] sm:$0xf]
  %v434 = vld [vmem:[%s1 + $0x2ac] sm:$0xf]
  %v435 = vld [vmem:[%s1 + $0x2b0] sm:$0xf]
  %v436 = vld [vmem:[%s1 + $0x2b4] sm:$0xf]
  %v437 = vld [vmem:[%s1 + $0x2b8] sm:$0xf]
  %v438 = vld [vmem:[%s1 + $0x2bc] sm:$0xf]
  %v439 = vld [vmem:[%s1 + $0x2c0] sm:$0xf]
  %v440 = vld [vmem:[%s1 + $0x2c4] sm:$0xf]
  %v441 = vld [vmem:[%s1 + $0x2c8] sm:$0xf]
  %v442 = vld [vmem:[%s1 + $0x2cc] sm:$0xf]
  %v443 = vld [vmem:[%s1 + $0x2d0] sm:$0xf]
  %v444 = vld [vmem:[%s1 + $0x2d4] sm:$0xf]
  %v445 = vld [vmem:[%s1 + $0x2d8] sm:$0xf]
  %v446 = vld [vmem:[%s1 + $0x2dc] sm:$0xf]
  %v447 = vld [vmem:[%s1 + $0x2e0] sm:$0xf]
  %v448 = vld [vmem:[%s1 + $0x2e4] sm:$0xf]
  %v449 = vld [vmem:[%s1 + $0x2e8] sm:$0xf]
  %v450 = vld [vmem:[%s1 + $0x2ec] sm:$0xf]
  %v451 = vld [vmem:[%s1 + $0x2f0] sm:$0xf]
  %v452 = vld [vmem:[%s1 + $0x2f4] sm:$0xf]
  %v453 = vld [vmem:[%s1 + $0x2f8] sm:$0xf]
  %v454 = vld [vmem:[%s1 + $0x2fc] sm:$0xf]
  %v455 = vld [vmem:[%s1 + $0x300] sm:$0xf]
  %v456 = vld [vmem:[%s1 + $0x304] sm:$0xf]
  %v457 = vld [vmem:[%s1 + $0x308] sm:$0xf]
  %v458 = vld [vmem:[%s1 + $0x30c] sm:$0xf]
  %v459 = vld [vmem:[%s1 + $0x310] sm:$0xf]
  %v460 = vld [vmem:[%s1 + $0x314] sm:$0xf]
  %v461 = vld [vmem:[%s1 + $0x318] sm:$0xf]
  %v462 = vld [vmem:[%s1 + $0x31c] sm:$0xf]
  %v463 = vld [vmem:[%s1 + $0x320] sm:$0xf]
  %v464 = vld [vmem:[%s1 + $0x324] sm:$0xf]
  %v465 = vld [vmem:[%s1 + $0x328] sm:$0xf]
  %v466 = vld [vmem:[%s1 + $0x32c] sm:$0xf]
  %v467 = vld [vmem:[%s1 + $0x330] sm:$0xf]
  %v468 = vld [vmem:[%s1 + $0x334] sm:$0xf]
  %v469 = vld [vmem:[%s1 + $0x338] sm:$0xf]
  %v470 = vld [vmem:[%s1 + $0x33c] sm:$0xf]
  %v471 = vld [vmem:[%s2] sm:$0x1]
  %v473 = vperm.slane %v471, 0
  %v699 = vunpack.c.l.b16 %v39
  %v700 = vunpack.c.h.b16 %v39
  %v701 = vunpack.c.l.b16 %v40
  %v702 = vunpack.c.h.b16 %v40
  %v703 = vunpack.c.l.b16 %v41
  %v704 = vunpack.c.h.b16 %v41
  %v705 = vunpack.c.l.b16 %v42
  %v706 = vunpack.c.h.b16 %v42
  %v707 = vunpack.c.l.b16 %v43
  %v708 = vunpack.c.h.b16 %v43
  %v709 = vunpack.c.l.b16 %v44
  %v710 = vunpack.c.h.b16 %v44
  %v711 = vunpack.c.l.b16 %v45
  %v712 = vunpack.c.l.b16 %v46
  %v713 = vunpack.c.h.b16 %v46
  %v714 = vunpack.c.l.b16 %v47
  %v715 = vunpack.c.h.b16 %v47
  %v716 = vunpack.c.l.b16 %v48
  %v717 = vunpack.c.h.b16 %v48
  %v718 = vunpack.c.l.b16 %v49
  %v719 = vunpack.c.h.b16 %v49
  %v720 = vunpack.c.l.b16 %v50
  %v721 = vunpack.c.h.b16 %v50
  %v722 = vunpack.c.l.b16 %v51
  %v723 = vunpack.c.h.b16 %v51
  %v724 = vunpack.c.l.b16 %v52
  %v725 = vunpack.c.l.b16 %v53
  %v726 = vunpack.c.h.b16 %v53
  %v727 = vunpack.c.l.b16 %v54
  %v728 = vunpack.c.h.b16 %v54
  %v729 = vunpack.c.l.b16 %v55
  %v730 = vunpack.c.h.b16 %v55
  %v731 = vunpack.c.l.b16 %v56
  %v732 = vunpack.c.h.b16 %v56
  %v733 = vunpack.c.l.b16 %v57
  %v734 = vunpack.c.h.b16 %v57
  %v735 = vunpack.c.l.b16 %v58
  %v736 = vunpack.c.h.b16 %v58
  %v737 = vunpack.c.l.b16 %v59
  %v738 = vunpack.c.l.b16 %v60
  %v739 = vunpack.c.h.b16 %v60
  %v740 = vunpack.c.l.b16 %v61
  %v741 = vunpack.c.h.b16 %v61
  %v742 = vunpack.c.l.b16 %v62
  %v743 = vunpack.c.h.b16 %v62
  %v744 = vunpack.c.l.b16 %v63
  %v745 = vunpack.c.h.b16 %v63
  %v746 = vunpack.c.l.b16 %v64
  %v747 = vunpack.c.h.b16 %v64
  %v748 = vunpack.c.l.b16 %v65
  %v749 = vunpack.c.h.b16 %v65
  %v750 = vunpack.c.l.b16 %v66
  %v751 = vunpack.c.l.b16 %v67
  %v752 = vunpack.c.h.b16 %v67
  %v753 = vunpack.c.l.b16 %v68
  %v754 = vunpack.c.h.b16 %v68
  %v755 = vunpack.c.l.b16 %v69
  %v756 = vunpack.c.h.b16 %v69
  %v757 = vunpack.c.l.b16 %v70
  %v758 = vunpack.c.h.b16 %v70
  %v759 = vunpack.c.l.b16 %v71
  %v760 = vunpack.c.h.b16 %v71
  %v761 = vunpack.c.l.b16 %v72
  %v762 = vunpack.c.h.b16 %v72
  %v763 = vunpack.c.l.b16 %v73
  %v764 = vunpack.c.l.b16 %v74
  %v765 = vunpack.c.h.b16 %v74
  %v766 = vunpack.c.l.b16 %v75
  %v767 = vunpack.c.h.b16 %v75
  %v768 = vunpack.c.l.b16 %v76
  %v769 = vunpack.c.h.b16 %v76
  %v770 = vunpack.c.l.b16 %v77
  %v771 = vunpack.c.h.b16 %v77
  %v772 = vunpack.c.l.b16 %v78
  %v773 = vunpack.c.h.b16 %v78
  %v774 = vunpack.c.l.b16 %v79
  %v775 = vunpack.c.h.b16 %v79
  %v776 = vunpack.c.l.b16 %v80
  %v777 = vunpack.c.l.b16 %v81
  %v778 = vunpack.c.h.b16 %v81
  %v779 = vunpack.c.l.b16 %v82
  %v780 = vunpack.c.h.b16 %v82
  %v781 = vunpack.c.l.b16 %v83
  %v782 = vunpack.c.h.b16 %v83
  %v783 = vunpack.c.l.b16 %v84
  %v784 = vunpack.c.h.b16 %v84
  %v785 = vunpack.c.l.b16 %v85
  %v786 = vunpack.c.h.b16 %v85
  %v787 = vunpack.c.l.b16 %v86
  %v788 = vunpack.c.h.b16 %v86
  %v789 = vunpack.c.l.b16 %v87
  %v790 = vunpack.c.l.b16 %v88
  %v791 = vunpack.c.h.b16 %v88
  %v792 = vunpack.c.l.b16 %v89
  %v793 = vunpack.c.h.b16 %v89
  %v794 = vunpack.c.l.b16 %v90
  %v795 = vunpack.c.h.b16 %v90
  %v796 = vunpack.c.l.b16 %v91
  %v797 = vunpack.c.h.b16 %v91
  %v798 = vunpack.c.l.b16 %v92
  %v799 = vunpack.c.h.b16 %v92
  %v800 = vunpack.c.l.b16 %v93
  %v801 = vunpack.c.h.b16 %v93
  %v802 = vunpack.c.l.b16 %v94
  %v803 = vunpack.c.l.b16 %v95
  %v804 = vunpack.c.h.b16 %v95
  %v805 = vunpack.c.l.b16 %v96
  %v806 = vunpack.c.h.b16 %v96
  %v807 = vunpack.c.l.b16 %v97
  %v808 = vunpack.c.h.b16 %v97
  %v809 = vunpack.c.l.b16 %v98
  %v810 = vunpack.c.h.b16 %v98
  %v811 = vunpack.c.l.b16 %v99
  %v812 = vunpack.c.h.b16 %v99
  %v813 = vunpack.c.l.b16 %v100
  %v814 = vunpack.c.h.b16 %v100
  %v815 = vunpack.c.l.b16 %v101
  %v816 = vunpack.c.l.b16 %v102
  %v817 = vunpack.c.h.b16 %v102
  %v818 = vunpack.c.l.b16 %v103
  %v819 = vunpack.c.h.b16 %v103
  %v820 = vunpack.c.l.b16 %v104
  %v821 = vunpack.c.h.b16 %v104
  %v822 = vunpack.c.l.b16 %v105
  %v823 = vunpack.c.h.b16 %v105
  %v824 = vunpack.c.l.b16 %v106
  %v825 = vunpack.c.h.b16 %v106
  %v826 = vunpack.c.l.b16 %v107
  %v827 = vunpack.c.h.b16 %v107
  %v828 = vunpack.c.l.b16 %v108
  %v829 = vunpack.c.l.b16 %v109
  %v830 = vunpack.c.h.b16 %v109
  %v831 = vunpack.c.l.b16 %v110
  %v832 = vunpack.c.h.b16 %v110
  %v833 = vunpack.c.l.b16 %v111
  %v834 = vunpack.c.h.b16 %v111
  %v835 = vunpack.c.l.b16 %v112
  %v836 = vunpack.c.h.b16 %v112
  %v837 = vunpack.c.l.b16 %v113
  %v838 = vunpack.c.h.b16 %v113
  %v839 = vunpack.c.l.b16 %v114
  %v840 = vunpack.c.h.b16 %v114
  %v841 = vunpack.c.l.b16 %v115
  %v842 = vunpack.c.l.b16 %v116
  %v843 = vunpack.c.h.b16 %v116
  %v844 = vunpack.c.l.b16 %v117
  %v845 = vunpack.c.h.b16 %v117
  %v846 = vunpack.c.l.b16 %v118
  %v847 = vunpack.c.h.b16 %v118
  %v848 = vunpack.c.l.b16 %v119
  %v849 = vunpack.c.h.b16 %v119
  %v850 = vunpack.c.l.b16 %v120
  %v851 = vunpack.c.h.b16 %v120
  %v852 = vunpack.c.l.b16 %v121
  %v853 = vunpack.c.h.b16 %v121
  %v854 = vunpack.c.l.b16 %v122
  %v855 = vunpack.c.l.b16 %v123
  %v856 = vunpack.c.h.b16 %v123
  %v857 = vunpack.c.l.b16 %v124
  %v858 = vunpack.c.h.b16 %v124
  %v859 = vunpack.c.l.b16 %v125
  %v860 = vunpack.c.h.b16 %v125
  %v861 = vunpack.c.l.b16 %v126
  %v862 = vunpack.c.h.b16 %v126
  %v863 = vunpack.c.l.b16 %v127
  %v864 = vunpack.c.h.b16 %v127
  %v865 = vunpack.c.l.b16 %v128
  %v866 = vunpack.c.h.b16 %v128
  %v867 = vunpack.c.l.b16 %v129
  %v868 = vunpack.c.l.b16 %v130
  %v869 = vunpack.c.h.b16 %v130
  %v870 = vunpack.c.l.b16 %v131
  %v871 = vunpack.c.h.b16 %v131
  %v872 = vunpack.c.l.b16 %v132
  %v873 = vunpack.c.h.b16 %v132
  %v874 = vunpack.c.l.b16 %v133
  %v875 = vunpack.c.h.b16 %v133
  %v876 = vunpack.c.l.b16 %v134
  %v877 = vunpack.c.h.b16 %v134
  %v878 = vunpack.c.l.b16 %v135
  %v879 = vunpack.c.h.b16 %v135
  %v880 = vunpack.c.l.b16 %v136
  %v881 = vunpack.c.l.b16 %v137
  %v882 = vunpack.c.h.b16 %v137
  %v883 = vunpack.c.l.b16 %v138
  %v884 = vunpack.c.h.b16 %v138
  %v885 = vunpack.c.l.b16 %v139
  %v886 = vunpack.c.h.b16 %v139
  %v887 = vunpack.c.l.b16 %v140
  %v888 = vunpack.c.h.b16 %v140
  %v889 = vunpack.c.l.b16 %v141
  %v890 = vunpack.c.h.b16 %v141
  %v891 = vunpack.c.l.b16 %v142
  %v892 = vunpack.c.h.b16 %v142
  %v893 = vunpack.c.l.b16 %v143
  %v894 = vunpack.c.l.b16 %v144
  %v895 = vunpack.c.h.b16 %v144
  %v896 = vunpack.c.l.b16 %v145
  %v897 = vunpack.c.h.b16 %v145
  %v898 = vunpack.c.l.b16 %v146
  %v899 = vunpack.c.h.b16 %v146
  %v900 = vunpack.c.l.b16 %v147
  %v901 = vunpack.c.h.b16 %v147
  %v902 = vunpack.c.l.b16 %v148
  %v903 = vunpack.c.h.b16 %v148
  %v904 = vunpack.c.l.b16 %v149
  %v905 = vunpack.c.h.b16 %v149
  %v906 = vunpack.c.l.b16 %v150
  %v907 = vunpack.c.l.b16 %v151
  %v908 = vunpack.c.h.b16 %v151
  %v909 = vunpack.c.l.b16 %v152
  %v910 = vunpack.c.h.b16 %v152
  %v911 = vunpack.c.l.b16 %v153
  %v912 = vunpack.c.h.b16 %v153
  %v913 = vunpack.c.l.b16 %v154
  %v914 = vunpack.c.h.b16 %v154
  %v915 = vunpack.c.l.b16 %v155
  %v916 = vunpack.c.h.b16 %v155
  %v917 = vunpack.c.l.b16 %v156
  %v918 = vunpack.c.h.b16 %v156
  %v919 = vunpack.c.l.b16 %v157
  %v920 = vunpack.c.l.b16 %v158
  %v921 = vunpack.c.h.b16 %v158
  %v922 = vunpack.c.l.b16 %v159
  %v923 = vunpack.c.h.b16 %v159
  %v924 = vunpack.c.l.b16 %v160
  %v925 = vunpack.c.h.b16 %v160
  %v926 = vunpack.c.l.b16 %v161
  %v927 = vunpack.c.h.b16 %v161
  %v928 = vunpack.c.l.b16 %v162
  %v929 = vunpack.c.h.b16 %v162
  %v930 = vunpack.c.l.b16 %v163
  %v931 = vunpack.c.h.b16 %v163
  %v932 = vunpack.c.l.b16 %v164
  %v933 = vunpack.c.l.b16 %v165
  %v934 = vunpack.c.h.b16 %v165
  %v935 = vunpack.c.l.b16 %v166
  %v936 = vunpack.c.h.b16 %v166
  %v937 = vunpack.c.l.b16 %v167
  %v938 = vunpack.c.h.b16 %v167
  %v939 = vunpack.c.l.b16 %v168
  %v940 = vunpack.c.h.b16 %v168
  %v941 = vunpack.c.l.b16 %v169
  %v942 = vunpack.c.h.b16 %v169
  %v943 = vunpack.c.l.b16 %v170
  %v944 = vunpack.c.h.b16 %v170
  %v945 = vunpack.c.l.b16 %v171
  %v946 = vunpack.c.l.b16 %v172
  %v947 = vunpack.c.h.b16 %v172
  %v948 = vunpack.c.l.b16 %v173
  %v949 = vunpack.c.h.b16 %v173
  %v950 = vunpack.c.l.b16 %v174
  %v951 = vunpack.c.h.b16 %v174
  %v952 = vunpack.c.l.b16 %v175
  %v953 = vunpack.c.h.b16 %v175
  %v954 = vunpack.c.l.b16 %v176
  %v955 = vunpack.c.h.b16 %v176
  %v956 = vunpack.c.l.b16 %v177
  %v957 = vunpack.c.h.b16 %v177
  %v958 = vunpack.c.l.b16 %v178
  %v959 = vunpack.c.l.b16 %v179
  %v960 = vunpack.c.h.b16 %v179
  %v961 = vunpack.c.l.b16 %v180
  %v962 = vunpack.c.h.b16 %v180
  %v963 = vunpack.c.l.b16 %v181
  %v964 = vunpack.c.h.b16 %v181
  %v965 = vunpack.c.l.b16 %v182
  %v966 = vunpack.c.h.b16 %v182
  %v967 = vunpack.c.l.b16 %v183
  %v968 = vunpack.c.h.b16 %v183
  %v969 = vunpack.c.l.b16 %v184
  %v970 = vunpack.c.h.b16 %v184
  %v971 = vunpack.c.l.b16 %v185
  %v972 = vunpack.c.l.b16 %v186
  %v973 = vunpack.c.h.b16 %v186
  %v974 = vunpack.c.l.b16 %v187
  %v975 = vunpack.c.h.b16 %v187
  %v976 = vunpack.c.l.b16 %v188
  %v977 = vunpack.c.h.b16 %v188
  %v978 = vunpack.c.l.b16 %v189
  %v979 = vunpack.c.h.b16 %v189
  %v980 = vunpack.c.l.b16 %v190
  %v981 = vunpack.c.h.b16 %v190
  %v982 = vunpack.c.l.b16 %v191
  %v983 = vunpack.c.h.b16 %v191
  %v984 = vunpack.c.l.b16 %v192
  %v985 = vunpack.c.l.b16 %v193
  %v986 = vunpack.c.h.b16 %v193
  %v987 = vunpack.c.l.b16 %v194
  %v988 = vunpack.c.h.b16 %v194
  %v989 = vunpack.c.l.b16 %v195
  %v990 = vunpack.c.h.b16 %v195
  %v991 = vunpack.c.l.b16 %v196
  %v992 = vunpack.c.h.b16 %v196
  %v993 = vunpack.c.l.b16 %v197
  %v994 = vunpack.c.h.b16 %v197
  %v995 = vunpack.c.l.b16 %v198
  %v996 = vunpack.c.h.b16 %v198
  %v997 = vunpack.c.l.b16 %v199
  %v998 = vunpack.c.l.b16 %v200
  %v999 = vunpack.c.h.b16 %v200
  %v1000 = vunpack.c.l.b16 %v201
  %v1001 = vunpack.c.h.b16 %v201
  %v1002 = vunpack.c.l.b16 %v202
  %v1003 = vunpack.c.h.b16 %v202
  %v1004 = vunpack.c.l.b16 %v203
  %v1005 = vunpack.c.h.b16 %v203
  %v1006 = vunpack.c.l.b16 %v204
  %v1007 = vunpack.c.h.b16 %v204
  %v1008 = vunpack.c.l.b16 %v205
  %v1009 = vunpack.c.h.b16 %v205
  %v1010 = vunpack.c.l.b16 %v206
  %v1011 = vunpack.c.l.b16 %v207
  %v1012 = vunpack.c.h.b16 %v207
  %v1013 = vunpack.c.l.b16 %v208
  %v1014 = vunpack.c.h.b16 %v208
  %v1015 = vunpack.c.l.b16 %v209
  %v1016 = vunpack.c.h.b16 %v209
  %v1017 = vunpack.c.l.b16 %v210
  %v1018 = vunpack.c.h.b16 %v210
  %v1019 = vunpack.c.l.b16 %v211
  %v1020 = vunpack.c.h.b16 %v211
  %v1021 = vunpack.c.l.b16 %v212
  %v1022 = vunpack.c.h.b16 %v212
  %v1023 = vunpack.c.l.b16 %v213
  %v1024 = vunpack.c.l.b16 %v214
  %v1025 = vunpack.c.h.b16 %v214
  %v1026 = vunpack.c.l.b16 %v215
  %v1027 = vunpack.c.h.b16 %v215
  %v1028 = vunpack.c.l.b16 %v216
  %v1029 = vunpack.c.h.b16 %v216
  %v1030 = vunpack.c.l.b16 %v217
  %v1031 = vunpack.c.h.b16 %v217
  %v1032 = vunpack.c.l.b16 %v218
  %v1033 = vunpack.c.h.b16 %v218
  %v1034 = vunpack.c.l.b16 %v219
  %v1035 = vunpack.c.h.b16 %v219
  %v1036 = vunpack.c.l.b16 %v220
  %v1037 = vunpack.c.l.b16 %v221
  %v1038 = vunpack.c.h.b16 %v221
  %v1039 = vunpack.c.l.b16 %v222
  %v1040 = vunpack.c.h.b16 %v222
  %v1041 = vunpack.c.l.b16 %v223
  %v1042 = vunpack.c.h.b16 %v223
  %v1043 = vunpack.c.l.b16 %v224
  %v1044 = vunpack.c.h.b16 %v224
  %v1045 = vunpack.c.l.b16 %v225
  %v1046 = vunpack.c.h.b16 %v225
  %v1047 = vunpack.c.l.b16 %v226
  %v1048 = vunpack.c.h.b16 %v226
  %v1049 = vunpack.c.l.b16 %v227
  %v1050 = vunpack.c.l.b16 %v228
  %v1051 = vunpack.c.h.b16 %v228
  %v1052 = vunpack.c.l.b16 %v229
  %v1053 = vunpack.c.h.b16 %v229
  %v1054 = vunpack.c.l.b16 %v230
  %v1055 = vunpack.c.h.b16 %v230
  %v1056 = vunpack.c.l.b16 %v231
  %v1057 = vunpack.c.h.b16 %v231
  %v1058 = vunpack.c.l.b16 %v232
  %v1059 = vunpack.c.h.b16 %v232
  %v1060 = vunpack.c.l.b16 %v233
  %v1061 = vunpack.c.h.b16 %v233
  %v1062 = vunpack.c.l.b16 %v234
  %v1063 = vunpack.c.l.b16 %v235
  %v1064 = vunpack.c.h.b16 %v235
  %v1065 = vunpack.c.l.b16 %v236
  %v1066 = vunpack.c.h.b16 %v236
  %v1067 = vunpack.c.l.b16 %v237
  %v1068 = vunpack.c.h.b16 %v237
  %v1069 = vunpack.c.l.b16 %v238
  %v1070 = vunpack.c.h.b16 %v238
  %v1071 = vunpack.c.l.b16 %v239
  %v1072 = vunpack.c.h.b16 %v239
  %v1073 = vunpack.c.l.b16 %v240
  %v1074 = vunpack.c.h.b16 %v240
  %v1075 = vunpack.c.l.b16 %v241
  %v1076 = vunpack.c.l.b16 %v242
  %v1077 = vunpack.c.h.b16 %v242
  %v1078 = vunpack.c.l.b16 %v243
  %v1079 = vunpack.c.h.b16 %v243
  %v1080 = vunpack.c.l.b16 %v244
  %v1081 = vunpack.c.h.b16 %v244
  %v1082 = vunpack.c.l.b16 %v245
  %v1083 = vunpack.c.h.b16 %v245
  %v1084 = vunpack.c.l.b16 %v246
  %v1085 = vunpack.c.h.b16 %v246
  %v1086 = vunpack.c.l.b16 %v247
  %v1087 = vunpack.c.h.b16 %v247
  %v1088 = vunpack.c.l.b16 %v248
  %v1089 = vunpack.c.l.b16 %v249
  %v1090 = vunpack.c.h.b16 %v249
  %v1091 = vunpack.c.l.b16 %v250
  %v1092 = vunpack.c.h.b16 %v250
  %v1093 = vunpack.c.l.b16 %v251
  %v1094 = vunpack.c.h.b16 %v251
  %v1095 = vunpack.c.l.b16 %v252
  %v1096 = vunpack.c.h.b16 %v252
  %v1097 = vunpack.c.l.b16 %v253
  %v1098 = vunpack.c.h.b16 %v253
  %v1099 = vunpack.c.l.b16 %v254
  %v1100 = vunpack.c.h.b16 %v254
  %v1101 = vunpack.c.l.b16 %v255
  %v1102 = vunpack.c.l.b16 %v256
  %v1103 = vunpack.c.h.b16 %v256
  %v1104 = vunpack.c.l.b16 %v257
  %v1105 = vunpack.c.h.b16 %v257
  %v1106 = vunpack.c.l.b16 %v258
  %v1107 = vunpack.c.h.b16 %v258
  %v1108 = vunpack.c.l.b16 %v259
  %v1109 = vunpack.c.h.b16 %v259
  %v1110 = vunpack.c.l.b16 %v260
  %v1111 = vunpack.c.h.b16 %v260
  %v1112 = vunpack.c.l.b16 %v261
  %v1113 = vunpack.c.h.b16 %v261
  %v1114 = vunpack.c.l.b16 %v262
  %v1115 = vpack.c.b16 %v712, %v699
  %v1116 = vpack.c.b16 %v713, %v700
  %v1117 = vpack.c.b16 %v714, %v701
  %v1118 = vpack.c.b16 %v715, %v702
  %v1119 = vpack.c.b16 %v716, %v703
  %v1120 = vpack.c.b16 %v717, %v704
  %v1121 = vpack.c.b16 %v718, %v705
  %v1122 = vpack.c.b16 %v719, %v706
  %v1123 = vpack.c.b16 %v720, %v707
  %v1124 = vpack.c.b16 %v721, %v708
  %v1125 = vpack.c.b16 %v722, %v709
  %v1126 = vpack.c.b16 %v723, %v710
  %v1127 = vpack.c.b16 %v724, %v711
  %v1128 = vpack.c.b16 %v738, %v725
  %v1129 = vpack.c.b16 %v739, %v726
  %v1130 = vpack.c.b16 %v740, %v727
  %v1131 = vpack.c.b16 %v741, %v728
  %v1132 = vpack.c.b16 %v742, %v729
  %v1133 = vpack.c.b16 %v743, %v730
  %v1134 = vpack.c.b16 %v744, %v731
  %v1135 = vpack.c.b16 %v745, %v732
  %v1136 = vpack.c.b16 %v746, %v733
  %v1137 = vpack.c.b16 %v747, %v734
  %v1138 = vpack.c.b16 %v748, %v735
  %v1139 = vpack.c.b16 %v749, %v736
  %v1140 = vpack.c.b16 %v750, %v737
  %v1141 = vpack.c.b16 %v764, %v751
  %v1142 = vpack.c.b16 %v765, %v752
  %v1143 = vpack.c.b16 %v766, %v753
  %v1144 = vpack.c.b16 %v767, %v754
  %v1145 = vpack.c.b16 %v768, %v755
  %v1146 = vpack.c.b16 %v769, %v756
  %v1147 = vpack.c.b16 %v770, %v757
  %v1148 = vpack.c.b16 %v771, %v758
  %v1149 = vpack.c.b16 %v772, %v759
  %v1150 = vpack.c.b16 %v773, %v760
  %v1151 = vpack.c.b16 %v774, %v761
  %v1152 = vpack.c.b16 %v775, %v762
  %v1153 = vpack.c.b16 %v776, %v763
  %v1154 = vpack.c.b16 %v790, %v777
  %v1155 = vpack.c.b16 %v791, %v778
  %v1156 = vpack.c.b16 %v792, %v779
  %v1157 = vpack.c.b16 %v793, %v780
  %v1158 = vpack.c.b16 %v794, %v781
  %v1159 = vpack.c.b16 %v795, %v782
  %v1160 = vpack.c.b16 %v796, %v783
  %v1161 = vpack.c.b16 %v797, %v784
  %v1162 = vpack.c.b16 %v798, %v785
  %v1163 = vpack.c.b16 %v799, %v786
  %v1164 = vpack.c.b16 %v800, %v787
  %v1165 = vpack.c.b16 %v801, %v788
  %v1166 = vpack.c.b16 %v802, %v789
  %v1167 = vpack.c.b16 %v816, %v803
  %v1168 = vpack.c.b16 %v817, %v804
  %v1169 = vpack.c.b16 %v818, %v805
  %v1170 = vpack.c.b16 %v819, %v806
  %v1171 = vpack.c.b16 %v820, %v807
  %v1172 = vpack.c.b16 %v821, %v808
  %v1173 = vpack.c.b16 %v822, %v809
  %v1174 = vpack.c.b16 %v823, %v810
  %v1175 = vpack.c.b16 %v824, %v811
  %v1176 = vpack.c.b16 %v825, %v812
  %v1177 = vpack.c.b16 %v826, %v813
  %v1178 = vpack.c.b16 %v827, %v814
  %v1179 = vpack.c.b16 %v828, %v815
  %v1180 = vpack.c.b16 %v842, %v829
  %v1181 = vpack.c.b16 %v843, %v830
  %v1182 = vpack.c.b16 %v844, %v831
  %v1183 = vpack.c.b16 %v845, %v832
  %v1184 = vpack.c.b16 %v846, %v833
  %v1185 = vpack.c.b16 %v847, %v834
  %v1186 = vpack.c.b16 %v848, %v835
  %v1187 = vpack.c.b16 %v849, %v836
  %v1188 = vpack.c.b16 %v850, %v837
  %v1189 = vpack.c.b16 %v851, %v838
  %v1190 = vpack.c.b16 %v852, %v839
  %v1191 = vpack.c.b16 %v853, %v840
  %v1192 = vpack.c.b16 %v854, %v841
  %v1193 = vpack.c.b16 %v868, %v855
  %v1194 = vpack.c.b16 %v869, %v856
  %v1195 = vpack.c.b16 %v870, %v857
  %v1196 = vpack.c.b16 %v871, %v858
  %v1197 = vpack.c.b16 %v872, %v859
  %v1198 = vpack.c.b16 %v873, %v860
  %v1199 = vpack.c.b16 %v874, %v861
  %v1200 = vpack.c.b16 %v875, %v862
  %v1201 = vpack.c.b16 %v876, %v863
  %v1202 = vpack.c.b16 %v877, %v864
  %v1203 = vpack.c.b16 %v878, %v865
  %v1204 = vpack.c.b16 %v879, %v866
  %v1205 = vpack.c.b16 %v880, %v867
  %v1206 = vpack.c.b16 %v894, %v881
  %v1207 = vpack.c.b16 %v895, %v882
  %v1208 = vpack.c.b16 %v896, %v883
  %v1209 = vpack.c.b16 %v897, %v884
  %v1210 = vpack.c.b16 %v898, %v885
  %v1211 = vpack.c.b16 %v899, %v886
  %v1212 = vpack.c.b16 %v900, %v887
  %v1213 = vpack.c.b16 %v901, %v888
  %v1214 = vpack.c.b16 %v902, %v889
  %v1215 = vpack.c.b16 %v903, %v890
  %v1216 = vpack.c.b16 %v904, %v891
  %v1217 = vpack.c.b16 %v905, %v892
  %v1218 = vpack.c.b16 %v906, %v893
  %v1219 = vpack.c.b16 %v920, %v907
  %v1220 = vpack.c.b16 %v921, %v908
  %v1221 = vpack.c.b16 %v922, %v909
  %v1222 = vpack.c.b16 %v923, %v910
  %v1223 = vpack.c.b16 %v924, %v911
  %v1224 = vpack.c.b16 %v925, %v912
  %v1225 = vpack.c.b16 %v926, %v913
  %v1226 = vpack.c.b16 %v927, %v914
  %v1227 = vpack.c.b16 %v928, %v915
  %v1228 = vpack.c.b16 %v929, %v916
  %v1229 = vpack.c.b16 %v930, %v917
  %v1230 = vpack.c.b16 %v931, %v918
  %v1231 = vpack.c.b16 %v932, %v919
  %v1232 = vpack.c.b16 %v946, %v933
  %v1233 = vpack.c.b16 %v947, %v934
  %v1234 = vpack.c.b16 %v948, %v935
  %v1235 = vpack.c.b16 %v949, %v936
  %v1236 = vpack.c.b16 %v950, %v937
  %v1237 = vpack.c.b16 %v951, %v938
  %v1238 = vpack.c.b16 %v952, %v939
  %v1239 = vpack.c.b16 %v953, %v940
  %v1240 = vpack.c.b16 %v954, %v941
  %v1241 = vpack.c.b16 %v955, %v942
  %v1242 = vpack.c.b16 %v956, %v943
  %v1243 = vpack.c.b16 %v957, %v944
  %v1244 = vpack.c.b16 %v958, %v945
  %v1245 = vpack.c.b16 %v972, %v959
  %v1246 = vpack.c.b16 %v973, %v960
  %v1247 = vpack.c.b16 %v974, %v961
  %v1248 = vpack.c.b16 %v975, %v962
  %v1249 = vpack.c.b16 %v976, %v963
  %v1250 = vpack.c.b16 %v977, %v964
  %v1251 = vpack.c.b16 %v978, %v965
  %v1252 = vpack.c.b16 %v979, %v966
  %v1253 = vpack.c.b16 %v980, %v967
  %v1254 = vpack.c.b16 %v981, %v968
  %v1255 = vpack.c.b16 %v982, %v969
  %v1256 = vpack.c.b16 %v983, %v970
  %v1257 = vpack.c.b16 %v984, %v971
  %v1258 = vpack.c.b16 %v998, %v985
  %v1259 = vpack.c.b16 %v999, %v986
  %v1260 = vpack.c.b16 %v1000, %v987
  %v1261 = vpack.c.b16 %v1001, %v988
  %v1262 = vpack.c.b16 %v1002, %v989
  %v1263 = vpack.c.b16 %v1003, %v990
  %v1264 = vpack.c.b16 %v1004, %v991
  %v1265 = vpack.c.b16 %v1005, %v992
  %v1266 = vpack.c.b16 %v1006, %v993
  %v1267 = vpack.c.b16 %v1007, %v994
  %v1268 = vpack.c.b16 %v1008, %v995
  %v1269 = vpack.c.b16 %v1009, %v996
  %v1270 = vpack.c.b16 %v1010, %v997
  %v1271 = vpack.c.b16 %v1024, %v1011
  %v1272 = vpack.c.b16 %v1025, %v1012
  %v1273 = vpack.c.b16 %v1026, %v1013
  %v1274 = vpack.c.b16 %v1027, %v1014
  %v1275 = vpack.c.b16 %v1028, %v1015
  %v1276 = vpack.c.b16 %v1029, %v1016
  %v1277 = vpack.c.b16 %v1030, %v1017
  %v1278 = vpack.c.b16 %v1031, %v1018
  %v1279 = vpack.c.b16 %v1032, %v1019
  %v1280 = vpack.c.b16 %v1033, %v1020
  %v1281 = vpack.c.b16 %v1034, %v1021
  %v1282 = vpack.c.b16 %v1035, %v1022
  %v1283 = vpack.c.b16 %v1036, %v1023
  %v1284 = vpack.c.b16 %v1050, %v1037
  %v1285 = vpack.c.b16 %v1051, %v1038
  %v1286 = vpack.c.b16 %v1052, %v1039
  %v1287 = vpack.c.b16 %v1053, %v1040
  %v1288 = vpack.c.b16 %v1054, %v1041
  %v1289 = vpack.c.b16 %v1055, %v1042
  %v1290 = vpack.c.b16 %v1056, %v1043
  %v1291 = vpack.c.b16 %v1057, %v1044
  %v1292 = vpack.c.b16 %v1058, %v1045
  %v1293 = vpack.c.b16 %v1059, %v1046
  %v1294 = vpack.c.b16 %v1060, %v1047
  %v1295 = vpack.c.b16 %v1061, %v1048
  %v1296 = vpack.c.b16 %v1062, %v1049
  %v1297 = vpack.c.b16 %v1076, %v1063
  %v1298 = vpack.c.b16 %v1077, %v1064
  %v1299 = vpack.c.b16 %v1078, %v1065
  %v1300 = vpack.c.b16 %v1079, %v1066
  %v1301 = vpack.c.b16 %v1080, %v1067
  %v1302 = vpack.c.b16 %v1081, %v1068
  %v1303 = vpack.c.b16 %v1082, %v1069
  %v1304 = vpack.c.b16 %v1083, %v1070
  %v1305 = vpack.c.b16 %v1084, %v1071
  %v1306 = vpack.c.b16 %v1085, %v1072
  %v1307 = vpack.c.b16 %v1086, %v1073
  %v1308 = vpack.c.b16 %v1087, %v1074
  %v1309 = vpack.c.b16 %v1088, %v1075
  %v1310 = vpack.c.b16 %v1102, %v1089
  %v1311 = vpack.c.b16 %v1103, %v1090
  %v1312 = vpack.c.b16 %v1104, %v1091
  %v1313 = vpack.c.b16 %v1105, %v1092
  %v1314 = vpack.c.b16 %v1106, %v1093
  %v1315 = vpack.c.b16 %v1107, %v1094
  %v1316 = vpack.c.b16 %v1108, %v1095
  %v1317 = vpack.c.b16 %v1109, %v1096
  %v1318 = vpack.c.b16 %v1110, %v1097
  %v1319 = vpack.c.b16 %v1111, %v1098
  %v1320 = vpack.c.b16 %v1112, %v1099
  %v1321 = vpack.c.b16 %v1113, %v1100
  %v1322 = vpack.c.b16 %v1114, %v1101
  %v1739 = vunpack.c.l.b16 %v263
  %v1740 = vunpack.c.l.b16 %v264
  %v1741 = vunpack.c.l.b16 %v265
  %v1742 = vunpack.c.l.b16 %v266
  %v1743 = vunpack.c.l.b16 %v267
  %v1744 = vunpack.c.l.b16 %v268
  %v1745 = vunpack.c.l.b16 %v269
  %v1746 = vunpack.c.l.b16 %v270
  %v1747 = vunpack.c.l.b16 %v271
  %v1748 = vunpack.c.l.b16 %v272
  %v1749 = vunpack.c.l.b16 %v273
  %v1750 = vunpack.c.l.b16 %v274
  %v1751 = vunpack.c.l.b16 %v275
  %v1752 = vunpack.c.l.b16 %v276
  %v1753 = vunpack.c.l.b16 %v277
  %v1754 = vunpack.c.l.b16 %v278
  %v1755 = vunpack.c.l.b16 %v279
  %v1756 = vunpack.c.l.b16 %v280
  %v1757 = vunpack.c.l.b16 %v281
  %v1758 = vunpack.c.l.b16 %v282
  %v1759 = vunpack.c.l.b16 %v283
  %v1760 = vunpack.c.l.b16 %v284
  %v1761 = vunpack.c.l.b16 %v285
  %v1762 = vunpack.c.l.b16 %v286
  %v1763 = vunpack.c.l.b16 %v287
  %v1764 = vunpack.c.l.b16 %v288
  %v1765 = vunpack.c.l.b16 %v289
  %v1766 = vunpack.c.l.b16 %v290
  %v1767 = vunpack.c.l.b16 %v291
  %v1768 = vunpack.c.l.b16 %v292
  %v1769 = vunpack.c.l.b16 %v293
  %v1770 = vunpack.c.l.b16 %v294
  %v1771 = vunpack.c.l.b16 %v295
  %v1772 = vunpack.c.l.b16 %v296
  %v1773 = vunpack.c.l.b16 %v297
  %v1774 = vunpack.c.l.b16 %v298
  %v1775 = vunpack.c.l.b16 %v299
  %v1776 = vunpack.c.l.b16 %v300
  %v1777 = vunpack.c.l.b16 %v301
  %v1778 = vunpack.c.l.b16 %v302
  %v1779 = vunpack.c.l.b16 %v303
  %v1780 = vunpack.c.l.b16 %v304
  %v1781 = vunpack.c.l.b16 %v305
  %v1782 = vunpack.c.l.b16 %v306
  %v1783 = vunpack.c.l.b16 %v307
  %v1784 = vunpack.c.l.b16 %v308
  %v1785 = vunpack.c.l.b16 %v309
  %v1786 = vunpack.c.l.b16 %v310
  %v1787 = vunpack.c.l.b16 %v311
  %v1788 = vunpack.c.l.b16 %v312
  %v1789 = vunpack.c.l.b16 %v313
  %v1790 = vunpack.c.l.b16 %v314
  %v1791 = vunpack.c.l.b16 %v315
  %v1792 = vunpack.c.l.b16 %v316
  %v1793 = vunpack.c.l.b16 %v317
  %v1794 = vunpack.c.l.b16 %v318
  %v1795 = vunpack.c.l.b16 %v319
  %v1796 = vunpack.c.l.b16 %v320
  %v1797 = vunpack.c.l.b16 %v321
  %v1798 = vunpack.c.l.b16 %v322
  %v1799 = vunpack.c.l.b16 %v323
  %v1800 = vunpack.c.l.b16 %v324
  %v1801 = vunpack.c.l.b16 %v325
  %v1802 = vunpack.c.l.b16 %v326
  %v1803 = vunpack.c.l.b16 %v327
  %v1804 = vunpack.c.l.b16 %v328
  %v1805 = vunpack.c.l.b16 %v329
  %v1806 = vunpack.c.l.b16 %v330
  %v1807 = vunpack.c.l.b16 %v331
  %v1808 = vunpack.c.l.b16 %v332
  %v1809 = vunpack.c.l.b16 %v333
  %v1810 = vunpack.c.l.b16 %v334
  %v1811 = vunpack.c.l.b16 %v335
  %v1812 = vunpack.c.l.b16 %v336
  %v1813 = vunpack.c.l.b16 %v337
  %v1814 = vunpack.c.l.b16 %v338
  %v1815 = vunpack.c.l.b16 %v339
  %v1816 = vunpack.c.l.b16 %v340
  %v1817 = vunpack.c.l.b16 %v341
  %v1818 = vunpack.c.l.b16 %v342
  %v1819 = vunpack.c.l.b16 %v343
  %v1820 = vunpack.c.l.b16 %v344
  %v1821 = vunpack.c.l.b16 %v345
  %v1822 = vunpack.c.l.b16 %v346
  %v1823 = vunpack.c.l.b16 %v347
  %v1824 = vunpack.c.l.b16 %v348
  %v1825 = vunpack.c.l.b16 %v349
  %v1826 = vunpack.c.l.b16 %v350
  %v1827 = vunpack.c.l.b16 %v351
  %v1828 = vunpack.c.l.b16 %v352
  %v1829 = vunpack.c.l.b16 %v353
  %v1830 = vunpack.c.l.b16 %v354
  %v1831 = vunpack.c.l.b16 %v355
  %v1832 = vunpack.c.l.b16 %v356
  %v1833 = vunpack.c.l.b16 %v357
  %v1834 = vunpack.c.l.b16 %v358
  %v1835 = vunpack.c.l.b16 %v359
  %v1836 = vunpack.c.l.b16 %v360
  %v1837 = vunpack.c.l.b16 %v361
  %v1838 = vunpack.c.l.b16 %v362
  %v1839 = vunpack.c.l.b16 %v363
  %v1840 = vunpack.c.l.b16 %v364
  %v1841 = vunpack.c.l.b16 %v365
  %v1842 = vunpack.c.l.b16 %v366
  %v1843 = vunpack.c.l.b16 %v367
  %v1844 = vunpack.c.l.b16 %v368
  %v1845 = vunpack.c.l.b16 %v369
  %v1846 = vunpack.c.l.b16 %v370
  %v1847 = vunpack.c.l.b16 %v371
  %v1848 = vunpack.c.l.b16 %v372
  %v1849 = vunpack.c.l.b16 %v373
  %v1850 = vunpack.c.l.b16 %v374
  %v1851 = vunpack.c.l.b16 %v375
  %v1852 = vunpack.c.l.b16 %v376
  %v1853 = vunpack.c.l.b16 %v377
  %v1854 = vunpack.c.l.b16 %v378
  %v1855 = vunpack.c.l.b16 %v379
  %v1856 = vunpack.c.l.b16 %v380
  %v1857 = vunpack.c.l.b16 %v381
  %v1858 = vunpack.c.l.b16 %v382
  %v1859 = vunpack.c.l.b16 %v383
  %v1860 = vunpack.c.l.b16 %v384
  %v1861 = vunpack.c.l.b16 %v385
  %v1862 = vunpack.c.l.b16 %v386
  %v1863 = vunpack.c.l.b16 %v387
  %v1864 = vunpack.c.l.b16 %v388
  %v1865 = vunpack.c.l.b16 %v389
  %v1866 = vunpack.c.l.b16 %v390
  %v1867 = vunpack.c.l.b16 %v391
  %v1868 = vunpack.c.l.b16 %v392
  %v1869 = vunpack.c.l.b16 %v393
  %v1870 = vunpack.c.l.b16 %v394
  %v1871 = vunpack.c.l.b16 %v395
  %v1872 = vunpack.c.l.b16 %v396
  %v1873 = vunpack.c.l.b16 %v397
  %v1874 = vunpack.c.l.b16 %v398
  %v1875 = vunpack.c.l.b16 %v399
  %v1876 = vunpack.c.l.b16 %v400
  %v1877 = vunpack.c.l.b16 %v401
  %v1878 = vunpack.c.l.b16 %v402
  %v1879 = vunpack.c.l.b16 %v403
  %v1880 = vunpack.c.l.b16 %v404
  %v1881 = vunpack.c.l.b16 %v405
  %v1882 = vunpack.c.l.b16 %v406
  %v1883 = vunpack.c.l.b16 %v407
  %v1884 = vunpack.c.l.b16 %v408
  %v1885 = vunpack.c.l.b16 %v409
  %v1886 = vunpack.c.l.b16 %v410
  %v1887 = vunpack.c.l.b16 %v411
  %v1888 = vunpack.c.l.b16 %v412
  %v1889 = vunpack.c.l.b16 %v413
  %v1890 = vunpack.c.l.b16 %v414
  %v1891 = vunpack.c.l.b16 %v415
  %v1892 = vunpack.c.l.b16 %v416
  %v1893 = vunpack.c.l.b16 %v417
  %v1894 = vunpack.c.l.b16 %v418
  %v1895 = vunpack.c.l.b16 %v419
  %v1896 = vunpack.c.l.b16 %v420
  %v1897 = vunpack.c.l.b16 %v421
  %v1898 = vunpack.c.l.b16 %v422
  %v1899 = vunpack.c.l.b16 %v423
  %v1900 = vunpack.c.l.b16 %v424
  %v1901 = vunpack.c.l.b16 %v425
  %v1902 = vunpack.c.l.b16 %v426
  %v1903 = vunpack.c.l.b16 %v427
  %v1904 = vunpack.c.l.b16 %v428
  %v1905 = vunpack.c.l.b16 %v429
  %v1906 = vunpack.c.l.b16 %v430
  %v1907 = vunpack.c.l.b16 %v431
  %v1908 = vunpack.c.l.b16 %v432
  %v1909 = vunpack.c.l.b16 %v433
  %v1910 = vunpack.c.l.b16 %v434
  %v1911 = vunpack.c.l.b16 %v435
  %v1912 = vunpack.c.l.b16 %v436
  %v1913 = vunpack.c.l.b16 %v437
  %v1914 = vunpack.c.l.b16 %v438
  %v1915 = vunpack.c.l.b16 %v439
  %v1916 = vunpack.c.l.b16 %v440
  %v1917 = vunpack.c.l.b16 %v441
  %v1918 = vunpack.c.l.b16 %v442
  %v1919 = vunpack.c.l.b16 %v443
  %v1920 = vunpack.c.l.b16 %v444
  %v1921 = vunpack.c.l.b16 %v445
  %v1922 = vunpack.c.l.b16 %v446
  %v1923 = vunpack.c.l.b16 %v447
  %v1924 = vunpack.c.l.b16 %v448
  %v1925 = vunpack.c.l.b16 %v449
  %v1926 = vunpack.c.l.b16 %v450
  %v1927 = vunpack.c.l.b16 %v451
  %v1928 = vunpack.c.l.b16 %v452
  %v1929 = vunpack.c.l.b16 %v453
  %v1930 = vunpack.c.l.b16 %v454
  %v1931 = vunpack.c.l.b16 %v455
  %v1932 = vunpack.c.l.b16 %v456
  %v1933 = vunpack.c.l.b16 %v457
  %v1934 = vunpack.c.l.b16 %v458
  %v1935 = vunpack.c.l.b16 %v459
  %v1936 = vunpack.c.l.b16 %v460
  %v1937 = vunpack.c.l.b16 %v461
  %v1938 = vunpack.c.l.b16 %v462
  %v1939 = vunpack.c.l.b16 %v463
  %v1940 = vunpack.c.l.b16 %v464
  %v1941 = vunpack.c.l.b16 %v465
  %v1942 = vunpack.c.l.b16 %v466
  %v1943 = vunpack.c.l.b16 %v467
  %v1944 = vunpack.c.l.b16 %v468
  %v1945 = vunpack.c.l.b16 %v469
  %v1946 = vunpack.c.l.b16 %v470
  %v1947 = vpack.c.b16 %v1740, %v1739
  %v1948 = vpack.c.b16 %v1742, %v1741
  %v1949 = vpack.c.b16 %v1744, %v1743
  %v1950 = vpack.c.b16 %v1746, %v1745
  %v1951 = vpack.c.b16 %v1748, %v1747
  %v1952 = vpack.c.b16 %v1750, %v1749
  %v1953 = vpack.c.b16 %v1752, %v1751
  %v1954 = vpack.c.b16 %v1754, %v1753
  %v1955 = vpack.c.b16 %v1756, %v1755
  %v1956 = vpack.c.b16 %v1758, %v1757
  %v1957 = vpack.c.b16 %v1760, %v1759
  %v1958 = vpack.c.b16 %v1762, %v1761
  %v1959 = vpack.c.b16 %v1764, %v1763
  %v1960 = vpack.c.b16 %v1766, %v1765
  %v1961 = vpack.c.b16 %v1768, %v1767
  %v1962 = vpack.c.b16 %v1770, %v1769
  %v1963 = vpack.c.b16 %v1772, %v1771
  %v1964 = vpack.c.b16 %v1774, %v1773
  %v1965 = vpack.c.b16 %v1776, %v1775
  %v1966 = vpack.c.b16 %v1778, %v1777
  %v1967 = vpack.c.b16 %v1780, %v1779
  %v1968 = vpack.c.b16 %v1782, %v1781
  %v1969 = vpack.c.b16 %v1784, %v1783
  %v1970 = vpack.c.b16 %v1786, %v1785
  %v1971 = vpack.c.b16 %v1788, %v1787
  %v1972 = vpack.c.b16 %v1790, %v1789
  %v1973 = vpack.c.b16 %v1792, %v1791
  %v1974 = vpack.c.b16 %v1794, %v1793
  %v1975 = vpack.c.b16 %v1796, %v1795
  %v1976 = vpack.c.b16 %v1798, %v1797
  %v1977 = vpack.c.b16 %v1800, %v1799
  %v1978 = vpack.c.b16 %v1802, %v1801
  %v1979 = vpack.c.b16 %v1804, %v1803
  %v1980 = vpack.c.b16 %v1806, %v1805
  %v1981 = vpack.c.b16 %v1808, %v1807
  %v1982 = vpack.c.b16 %v1810, %v1809
  %v1983 = vpack.c.b16 %v1812, %v1811
  %v1984 = vpack.c.b16 %v1814, %v1813
  %v1985 = vpack.c.b16 %v1816, %v1815
  %v1986 = vpack.c.b16 %v1818, %v1817
  %v1987 = vpack.c.b16 %v1820, %v1819
  %v1988 = vpack.c.b16 %v1822, %v1821
  %v1989 = vpack.c.b16 %v1824, %v1823
  %v1990 = vpack.c.b16 %v1826, %v1825
  %v1991 = vpack.c.b16 %v1828, %v1827
  %v1992 = vpack.c.b16 %v1830, %v1829
  %v1993 = vpack.c.b16 %v1832, %v1831
  %v1994 = vpack.c.b16 %v1834, %v1833
  %v1995 = vpack.c.b16 %v1836, %v1835
  %v1996 = vpack.c.b16 %v1838, %v1837
  %v1997 = vpack.c.b16 %v1840, %v1839
  %v1998 = vpack.c.b16 %v1842, %v1841
  %v1999 = vpack.c.b16 %v1844, %v1843
  %v2000 = vpack.c.b16 %v1846, %v1845
  %v2001 = vpack.c.b16 %v1848, %v1847
  %v2002 = vpack.c.b16 %v1850, %v1849
  %v2003 = vpack.c.b16 %v1852, %v1851
  %v2004 = vpack.c.b16 %v1854, %v1853
  %v2005 = vpack.c.b16 %v1856, %v1855
  %v2006 = vpack.c.b16 %v1858, %v1857
  %v2007 = vpack.c.b16 %v1860, %v1859
  %v2008 = vpack.c.b16 %v1862, %v1861
  %v2009 = vpack.c.b16 %v1864, %v1863
  %v2010 = vpack.c.b16 %v1866, %v1865
  %v2011 = vpack.c.b16 %v1868, %v1867
  %v2012 = vpack.c.b16 %v1870, %v1869
  %v2013 = vpack.c.b16 %v1872, %v1871
  %v2014 = vpack.c.b16 %v1874, %v1873
  %v2015 = vpack.c.b16 %v1876, %v1875
  %v2016 = vpack.c.b16 %v1878, %v1877
  %v2017 = vpack.c.b16 %v1880, %v1879
  %v2018 = vpack.c.b16 %v1882, %v1881
  %v2019 = vpack.c.b16 %v1884, %v1883
  %v2020 = vpack.c.b16 %v1886, %v1885
  %v2021 = vpack.c.b16 %v1888, %v1887
  %v2022 = vpack.c.b16 %v1890, %v1889
  %v2023 = vpack.c.b16 %v1892, %v1891
  %v2024 = vpack.c.b16 %v1894, %v1893
  %v2025 = vpack.c.b16 %v1896, %v1895
  %v2026 = vpack.c.b16 %v1898, %v1897
  %v2027 = vpack.c.b16 %v1900, %v1899
  %v2028 = vpack.c.b16 %v1902, %v1901
  %v2029 = vpack.c.b16 %v1904, %v1903
  %v2030 = vpack.c.b16 %v1906, %v1905
  %v2031 = vpack.c.b16 %v1908, %v1907
  %v2032 = vpack.c.b16 %v1910, %v1909
  %v2033 = vpack.c.b16 %v1912, %v1911
  %v2034 = vpack.c.b16 %v1914, %v1913
  %v2035 = vpack.c.b16 %v1916, %v1915
  %v2036 = vpack.c.b16 %v1918, %v1917
  %v2037 = vpack.c.b16 %v1920, %v1919
  %v2038 = vpack.c.b16 %v1922, %v1921
  %v2039 = vpack.c.b16 %v1924, %v1923
  %v2040 = vpack.c.b16 %v1926, %v1925
  %v2041 = vpack.c.b16 %v1928, %v1927
  %v2042 = vpack.c.b16 %v1930, %v1929
  %v2043 = vpack.c.b16 %v1932, %v1931
  %v2044 = vpack.c.b16 %v1934, %v1933
  %v2045 = vpack.c.b16 %v1936, %v1935
  %v2046 = vpack.c.b16 %v1938, %v1937
  %v2047 = vpack.c.b16 %v1940, %v1939
  %v2048 = vpack.c.b16 %v1942, %v1941
  %v2049 = vpack.c.b16 %v1944, %v1943
  %v2050 = vpack.c.b16 %v1946, %v1945
  %2155 = vmatpush.bf16.msra.mxu0 %v1954
  %2156 = vmatpush.bf16.msra.mxu0 %v1953
  %2157 = vmatpush.bf16.msra.mxu0 %v1952
  %2158 = vmatpush.bf16.msra.mxu0 %v1951
  %2159 = vmatpush.bf16.msra.mxu0 %v1950
  %2160 = vmatpush.bf16.msra.mxu0 %v1949
  %2161 = vmatpush.bf16.msra.mxu0 %v1948
  %2162 = vmatpush.bf16.msra.mxu0 %v1947
  %2163 = vmatmul.bf16.gmra.mxu0 %v1115
  %v2164 = vpop.f32.mrf.mxu0
  %v2165 = vadd.f32 %v473, %v2164
  %v2166 = vpop.f32.mrf.mxu0
  %v2167 = vadd.f32 %v473, %v2166
  %2168 = vmatmul.bf16.gmra.mxu0 %v1128
  %v2169 = vpop.f32.mrf.mxu0
  %v2170 = vadd.f32 %v473, %v2169
  %v2171 = vpop.f32.mrf.mxu0
  %v2172 = vadd.f32 %v473, %v2171
  %2173 = vmatmul.bf16.gmra.mxu0 %v1141
  %v2174 = vpop.f32.mrf.mxu0
  %v2175 = vadd.f32 %v473, %v2174
  %v2176 = vpop.f32.mrf.mxu0
  %v2177 = vadd.f32 %v473, %v2176
  %2178 = vmatmul.bf16.gmra.mxu0 %v1154
  %v2179 = vpop.f32.mrf.mxu0
  %v2180 = vadd.f32 %v473, %v2179
  %v2181 = vpop.f32.mrf.mxu0
  %v2182 = vadd.f32 %v473, %v2181
  %2183 = vmatmul.bf16.gmra.mxu0 %v1167
  %v2184 = vpop.f32.mrf.mxu0
  %v2185 = vadd.f32 %v473, %v2184
  %v2186 = vpop.f32.mrf.mxu0
  %v2187 = vadd.f32 %v473, %v2186
  %2188 = vmatmul.bf16.gmra.mxu0 %v1180
  %v2189 = vpop.f32.mrf.mxu0
  %v2190 = vadd.f32 %v473, %v2189
  %v2191 = vpop.f32.mrf.mxu0
  %v2192 = vadd.f32 %v473, %v2191
  %2193 = vmatmul.bf16.gmra.mxu0 %v1193
  %v2194 = vpop.f32.mrf.mxu0
  %v2195 = vadd.f32 %v473, %v2194
  %v2196 = vpop.f32.mrf.mxu0
  %v2197 = vadd.f32 %v473, %v2196
  %2198 = vmatmul.bf16.gmra.mxu0 %v1206
  %v2199 = vpop.f32.mrf.mxu0
  %v2200 = vadd.f32 %v473, %v2199
  %v2201 = vpop.f32.mrf.mxu0
  %v2202 = vadd.f32 %v473, %v2201
  %2203 = vmatmul.bf16.gmra.mxu0 %v1219
  %v2204 = vpop.f32.mrf.mxu0
  %v2205 = vadd.f32 %v473, %v2204
  %v2206 = vpop.f32.mrf.mxu0
  %v2207 = vadd.f32 %v473, %v2206
  %2208 = vmatmul.bf16.gmra.mxu0 %v1232
  %v2209 = vpop.f32.mrf.mxu0
  %v2210 = vadd.f32 %v473, %v2209
  %v2211 = vpop.f32.mrf.mxu0
  %v2212 = vadd.f32 %v473, %v2211
  %2213 = vmatmul.bf16.gmra.mxu0 %v1245
  %v2214 = vpop.f32.mrf.mxu0
  %v2215 = vadd.f32 %v473, %v2214
  %v2216 = vpop.f32.mrf.mxu0
  %v2217 = vadd.f32 %v473, %v2216
  %2218 = vmatmul.bf16.gmra.mxu0 %v1258
  %v2219 = vpop.f32.mrf.mxu0
  %v2220 = vadd.f32 %v473, %v2219
  %v2221 = vpop.f32.mrf.mxu0
  %v2222 = vadd.f32 %v473, %v2221
  %2223 = vmatmul.bf16.gmra.mxu0 %v1271
  %v2224 = vpop.f32.mrf.mxu0
  %v2225 = vadd.f32 %v473, %v2224
  %v2226 = vpop.f32.mrf.mxu0
  %v2227 = vadd.f32 %v473, %v2226
  %2228 = vmatmul.bf16.gmra.mxu0 %v1284
  %v2229 = vpop.f32.mrf.mxu0
  %v2230 = vadd.f32 %v473, %v2229
  %v2231 = vpop.f32.mrf.mxu0
  %v2232 = vadd.f32 %v473, %v2231
  %2233 = vmatmul.bf16.gmra.mxu0 %v1297
  %v2234 = vpop.f32.mrf.mxu0
  %v2235 = vadd.f32 %v473, %v2234
  %v2236 = vpop.f32.mrf.mxu0
  %v2237 = vadd.f32 %v473, %v2236
  %2238 = vmatmul.bf16.gmra.mxu0 %v1310
  %v2239 = vpop.f32.mrf.mxu0
  %v2240 = vadd.f32 %v473, %v2239
  %v2241 = vpop.f32.mrf.mxu0
  %v2242 = vadd.f32 %v473, %v2241
  %2243 = vdwg.mxu0
  %2244 = vmatpush.bf16.msra.mxu0 %v1962
  %2245 = vmatpush.bf16.msra.mxu0 %v1961
  %2246 = vmatpush.bf16.msra.mxu0 %v1960
  %2247 = vmatpush.bf16.msra.mxu0 %v1959
  %2248 = vmatpush.bf16.msra.mxu0 %v1958
  %2249 = vmatpush.bf16.msra.mxu0 %v1957
  %2250 = vmatpush.bf16.msra.mxu0 %v1956
  %2251 = vmatpush.bf16.msra.mxu0 %v1955
  %2252 = vmatmul.bf16.gmra.mxu0 %v1116
  %v2253 = vpop.f32.mrf.mxu0
  %v2254 = vadd.f32 %v2165, %v2253
  %v2255 = vpop.f32.mrf.mxu0
  %v2256 = vadd.f32 %v2167, %v2255
  %2257 = vmatmul.bf16.gmra.mxu0 %v1129
  %v2258 = vpop.f32.mrf.mxu0
  %v2259 = vadd.f32 %v2170, %v2258
  %v2260 = vpop.f32.mrf.mxu0
  %v2261 = vadd.f32 %v2172, %v2260
  %2262 = vmatmul.bf16.gmra.mxu0 %v1142
  %v2263 = vpop.f32.mrf.mxu0
  %v2264 = vadd.f32 %v2175, %v2263
  %v2265 = vpop.f32.mrf.mxu0
  %v2266 = vadd.f32 %v2177, %v2265
  %2267 = vmatmul.bf16.gmra.mxu0 %v1155
  %v2268 = vpop.f32.mrf.mxu0
  %v2269 = vadd.f32 %v2180, %v2268
  %v2270 = vpop.f32.mrf.mxu0
  %v2271 = vadd.f32 %v2182, %v2270
  %2272 = vmatmul.bf16.gmra.mxu0 %v1168
  %v2273 = vpop.f32.mrf.mxu0
  %v2274 = vadd.f32 %v2185, %v2273
  %v2275 = vpop.f32.mrf.mxu0
  %v2276 = vadd.f32 %v2187, %v2275
  %2277 = vmatmul.bf16.gmra.mxu0 %v1181
  %v2278 = vpop.f32.mrf.mxu0
  %v2279 = vadd.f32 %v2190, %v2278
  %v2280 = vpop.f32.mrf.mxu0
  %v2281 = vadd.f32 %v2192, %v2280
  %2282 = vmatmul.bf16.gmra.mxu0 %v1194
  %v2283 = vpop.f32.mrf.mxu0
  %v2284 = vadd.f32 %v2195, %v2283
  %v2285 = vpop.f32.mrf.mxu0
  %v2286 = vadd.f32 %v2197, %v2285
  %2287 = vmatmul.bf16.gmra.mxu0 %v1207
  %v2288 = vpop.f32.mrf.mxu0
  %v2289 = vadd.f32 %v2200, %v2288
  %v2290 = vpop.f32.mrf.mxu0
  %v2291 = vadd.f32 %v2202, %v2290
  %2292 = vmatmul.bf16.gmra.mxu0 %v1220
  %v2293 = vpop.f32.mrf.mxu0
  %v2294 = vadd.f32 %v2205, %v2293
  %v2295 = vpop.f32.mrf.mxu0
  %v2296 = vadd.f32 %v2207, %v2295
  %2297 = vmatmul.bf16.gmra.mxu0 %v1233
  %v2298 = vpop.f32.mrf.mxu0
  %v2299 = vadd.f32 %v2210, %v2298
  %v2300 = vpop.f32.mrf.mxu0
  %v2301 = vadd.f32 %v2212, %v2300
  %2302 = vmatmul.bf16.gmra.mxu0 %v1246
  %v2303 = vpop.f32.mrf.mxu0
  %v2304 = vadd.f32 %v2215, %v2303
  %v2305 = vpop.f32.mrf.mxu0
  %v2306 = vadd.f32 %v2217, %v2305
  %2307 = vmatmul.bf16.gmra.mxu0 %v1259
  %v2308 = vpop.f32.mrf.mxu0
  %v2309 = vadd.f32 %v2220, %v2308
  %v2310 = vpop.f32.mrf.mxu0
  %v2311 = vadd.f32 %v2222, %v2310
  %2312 = vmatmul.bf16.gmra.mxu0 %v1272
  %v2313 = vpop.f32.mrf.mxu0
  %v2314 = vadd.f32 %v2225, %v2313
  %v2315 = vpop.f32.mrf.mxu0
  %v2316 = vadd.f32 %v2227, %v2315
  %2317 = vmatmul.bf16.gmra.mxu0 %v1285
  %v2318 = vpop.f32.mrf.mxu0
  %v2319 = vadd.f32 %v2230, %v2318
  %v2320 = vpop.f32.mrf.mxu0
  %v2321 = vadd.f32 %v2232, %v2320
  %2322 = vmatmul.bf16.gmra.mxu0 %v1298
  %v2323 = vpop.f32.mrf.mxu0
  %v2324 = vadd.f32 %v2235, %v2323
  %v2325 = vpop.f32.mrf.mxu0
  %v2326 = vadd.f32 %v2237, %v2325
  %2327 = vmatmul.bf16.gmra.mxu0 %v1311
  %v2328 = vpop.f32.mrf.mxu0
  %v2329 = vadd.f32 %v2240, %v2328
  %v2330 = vpop.f32.mrf.mxu0
  %v2331 = vadd.f32 %v2242, %v2330
  %2332 = vdwg.mxu0
  %2333 = vmatpush.bf16.msra.mxu0 %v1970
  %2334 = vmatpush.bf16.msra.mxu0 %v1969
  %2335 = vmatpush.bf16.msra.mxu0 %v1968
  %2336 = vmatpush.bf16.msra.mxu0 %v1967
  %2337 = vmatpush.bf16.msra.mxu0 %v1966
  %2338 = vmatpush.bf16.msra.mxu0 %v1965
  %2339 = vmatpush.bf16.msra.mxu0 %v1964
  %2340 = vmatpush.bf16.msra.mxu0 %v1963
  %2341 = vmatmul.bf16.gmra.mxu0 %v1117
  %v2342 = vpop.f32.mrf.mxu0
  %v2343 = vadd.f32 %v2254, %v2342
  %v2344 = vpop.f32.mrf.mxu0
  %v2345 = vadd.f32 %v2256, %v2344
  %2346 = vmatmul.bf16.gmra.mxu0 %v1130
  %v2347 = vpop.f32.mrf.mxu0
  %v2348 = vadd.f32 %v2259, %v2347
  %v2349 = vpop.f32.mrf.mxu0
  %v2350 = vadd.f32 %v2261, %v2349
  %2351 = vmatmul.bf16.gmra.mxu0 %v1143
  %v2352 = vpop.f32.mrf.mxu0
  %v2353 = vadd.f32 %v2264, %v2352
  %v2354 = vpop.f32.mrf.mxu0
  %v2355 = vadd.f32 %v2266, %v2354
  %2356 = vmatmul.bf16.gmra.mxu0 %v1156
  %v2357 = vpop.f32.mrf.mxu0
  %v2358 = vadd.f32 %v2269, %v2357
  %v2359 = vpop.f32.mrf.mxu0
  %v2360 = vadd.f32 %v2271, %v2359
  %2361 = vmatmul.bf16.gmra.mxu0 %v1169
  %v2362 = vpop.f32.mrf.mxu0
  %v2363 = vadd.f32 %v2274, %v2362
  %v2364 = vpop.f32.mrf.mxu0
  %v2365 = vadd.f32 %v2276, %v2364
  %2366 = vmatmul.bf16.gmra.mxu0 %v1182
  %v2367 = vpop.f32.mrf.mxu0
  %v2368 = vadd.f32 %v2279, %v2367
  %v2369 = vpop.f32.mrf.mxu0
  %v2370 = vadd.f32 %v2281, %v2369
  %2371 = vmatmul.bf16.gmra.mxu0 %v1195
  %v2372 = vpop.f32.mrf.mxu0
  %v2373 = vadd.f32 %v2284, %v2372
  %v2374 = vpop.f32.mrf.mxu0
  %v2375 = vadd.f32 %v2286, %v2374
  %2376 = vmatmul.bf16.gmra.mxu0 %v1208
  %v2377 = vpop.f32.mrf.mxu0
  %v2378 = vadd.f32 %v2289, %v2377
  %v2379 = vpop.f32.mrf.mxu0
  %v2380 = vadd.f32 %v2291, %v2379
  %2381 = vmatmul.bf16.gmra.mxu0 %v1221
  %v2382 = vpop.f32.mrf.mxu0
  %v2383 = vadd.f32 %v2294, %v2382
  %v2384 = vpop.f32.mrf.mxu0
  %v2385 = vadd.f32 %v2296, %v2384
  %2386 = vmatmul.bf16.gmra.mxu0 %v1234
  %v2387 = vpop.f32.mrf.mxu0
  %v2388 = vadd.f32 %v2299, %v2387
  %v2389 = vpop.f32.mrf.mxu0
  %v2390 = vadd.f32 %v2301, %v2389
  %2391 = vmatmul.bf16.gmra.mxu0 %v1247
  %v2392 = vpop.f32.mrf.mxu0
  %v2393 = vadd.f32 %v2304, %v2392
  %v2394 = vpop.f32.mrf.mxu0
  %v2395 = vadd.f32 %v2306, %v2394
  %2396 = vmatmul.bf16.gmra.mxu0 %v1260
  %v2397 = vpop.f32.mrf.mxu0
  %v2398 = vadd.f32 %v2309, %v2397
  %v2399 = vpop.f32.mrf.mxu0
  %v2400 = vadd.f32 %v2311, %v2399
  %2401 = vmatmul.bf16.gmra.mxu0 %v1273
  %v2402 = vpop.f32.mrf.mxu0
  %v2403 = vadd.f32 %v2314, %v2402
  %v2404 = vpop.f32.mrf.mxu0
  %v2405 = vadd.f32 %v2316, %v2404
  %2406 = vmatmul.bf16.gmra.mxu0 %v1286
  %v2407 = vpop.f32.mrf.mxu0
  %v2408 = vadd.f32 %v2319, %v2407
  %v2409 = vpop.f32.mrf.mxu0
  %v2410 = vadd.f32 %v2321, %v2409
  %2411 = vmatmul.bf16.gmra.mxu0 %v1299
  %v2412 = vpop.f32.mrf.mxu0
  %v2413 = vadd.f32 %v2324, %v2412
  %v2414 = vpop.f32.mrf.mxu0
  %v2415 = vadd.f32 %v2326, %v2414
  %2416 = vmatmul.bf16.gmra.mxu0 %v1312
  %v2417 = vpop.f32.mrf.mxu0
  %v2418 = vadd.f32 %v2329, %v2417
  %v2419 = vpop.f32.mrf.mxu0
  %v2420 = vadd.f32 %v2331, %v2419
  %2421 = vdwg.mxu0
  %2422 = vmatpush.bf16.msra.mxu0 %v1978
  %2423 = vmatpush.bf16.msra.mxu0 %v1977
  %2424 = vmatpush.bf16.msra.mxu0 %v1976
  %2425 = vmatpush.bf16.msra.mxu0 %v1975
  %2426 = vmatpush.bf16.msra.mxu0 %v1974
  %2427 = vmatpush.bf16.msra.mxu0 %v1973
  %2428 = vmatpush.bf16.msra.mxu0 %v1972
  %2429 = vmatpush.bf16.msra.mxu0 %v1971
  %2430 = vmatmul.bf16.gmra.mxu0 %v1118
  %v2431 = vpop.f32.mrf.mxu0
  %v2432 = vadd.f32 %v2343, %v2431
  %v2433 = vpop.f32.mrf.mxu0
  %v2434 = vadd.f32 %v2345, %v2433
  %2435 = vmatmul.bf16.gmra.mxu0 %v1131
  %v2436 = vpop.f32.mrf.mxu0
  %v2437 = vadd.f32 %v2348, %v2436
  %v2438 = vpop.f32.mrf.mxu0
  %v2439 = vadd.f32 %v2350, %v2438
  %2440 = vmatmul.bf16.gmra.mxu0 %v1144
  %v2441 = vpop.f32.mrf.mxu0
  %v2442 = vadd.f32 %v2353, %v2441
  %v2443 = vpop.f32.mrf.mxu0
  %v2444 = vadd.f32 %v2355, %v2443
  %2445 = vmatmul.bf16.gmra.mxu0 %v1157
  %v2446 = vpop.f32.mrf.mxu0
  %v2447 = vadd.f32 %v2358, %v2446
  %v2448 = vpop.f32.mrf.mxu0
  %v2449 = vadd.f32 %v2360, %v2448
  %2450 = vmatmul.bf16.gmra.mxu0 %v1170
  %v2451 = vpop.f32.mrf.mxu0
  %v2452 = vadd.f32 %v2363, %v2451
  %v2453 = vpop.f32.mrf.mxu0
  %v2454 = vadd.f32 %v2365, %v2453
  %2455 = vmatmul.bf16.gmra.mxu0 %v1183
  %v2456 = vpop.f32.mrf.mxu0
  %v2457 = vadd.f32 %v2368, %v2456
  %v2458 = vpop.f32.mrf.mxu0
  %v2459 = vadd.f32 %v2370, %v2458
  %2460 = vmatmul.bf16.gmra.mxu0 %v1196
  %v2461 = vpop.f32.mrf.mxu0
  %v2462 = vadd.f32 %v2373, %v2461
  %v2463 = vpop.f32.mrf.mxu0
  %v2464 = vadd.f32 %v2375, %v2463
  %2465 = vmatmul.bf16.gmra.mxu0 %v1209
  %v2466 = vpop.f32.mrf.mxu0
  %v2467 = vadd.f32 %v2378, %v2466
  %v2468 = vpop.f32.mrf.mxu0
  %v2469 = vadd.f32 %v2380, %v2468
  %2470 = vmatmul.bf16.gmra.mxu0 %v1222
  %v2471 = vpop.f32.mrf.mxu0
  %v2472 = vadd.f32 %v2383, %v2471
  %v2473 = vpop.f32.mrf.mxu0
  %v2474 = vadd.f32 %v2385, %v2473
  %2475 = vmatmul.bf16.gmra.mxu0 %v1235
  %v2476 = vpop.f32.mrf.mxu0
  %v2477 = vadd.f32 %v2388, %v2476
  %v2478 = vpop.f32.mrf.mxu0
  %v2479 = vadd.f32 %v2390, %v2478
  %2480 = vmatmul.bf16.gmra.mxu0 %v1248
  %v2481 = vpop.f32.mrf.mxu0
  %v2482 = vadd.f32 %v2393, %v2481
  %v2483 = vpop.f32.mrf.mxu0
  %v2484 = vadd.f32 %v2395, %v2483
  %2485 = vmatmul.bf16.gmra.mxu0 %v1261
  %v2486 = vpop.f32.mrf.mxu0
  %v2487 = vadd.f32 %v2398, %v2486
  %v2488 = vpop.f32.mrf.mxu0
  %v2489 = vadd.f32 %v2400, %v2488
  %2490 = vmatmul.bf16.gmra.mxu0 %v1274
  %v2491 = vpop.f32.mrf.mxu0
  %v2492 = vadd.f32 %v2403, %v2491
  %v2493 = vpop.f32.mrf.mxu0
  %v2494 = vadd.f32 %v2405, %v2493
  %2495 = vmatmul.bf16.gmra.mxu0 %v1287
  %v2496 = vpop.f32.mrf.mxu0
  %v2497 = vadd.f32 %v2408, %v2496
  %v2498 = vpop.f32.mrf.mxu0
  %v2499 = vadd.f32 %v2410, %v2498
  %2500 = vmatmul.bf16.gmra.mxu0 %v1300
  %v2501 = vpop.f32.mrf.mxu0
  %v2502 = vadd.f32 %v2413, %v2501
  %v2503 = vpop.f32.mrf.mxu0
  %v2504 = vadd.f32 %v2415, %v2503
  %2505 = vmatmul.bf16.gmra.mxu0 %v1313
  %v2506 = vpop.f32.mrf.mxu0
  %v2507 = vadd.f32 %v2418, %v2506
  %v2508 = vpop.f32.mrf.mxu0
  %v2509 = vadd.f32 %v2420, %v2508
  %2510 = vdwg.mxu0
  %2511 = vmatpush.bf16.msra.mxu0 %v1986
  %2512 = vmatpush.bf16.msra.mxu0 %v1985
  %2513 = vmatpush.bf16.msra.mxu0 %v1984
  %2514 = vmatpush.bf16.msra.mxu0 %v1983
  %2515 = vmatpush.bf16.msra.mxu0 %v1982
  %2516 = vmatpush.bf16.msra.mxu0 %v1981
  %2517 = vmatpush.bf16.msra.mxu0 %v1980
  %2518 = vmatpush.bf16.msra.mxu0 %v1979
  %2519 = vmatmul.bf16.gmra.mxu0 %v1119
  %v2520 = vpop.f32.mrf.mxu0
  %v2521 = vadd.f32 %v2432, %v2520
  %v2522 = vpop.f32.mrf.mxu0
  %v2523 = vadd.f32 %v2434, %v2522
  %2524 = vmatmul.bf16.gmra.mxu0 %v1132
  %v2525 = vpop.f32.mrf.mxu0
  %v2526 = vadd.f32 %v2437, %v2525
  %v2527 = vpop.f32.mrf.mxu0
  %v2528 = vadd.f32 %v2439, %v2527
  %2529 = vmatmul.bf16.gmra.mxu0 %v1145
  %v2530 = vpop.f32.mrf.mxu0
  %v2531 = vadd.f32 %v2442, %v2530
  %v2532 = vpop.f32.mrf.mxu0
  %v2533 = vadd.f32 %v2444, %v2532
  %2534 = vmatmul.bf16.gmra.mxu0 %v1158
  %v2535 = vpop.f32.mrf.mxu0
  %v2536 = vadd.f32 %v2447, %v2535
  %v2537 = vpop.f32.mrf.mxu0
  %v2538 = vadd.f32 %v2449, %v2537
  %2539 = vmatmul.bf16.gmra.mxu0 %v1171
  %v2540 = vpop.f32.mrf.mxu0
  %v2541 = vadd.f32 %v2452, %v2540
  %v2542 = vpop.f32.mrf.mxu0
  %v2543 = vadd.f32 %v2454, %v2542
  %2544 = vmatmul.bf16.gmra.mxu0 %v1184
  %v2545 = vpop.f32.mrf.mxu0
  %v2546 = vadd.f32 %v2457, %v2545
  %v2547 = vpop.f32.mrf.mxu0
  %v2548 = vadd.f32 %v2459, %v2547
  %2549 = vmatmul.bf16.gmra.mxu0 %v1197
  %v2550 = vpop.f32.mrf.mxu0
  %v2551 = vadd.f32 %v2462, %v2550
  %v2552 = vpop.f32.mrf.mxu0
  %v2553 = vadd.f32 %v2464, %v2552
  %2554 = vmatmul.bf16.gmra.mxu0 %v1210
  %v2555 = vpop.f32.mrf.mxu0
  %v2556 = vadd.f32 %v2467, %v2555
  %v2557 = vpop.f32.mrf.mxu0
  %v2558 = vadd.f32 %v2469, %v2557
  %2559 = vmatmul.bf16.gmra.mxu0 %v1223
  %v2560 = vpop.f32.mrf.mxu0
  %v2561 = vadd.f32 %v2472, %v2560
  %v2562 = vpop.f32.mrf.mxu0
  %v2563 = vadd.f32 %v2474, %v2562
  %2564 = vmatmul.bf16.gmra.mxu0 %v1236
  %v2565 = vpop.f32.mrf.mxu0
  %v2566 = vadd.f32 %v2477, %v2565
  %v2567 = vpop.f32.mrf.mxu0
  %v2568 = vadd.f32 %v2479, %v2567
  %2569 = vmatmul.bf16.gmra.mxu0 %v1249
  %v2570 = vpop.f32.mrf.mxu0
  %v2571 = vadd.f32 %v2482, %v2570
  %v2572 = vpop.f32.mrf.mxu0
  %v2573 = vadd.f32 %v2484, %v2572
  %2574 = vmatmul.bf16.gmra.mxu0 %v1262
  %v2575 = vpop.f32.mrf.mxu0
  %v2576 = vadd.f32 %v2487, %v2575
  %v2577 = vpop.f32.mrf.mxu0
  %v2578 = vadd.f32 %v2489, %v2577
  %2579 = vmatmul.bf16.gmra.mxu0 %v1275
  %v2580 = vpop.f32.mrf.mxu0
  %v2581 = vadd.f32 %v2492, %v2580
  %v2582 = vpop.f32.mrf.mxu0
  %v2583 = vadd.f32 %v2494, %v2582
  %2584 = vmatmul.bf16.gmra.mxu0 %v1288
  %v2585 = vpop.f32.mrf.mxu0
  %v2586 = vadd.f32 %v2497, %v2585
  %v2587 = vpop.f32.mrf.mxu0
  %v2588 = vadd.f32 %v2499, %v2587
  %2589 = vmatmul.bf16.gmra.mxu0 %v1301
  %v2590 = vpop.f32.mrf.mxu0
  %v2591 = vadd.f32 %v2502, %v2590
  %v2592 = vpop.f32.mrf.mxu0
  %v2593 = vadd.f32 %v2504, %v2592
  %2594 = vmatmul.bf16.gmra.mxu0 %v1314
  %v2595 = vpop.f32.mrf.mxu0
  %v2596 = vadd.f32 %v2507, %v2595
  %v2597 = vpop.f32.mrf.mxu0
  %v2598 = vadd.f32 %v2509, %v2597
  %2599 = vdwg.mxu0
  %2600 = vmatpush.bf16.msra.mxu0 %v1994
  %2601 = vmatpush.bf16.msra.mxu0 %v1993
  %2602 = vmatpush.bf16.msra.mxu0 %v1992
  %2603 = vmatpush.bf16.msra.mxu0 %v1991
  %2604 = vmatpush.bf16.msra.mxu0 %v1990
  %2605 = vmatpush.bf16.msra.mxu0 %v1989
  %2606 = vmatpush.bf16.msra.mxu0 %v1988
  %2607 = vmatpush.bf16.msra.mxu0 %v1987
  %2608 = vmatmul.bf16.gmra.mxu0 %v1120
  %v2609 = vpop.f32.mrf.mxu0
  %v2610 = vadd.f32 %v2521, %v2609
  %v2611 = vpop.f32.mrf.mxu0
  %v2612 = vadd.f32 %v2523, %v2611
  %2613 = vmatmul.bf16.gmra.mxu0 %v1133
  %v2614 = vpop.f32.mrf.mxu0
  %v2615 = vadd.f32 %v2526, %v2614
  %v2616 = vpop.f32.mrf.mxu0
  %v2617 = vadd.f32 %v2528, %v2616
  %2618 = vmatmul.bf16.gmra.mxu0 %v1146
  %v2619 = vpop.f32.mrf.mxu0
  %v2620 = vadd.f32 %v2531, %v2619
  %v2621 = vpop.f32.mrf.mxu0
  %v2622 = vadd.f32 %v2533, %v2621
  %2623 = vmatmul.bf16.gmra.mxu0 %v1159
  %v2624 = vpop.f32.mrf.mxu0
  %v2625 = vadd.f32 %v2536, %v2624
  %v2626 = vpop.f32.mrf.mxu0
  %v2627 = vadd.f32 %v2538, %v2626
  %2628 = vmatmul.bf16.gmra.mxu0 %v1172
  %v2629 = vpop.f32.mrf.mxu0
  %v2630 = vadd.f32 %v2541, %v2629
  %v2631 = vpop.f32.mrf.mxu0
  %v2632 = vadd.f32 %v2543, %v2631
  %2633 = vmatmul.bf16.gmra.mxu0 %v1185
  %v2634 = vpop.f32.mrf.mxu0
  %v2635 = vadd.f32 %v2546, %v2634
  %v2636 = vpop.f32.mrf.mxu0
  %v2637 = vadd.f32 %v2548, %v2636
  %2638 = vmatmul.bf16.gmra.mxu0 %v1198
  %v2639 = vpop.f32.mrf.mxu0
  %v2640 = vadd.f32 %v2551, %v2639
  %v2641 = vpop.f32.mrf.mxu0
  %v2642 = vadd.f32 %v2553, %v2641
  %2643 = vmatmul.bf16.gmra.mxu0 %v1211
  %v2644 = vpop.f32.mrf.mxu0
  %v2645 = vadd.f32 %v2556, %v2644
  %v2646 = vpop.f32.mrf.mxu0
  %v2647 = vadd.f32 %v2558, %v2646
  %2648 = vmatmul.bf16.gmra.mxu0 %v1224
  %v2649 = vpop.f32.mrf.mxu0
  %v2650 = vadd.f32 %v2561, %v2649
  %v2651 = vpop.f32.mrf.mxu0
  %v2652 = vadd.f32 %v2563, %v2651
  %2653 = vmatmul.bf16.gmra.mxu0 %v1237
  %v2654 = vpop.f32.mrf.mxu0
  %v2655 = vadd.f32 %v2566, %v2654
  %v2656 = vpop.f32.mrf.mxu0
  %v2657 = vadd.f32 %v2568, %v2656
  %2658 = vmatmul.bf16.gmra.mxu0 %v1250
  %v2659 = vpop.f32.mrf.mxu0
  %v2660 = vadd.f32 %v2571, %v2659
  %v2661 = vpop.f32.mrf.mxu0
  %v2662 = vadd.f32 %v2573, %v2661
  %2663 = vmatmul.bf16.gmra.mxu0 %v1263
  %v2664 = vpop.f32.mrf.mxu0
  %v2665 = vadd.f32 %v2576, %v2664
  %v2666 = vpop.f32.mrf.mxu0
  %v2667 = vadd.f32 %v2578, %v2666
  %2668 = vmatmul.bf16.gmra.mxu0 %v1276
  %v2669 = vpop.f32.mrf.mxu0
  %v2670 = vadd.f32 %v2581, %v2669
  %v2671 = vpop.f32.mrf.mxu0
  %v2672 = vadd.f32 %v2583, %v2671
  %2673 = vmatmul.bf16.gmra.mxu0 %v1289
  %v2674 = vpop.f32.mrf.mxu0
  %v2675 = vadd.f32 %v2586, %v2674
  %v2676 = vpop.f32.mrf.mxu0
  %v2677 = vadd.f32 %v2588, %v2676
  %2678 = vmatmul.bf16.gmra.mxu0 %v1302
  %v2679 = vpop.f32.mrf.mxu0
  %v2680 = vadd.f32 %v2591, %v2679
  %v2681 = vpop.f32.mrf.mxu0
  %v2682 = vadd.f32 %v2593, %v2681
  %2683 = vmatmul.bf16.gmra.mxu0 %v1315
  %v2684 = vpop.f32.mrf.mxu0
  %v2685 = vadd.f32 %v2596, %v2684
  %v2686 = vpop.f32.mrf.mxu0
  %v2687 = vadd.f32 %v2598, %v2686
  %2688 = vdwg.mxu0
  %2689 = vmatpush.bf16.msra.mxu0 %v2002
  %2690 = vmatpush.bf16.msra.mxu0 %v2001
  %2691 = vmatpush.bf16.msra.mxu0 %v2000
  %2692 = vmatpush.bf16.msra.mxu0 %v1999
  %2693 = vmatpush.bf16.msra.mxu0 %v1998
  %2694 = vmatpush.bf16.msra.mxu0 %v1997
  %2695 = vmatpush.bf16.msra.mxu0 %v1996
  %2696 = vmatpush.bf16.msra.mxu0 %v1995
  %2697 = vmatmul.bf16.gmra.mxu0 %v1121
  %v2698 = vpop.f32.mrf.mxu0
  %v2699 = vadd.f32 %v2610, %v2698
  %v2700 = vpop.f32.mrf.mxu0
  %v2701 = vadd.f32 %v2612, %v2700
  %2702 = vmatmul.bf16.gmra.mxu0 %v1134
  %v2703 = vpop.f32.mrf.mxu0
  %v2704 = vadd.f32 %v2615, %v2703
  %v2705 = vpop.f32.mrf.mxu0
  %v2706 = vadd.f32 %v2617, %v2705
  %2707 = vmatmul.bf16.gmra.mxu0 %v1147
  %v2708 = vpop.f32.mrf.mxu0
  %v2709 = vadd.f32 %v2620, %v2708
  %v2710 = vpop.f32.mrf.mxu0
  %v2711 = vadd.f32 %v2622, %v2710
  %2712 = vmatmul.bf16.gmra.mxu0 %v1160
  %v2713 = vpop.f32.mrf.mxu0
  %v2714 = vadd.f32 %v2625, %v2713
  %v2715 = vpop.f32.mrf.mxu0
  %v2716 = vadd.f32 %v2627, %v2715
  %2717 = vmatmul.bf16.gmra.mxu0 %v1173
  %v2718 = vpop.f32.mrf.mxu0
  %v2719 = vadd.f32 %v2630, %v2718
  %v2720 = vpop.f32.mrf.mxu0
  %v2721 = vadd.f32 %v2632, %v2720
  %2722 = vmatmul.bf16.gmra.mxu0 %v1186
  %v2723 = vpop.f32.mrf.mxu0
  %v2724 = vadd.f32 %v2635, %v2723
  %v2725 = vpop.f32.mrf.mxu0
  %v2726 = vadd.f32 %v2637, %v2725
  %2727 = vmatmul.bf16.gmra.mxu0 %v1199
  %v2728 = vpop.f32.mrf.mxu0
  %v2729 = vadd.f32 %v2640, %v2728
  %v2730 = vpop.f32.mrf.mxu0
  %v2731 = vadd.f32 %v2642, %v2730
  %2732 = vmatmul.bf16.gmra.mxu0 %v1212
  %v2733 = vpop.f32.mrf.mxu0
  %v2734 = vadd.f32 %v2645, %v2733
  %v2735 = vpop.f32.mrf.mxu0
  %v2736 = vadd.f32 %v2647, %v2735
  %2737 = vmatmul.bf16.gmra.mxu0 %v1225
  %v2738 = vpop.f32.mrf.mxu0
  %v2739 = vadd.f32 %v2650, %v2738
  %v2740 = vpop.f32.mrf.mxu0
  %v2741 = vadd.f32 %v2652, %v2740
  %2742 = vmatmul.bf16.gmra.mxu0 %v1238
  %v2743 = vpop.f32.mrf.mxu0
  %v2744 = vadd.f32 %v2655, %v2743
  %v2745 = vpop.f32.mrf.mxu0
  %v2746 = vadd.f32 %v2657, %v2745
  %2747 = vmatmul.bf16.gmra.mxu0 %v1251
  %v2748 = vpop.f32.mrf.mxu0
  %v2749 = vadd.f32 %v2660, %v2748
  %v2750 = vpop.f32.mrf.mxu0
  %v2751 = vadd.f32 %v2662, %v2750
  %2752 = vmatmul.bf16.gmra.mxu0 %v1264
  %v2753 = vpop.f32.mrf.mxu0
  %v2754 = vadd.f32 %v2665, %v2753
  %v2755 = vpop.f32.mrf.mxu0
  %v2756 = vadd.f32 %v2667, %v2755
  %2757 = vmatmul.bf16.gmra.mxu0 %v1277
  %v2758 = vpop.f32.mrf.mxu0
  %v2759 = vadd.f32 %v2670, %v2758
  %v2760 = vpop.f32.mrf.mxu0
  %v2761 = vadd.f32 %v2672, %v2760
  %2762 = vmatmul.bf16.gmra.mxu0 %v1290
  %v2763 = vpop.f32.mrf.mxu0
  %v2764 = vadd.f32 %v2675, %v2763
  %v2765 = vpop.f32.mrf.mxu0
  %v2766 = vadd.f32 %v2677, %v2765
  %2767 = vmatmul.bf16.gmra.mxu0 %v1303
  %v2768 = vpop.f32.mrf.mxu0
  %v2769 = vadd.f32 %v2680, %v2768
  %v2770 = vpop.f32.mrf.mxu0
  %v2771 = vadd.f32 %v2682, %v2770
  %2772 = vmatmul.bf16.gmra.mxu0 %v1316
  %v2773 = vpop.f32.mrf.mxu0
  %v2774 = vadd.f32 %v2685, %v2773
  %v2775 = vpop.f32.mrf.mxu0
  %v2776 = vadd.f32 %v2687, %v2775
  %2777 = vdwg.mxu0
  %2778 = vmatpush.bf16.msra.mxu0 %v2010
  %2779 = vmatpush.bf16.msra.mxu0 %v2009
  %2780 = vmatpush.bf16.msra.mxu0 %v2008
  %2781 = vmatpush.bf16.msra.mxu0 %v2007
  %2782 = vmatpush.bf16.msra.mxu0 %v2006
  %2783 = vmatpush.bf16.msra.mxu0 %v2005
  %2784 = vmatpush.bf16.msra.mxu0 %v2004
  %2785 = vmatpush.bf16.msra.mxu0 %v2003
  %2786 = vmatmul.bf16.gmra.mxu0 %v1122
  %v2787 = vpop.f32.mrf.mxu0
  %v2788 = vadd.f32 %v2699, %v2787
  %v2789 = vpop.f32.mrf.mxu0
  %v2790 = vadd.f32 %v2701, %v2789
  %2791 = vmatmul.bf16.gmra.mxu0 %v1135
  %v2792 = vpop.f32.mrf.mxu0
  %v2793 = vadd.f32 %v2704, %v2792
  %v2794 = vpop.f32.mrf.mxu0
  %v2795 = vadd.f32 %v2706, %v2794
  %2796 = vmatmul.bf16.gmra.mxu0 %v1148
  %v2797 = vpop.f32.mrf.mxu0
  %v2798 = vadd.f32 %v2709, %v2797
  %v2799 = vpop.f32.mrf.mxu0
  %v2800 = vadd.f32 %v2711, %v2799
  %2801 = vmatmul.bf16.gmra.mxu0 %v1161
  %v2802 = vpop.f32.mrf.mxu0
  %v2803 = vadd.f32 %v2714, %v2802
  %v2804 = vpop.f32.mrf.mxu0
  %v2805 = vadd.f32 %v2716, %v2804
  %2806 = vmatmul.bf16.gmra.mxu0 %v1174
  %v2807 = vpop.f32.mrf.mxu0
  %v2808 = vadd.f32 %v2719, %v2807
  %v2809 = vpop.f32.mrf.mxu0
  %v2810 = vadd.f32 %v2721, %v2809
  %2811 = vmatmul.bf16.gmra.mxu0 %v1187
  %v2812 = vpop.f32.mrf.mxu0
  %v2813 = vadd.f32 %v2724, %v2812
  %v2814 = vpop.f32.mrf.mxu0
  %v2815 = vadd.f32 %v2726, %v2814
  %2816 = vmatmul.bf16.gmra.mxu0 %v1200
  %v2817 = vpop.f32.mrf.mxu0
  %v2818 = vadd.f32 %v2729, %v2817
  %v2819 = vpop.f32.mrf.mxu0
  %v2820 = vadd.f32 %v2731, %v2819
  %2821 = vmatmul.bf16.gmra.mxu0 %v1213
  %v2822 = vpop.f32.mrf.mxu0
  %v2823 = vadd.f32 %v2734, %v2822
  %v2824 = vpop.f32.mrf.mxu0
  %v2825 = vadd.f32 %v2736, %v2824
  %2826 = vmatmul.bf16.gmra.mxu0 %v1226
  %v2827 = vpop.f32.mrf.mxu0
  %v2828 = vadd.f32 %v2739, %v2827
  %v2829 = vpop.f32.mrf.mxu0
  %v2830 = vadd.f32 %v2741, %v2829
  %2831 = vmatmul.bf16.gmra.mxu0 %v1239
  %v2832 = vpop.f32.mrf.mxu0
  %v2833 = vadd.f32 %v2744, %v2832
  %v2834 = vpop.f32.mrf.mxu0
  %v2835 = vadd.f32 %v2746, %v2834
  %2836 = vmatmul.bf16.gmra.mxu0 %v1252
  %v2837 = vpop.f32.mrf.mxu0
  %v2838 = vadd.f32 %v2749, %v2837
  %v2839 = vpop.f32.mrf.mxu0
  %v2840 = vadd.f32 %v2751, %v2839
  %2841 = vmatmul.bf16.gmra.mxu0 %v1265
  %v2842 = vpop.f32.mrf.mxu0
  %v2843 = vadd.f32 %v2754, %v2842
  %v2844 = vpop.f32.mrf.mxu0
  %v2845 = vadd.f32 %v2756, %v2844
  %2846 = vmatmul.bf16.gmra.mxu0 %v1278
  %v2847 = vpop.f32.mrf.mxu0
  %v2848 = vadd.f32 %v2759, %v2847
  %v2849 = vpop.f32.mrf.mxu0
  %v2850 = vadd.f32 %v2761, %v2849
  %2851 = vmatmul.bf16.gmra.mxu0 %v1291
  %v2852 = vpop.f32.mrf.mxu0
  %v2853 = vadd.f32 %v2764, %v2852
  %v2854 = vpop.f32.mrf.mxu0
  %v2855 = vadd.f32 %v2766, %v2854
  %2856 = vmatmul.bf16.gmra.mxu0 %v1304
  %v2857 = vpop.f32.mrf.mxu0
  %v2858 = vadd.f32 %v2769, %v2857
  %v2859 = vpop.f32.mrf.mxu0
  %v2860 = vadd.f32 %v2771, %v2859
  %2861 = vmatmul.bf16.gmra.mxu0 %v1317
  %v2862 = vpop.f32.mrf.mxu0
  %v2863 = vadd.f32 %v2774, %v2862
  %v2864 = vpop.f32.mrf.mxu0
  %v2865 = vadd.f32 %v2776, %v2864
  %2866 = vdwg.mxu0
  %2867 = vmatpush.bf16.msra.mxu0 %v2018
  %2868 = vmatpush.bf16.msra.mxu0 %v2017
  %2869 = vmatpush.bf16.msra.mxu0 %v2016
  %2870 = vmatpush.bf16.msra.mxu0 %v2015
  %2871 = vmatpush.bf16.msra.mxu0 %v2014
  %2872 = vmatpush.bf16.msra.mxu0 %v2013
  %2873 = vmatpush.bf16.msra.mxu0 %v2012
  %2874 = vmatpush.bf16.msra.mxu0 %v2011
  %2875 = vmatmul.bf16.gmra.mxu0 %v1123
  %v2876 = vpop.f32.mrf.mxu0
  %v2877 = vadd.f32 %v2788, %v2876
  %v2878 = vpop.f32.mrf.mxu0
  %v2879 = vadd.f32 %v2790, %v2878
  %2880 = vmatmul.bf16.gmra.mxu0 %v1136
  %v2881 = vpop.f32.mrf.mxu0
  %v2882 = vadd.f32 %v2793, %v2881
  %v2883 = vpop.f32.mrf.mxu0
  %v2884 = vadd.f32 %v2795, %v2883
  %2885 = vmatmul.bf16.gmra.mxu0 %v1149
  %v2886 = vpop.f32.mrf.mxu0
  %v2887 = vadd.f32 %v2798, %v2886
  %v2888 = vpop.f32.mrf.mxu0
  %v2889 = vadd.f32 %v2800, %v2888
  %2890 = vmatmul.bf16.gmra.mxu0 %v1162
  %v2891 = vpop.f32.mrf.mxu0
  %v2892 = vadd.f32 %v2803, %v2891
  %v2893 = vpop.f32.mrf.mxu0
  %v2894 = vadd.f32 %v2805, %v2893
  %2895 = vmatmul.bf16.gmra.mxu0 %v1175
  %v2896 = vpop.f32.mrf.mxu0
  %v2897 = vadd.f32 %v2808, %v2896
  %v2898 = vpop.f32.mrf.mxu0
  %v2899 = vadd.f32 %v2810, %v2898
  %2900 = vmatmul.bf16.gmra.mxu0 %v1188
  %v2901 = vpop.f32.mrf.mxu0
  %v2902 = vadd.f32 %v2813, %v2901
  %v2903 = vpop.f32.mrf.mxu0
  %v2904 = vadd.f32 %v2815, %v2903
  %2905 = vmatmul.bf16.gmra.mxu0 %v1201
  %v2906 = vpop.f32.mrf.mxu0
  %v2907 = vadd.f32 %v2818, %v2906
  %v2908 = vpop.f32.mrf.mxu0
  %v2909 = vadd.f32 %v2820, %v2908
  %2910 = vmatmul.bf16.gmra.mxu0 %v1214
  %v2911 = vpop.f32.mrf.mxu0
  %v2912 = vadd.f32 %v2823, %v2911
  %v2913 = vpop.f32.mrf.mxu0
  %v2914 = vadd.f32 %v2825, %v2913
  %2915 = vmatmul.bf16.gmra.mxu0 %v1227
  %v2916 = vpop.f32.mrf.mxu0
  %v2917 = vadd.f32 %v2828, %v2916
  %v2918 = vpop.f32.mrf.mxu0
  %v2919 = vadd.f32 %v2830, %v2918
  %2920 = vmatmul.bf16.gmra.mxu0 %v1240
  %v2921 = vpop.f32.mrf.mxu0
  %v2922 = vadd.f32 %v2833, %v2921
  %v2923 = vpop.f32.mrf.mxu0
  %v2924 = vadd.f32 %v2835, %v2923
  %2925 = vmatmul.bf16.gmra.mxu0 %v1253
  %v2926 = vpop.f32.mrf.mxu0
  %v2927 = vadd.f32 %v2838, %v2926
  %v2928 = vpop.f32.mrf.mxu0
  %v2929 = vadd.f32 %v2840, %v2928
  %2930 = vmatmul.bf16.gmra.mxu0 %v1266
  %v2931 = vpop.f32.mrf.mxu0
  %v2932 = vadd.f32 %v2843, %v2931
  %v2933 = vpop.f32.mrf.mxu0
  %v2934 = vadd.f32 %v2845, %v2933
  %2935 = vmatmul.bf16.gmra.mxu0 %v1279
  %v2936 = vpop.f32.mrf.mxu0
  %v2937 = vadd.f32 %v2848, %v2936
  %v2938 = vpop.f32.mrf.mxu0
  %v2939 = vadd.f32 %v2850, %v2938
  %2940 = vmatmul.bf16.gmra.mxu0 %v1292
  %v2941 = vpop.f32.mrf.mxu0
  %v2942 = vadd.f32 %v2853, %v2941
  %v2943 = vpop.f32.mrf.mxu0
  %v2944 = vadd.f32 %v2855, %v2943
  %2945 = vmatmul.bf16.gmra.mxu0 %v1305
  %v2946 = vpop.f32.mrf.mxu0
  %v2947 = vadd.f32 %v2858, %v2946
  %v2948 = vpop.f32.mrf.mxu0
  %v2949 = vadd.f32 %v2860, %v2948
  %2950 = vmatmul.bf16.gmra.mxu0 %v1318
  %v2951 = vpop.f32.mrf.mxu0
  %v2952 = vadd.f32 %v2863, %v2951
  %v2953 = vpop.f32.mrf.mxu0
  %v2954 = vadd.f32 %v2865, %v2953
  %2955 = vdwg.mxu0
  %2956 = vmatpush.bf16.msra.mxu0 %v2026
  %2957 = vmatpush.bf16.msra.mxu0 %v2025
  %2958 = vmatpush.bf16.msra.mxu0 %v2024
  %2959 = vmatpush.bf16.msra.mxu0 %v2023
  %2960 = vmatpush.bf16.msra.mxu0 %v2022
  %2961 = vmatpush.bf16.msra.mxu0 %v2021
  %2962 = vmatpush.bf16.msra.mxu0 %v2020
  %2963 = vmatpush.bf16.msra.mxu0 %v2019
  %2964 = vmatmul.bf16.gmra.mxu0 %v1124
  %v2965 = vpop.f32.mrf.mxu0
  %v2966 = vadd.f32 %v2877, %v2965
  %v2967 = vpop.f32.mrf.mxu0
  %v2968 = vadd.f32 %v2879, %v2967
  %2969 = vmatmul.bf16.gmra.mxu0 %v1137
  %v2970 = vpop.f32.mrf.mxu0
  %v2971 = vadd.f32 %v2882, %v2970
  %v2972 = vpop.f32.mrf.mxu0
  %v2973 = vadd.f32 %v2884, %v2972
  %2974 = vmatmul.bf16.gmra.mxu0 %v1150
  %v2975 = vpop.f32.mrf.mxu0
  %v2976 = vadd.f32 %v2887, %v2975
  %v2977 = vpop.f32.mrf.mxu0
  %v2978 = vadd.f32 %v2889, %v2977
  %2979 = vmatmul.bf16.gmra.mxu0 %v1163
  %v2980 = vpop.f32.mrf.mxu0
  %v2981 = vadd.f32 %v2892, %v2980
  %v2982 = vpop.f32.mrf.mxu0
  %v2983 = vadd.f32 %v2894, %v2982
  %2984 = vmatmul.bf16.gmra.mxu0 %v1176
  %v2985 = vpop.f32.mrf.mxu0
  %v2986 = vadd.f32 %v2897, %v2985
  %v2987 = vpop.f32.mrf.mxu0
  %v2988 = vadd.f32 %v2899, %v2987
  %2989 = vmatmul.bf16.gmra.mxu0 %v1189
  %v2990 = vpop.f32.mrf.mxu0
  %v2991 = vadd.f32 %v2902, %v2990
  %v2992 = vpop.f32.mrf.mxu0
  %v2993 = vadd.f32 %v2904, %v2992
  %2994 = vmatmul.bf16.gmra.mxu0 %v1202
  %v2995 = vpop.f32.mrf.mxu0
  %v2996 = vadd.f32 %v2907, %v2995
  %v2997 = vpop.f32.mrf.mxu0
  %v2998 = vadd.f32 %v2909, %v2997
  %2999 = vmatmul.bf16.gmra.mxu0 %v1215
  %v3000 = vpop.f32.mrf.mxu0
  %v3001 = vadd.f32 %v2912, %v3000
  %v3002 = vpop.f32.mrf.mxu0
  %v3003 = vadd.f32 %v2914, %v3002
  %3004 = vmatmul.bf16.gmra.mxu0 %v1228
  %v3005 = vpop.f32.mrf.mxu0
  %v3006 = vadd.f32 %v2917, %v3005
  %v3007 = vpop.f32.mrf.mxu0
  %v3008 = vadd.f32 %v2919, %v3007
  %3009 = vmatmul.bf16.gmra.mxu0 %v1241
  %v3010 = vpop.f32.mrf.mxu0
  %v3011 = vadd.f32 %v2922, %v3010
  %v3012 = vpop.f32.mrf.mxu0
  %v3013 = vadd.f32 %v2924, %v3012
  %3014 = vmatmul.bf16.gmra.mxu0 %v1254
  %v3015 = vpop.f32.mrf.mxu0
  %v3016 = vadd.f32 %v2927, %v3015
  %v3017 = vpop.f32.mrf.mxu0
  %v3018 = vadd.f32 %v2929, %v3017
  %3019 = vmatmul.bf16.gmra.mxu0 %v1267
  %v3020 = vpop.f32.mrf.mxu0
  %v3021 = vadd.f32 %v2932, %v3020
  %v3022 = vpop.f32.mrf.mxu0
  %v3023 = vadd.f32 %v2934, %v3022
  %3024 = vmatmul.bf16.gmra.mxu0 %v1280
  %v3025 = vpop.f32.mrf.mxu0
  %v3026 = vadd.f32 %v2937, %v3025
  %v3027 = vpop.f32.mrf.mxu0
  %v3028 = vadd.f32 %v2939, %v3027
  %3029 = vmatmul.bf16.gmra.mxu0 %v1293
  %v3030 = vpop.f32.mrf.mxu0
  %v3031 = vadd.f32 %v2942, %v3030
  %v3032 = vpop.f32.mrf.mxu0
  %v3033 = vadd.f32 %v2944, %v3032
  %3034 = vmatmul.bf16.gmra.mxu0 %v1306
  %v3035 = vpop.f32.mrf.mxu0
  %v3036 = vadd.f32 %v2947, %v3035
  %v3037 = vpop.f32.mrf.mxu0
  %v3038 = vadd.f32 %v2949, %v3037
  %3039 = vmatmul.bf16.gmra.mxu0 %v1319
  %v3040 = vpop.f32.mrf.mxu0
  %v3041 = vadd.f32 %v2952, %v3040
  %v3042 = vpop.f32.mrf.mxu0
  %v3043 = vadd.f32 %v2954, %v3042
  %3044 = vdwg.mxu0
  %3045 = vmatpush.bf16.msra.mxu0 %v2034
  %3046 = vmatpush.bf16.msra.mxu0 %v2033
  %3047 = vmatpush.bf16.msra.mxu0 %v2032
  %3048 = vmatpush.bf16.msra.mxu0 %v2031
  %3049 = vmatpush.bf16.msra.mxu0 %v2030
  %3050 = vmatpush.bf16.msra.mxu0 %v2029
  %3051 = vmatpush.bf16.msra.mxu0 %v2028
  %3052 = vmatpush.bf16.msra.mxu0 %v2027
  %3053 = vmatmul.bf16.gmra.mxu0 %v1125
  %v3054 = vpop.f32.mrf.mxu0
  %v3055 = vadd.f32 %v2966, %v3054
  %v3056 = vpop.f32.mrf.mxu0
  %v3057 = vadd.f32 %v2968, %v3056
  %3058 = vmatmul.bf16.gmra.mxu0 %v1138
  %v3059 = vpop.f32.mrf.mxu0
  %v3060 = vadd.f32 %v2971, %v3059
  %v3061 = vpop.f32.mrf.mxu0
  %v3062 = vadd.f32 %v2973, %v3061
  %3063 = vmatmul.bf16.gmra.mxu0 %v1151
  %v3064 = vpop.f32.mrf.mxu0
  %v3065 = vadd.f32 %v2976, %v3064
  %v3066 = vpop.f32.mrf.mxu0
  %v3067 = vadd.f32 %v2978, %v3066
  %3068 = vmatmul.bf16.gmra.mxu0 %v1164
  %v3069 = vpop.f32.mrf.mxu0
  %v3070 = vadd.f32 %v2981, %v3069
  %v3071 = vpop.f32.mrf.mxu0
  %v3072 = vadd.f32 %v2983, %v3071
  %3073 = vmatmul.bf16.gmra.mxu0 %v1177
  %v3074 = vpop.f32.mrf.mxu0
  %v3075 = vadd.f32 %v2986, %v3074
  %v3076 = vpop.f32.mrf.mxu0
  %v3077 = vadd.f32 %v2988, %v3076
  %3078 = vmatmul.bf16.gmra.mxu0 %v1190
  %v3079 = vpop.f32.mrf.mxu0
  %v3080 = vadd.f32 %v2991, %v3079
  %v3081 = vpop.f32.mrf.mxu0
  %v3082 = vadd.f32 %v2993, %v3081
  %3083 = vmatmul.bf16.gmra.mxu0 %v1203
  %v3084 = vpop.f32.mrf.mxu0
  %v3085 = vadd.f32 %v2996, %v3084
  %v3086 = vpop.f32.mrf.mxu0
  %v3087 = vadd.f32 %v2998, %v3086
  %3088 = vmatmul.bf16.gmra.mxu0 %v1216
  %v3089 = vpop.f32.mrf.mxu0
  %v3090 = vadd.f32 %v3001, %v3089
  %v3091 = vpop.f32.mrf.mxu0
  %v3092 = vadd.f32 %v3003, %v3091
  %3093 = vmatmul.bf16.gmra.mxu0 %v1229
  %v3094 = vpop.f32.mrf.mxu0
  %v3095 = vadd.f32 %v3006, %v3094
  %v3096 = vpop.f32.mrf.mxu0
  %v3097 = vadd.f32 %v3008, %v3096
  %3098 = vmatmul.bf16.gmra.mxu0 %v1242
  %v3099 = vpop.f32.mrf.mxu0
  %v3100 = vadd.f32 %v3011, %v3099
  %v3101 = vpop.f32.mrf.mxu0
  %v3102 = vadd.f32 %v3013, %v3101
  %3103 = vmatmul.bf16.gmra.mxu0 %v1255
  %v3104 = vpop.f32.mrf.mxu0
  %v3105 = vadd.f32 %v3016, %v3104
  %v3106 = vpop.f32.mrf.mxu0
  %v3107 = vadd.f32 %v3018, %v3106
  %3108 = vmatmul.bf16.gmra.mxu0 %v1268
  %v3109 = vpop.f32.mrf.mxu0
  %v3110 = vadd.f32 %v3021, %v3109
  %v3111 = vpop.f32.mrf.mxu0
  %v3112 = vadd.f32 %v3023, %v3111
  %3113 = vmatmul.bf16.gmra.mxu0 %v1281
  %v3114 = vpop.f32.mrf.mxu0
  %v3115 = vadd.f32 %v3026, %v3114
  %v3116 = vpop.f32.mrf.mxu0
  %v3117 = vadd.f32 %v3028, %v3116
  %3118 = vmatmul.bf16.gmra.mxu0 %v1294
  %v3119 = vpop.f32.mrf.mxu0
  %v3120 = vadd.f32 %v3031, %v3119
  %v3121 = vpop.f32.mrf.mxu0
  %v3122 = vadd.f32 %v3033, %v3121
  %3123 = vmatmul.bf16.gmra.mxu0 %v1307
  %v3124 = vpop.f32.mrf.mxu0
  %v3125 = vadd.f32 %v3036, %v3124
  %v3126 = vpop.f32.mrf.mxu0
  %v3127 = vadd.f32 %v3038, %v3126
  %3128 = vmatmul.bf16.gmra.mxu0 %v1320
  %v3129 = vpop.f32.mrf.mxu0
  %v3130 = vadd.f32 %v3041, %v3129
  %v3131 = vpop.f32.mrf.mxu0
  %v3132 = vadd.f32 %v3043, %v3131
  %3133 = vdwg.mxu0
  %3134 = vmatpush.bf16.msra.mxu0 %v2042
  %3135 = vmatpush.bf16.msra.mxu0 %v2041
  %3136 = vmatpush.bf16.msra.mxu0 %v2040
  %3137 = vmatpush.bf16.msra.mxu0 %v2039
  %3138 = vmatpush.bf16.msra.mxu0 %v2038
  %3139 = vmatpush.bf16.msra.mxu0 %v2037
  %3140 = vmatpush.bf16.msra.mxu0 %v2036
  %3141 = vmatpush.bf16.msra.mxu0 %v2035
  %3142 = vmatmul.bf16.gmra.mxu0 %v1126
  %v3143 = vpop.f32.mrf.mxu0
  %v3144 = vadd.f32 %v3055, %v3143
  %v3145 = vpop.f32.mrf.mxu0
  %v3146 = vadd.f32 %v3057, %v3145
  %3147 = vmatmul.bf16.gmra.mxu0 %v1139
  %v3148 = vpop.f32.mrf.mxu0
  %v3149 = vadd.f32 %v3060, %v3148
  %v3150 = vpop.f32.mrf.mxu0
  %v3151 = vadd.f32 %v3062, %v3150
  %3152 = vmatmul.bf16.gmra.mxu0 %v1152
  %v3153 = vpop.f32.mrf.mxu0
  %v3154 = vadd.f32 %v3065, %v3153
  %v3155 = vpop.f32.mrf.mxu0
  %v3156 = vadd.f32 %v3067, %v3155
  %3157 = vmatmul.bf16.gmra.mxu0 %v1165
  %v3158 = vpop.f32.mrf.mxu0
  %v3159 = vadd.f32 %v3070, %v3158
  %v3160 = vpop.f32.mrf.mxu0
  %v3161 = vadd.f32 %v3072, %v3160
  %3162 = vmatmul.bf16.gmra.mxu0 %v1178
  %v3163 = vpop.f32.mrf.mxu0
  %v3164 = vadd.f32 %v3075, %v3163
  %v3165 = vpop.f32.mrf.mxu0
  %v3166 = vadd.f32 %v3077, %v3165
  %3167 = vmatmul.bf16.gmra.mxu0 %v1191
  %v3168 = vpop.f32.mrf.mxu0
  %v3169 = vadd.f32 %v3080, %v3168
  %v3170 = vpop.f32.mrf.mxu0
  %v3171 = vadd.f32 %v3082, %v3170
  %3172 = vmatmul.bf16.gmra.mxu0 %v1204
  %v3173 = vpop.f32.mrf.mxu0
  %v3174 = vadd.f32 %v3085, %v3173
  %v3175 = vpop.f32.mrf.mxu0
  %v3176 = vadd.f32 %v3087, %v3175
  %3177 = vmatmul.bf16.gmra.mxu0 %v1217
  %v3178 = vpop.f32.mrf.mxu0
  %v3179 = vadd.f32 %v3090, %v3178
  %v3180 = vpop.f32.mrf.mxu0
  %v3181 = vadd.f32 %v3092, %v3180
  %3182 = vmatmul.bf16.gmra.mxu0 %v1230
  %v3183 = vpop.f32.mrf.mxu0
  %v3184 = vadd.f32 %v3095, %v3183
  %v3185 = vpop.f32.mrf.mxu0
  %v3186 = vadd.f32 %v3097, %v3185
  %3187 = vmatmul.bf16.gmra.mxu0 %v1243
  %v3188 = vpop.f32.mrf.mxu0
  %v3189 = vadd.f32 %v3100, %v3188
  %v3190 = vpop.f32.mrf.mxu0
  %v3191 = vadd.f32 %v3102, %v3190
  %3192 = vmatmul.bf16.gmra.mxu0 %v1256
  %v3193 = vpop.f32.mrf.mxu0
  %v3194 = vadd.f32 %v3105, %v3193
  %v3195 = vpop.f32.mrf.mxu0
  %v3196 = vadd.f32 %v3107, %v3195
  %3197 = vmatmul.bf16.gmra.mxu0 %v1269
  %v3198 = vpop.f32.mrf.mxu0
  %v3199 = vadd.f32 %v3110, %v3198
  %v3200 = vpop.f32.mrf.mxu0
  %v3201 = vadd.f32 %v3112, %v3200
  %3202 = vmatmul.bf16.gmra.mxu0 %v1282
  %v3203 = vpop.f32.mrf.mxu0
  %v3204 = vadd.f32 %v3115, %v3203
  %v3205 = vpop.f32.mrf.mxu0
  %v3206 = vadd.f32 %v3117, %v3205
  %3207 = vmatmul.bf16.gmra.mxu0 %v1295
  %v3208 = vpop.f32.mrf.mxu0
  %v3209 = vadd.f32 %v3120, %v3208
  %v3210 = vpop.f32.mrf.mxu0
  %v3211 = vadd.f32 %v3122, %v3210
  %3212 = vmatmul.bf16.gmra.mxu0 %v1308
  %v3213 = vpop.f32.mrf.mxu0
  %v3214 = vadd.f32 %v3125, %v3213
  %v3215 = vpop.f32.mrf.mxu0
  %v3216 = vadd.f32 %v3127, %v3215
  %3217 = vmatmul.bf16.gmra.mxu0 %v1321
  %v3218 = vpop.f32.mrf.mxu0
  %v3219 = vadd.f32 %v3130, %v3218
  %v3220 = vpop.f32.mrf.mxu0
  %v3221 = vadd.f32 %v3132, %v3220
  %3222 = vdwg.mxu0
  %3223 = vmatpush.bf16.msra.mxu0 %v2050
  %3224 = vmatpush.bf16.msra.mxu0 %v2049
  %3225 = vmatpush.bf16.msra.mxu0 %v2048
  %3226 = vmatpush.bf16.msra.mxu0 %v2047
  %3227 = vmatpush.bf16.msra.mxu0 %v2046
  %3228 = vmatpush.bf16.msra.mxu0 %v2045
  %3229 = vmatpush.bf16.msra.mxu0 %v2044
  %3230 = vmatpush.bf16.msra.mxu0 %v2043
  %3231 = vmatmul.bf16.gmra.mxu0 %v1127
  %v3232 = vpop.f32.mrf.mxu0
  %v3233 = vadd.f32 %v3144, %v3232
  %v3234 = vpop.f32.mrf.mxu0
  %v3235 = vadd.f32 %v3146, %v3234
  %3236 = vmatmul.bf16.gmra.mxu0 %v1140
  %v3237 = vpop.f32.mrf.mxu0
  %v3238 = vadd.f32 %v3149, %v3237
  %v3239 = vpop.f32.mrf.mxu0
  %v3240 = vadd.f32 %v3151, %v3239
  %3241 = vmatmul.bf16.gmra.mxu0 %v1153
  %v3242 = vpop.f32.mrf.mxu0
  %v3243 = vadd.f32 %v3154, %v3242
  %v3244 = vpop.f32.mrf.mxu0
  %v3245 = vadd.f32 %v3156, %v3244
  %3246 = vmatmul.bf16.gmra.mxu0 %v1166
  %v3247 = vpop.f32.mrf.mxu0
  %v3248 = vadd.f32 %v3159, %v3247
  %v3249 = vpop.f32.mrf.mxu0
  %v3250 = vadd.f32 %v3161, %v3249
  %3251 = vmatmul.bf16.gmra.mxu0 %v1179
  %v3252 = vpop.f32.mrf.mxu0
  %v3253 = vadd.f32 %v3164, %v3252
  %v3254 = vpop.f32.mrf.mxu0
  %v3255 = vadd.f32 %v3166, %v3254
  %3256 = vmatmul.bf16.gmra.mxu0 %v1192
  %v3257 = vpop.f32.mrf.mxu0
  %v3258 = vadd.f32 %v3169, %v3257
  %v3259 = vpop.f32.mrf.mxu0
  %v3260 = vadd.f32 %v3171, %v3259
  %3261 = vmatmul.bf16.gmra.mxu0 %v1205
  %v3262 = vpop.f32.mrf.mxu0
  %v3263 = vadd.f32 %v3174, %v3262
  %v3264 = vpop.f32.mrf.mxu0
  %v3265 = vadd.f32 %v3176, %v3264
  %3266 = vmatmul.bf16.gmra.mxu0 %v1218
  %v3267 = vpop.f32.mrf.mxu0
  %v3268 = vadd.f32 %v3179, %v3267
  %v3269 = vpop.f32.mrf.mxu0
  %v3270 = vadd.f32 %v3181, %v3269
  %3271 = vmatmul.bf16.gmra.mxu0 %v1231
  %v3272 = vpop.f32.mrf.mxu0
  %v3273 = vadd.f32 %v3184, %v3272
  %v3274 = vpop.f32.mrf.mxu0
  %v3275 = vadd.f32 %v3186, %v3274
  %3276 = vmatmul.bf16.gmra.mxu0 %v1244
  %v3277 = vpop.f32.mrf.mxu0
  %v3278 = vadd.f32 %v3189, %v3277
  %v3279 = vpop.f32.mrf.mxu0
  %v3280 = vadd.f32 %v3191, %v3279
  %3281 = vmatmul.bf16.gmra.mxu0 %v1257
  %v3282 = vpop.f32.mrf.mxu0
  %v3283 = vadd.f32 %v3194, %v3282
  %v3284 = vpop.f32.mrf.mxu0
  %v3285 = vadd.f32 %v3196, %v3284
  %3286 = vmatmul.bf16.gmra.mxu0 %v1270
  %v3287 = vpop.f32.mrf.mxu0
  %v3288 = vadd.f32 %v3199, %v3287
  %v3289 = vpop.f32.mrf.mxu0
  %v3290 = vadd.f32 %v3201, %v3289
  %3291 = vmatmul.bf16.gmra.mxu0 %v1283
  %v3292 = vpop.f32.mrf.mxu0
  %v3293 = vadd.f32 %v3204, %v3292
  %v3294 = vpop.f32.mrf.mxu0
  %v3295 = vadd.f32 %v3206, %v3294
  %3296 = vmatmul.bf16.gmra.mxu0 %v1296
  %v3297 = vpop.f32.mrf.mxu0
  %v3298 = vadd.f32 %v3209, %v3297
  %v3299 = vpop.f32.mrf.mxu0
  %v3300 = vadd.f32 %v3211, %v3299
  %3301 = vmatmul.bf16.gmra.mxu0 %v1309
  %v3302 = vpop.f32.mrf.mxu0
  %v3303 = vadd.f32 %v3214, %v3302
  %v3304 = vpop.f32.mrf.mxu0
  %v3305 = vadd.f32 %v3216, %v3304
  %3306 = vmatmul.bf16.gmra.mxu0 %v1322
  %v3307 = vpop.f32.mrf.mxu0
  %v3308 = vadd.f32 %v3219, %v3307
  %v3309 = vpop.f32.mrf.mxu0
  %v3310 = vadd.f32 %v3221, %v3309
  %3311 = vdwg.mxu0
  %vm3312 = vcmp.ge.f32.partialorder %v3233, 0.0
  %vm3313 = vcmp.ge.f32.partialorder %v3235, 0.0
  %vm3314 = vcmp.ge.f32.partialorder %v3238, 0.0
  %vm3315 = vcmp.ge.f32.partialorder %v3240, 0.0
  %vm3316 = vcmp.ge.f32.partialorder %v3243, 0.0
  %vm3317 = vcmp.ge.f32.partialorder %v3245, 0.0
  %vm3318 = vcmp.ge.f32.partialorder %v3248, 0.0
  %vm3319 = vcmp.ge.f32.partialorder %v3250, 0.0
  %vm3320 = vcmp.ge.f32.partialorder %v3253, 0.0
  %vm3321 = vcmp.ge.f32.partialorder %v3255, 0.0
  %vm3322 = vcmp.ge.f32.partialorder %v3258, 0.0
  %vm3323 = vcmp.ge.f32.partialorder %v3260, 0.0
  %vm3324 = vcmp.ge.f32.partialorder %v3263, 0.0
  %vm3325 = vcmp.ge.f32.partialorder %v3265, 0.0
  %vm3326 = vcmp.ge.f32.partialorder %v3268, 0.0
  %vm3327 = vcmp.ge.f32.partialorder %v3270, 0.0
  %vm3328 = vcmp.ge.f32.partialorder %v3273, 0.0
  %vm3329 = vcmp.ge.f32.partialorder %v3275, 0.0
  %vm3330 = vcmp.ge.f32.partialorder %v3278, 0.0
  %vm3331 = vcmp.ge.f32.partialorder %v3280, 0.0
  %vm3332 = vcmp.ge.f32.partialorder %v3283, 0.0
  %vm3333 = vcmp.ge.f32.partialorder %v3285, 0.0
  %vm3334 = vcmp.ge.f32.partialorder %v3288, 0.0
  %vm3335 = vcmp.ge.f32.partialorder %v3290, 0.0
  %vm3336 = vcmp.ge.f32.partialorder %v3293, 0.0
  %vm3337 = vcmp.ge.f32.partialorder %v3295, 0.0
  %vm3338 = vcmp.ge.f32.partialorder %v3298, 0.0
  %vm3339 = vcmp.ge.f32.partialorder %v3300, 0.0
  %vm3340 = vcmp.ge.f32.partialorder %v3303, 0.0
  %vm3341 = vcmp.ge.f32.partialorder %v3305, 0.0
  %vm3342 = vcmp.ge.f32.partialorder %v3308, 0.0
  %vm3343 = vcmp.ge.f32.partialorder %v3310, 0.0
  %v3344 = vmul.f32 %v3233, 0.2
  %v3345 = vmul.f32 %v3235, 0.2
  %v3346 = vmul.f32 %v3238, 0.2
  %v3347 = vmul.f32 %v3240, 0.2
  %v3348 = vmul.f32 %v3243, 0.2
  %v3349 = vmul.f32 %v3245, 0.2
  %v3350 = vmul.f32 %v3248, 0.2
  %v3351 = vmul.f32 %v3250, 0.2
  %v3352 = vmul.f32 %v3253, 0.2
  %v3353 = vmul.f32 %v3255, 0.2
  %v3354 = vmul.f32 %v3258, 0.2
  %v3355 = vmul.f32 %v3260, 0.2
  %v3356 = vmul.f32 %v3263, 0.2
  %v3357 = vmul.f32 %v3265, 0.2
  %v3358 = vmul.f32 %v3268, 0.2
  %v3359 = vmul.f32 %v3270, 0.2
  %v3360 = vmul.f32 %v3273, 0.2
  %v3361 = vmul.f32 %v3275, 0.2
  %v3362 = vmul.f32 %v3278, 0.2
  %v3363 = vmul.f32 %v3280, 0.2
  %v3364 = vmul.f32 %v3283, 0.2
  %v3365 = vmul.f32 %v3285, 0.2
  %v3366 = vmul.f32 %v3288, 0.2
  %v3367 = vmul.f32 %v3290, 0.2
  %v3368 = vmul.f32 %v3293, 0.2
  %v3369 = vmul.f32 %v3295, 0.2
  %v3370 = vmul.f32 %v3298, 0.2
  %v3371 = vmul.f32 %v3300, 0.2
  %v3372 = vmul.f32 %v3303, 0.2
  %v3373 = vmul.f32 %v3305, 0.2
  %v3374 = vmul.f32 %v3308, 0.2
  %v3375 = vmul.f32 %v3310, 0.2
  %v3376 = vsel %vm3312, %v3233, %v3344
  %v3377 = vsel %vm3313, %v3235, %v3345
  %v3378 = vsel %vm3314, %v3238, %v3346
  %v3379 = vsel %vm3315, %v3240, %v3347
  %v3380 = vsel %vm3316, %v3243, %v3348
  %v3381 = vsel %vm3317, %v3245, %v3349
  %v3382 = vsel %vm3318, %v3248, %v3350
  %v3383 = vsel %vm3319, %v3250, %v3351
  %v3384 = vsel %vm3320, %v3253, %v3352
  %v3385 = vsel %vm3321, %v3255, %v3353
  %v3386 = vsel %vm3322, %v3258, %v3354
  %v3387 = vsel %vm3323, %v3260, %v3355
  %v3388 = vsel %vm3324, %v3263, %v3356
  %v3389 = vsel %vm3325, %v3265, %v3357
  %v3390 = vsel %vm3326, %v3268, %v3358
  %v3391 = vsel %vm3327, %v3270, %v3359
  %v3392 = vsel %vm3328, %v3273, %v3360
  %v3393 = vsel %vm3329, %v3275, %v3361
  %v3394 = vsel %vm3330, %v3278, %v3362
  %v3395 = vsel %vm3331, %v3280, %v3363
  %v3396 = vsel %vm3332, %v3283, %v3364
  %v3397 = vsel %vm3333, %v3285, %v3365
  %v3398 = vsel %vm3334, %v3288, %v3366
  %v3399 = vsel %vm3335, %v3290, %v3367
  %v3400 = vsel %vm3336, %v3293, %v3368
  %v3401 = vsel %vm3337, %v3295, %v3369
  %v3402 = vsel %vm3338, %v3298, %v3370
  %v3403 = vsel %vm3339, %v3300, %v3371
  %v3404 = vsel %vm3340, %v3303, %v3372
  %v3405 = vsel %vm3341, %v3305, %v3373
  %v3406 = vsel %vm3342, %v3308, %v3374
  %v3407 = vsel %vm3343, %v3310, %v3375
  %v3408 = vpack.c.bf16 %v3376, %v3376
  %v3409 = vpack.c.bf16 %v3377, %v3377
  %v3410 = vpack.c.bf16 %v3378, %v3378
  %v3411 = vpack.c.bf16 %v3379, %v3379
  %v3412 = vpack.c.bf16 %v3380, %v3380
  %v3413 = vpack.c.bf16 %v3381, %v3381
  %v3414 = vpack.c.bf16 %v3382, %v3382
  %v3415 = vpack.c.bf16 %v3383, %v3383
  %v3416 = vpack.c.bf16 %v3384, %v3384
  %v3417 = vpack.c.bf16 %v3385, %v3385
  %v3418 = vpack.c.bf16 %v3386, %v3386
  %v3419 = vpack.c.bf16 %v3387, %v3387
  %v3420 = vpack.c.bf16 %v3388, %v3388
  %v3421 = vpack.c.bf16 %v3389, %v3389
  %v3422 = vpack.c.bf16 %v3390, %v3390
  %v3423 = vpack.c.bf16 %v3391, %v3391
  %v3424 = vpack.c.bf16 %v3392, %v3392
  %v3425 = vpack.c.bf16 %v3393, %v3393
  %v3426 = vpack.c.bf16 %v3394, %v3394
  %v3427 = vpack.c.bf16 %v3395, %v3395
  %v3428 = vpack.c.bf16 %v3396, %v3396
  %v3429 = vpack.c.bf16 %v3397, %v3397
  %v3430 = vpack.c.bf16 %v3398, %v3398
  %v3431 = vpack.c.bf16 %v3399, %v3399
  %v3432 = vpack.c.bf16 %v3400, %v3400
  %v3433 = vpack.c.bf16 %v3401, %v3401
  %v3434 = vpack.c.bf16 %v3402, %v3402
  %v3435 = vpack.c.bf16 %v3403, %v3403
  %v3436 = vpack.c.bf16 %v3404, %v3404
  %v3437 = vpack.c.bf16 %v3405, %v3405
  %v3438 = vpack.c.bf16 %v3406, %v3406
  %v3439 = vpack.c.bf16 %v3407, %v3407
  %v3440 = vld [vmem:[%s3] sm:$0xff]
  %v3441 = vld [vmem:[%s3 + $0x8] sm:$0xff]
  %v3442 = vld [vmem:[%s3 + $0x10] sm:$0xff]
  %v3443 = vld [vmem:[%s3 + $0x18] sm:$0xff]
  %v3444 = vld [vmem:[%s3 + $0x20] sm:$0xff]
  %v3445 = vld [vmem:[%s3 + $0x28] sm:$0xff]
  %v3446 = vld [vmem:[%s3 + $0x30] sm:$0xff]
  %v3447 = vld [vmem:[%s3 + $0x38] sm:$0xff]
  %v3448 = vld [vmem:[%s3 + $0x40] sm:$0xff]
  %v3449 = vld [vmem:[%s3 + $0x48] sm:$0xff]
  %v3450 = vld [vmem:[%s3 + $0x50] sm:$0xff]
  %v3451 = vld [vmem:[%s3 + $0x58] sm:$0xff]
  %v3452 = vld [vmem:[%s3 + $0x60] sm:$0xff]
  %v3453 = vld [vmem:[%s3 + $0x68] sm:$0xff]
  %v3454 = vld [vmem:[%s3 + $0x70] sm:$0xff]
  %v3455 = vld [vmem:[%s3 + $0x78] sm:$0xff]
  %v3456 = vld [vmem:[%s3 + $0x80] sm:$0xff]
  %v3457 = vld [vmem:[%s3 + $0x88] sm:$0xff]
  %v3458 = vld [vmem:[%s3 + $0x90] sm:$0xff]
  %v3459 = vld [vmem:[%s3 + $0x98] sm:$0xff]
  %v3460 = vld [vmem:[%s3 + $0xa0] sm:$0xff]
  %v3461 = vld [vmem:[%s3 + $0xa8] sm:$0xff]
  %v3462 = vld [vmem:[%s3 + $0xb0] sm:$0xff]
  %v3463 = vld [vmem:[%s3 + $0xb8] sm:$0xff]
  %v3464 = vld [vmem:[%s3 + $0xc0] sm:$0xff]
  %v3465 = vld [vmem:[%s3 + $0xc8] sm:$0xff]
  %v3466 = vld [vmem:[%s3 + $0xd0] sm:$0xff]
  %v3467 = vld [vmem:[%s3 + $0xd8] sm:$0xff]
  %v3468 = vld [vmem:[%s3 + $0xe0] sm:$0xff]
  %v3469 = vld [vmem:[%s3 + $0xe8] sm:$0xff]
  %v3470 = vld [vmem:[%s3 + $0xf0] sm:$0xff]
  %v3471 = vld [vmem:[%s3 + $0xf8] sm:$0xff]
  %v3472 = vld [vmem:[%s3 + $0x100] sm:$0xff]
  %v3473 = vld [vmem:[%s3 + $0x108] sm:$0xff]
  %v3474 = vld [vmem:[%s3 + $0x110] sm:$0xff]
  %v3475 = vld [vmem:[%s3 + $0x118] sm:$0xff]
  %v3476 = vld [vmem:[%s3 + $0x120] sm:$0xff]
  %v3477 = vld [vmem:[%s3 + $0x128] sm:$0xff]
  %v3478 = vld [vmem:[%s3 + $0x130] sm:$0xff]
  %v3479 = vld [vmem:[%s3 + $0x138] sm:$0xff]
  %v3480 = vld [vmem:[%s3 + $0x140] sm:$0xff]
  %v3481 = vld [vmem:[%s3 + $0x148] sm:$0xff]
  %v3482 = vld [vmem:[%s3 + $0x150] sm:$0xff]
  %v3483 = vld [vmem:[%s3 + $0x158] sm:$0xff]
  %v3484 = vld [vmem:[%s3 + $0x160] sm:$0xff]
  %v3485 = vld [vmem:[%s3 + $0x168] sm:$0xff]
  %v3486 = vld [vmem:[%s3 + $0x170] sm:$0xff]
  %v3487 = vld [vmem:[%s3 + $0x178] sm:$0xff]
  %v3488 = vld [vmem:[%s3 + $0x180] sm:$0xff]
  %v3489 = vld [vmem:[%s3 + $0x188] sm:$0xff]
  %v3490 = vld [vmem:[%s3 + $0x190] sm:$0xff]
  %v3491 = vld [vmem:[%s3 + $0x198] sm:$0xff]
  %v3492 = vld [vmem:[%s3 + $0x1a0] sm:$0xff]
  %v3493 = vld [vmem:[%s3 + $0x1a8] sm:$0xff]
  %v3494 = vld [vmem:[%s3 + $0x1b0] sm:$0xff]
  %v3495 = vld [vmem:[%s3 + $0x1b8] sm:$0xff]
  %v3496 = vld [vmem:[%s3 + $0x1c0] sm:$0xff]
  %v3497 = vld [vmem:[%s3 + $0x1c8] sm:$0xff]
  %v3498 = vld [vmem:[%s3 + $0x1d0] sm:$0xff]
  %v3499 = vld [vmem:[%s3 + $0x1d8] sm:$0xff]
  %v3500 = vld [vmem:[%s3 + $0x1e0] sm:$0xff]
  %v3501 = vld [vmem:[%s3 + $0x1e8] sm:$0xff]
  %v3502 = vld [vmem:[%s3 + $0x1f0] sm:$0xff]
  %v3503 = vld [vmem:[%s3 + $0x1f8] sm:$0xff]
  %v3504 = vld [vmem:[%s3 + $0x200] sm:$0xff]
  %v3505 = vld [vmem:[%s3 + $0x208] sm:$0xff]
  %v3506 = vld [vmem:[%s3 + $0x210] sm:$0xff]
  %v3507 = vld [vmem:[%s3 + $0x218] sm:$0xff]
  %v3508 = vld [vmem:[%s3 + $0x220] sm:$0xff]
  %v3509 = vld [vmem:[%s3 + $0x228] sm:$0xff]
  %v3510 = vld [vmem:[%s3 + $0x230] sm:$0xff]
  %v3511 = vld [vmem:[%s3 + $0x238] sm:$0xff]
  %v3512 = vld [vmem:[%s3 + $0x240] sm:$0xff]
  %v3513 = vld [vmem:[%s3 + $0x248] sm:$0xff]
  %v3514 = vld [vmem:[%s3 + $0x250] sm:$0xff]
  %v3515 = vld [vmem:[%s3 + $0x258] sm:$0xff]
  %v3516 = vld [vmem:[%s3 + $0x260] sm:$0xff]
  %v3517 = vld [vmem:[%s3 + $0x268] sm:$0xff]
  %v3518 = vld [vmem:[%s3 + $0x270] sm:$0xff]
  %v3519 = vld [vmem:[%s3 + $0x278] sm:$0xff]
  %v3520 = vld [vmem:[%s3 + $0x280] sm:$0xff]
  %v3521 = vld [vmem:[%s3 + $0x288] sm:$0xff]
  %v3522 = vld [vmem:[%s3 + $0x290] sm:$0xff]
  %v3523 = vld [vmem:[%s3 + $0x298] sm:$0xff]
  %v3524 = vld [vmem:[%s3 + $0x2a0] sm:$0xff]
  %v3525 = vld [vmem:[%s3 + $0x2a8] sm:$0xff]
  %v3526 = vld [vmem:[%s3 + $0x2b0] sm:$0xff]
  %v3527 = vld [vmem:[%s3 + $0x2b8] sm:$0xff]
  %v3528 = vld [vmem:[%s3 + $0x2c0] sm:$0xff]
  %v3529 = vld [vmem:[%s3 + $0x2c8] sm:$0xff]
  %v3530 = vld [vmem:[%s3 + $0x2d0] sm:$0xff]
  %v3531 = vld [vmem:[%s3 + $0x2d8] sm:$0xff]
  %v3532 = vld [vmem:[%s3 + $0x2e0] sm:$0xff]
  %v3533 = vld [vmem:[%s3 + $0x2e8] sm:$0xff]
  %v3534 = vld [vmem:[%s3 + $0x2f0] sm:$0xff]
  %v3535 = vld [vmem:[%s3 + $0x2f8] sm:$0xff]
  %v3536 = vld [vmem:[%s3 + $0x300] sm:$0xff]
  %v3537 = vld [vmem:[%s3 + $0x308] sm:$0xff]
  %v3538 = vld [vmem:[%s3 + $0x310] sm:$0xff]
  %v3539 = vld [vmem:[%s3 + $0x318] sm:$0xff]
  %v3540 = vld [vmem:[%s3 + $0x320] sm:$0xff]
  %v3541 = vld [vmem:[%s3 + $0x328] sm:$0xff]
  %v3542 = vld [vmem:[%s3 + $0x330] sm:$0xff]
  %v3543 = vld [vmem:[%s3 + $0x338] sm:$0xff]
  %v3544 = vld [vmem:[%s3 + $0x340] sm:$0xff]
  %v3545 = vld [vmem:[%s3 + $0x348] sm:$0xff]
  %v3546 = vld [vmem:[%s3 + $0x350] sm:$0xff]
  %v3547 = vld [vmem:[%s3 + $0x358] sm:$0xff]
  %v3548 = vld [vmem:[%s3 + $0x360] sm:$0xff]
  %v3549 = vld [vmem:[%s3 + $0x368] sm:$0xff]
  %v3550 = vld [vmem:[%s3 + $0x370] sm:$0xff]
  %v3551 = vld [vmem:[%s3 + $0x378] sm:$0xff]
  %v3552 = vld [vmem:[%s3 + $0x380] sm:$0xff]
  %v3553 = vld [vmem:[%s3 + $0x388] sm:$0xff]
  %v3554 = vld [vmem:[%s3 + $0x390] sm:$0xff]
  %v3555 = vld [vmem:[%s3 + $0x398] sm:$0xff]
  %v3556 = vld [vmem:[%s3 + $0x3a0] sm:$0xff]
  %v3557 = vld [vmem:[%s3 + $0x3a8] sm:$0xff]
  %v3558 = vld [vmem:[%s3 + $0x3b0] sm:$0xff]
  %v3559 = vld [vmem:[%s3 + $0x3b8] sm:$0xff]
  %v3560 = vld [vmem:[%s3 + $0x3c0] sm:$0xff]
  %v3561 = vld [vmem:[%s3 + $0x3c8] sm:$0xff]
  %v3562 = vld [vmem:[%s3 + $0x3d0] sm:$0xff]
  %v3563 = vld [vmem:[%s3 + $0x3d8] sm:$0xff]
  %v3564 = vld [vmem:[%s3 + $0x3e0] sm:$0xff]
  %v3565 = vld [vmem:[%s3 + $0x3e8] sm:$0xff]
  %v3566 = vld [vmem:[%s3 + $0x3f0] sm:$0xff]
  %v3567 = vld [vmem:[%s3 + $0x3f8] sm:$0xff]
  %v3568 = vld [vmem:[%s3 + $0x400] sm:$0xff]
  %v3569 = vld [vmem:[%s3 + $0x408] sm:$0xff]
  %v3570 = vld [vmem:[%s3 + $0x410] sm:$0xff]
  %v3571 = vld [vmem:[%s3 + $0x418] sm:$0xff]
  %v3572 = vld [vmem:[%s3 + $0x420] sm:$0xff]
  %v3573 = vld [vmem:[%s3 + $0x428] sm:$0xff]
  %v3574 = vld [vmem:[%s3 + $0x430] sm:$0xff]
  %v3575 = vld [vmem:[%s3 + $0x438] sm:$0xff]
  %v3576 = vld [vmem:[%s3 + $0x440] sm:$0xff]
  %v3577 = vld [vmem:[%s3 + $0x448] sm:$0xff]
  %v3578 = vld [vmem:[%s3 + $0x450] sm:$0xff]
  %v3579 = vld [vmem:[%s3 + $0x458] sm:$0xff]
  %v3580 = vld [vmem:[%s3 + $0x460] sm:$0xff]
  %v3581 = vld [vmem:[%s3 + $0x468] sm:$0xff]
  %v3582 = vld [vmem:[%s3 + $0x470] sm:$0xff]
  %v3583 = vld [vmem:[%s3 + $0x478] sm:$0xff]
  %v3584 = vld [vmem:[%s3 + $0x480] sm:$0xff]
  %v3585 = vld [vmem:[%s3 + $0x488] sm:$0xff]
  %v3586 = vld [vmem:[%s3 + $0x490] sm:$0xff]
  %v3587 = vld [vmem:[%s3 + $0x498] sm:$0xff]
  %v3588 = vld [vmem:[%s3 + $0x4a0] sm:$0xff]
  %v3589 = vld [vmem:[%s3 + $0x4a8] sm:$0xff]
  %v3590 = vld [vmem:[%s3 + $0x4b0] sm:$0xff]
  %v3591 = vld [vmem:[%s3 + $0x4b8] sm:$0xff]
  %v3592 = vld [vmem:[%s3 + $0x4c0] sm:$0xff]
  %v3593 = vld [vmem:[%s3 + $0x4c8] sm:$0xff]
  %v3594 = vld [vmem:[%s3 + $0x4d0] sm:$0xff]
  %v3595 = vld [vmem:[%s3 + $0x4d8] sm:$0xff]
  %v3596 = vld [vmem:[%s3 + $0x4e0] sm:$0xff]
  %v3597 = vld [vmem:[%s3 + $0x4e8] sm:$0xff]
  %v3598 = vld [vmem:[%s3 + $0x4f0] sm:$0xff]
  %v3599 = vld [vmem:[%s3 + $0x4f8] sm:$0xff]
  %v3600 = vld [vmem:[%s3 + $0x500] sm:$0xff]
  %v3601 = vld [vmem:[%s3 + $0x508] sm:$0xff]
  %v3602 = vld [vmem:[%s3 + $0x510] sm:$0xff]
  %v3603 = vld [vmem:[%s3 + $0x518] sm:$0xff]
  %v3604 = vld [vmem:[%s3 + $0x520] sm:$0xff]
  %v3605 = vld [vmem:[%s3 + $0x528] sm:$0xff]
  %v3606 = vld [vmem:[%s3 + $0x530] sm:$0xff]
  %v3607 = vld [vmem:[%s3 + $0x538] sm:$0xff]
  %v3608 = vld [vmem:[%s3 + $0x540] sm:$0xff]
  %v3609 = vld [vmem:[%s3 + $0x548] sm:$0xff]
  %v3610 = vld [vmem:[%s3 + $0x550] sm:$0xff]
  %v3611 = vld [vmem:[%s3 + $0x558] sm:$0xff]
  %v3612 = vld [vmem:[%s3 + $0x560] sm:$0xff]
  %v3613 = vld [vmem:[%s3 + $0x568] sm:$0xff]
  %v3614 = vld [vmem:[%s3 + $0x570] sm:$0xff]
  %v3615 = vld [vmem:[%s3 + $0x578] sm:$0xff]
  %v3616 = vld [vmem:[%s3 + $0x580] sm:$0xff]
  %v3617 = vld [vmem:[%s3 + $0x588] sm:$0xff]
  %v3618 = vld [vmem:[%s3 + $0x590] sm:$0xff]
  %v3619 = vld [vmem:[%s3 + $0x598] sm:$0xff]
  %v3620 = vld [vmem:[%s3 + $0x5a0] sm:$0xff]
  %v3621 = vld [vmem:[%s3 + $0x5a8] sm:$0xff]
  %v3622 = vld [vmem:[%s3 + $0x5b0] sm:$0xff]
  %v3623 = vld [vmem:[%s3 + $0x5b8] sm:$0xff]
  %v3624 = vld [vmem:[%s3 + $0x5c0] sm:$0xff]
  %v3625 = vld [vmem:[%s3 + $0x5c8] sm:$0xff]
  %v3626 = vld [vmem:[%s3 + $0x5d0] sm:$0xff]
  %v3627 = vld [vmem:[%s3 + $0x5d8] sm:$0xff]
  %v3628 = vld [vmem:[%s3 + $0x5e0] sm:$0xff]
  %v3629 = vld [vmem:[%s3 + $0x5e8] sm:$0xff]
  %v3630 = vld [vmem:[%s3 + $0x5f0] sm:$0xff]
  %v3631 = vld [vmem:[%s3 + $0x5f8] sm:$0xff]
  %v3632 = vld [vmem:[%s3 + $0x600] sm:$0xff]
  %v3633 = vld [vmem:[%s3 + $0x608] sm:$0xff]
  %v3634 = vld [vmem:[%s3 + $0x610] sm:$0xff]
  %v3635 = vld [vmem:[%s3 + $0x618] sm:$0xff]
  %v3636 = vld [vmem:[%s3 + $0x620] sm:$0xff]
  %v3637 = vld [vmem:[%s3 + $0x628] sm:$0xff]
  %v3638 = vld [vmem:[%s3 + $0x630] sm:$0xff]
  %v3639 = vld [vmem:[%s3 + $0x638] sm:$0xff]
  %v3640 = vld [vmem:[%s3 + $0x640] sm:$0xff]
  %v3641 = vld [vmem:[%s3 + $0x648] sm:$0xff]
  %v3642 = vld [vmem:[%s3 + $0x650] sm:$0xff]
  %v3643 = vld [vmem:[%s3 + $0x658] sm:$0xff]
  %v3644 = vld [vmem:[%s3 + $0x660] sm:$0xff]
  %v3645 = vld [vmem:[%s3 + $0x668] sm:$0xff]
  %v3646 = vld [vmem:[%s3 + $0x670] sm:$0xff]
  %v3647 = vld [vmem:[%s3 + $0x678] sm:$0xff]
  %v3648 = vld [vmem:[%s3 + $0x680] sm:$0xff]
  %v3649 = vld [vmem:[%s3 + $0x688] sm:$0xff]
  %v3650 = vld [vmem:[%s3 + $0x690] sm:$0xff]
  %v3651 = vld [vmem:[%s3 + $0x698] sm:$0xff]
  %v3652 = vld [vmem:[%s3 + $0x6a0] sm:$0xff]
  %v3653 = vld [vmem:[%s3 + $0x6a8] sm:$0xff]
  %v3654 = vld [vmem:[%s3 + $0x6b0] sm:$0xff]
  %v3655 = vld [vmem:[%s3 + $0x6b8] sm:$0xff]
  %v3656 = vld [vmem:[%s3 + $0x6c0] sm:$0xff]
  %v3657 = vld [vmem:[%s3 + $0x6c8] sm:$0xff]
  %v3658 = vld [vmem:[%s3 + $0x6d0] sm:$0xff]
  %v3659 = vld [vmem:[%s3 + $0x6d8] sm:$0xff]
  %v3660 = vld [vmem:[%s3 + $0x6e0] sm:$0xff]
  %v3661 = vld [vmem:[%s3 + $0x6e8] sm:$0xff]
  %v3662 = vld [vmem:[%s3 + $0x6f0] sm:$0xff]
  %v3663 = vld [vmem:[%s3 + $0x6f8] sm:$0xff]
  %v3664 = vld [vmem:[%s3 + $0x700] sm:$0xff]
  %v3665 = vld [vmem:[%s3 + $0x708] sm:$0xff]
  %v3666 = vld [vmem:[%s3 + $0x710] sm:$0xff]
  %v3667 = vld [vmem:[%s3 + $0x718] sm:$0xff]
  %v3668 = vld [vmem:[%s3 + $0x720] sm:$0xff]
  %v3669 = vld [vmem:[%s3 + $0x728] sm:$0xff]
  %v3670 = vld [vmem:[%s3 + $0x730] sm:$0xff]
  %v3671 = vld [vmem:[%s3 + $0x738] sm:$0xff]
  %v3672 = vld [vmem:[%s3 + $0x740] sm:$0xff]
  %v3673 = vld [vmem:[%s3 + $0x748] sm:$0xff]
  %v3674 = vld [vmem:[%s3 + $0x750] sm:$0xff]
  %v3675 = vld [vmem:[%s3 + $0x758] sm:$0xff]
  %v3676 = vld [vmem:[%s3 + $0x760] sm:$0xff]
  %v3677 = vld [vmem:[%s3 + $0x768] sm:$0xff]
  %v3678 = vld [vmem:[%s3 + $0x770] sm:$0xff]
  %v3679 = vld [vmem:[%s3 + $0x778] sm:$0xff]
  %v3680 = vld [vmem:[%s3 + $0x780] sm:$0xff]
  %v3681 = vld [vmem:[%s3 + $0x788] sm:$0xff]
  %v3682 = vld [vmem:[%s3 + $0x790] sm:$0xff]
  %v3683 = vld [vmem:[%s3 + $0x798] sm:$0xff]
  %v3684 = vld [vmem:[%s3 + $0x7a0] sm:$0xff]
  %v3685 = vld [vmem:[%s3 + $0x7a8] sm:$0xff]
  %v3686 = vld [vmem:[%s3 + $0x7b0] sm:$0xff]
  %v3687 = vld [vmem:[%s3 + $0x7b8] sm:$0xff]
  %v3688 = vld [vmem:[%s3 + $0x7c0] sm:$0xff]
  %v3689 = vld [vmem:[%s3 + $0x7c8] sm:$0xff]
  %v3690 = vld [vmem:[%s3 + $0x7d0] sm:$0xff]
  %v3691 = vld [vmem:[%s3 + $0x7d8] sm:$0xff]
  %v3692 = vld [vmem:[%s3 + $0x7e0] sm:$0xff]
  %v3693 = vld [vmem:[%s3 + $0x7e8] sm:$0xff]
  %v3694 = vld [vmem:[%s3 + $0x7f0] sm:$0xff]
  %v3695 = vld [vmem:[%s3 + $0x7f8] sm:$0xff]
  %v3696 = vld [vmem:[%s3 + $0x800] sm:$0xff]
  %v3697 = vld [vmem:[%s3 + $0x808] sm:$0xff]
  %v3698 = vld [vmem:[%s3 + $0x810] sm:$0xff]
  %v3699 = vld [vmem:[%s3 + $0x818] sm:$0xff]
  %v3700 = vld [vmem:[%s3 + $0x820] sm:$0xff]
  %v3701 = vld [vmem:[%s3 + $0x828] sm:$0xff]
  %v3702 = vld [vmem:[%s3 + $0x830] sm:$0xff]
  %v3703 = vld [vmem:[%s3 + $0x838] sm:$0xff]
  %v3704 = vld [vmem:[%s3 + $0x840] sm:$0xff]
  %v3705 = vld [vmem:[%s3 + $0x848] sm:$0xff]
  %v3706 = vld [vmem:[%s3 + $0x850] sm:$0xff]
  %v3707 = vld [vmem:[%s3 + $0x858] sm:$0xff]
  %v3708 = vld [vmem:[%s3 + $0x860] sm:$0xff]
  %v3709 = vld [vmem:[%s3 + $0x868] sm:$0xff]
  %v3710 = vld [vmem:[%s3 + $0x870] sm:$0xff]
  %v3711 = vld [vmem:[%s3 + $0x878] sm:$0xff]
  %v3712 = vld [vmem:[%s3 + $0x880] sm:$0xff]
  %v3713 = vld [vmem:[%s3 + $0x888] sm:$0xff]
  %v3714 = vld [vmem:[%s3 + $0x890] sm:$0xff]
  %v3715 = vld [vmem:[%s3 + $0x898] sm:$0xff]
  %v3716 = vld [vmem:[%s3 + $0x8a0] sm:$0xff]
  %v3717 = vld [vmem:[%s3 + $0x8a8] sm:$0xff]
  %v3718 = vld [vmem:[%s3 + $0x8b0] sm:$0xff]
  %v3719 = vld [vmem:[%s3 + $0x8b8] sm:$0xff]
  %v3720 = vld [vmem:[%s3 + $0x8c0] sm:$0xff]
  %v3721 = vld [vmem:[%s3 + $0x8c8] sm:$0xff]
  %v3722 = vld [vmem:[%s3 + $0x8d0] sm:$0xff]
  %v3723 = vld [vmem:[%s3 + $0x8d8] sm:$0xff]
  %v3724 = vld [vmem:[%s3 + $0x8e0] sm:$0xff]
  %v3725 = vld [vmem:[%s3 + $0x8e8] sm:$0xff]
  %v3726 = vld [vmem:[%s3 + $0x8f0] sm:$0xff]
  %v3727 = vld [vmem:[%s3 + $0x8f8] sm:$0xff]
  %v3728 = vld [vmem:[%s3 + $0x900] sm:$0xff]
  %v3729 = vld [vmem:[%s3 + $0x908] sm:$0xff]
  %v3730 = vld [vmem:[%s3 + $0x910] sm:$0xff]
  %v3731 = vld [vmem:[%s3 + $0x918] sm:$0xff]
  %v3732 = vld [vmem:[%s3 + $0x920] sm:$0xff]
  %v3733 = vld [vmem:[%s3 + $0x928] sm:$0xff]
  %v3734 = vld [vmem:[%s3 + $0x930] sm:$0xff]
  %v3735 = vld [vmem:[%s3 + $0x938] sm:$0xff]
  %v3736 = vld [vmem:[%s3 + $0x940] sm:$0xff]
  %v3737 = vld [vmem:[%s3 + $0x948] sm:$0xff]
  %v3738 = vld [vmem:[%s3 + $0x950] sm:$0xff]
  %v3739 = vld [vmem:[%s3 + $0x958] sm:$0xff]
  %v3740 = vld [vmem:[%s3 + $0x960] sm:$0xff]
  %v3741 = vld [vmem:[%s3 + $0x968] sm:$0xff]
  %v3742 = vld [vmem:[%s3 + $0x970] sm:$0xff]
  %v3743 = vld [vmem:[%s3 + $0x978] sm:$0xff]
  %v3744 = vld [vmem:[%s3 + $0x980] sm:$0xff]
  %v3745 = vld [vmem:[%s3 + $0x988] sm:$0xff]
  %v3746 = vld [vmem:[%s3 + $0x990] sm:$0xff]
  %v3747 = vld [vmem:[%s3 + $0x998] sm:$0xff]
  %v3748 = vld [vmem:[%s3 + $0x9a0] sm:$0xff]
  %v3749 = vld [vmem:[%s3 + $0x9a8] sm:$0xff]
  %v3750 = vld [vmem:[%s3 + $0x9b0] sm:$0xff]
  %v3751 = vld [vmem:[%s3 + $0x9b8] sm:$0xff]
  %v3752 = vld [vmem:[%s3 + $0x9c0] sm:$0xff]
  %v3753 = vld [vmem:[%s3 + $0x9c8] sm:$0xff]
  %v3754 = vld [vmem:[%s3 + $0x9d0] sm:$0xff]
  %v3755 = vld [vmem:[%s3 + $0x9d8] sm:$0xff]
  %v3756 = vld [vmem:[%s3 + $0x9e0] sm:$0xff]
  %v3757 = vld [vmem:[%s3 + $0x9e8] sm:$0xff]
  %v3758 = vld [vmem:[%s3 + $0x9f0] sm:$0xff]
  %v3759 = vld [vmem:[%s3 + $0x9f8] sm:$0xff]
  %v3760 = vld [vmem:[%s3 + $0xa00] sm:$0xff]
  %v3761 = vld [vmem:[%s3 + $0xa08] sm:$0xff]
  %v3762 = vld [vmem:[%s3 + $0xa10] sm:$0xff]
  %v3763 = vld [vmem:[%s3 + $0xa18] sm:$0xff]
  %v3764 = vld [vmem:[%s3 + $0xa20] sm:$0xff]
  %v3765 = vld [vmem:[%s3 + $0xa28] sm:$0xff]
  %v3766 = vld [vmem:[%s3 + $0xa30] sm:$0xff]
  %v3767 = vld [vmem:[%s3 + $0xa38] sm:$0xff]
  %v3768 = vld [vmem:[%s3 + $0xa40] sm:$0xff]
  %v3769 = vld [vmem:[%s3 + $0xa48] sm:$0xff]
  %v3770 = vld [vmem:[%s3 + $0xa50] sm:$0xff]
  %v3771 = vld [vmem:[%s3 + $0xa58] sm:$0xff]
  %v3772 = vld [vmem:[%s3 + $0xa60] sm:$0xff]
  %v3773 = vld [vmem:[%s3 + $0xa68] sm:$0xff]
  %v3774 = vld [vmem:[%s3 + $0xa70] sm:$0xff]
  %v3775 = vld [vmem:[%s3 + $0xa78] sm:$0xff]
  %v3776 = vld [vmem:[%s3 + $0xa80] sm:$0xff]
  %v3777 = vld [vmem:[%s3 + $0xa88] sm:$0xff]
  %v3778 = vld [vmem:[%s3 + $0xa90] sm:$0xff]
  %v3779 = vld [vmem:[%s3 + $0xa98] sm:$0xff]
  %v3780 = vld [vmem:[%s3 + $0xaa0] sm:$0xff]
  %v3781 = vld [vmem:[%s3 + $0xaa8] sm:$0xff]
  %v3782 = vld [vmem:[%s3 + $0xab0] sm:$0xff]
  %v3783 = vld [vmem:[%s3 + $0xab8] sm:$0xff]
  %v3784 = vld [vmem:[%s3 + $0xac0] sm:$0xff]
  %v3785 = vld [vmem:[%s3 + $0xac8] sm:$0xff]
  %v3786 = vld [vmem:[%s3 + $0xad0] sm:$0xff]
  %v3787 = vld [vmem:[%s3 + $0xad8] sm:$0xff]
  %v3788 = vld [vmem:[%s3 + $0xae0] sm:$0xff]
  %v3789 = vld [vmem:[%s3 + $0xae8] sm:$0xff]
  %v3790 = vld [vmem:[%s3 + $0xaf0] sm:$0xff]
  %v3791 = vld [vmem:[%s3 + $0xaf8] sm:$0xff]
  %v3792 = vld [vmem:[%s3 + $0xb00] sm:$0xff]
  %v3793 = vld [vmem:[%s3 + $0xb08] sm:$0xff]
  %v3794 = vld [vmem:[%s3 + $0xb10] sm:$0xff]
  %v3795 = vld [vmem:[%s3 + $0xb18] sm:$0xff]
  %v3796 = vld [vmem:[%s3 + $0xb20] sm:$0xff]
  %v3797 = vld [vmem:[%s3 + $0xb28] sm:$0xff]
  %v3798 = vld [vmem:[%s3 + $0xb30] sm:$0xff]
  %v3799 = vld [vmem:[%s3 + $0xb38] sm:$0xff]
  %v3800 = vld [vmem:[%s3 + $0xb40] sm:$0xff]
  %v3801 = vld [vmem:[%s3 + $0xb48] sm:$0xff]
  %v3802 = vld [vmem:[%s3 + $0xb50] sm:$0xff]
  %v3803 = vld [vmem:[%s3 + $0xb58] sm:$0xff]
  %v3804 = vld [vmem:[%s3 + $0xb60] sm:$0xff]
  %v3805 = vld [vmem:[%s3 + $0xb68] sm:$0xff]
  %v3806 = vld [vmem:[%s3 + $0xb70] sm:$0xff]
  %v3807 = vld [vmem:[%s3 + $0xb78] sm:$0xff]
  %v3808 = vld [vmem:[%s3 + $0xb80] sm:$0xff]
  %v3809 = vld [vmem:[%s3 + $0xb88] sm:$0xff]
  %v3810 = vld [vmem:[%s3 + $0xb90] sm:$0xff]
  %v3811 = vld [vmem:[%s3 + $0xb98] sm:$0xff]
  %v3812 = vld [vmem:[%s3 + $0xba0] sm:$0xff]
  %v3813 = vld [vmem:[%s3 + $0xba8] sm:$0xff]
  %v3814 = vld [vmem:[%s3 + $0xbb0] sm:$0xff]
  %v3815 = vld [vmem:[%s3 + $0xbb8] sm:$0xff]
  %v3816 = vld [vmem:[%s3 + $0xbc0] sm:$0xff]
  %v3817 = vld [vmem:[%s3 + $0xbc8] sm:$0xff]
  %v3818 = vld [vmem:[%s3 + $0xbd0] sm:$0xff]
  %v3819 = vld [vmem:[%s3 + $0xbd8] sm:$0xff]
  %v3820 = vld [vmem:[%s3 + $0xbe0] sm:$0xff]
  %v3821 = vld [vmem:[%s3 + $0xbe8] sm:$0xff]
  %v3822 = vld [vmem:[%s3 + $0xbf0] sm:$0xff]
  %v3823 = vld [vmem:[%s3 + $0xbf8] sm:$0xff]
  %v3824 = vld [vmem:[%s3 + $0xc00] sm:$0xff]
  %v3825 = vld [vmem:[%s3 + $0xc08] sm:$0xff]
  %v3826 = vld [vmem:[%s3 + $0xc10] sm:$0xff]
  %v3827 = vld [vmem:[%s3 + $0xc18] sm:$0xff]
  %v3828 = vld [vmem:[%s3 + $0xc20] sm:$0xff]
  %v3829 = vld [vmem:[%s3 + $0xc28] sm:$0xff]
  %v3830 = vld [vmem:[%s3 + $0xc30] sm:$0xff]
  %v3831 = vld [vmem:[%s3 + $0xc38] sm:$0xff]
  %v3832 = vld [vmem:[%s3 + $0xc40] sm:$0xff]
  %v3833 = vld [vmem:[%s3 + $0xc48] sm:$0xff]
  %v3834 = vld [vmem:[%s3 + $0xc50] sm:$0xff]
  %v3835 = vld [vmem:[%s3 + $0xc58] sm:$0xff]
  %v3836 = vld [vmem:[%s3 + $0xc60] sm:$0xff]
  %v3837 = vld [vmem:[%s3 + $0xc68] sm:$0xff]
  %v3838 = vld [vmem:[%s3 + $0xc70] sm:$0xff]
  %v3839 = vld [vmem:[%s3 + $0xc78] sm:$0xff]
  %v3840 = vld [vmem:[%s4] sm:$0x3]
  %v3843 = vunpack.c.l.b16 %v3408
  %v3844 = vunpack.c.l.b16 %v3409
  %v3845 = vpack.c.b16 %v3844, %v3843
  %v3849 = vunpack.c.l.b16 %v3410
  %v3850 = vunpack.c.l.b16 %v3411
  %v3851 = vpack.c.b16 %v3850, %v3849
  %v3855 = vunpack.c.l.b16 %v3412
  %v3856 = vunpack.c.l.b16 %v3413
  %v3857 = vpack.c.b16 %v3856, %v3855
  %v3861 = vunpack.c.l.b16 %v3416
  %v3862 = vunpack.c.l.b16 %v3417
  %v3863 = vpack.c.b16 %v3862, %v3861
  %v3867 = vunpack.c.l.b16 %v3418
  %v3868 = vunpack.c.l.b16 %v3419
  %v3869 = vpack.c.b16 %v3868, %v3867
  %v3873 = vunpack.c.l.b16 %v3420
  %v3874 = vunpack.c.l.b16 %v3421
  %v3875 = vpack.c.b16 %v3874, %v3873
  %v3879 = vunpack.c.l.b16 %v3424
  %v3880 = vunpack.c.l.b16 %v3425
  %v3881 = vpack.c.b16 %v3880, %v3879
  %v3885 = vunpack.c.l.b16 %v3426
  %v3886 = vunpack.c.l.b16 %v3427
  %v3887 = vpack.c.b16 %v3886, %v3885
  %v3891 = vunpack.c.l.b16 %v3428
  %v3892 = vunpack.c.l.b16 %v3429
  %v3893 = vpack.c.b16 %v3892, %v3891
  %v3896 = vperm.slane %v3840, 0
  %v3897 = vperm.slane %v3840, 1
  %v4300 = vunpack.c.l.b16 %v3440
  %v4301 = vunpack.c.h.b16 %v3440
  %v4302 = vunpack.c.l.b16 %v3441
  %v4303 = vunpack.c.h.b16 %v3441
  %v4304 = vunpack.c.l.b16 %v3442
  %v4305 = vunpack.c.h.b16 %v3442
  %v4306 = vunpack.c.l.b16 %v3443
  %v4307 = vunpack.c.h.b16 %v3443
  %v4308 = vunpack.c.l.b16 %v3444
  %v4309 = vunpack.c.h.b16 %v3444
  %v4310 = vunpack.c.l.b16 %v3445
  %v4311 = vunpack.c.h.b16 %v3445
  %v4312 = vunpack.c.l.b16 %v3446
  %v4313 = vunpack.c.h.b16 %v3446
  %v4314 = vunpack.c.l.b16 %v3447
  %v4315 = vunpack.c.h.b16 %v3447
  %v4316 = vunpack.c.l.b16 %v3448
  %v4317 = vunpack.c.h.b16 %v3448
  %v4318 = vunpack.c.l.b16 %v3449
  %v4319 = vunpack.c.h.b16 %v3449
  %v4320 = vunpack.c.l.b16 %v3450
  %v4321 = vunpack.c.h.b16 %v3450
  %v4322 = vunpack.c.l.b16 %v3451
  %v4323 = vunpack.c.h.b16 %v3451
  %v4324 = vunpack.c.l.b16 %v3452
  %v4325 = vunpack.c.h.b16 %v3452
  %v4326 = vunpack.c.l.b16 %v3453
  %v4327 = vunpack.c.h.b16 %v3453
  %v4328 = vunpack.c.l.b16 %v3454
  %v4329 = vunpack.c.h.b16 %v3454
  %v4330 = vunpack.c.l.b16 %v3455
  %v4331 = vunpack.c.h.b16 %v3455
  %v4332 = vunpack.c.l.b16 %v3456
  %v4333 = vunpack.c.h.b16 %v3456
  %v4334 = vunpack.c.l.b16 %v3457
  %v4335 = vunpack.c.h.b16 %v3457
  %v4336 = vunpack.c.l.b16 %v3458
  %v4337 = vunpack.c.h.b16 %v3458
  %v4338 = vunpack.c.l.b16 %v3459
  %v4339 = vunpack.c.h.b16 %v3459
  %v4340 = vunpack.c.l.b16 %v3460
  %v4341 = vunpack.c.h.b16 %v3460
  %v4342 = vunpack.c.l.b16 %v3461
  %v4343 = vunpack.c.h.b16 %v3461
  %v4344 = vunpack.c.l.b16 %v3462
  %v4345 = vunpack.c.h.b16 %v3462
  %v4346 = vunpack.c.l.b16 %v3463
  %v4347 = vunpack.c.h.b16 %v3463
  %v4348 = vunpack.c.l.b16 %v3464
  %v4349 = vunpack.c.h.b16 %v3464
  %v4350 = vunpack.c.l.b16 %v3465
  %v4351 = vunpack.c.h.b16 %v3465
  %v4352 = vunpack.c.l.b16 %v3466
  %v4353 = vunpack.c.h.b16 %v3466
  %v4354 = vunpack.c.l.b16 %v3467
  %v4355 = vunpack.c.h.b16 %v3467
  %v4356 = vunpack.c.l.b16 %v3468
  %v4357 = vunpack.c.h.b16 %v3468
  %v4358 = vunpack.c.l.b16 %v3469
  %v4359 = vunpack.c.h.b16 %v3469
  %v4360 = vunpack.c.l.b16 %v3470
  %v4361 = vunpack.c.h.b16 %v3470
  %v4362 = vunpack.c.l.b16 %v3471
  %v4363 = vunpack.c.h.b16 %v3471
  %v4364 = vunpack.c.l.b16 %v3472
  %v4365 = vunpack.c.h.b16 %v3472
  %v4366 = vunpack.c.l.b16 %v3473
  %v4367 = vunpack.c.h.b16 %v3473
  %v4368 = vunpack.c.l.b16 %v3474
  %v4369 = vunpack.c.h.b16 %v3474
  %v4370 = vunpack.c.l.b16 %v3475
  %v4371 = vunpack.c.h.b16 %v3475
  %v4372 = vunpack.c.l.b16 %v3476
  %v4373 = vunpack.c.h.b16 %v3476
  %v4374 = vunpack.c.l.b16 %v3477
  %v4375 = vunpack.c.h.b16 %v3477
  %v4376 = vunpack.c.l.b16 %v3478
  %v4377 = vunpack.c.h.b16 %v3478
  %v4378 = vunpack.c.l.b16 %v3479
  %v4379 = vunpack.c.h.b16 %v3479
  %v4380 = vunpack.c.l.b16 %v3480
  %v4381 = vunpack.c.h.b16 %v3480
  %v4382 = vunpack.c.l.b16 %v3481
  %v4383 = vunpack.c.h.b16 %v3481
  %v4384 = vunpack.c.l.b16 %v3482
  %v4385 = vunpack.c.h.b16 %v3482
  %v4386 = vunpack.c.l.b16 %v3483
  %v4387 = vunpack.c.h.b16 %v3483
  %v4388 = vunpack.c.l.b16 %v3484
  %v4389 = vunpack.c.h.b16 %v3484
  %v4390 = vunpack.c.l.b16 %v3485
  %v4391 = vunpack.c.h.b16 %v3485
  %v4392 = vunpack.c.l.b16 %v3486
  %v4393 = vunpack.c.h.b16 %v3486
  %v4394 = vunpack.c.l.b16 %v3487
  %v4395 = vunpack.c.h.b16 %v3487
  %v4396 = vunpack.c.l.b16 %v3488
  %v4397 = vunpack.c.h.b16 %v3488
  %v4398 = vunpack.c.l.b16 %v3489
  %v4399 = vunpack.c.h.b16 %v3489
  %v4400 = vunpack.c.l.b16 %v3490
  %v4401 = vunpack.c.h.b16 %v3490
  %v4402 = vunpack.c.l.b16 %v3491
  %v4403 = vunpack.c.h.b16 %v3491
  %v4404 = vunpack.c.l.b16 %v3492
  %v4405 = vunpack.c.h.b16 %v3492
  %v4406 = vunpack.c.l.b16 %v3493
  %v4407 = vunpack.c.h.b16 %v3493
  %v4408 = vunpack.c.l.b16 %v3494
  %v4409 = vunpack.c.h.b16 %v3494
  %v4410 = vunpack.c.l.b16 %v3495
  %v4411 = vunpack.c.h.b16 %v3495
  %v4412 = vunpack.c.l.b16 %v3496
  %v4413 = vunpack.c.h.b16 %v3496
  %v4414 = vunpack.c.l.b16 %v3497
  %v4415 = vunpack.c.h.b16 %v3497
  %v4416 = vunpack.c.l.b16 %v3498
  %v4417 = vunpack.c.h.b16 %v3498
  %v4418 = vunpack.c.l.b16 %v3499
  %v4419 = vunpack.c.h.b16 %v3499
  %v4420 = vunpack.c.l.b16 %v3500
  %v4421 = vunpack.c.h.b16 %v3500
  %v4422 = vunpack.c.l.b16 %v3501
  %v4423 = vunpack.c.h.b16 %v3501
  %v4424 = vunpack.c.l.b16 %v3502
  %v4425 = vunpack.c.h.b16 %v3502
  %v4426 = vunpack.c.l.b16 %v3503
  %v4427 = vunpack.c.h.b16 %v3503
  %v4428 = vunpack.c.l.b16 %v3504
  %v4429 = vunpack.c.h.b16 %v3504
  %v4430 = vunpack.c.l.b16 %v3505
  %v4431 = vunpack.c.h.b16 %v3505
  %v4432 = vunpack.c.l.b16 %v3506
  %v4433 = vunpack.c.h.b16 %v3506
  %v4434 = vunpack.c.l.b16 %v3507
  %v4435 = vunpack.c.h.b16 %v3507
  %v4436 = vunpack.c.l.b16 %v3508
  %v4437 = vunpack.c.h.b16 %v3508
  %v4438 = vunpack.c.l.b16 %v3509
  %v4439 = vunpack.c.h.b16 %v3509
  %v4440 = vunpack.c.l.b16 %v3510
  %v4441 = vunpack.c.h.b16 %v3510
  %v4442 = vunpack.c.l.b16 %v3511
  %v4443 = vunpack.c.h.b16 %v3511
  %v4444 = vunpack.c.l.b16 %v3512
  %v4445 = vunpack.c.h.b16 %v3512
  %v4446 = vunpack.c.l.b16 %v3513
  %v4447 = vunpack.c.h.b16 %v3513
  %v4448 = vunpack.c.l.b16 %v3514
  %v4449 = vunpack.c.h.b16 %v3514
  %v4450 = vunpack.c.l.b16 %v3515
  %v4451 = vunpack.c.h.b16 %v3515
  %v4452 = vunpack.c.l.b16 %v3516
  %v4453 = vunpack.c.h.b16 %v3516
  %v4454 = vunpack.c.l.b16 %v3517
  %v4455 = vunpack.c.h.b16 %v3517
  %v4456 = vunpack.c.l.b16 %v3518
  %v4457 = vunpack.c.h.b16 %v3518
  %v4458 = vunpack.c.l.b16 %v3519
  %v4459 = vunpack.c.h.b16 %v3519
  %v4460 = vunpack.c.l.b16 %v3520
  %v4461 = vunpack.c.h.b16 %v3520
  %v4462 = vunpack.c.l.b16 %v3521
  %v4463 = vunpack.c.h.b16 %v3521
  %v4464 = vunpack.c.l.b16 %v3522
  %v4465 = vunpack.c.h.b16 %v3522
  %v4466 = vunpack.c.l.b16 %v3523
  %v4467 = vunpack.c.h.b16 %v3523
  %v4468 = vunpack.c.l.b16 %v3524
  %v4469 = vunpack.c.h.b16 %v3524
  %v4470 = vunpack.c.l.b16 %v3525
  %v4471 = vunpack.c.h.b16 %v3525
  %v4472 = vunpack.c.l.b16 %v3526
  %v4473 = vunpack.c.h.b16 %v3526
  %v4474 = vunpack.c.l.b16 %v3527
  %v4475 = vunpack.c.h.b16 %v3527
  %v4476 = vunpack.c.l.b16 %v3528
  %v4477 = vunpack.c.h.b16 %v3528
  %v4478 = vunpack.c.l.b16 %v3529
  %v4479 = vunpack.c.h.b16 %v3529
  %v4480 = vunpack.c.l.b16 %v3530
  %v4481 = vunpack.c.h.b16 %v3530
  %v4482 = vunpack.c.l.b16 %v3531
  %v4483 = vunpack.c.h.b16 %v3531
  %v4484 = vunpack.c.l.b16 %v3532
  %v4485 = vunpack.c.h.b16 %v3532
  %v4486 = vunpack.c.l.b16 %v3533
  %v4487 = vunpack.c.h.b16 %v3533
  %v4488 = vunpack.c.l.b16 %v3534
  %v4489 = vunpack.c.h.b16 %v3534
  %v4490 = vunpack.c.l.b16 %v3535
  %v4491 = vunpack.c.h.b16 %v3535
  %v4492 = vunpack.c.l.b16 %v3536
  %v4493 = vunpack.c.h.b16 %v3536
  %v4494 = vunpack.c.l.b16 %v3537
  %v4495 = vunpack.c.h.b16 %v3537
  %v4496 = vunpack.c.l.b16 %v3538
  %v4497 = vunpack.c.h.b16 %v3538
  %v4498 = vunpack.c.l.b16 %v3539
  %v4499 = vunpack.c.h.b16 %v3539
  %v4500 = vunpack.c.l.b16 %v3540
  %v4501 = vunpack.c.h.b16 %v3540
  %v4502 = vunpack.c.l.b16 %v3541
  %v4503 = vunpack.c.h.b16 %v3541
  %v4504 = vunpack.c.l.b16 %v3542
  %v4505 = vunpack.c.h.b16 %v3542
  %v4506 = vunpack.c.l.b16 %v3543
  %v4507 = vunpack.c.h.b16 %v3543
  %v4508 = vunpack.c.l.b16 %v3544
  %v4509 = vunpack.c.h.b16 %v3544
  %v4510 = vunpack.c.l.b16 %v3545
  %v4511 = vunpack.c.h.b16 %v3545
  %v4512 = vunpack.c.l.b16 %v3546
  %v4513 = vunpack.c.h.b16 %v3546
  %v4514 = vunpack.c.l.b16 %v3547
  %v4515 = vunpack.c.h.b16 %v3547
  %v4516 = vunpack.c.l.b16 %v3548
  %v4517 = vunpack.c.h.b16 %v3548
  %v4518 = vunpack.c.l.b16 %v3549
  %v4519 = vunpack.c.h.b16 %v3549
  %v4520 = vunpack.c.l.b16 %v3550
  %v4521 = vunpack.c.h.b16 %v3550
  %v4522 = vunpack.c.l.b16 %v3551
  %v4523 = vunpack.c.h.b16 %v3551
  %v4524 = vunpack.c.l.b16 %v3552
  %v4525 = vunpack.c.h.b16 %v3552
  %v4526 = vunpack.c.l.b16 %v3553
  %v4527 = vunpack.c.h.b16 %v3553
  %v4528 = vunpack.c.l.b16 %v3554
  %v4529 = vunpack.c.h.b16 %v3554
  %v4530 = vunpack.c.l.b16 %v3555
  %v4531 = vunpack.c.h.b16 %v3555
  %v4532 = vunpack.c.l.b16 %v3556
  %v4533 = vunpack.c.h.b16 %v3556
  %v4534 = vunpack.c.l.b16 %v3557
  %v4535 = vunpack.c.h.b16 %v3557
  %v4536 = vunpack.c.l.b16 %v3558
  %v4537 = vunpack.c.h.b16 %v3558
  %v4538 = vunpack.c.l.b16 %v3559
  %v4539 = vunpack.c.h.b16 %v3559
  %v4540 = vunpack.c.l.b16 %v3560
  %v4541 = vunpack.c.h.b16 %v3560
  %v4542 = vunpack.c.l.b16 %v3561
  %v4543 = vunpack.c.h.b16 %v3561
  %v4544 = vunpack.c.l.b16 %v3562
  %v4545 = vunpack.c.h.b16 %v3562
  %v4546 = vunpack.c.l.b16 %v3563
  %v4547 = vunpack.c.h.b16 %v3563
  %v4548 = vunpack.c.l.b16 %v3564
  %v4549 = vunpack.c.h.b16 %v3564
  %v4550 = vunpack.c.l.b16 %v3565
  %v4551 = vunpack.c.h.b16 %v3565
  %v4552 = vunpack.c.l.b16 %v3566
  %v4553 = vunpack.c.h.b16 %v3566
  %v4554 = vunpack.c.l.b16 %v3567
  %v4555 = vunpack.c.h.b16 %v3567
  %v4556 = vunpack.c.l.b16 %v3568
  %v4557 = vunpack.c.h.b16 %v3568
  %v4558 = vunpack.c.l.b16 %v3569
  %v4559 = vunpack.c.h.b16 %v3569
  %v4560 = vunpack.c.l.b16 %v3570
  %v4561 = vunpack.c.h.b16 %v3570
  %v4562 = vunpack.c.l.b16 %v3571
  %v4563 = vunpack.c.h.b16 %v3571
  %v4564 = vunpack.c.l.b16 %v3572
  %v4565 = vunpack.c.h.b16 %v3572
  %v4566 = vunpack.c.l.b16 %v3573
  %v4567 = vunpack.c.h.b16 %v3573
  %v4568 = vunpack.c.l.b16 %v3574
  %v4569 = vunpack.c.h.b16 %v3574
  %v4570 = vunpack.c.l.b16 %v3575
  %v4571 = vunpack.c.h.b16 %v3575
  %v4572 = vunpack.c.l.b16 %v3576
  %v4573 = vunpack.c.h.b16 %v3576
  %v4574 = vunpack.c.l.b16 %v3577
  %v4575 = vunpack.c.h.b16 %v3577
  %v4576 = vunpack.c.l.b16 %v3578
  %v4577 = vunpack.c.h.b16 %v3578
  %v4578 = vunpack.c.l.b16 %v3579
  %v4579 = vunpack.c.h.b16 %v3579
  %v4580 = vunpack.c.l.b16 %v3580
  %v4581 = vunpack.c.h.b16 %v3580
  %v4582 = vunpack.c.l.b16 %v3581
  %v4583 = vunpack.c.h.b16 %v3581
  %v4584 = vunpack.c.l.b16 %v3582
  %v4585 = vunpack.c.h.b16 %v3582
  %v4586 = vunpack.c.l.b16 %v3583
  %v4587 = vunpack.c.h.b16 %v3583
  %v4588 = vunpack.c.l.b16 %v3584
  %v4589 = vunpack.c.h.b16 %v3584
  %v4590 = vunpack.c.l.b16 %v3585
  %v4591 = vunpack.c.h.b16 %v3585
  %v4592 = vunpack.c.l.b16 %v3586
  %v4593 = vunpack.c.h.b16 %v3586
  %v4594 = vunpack.c.l.b16 %v3587
  %v4595 = vunpack.c.h.b16 %v3587
  %v4596 = vunpack.c.l.b16 %v3588
  %v4597 = vunpack.c.h.b16 %v3588
  %v4598 = vunpack.c.l.b16 %v3589
  %v4599 = vunpack.c.h.b16 %v3589
  %v4600 = vunpack.c.l.b16 %v3590
  %v4601 = vunpack.c.h.b16 %v3590
  %v4602 = vunpack.c.l.b16 %v3591
  %v4603 = vunpack.c.h.b16 %v3591
  %v4604 = vunpack.c.l.b16 %v3592
  %v4605 = vunpack.c.h.b16 %v3592
  %v4606 = vunpack.c.l.b16 %v3593
  %v4607 = vunpack.c.h.b16 %v3593
  %v4608 = vunpack.c.l.b16 %v3594
  %v4609 = vunpack.c.h.b16 %v3594
  %v4610 = vunpack.c.l.b16 %v3595
  %v4611 = vunpack.c.h.b16 %v3595
  %v4612 = vunpack.c.l.b16 %v3596
  %v4613 = vunpack.c.h.b16 %v3596
  %v4614 = vunpack.c.l.b16 %v3597
  %v4615 = vunpack.c.h.b16 %v3597
  %v4616 = vunpack.c.l.b16 %v3598
  %v4617 = vunpack.c.h.b16 %v3598
  %v4618 = vunpack.c.l.b16 %v3599
  %v4619 = vunpack.c.h.b16 %v3599
  %v4620 = vunpack.c.l.b16 %v3600
  %v4621 = vunpack.c.h.b16 %v3600
  %v4622 = vunpack.c.l.b16 %v3601
  %v4623 = vunpack.c.h.b16 %v3601
  %v4624 = vunpack.c.l.b16 %v3602
  %v4625 = vunpack.c.h.b16 %v3602
  %v4626 = vunpack.c.l.b16 %v3603
  %v4627 = vunpack.c.h.b16 %v3603
  %v4628 = vunpack.c.l.b16 %v3604
  %v4629 = vunpack.c.h.b16 %v3604
  %v4630 = vunpack.c.l.b16 %v3605
  %v4631 = vunpack.c.h.b16 %v3605
  %v4632 = vunpack.c.l.b16 %v3606
  %v4633 = vunpack.c.h.b16 %v3606
  %v4634 = vunpack.c.l.b16 %v3607
  %v4635 = vunpack.c.h.b16 %v3607
  %v4636 = vunpack.c.l.b16 %v3608
  %v4637 = vunpack.c.h.b16 %v3608
  %v4638 = vunpack.c.l.b16 %v3609
  %v4639 = vunpack.c.h.b16 %v3609
  %v4640 = vunpack.c.l.b16 %v3610
  %v4641 = vunpack.c.h.b16 %v3610
  %v4642 = vunpack.c.l.b16 %v3611
  %v4643 = vunpack.c.h.b16 %v3611
  %v4644 = vunpack.c.l.b16 %v3612
  %v4645 = vunpack.c.h.b16 %v3612
  %v4646 = vunpack.c.l.b16 %v3613
  %v4647 = vunpack.c.h.b16 %v3613
  %v4648 = vunpack.c.l.b16 %v3614
  %v4649 = vunpack.c.h.b16 %v3614
  %v4650 = vunpack.c.l.b16 %v3615
  %v4651 = vunpack.c.h.b16 %v3615
  %v4652 = vunpack.c.l.b16 %v3616
  %v4653 = vunpack.c.h.b16 %v3616
  %v4654 = vunpack.c.l.b16 %v3617
  %v4655 = vunpack.c.h.b16 %v3617
  %v4656 = vunpack.c.l.b16 %v3618
  %v4657 = vunpack.c.h.b16 %v3618
  %v4658 = vunpack.c.l.b16 %v3619
  %v4659 = vunpack.c.h.b16 %v3619
  %v4660 = vunpack.c.l.b16 %v3620
  %v4661 = vunpack.c.h.b16 %v3620
  %v4662 = vunpack.c.l.b16 %v3621
  %v4663 = vunpack.c.h.b16 %v3621
  %v4664 = vunpack.c.l.b16 %v3622
  %v4665 = vunpack.c.h.b16 %v3622
  %v4666 = vunpack.c.l.b16 %v3623
  %v4667 = vunpack.c.h.b16 %v3623
  %v4668 = vunpack.c.l.b16 %v3624
  %v4669 = vunpack.c.h.b16 %v3624
  %v4670 = vunpack.c.l.b16 %v3625
  %v4671 = vunpack.c.h.b16 %v3625
  %v4672 = vunpack.c.l.b16 %v3626
  %v4673 = vunpack.c.h.b16 %v3626
  %v4674 = vunpack.c.l.b16 %v3627
  %v4675 = vunpack.c.h.b16 %v3627
  %v4676 = vunpack.c.l.b16 %v3628
  %v4677 = vunpack.c.h.b16 %v3628
  %v4678 = vunpack.c.l.b16 %v3629
  %v4679 = vunpack.c.h.b16 %v3629
  %v4680 = vunpack.c.l.b16 %v3630
  %v4681 = vunpack.c.h.b16 %v3630
  %v4682 = vunpack.c.l.b16 %v3631
  %v4683 = vunpack.c.h.b16 %v3631
  %v4684 = vunpack.c.l.b16 %v3632
  %v4685 = vunpack.c.h.b16 %v3632
  %v4686 = vunpack.c.l.b16 %v3633
  %v4687 = vunpack.c.h.b16 %v3633
  %v4688 = vunpack.c.l.b16 %v3634
  %v4689 = vunpack.c.h.b16 %v3634
  %v4690 = vunpack.c.l.b16 %v3635
  %v4691 = vunpack.c.h.b16 %v3635
  %v4692 = vunpack.c.l.b16 %v3636
  %v4693 = vunpack.c.h.b16 %v3636
  %v4694 = vunpack.c.l.b16 %v3637
  %v4695 = vunpack.c.h.b16 %v3637
  %v4696 = vunpack.c.l.b16 %v3638
  %v4697 = vunpack.c.h.b16 %v3638
  %v4698 = vunpack.c.l.b16 %v3639
  %v4699 = vunpack.c.h.b16 %v3639
  %v4700 = vunpack.c.l.b16 %v3640
  %v4701 = vunpack.c.h.b16 %v3640
  %v4702 = vunpack.c.l.b16 %v3641
  %v4703 = vunpack.c.h.b16 %v3641
  %v4704 = vunpack.c.l.b16 %v3642
  %v4705 = vunpack.c.h.b16 %v3642
  %v4706 = vunpack.c.l.b16 %v3643
  %v4707 = vunpack.c.h.b16 %v3643
  %v4708 = vunpack.c.l.b16 %v3644
  %v4709 = vunpack.c.h.b16 %v3644
  %v4710 = vunpack.c.l.b16 %v3645
  %v4711 = vunpack.c.h.b16 %v3645
  %v4712 = vunpack.c.l.b16 %v3646
  %v4713 = vunpack.c.h.b16 %v3646
  %v4714 = vunpack.c.l.b16 %v3647
  %v4715 = vunpack.c.h.b16 %v3647
  %v4716 = vunpack.c.l.b16 %v3648
  %v4717 = vunpack.c.h.b16 %v3648
  %v4718 = vunpack.c.l.b16 %v3649
  %v4719 = vunpack.c.h.b16 %v3649
  %v4720 = vunpack.c.l.b16 %v3650
  %v4721 = vunpack.c.h.b16 %v3650
  %v4722 = vunpack.c.l.b16 %v3651
  %v4723 = vunpack.c.h.b16 %v3651
  %v4724 = vunpack.c.l.b16 %v3652
  %v4725 = vunpack.c.h.b16 %v3652
  %v4726 = vunpack.c.l.b16 %v3653
  %v4727 = vunpack.c.h.b16 %v3653
  %v4728 = vunpack.c.l.b16 %v3654
  %v4729 = vunpack.c.h.b16 %v3654
  %v4730 = vunpack.c.l.b16 %v3655
  %v4731 = vunpack.c.h.b16 %v3655
  %v4732 = vunpack.c.l.b16 %v3656
  %v4733 = vunpack.c.h.b16 %v3656
  %v4734 = vunpack.c.l.b16 %v3657
  %v4735 = vunpack.c.h.b16 %v3657
  %v4736 = vunpack.c.l.b16 %v3658
  %v4737 = vunpack.c.h.b16 %v3658
  %v4738 = vunpack.c.l.b16 %v3659
  %v4739 = vunpack.c.h.b16 %v3659
  %v4740 = vunpack.c.l.b16 %v3660
  %v4741 = vunpack.c.h.b16 %v3660
  %v4742 = vunpack.c.l.b16 %v3661
  %v4743 = vunpack.c.h.b16 %v3661
  %v4744 = vunpack.c.l.b16 %v3662
  %v4745 = vunpack.c.h.b16 %v3662
  %v4746 = vunpack.c.l.b16 %v3663
  %v4747 = vunpack.c.h.b16 %v3663
  %v4748 = vunpack.c.l.b16 %v3664
  %v4749 = vunpack.c.h.b16 %v3664
  %v4750 = vunpack.c.l.b16 %v3665
  %v4751 = vunpack.c.h.b16 %v3665
  %v4752 = vunpack.c.l.b16 %v3666
  %v4753 = vunpack.c.h.b16 %v3666
  %v4754 = vunpack.c.l.b16 %v3667
  %v4755 = vunpack.c.h.b16 %v3667
  %v4756 = vunpack.c.l.b16 %v3668
  %v4757 = vunpack.c.h.b16 %v3668
  %v4758 = vunpack.c.l.b16 %v3669
  %v4759 = vunpack.c.h.b16 %v3669
  %v4760 = vunpack.c.l.b16 %v3670
  %v4761 = vunpack.c.h.b16 %v3670
  %v4762 = vunpack.c.l.b16 %v3671
  %v4763 = vunpack.c.h.b16 %v3671
  %v4764 = vunpack.c.l.b16 %v3672
  %v4765 = vunpack.c.h.b16 %v3672
  %v4766 = vunpack.c.l.b16 %v3673
  %v4767 = vunpack.c.h.b16 %v3673
  %v4768 = vunpack.c.l.b16 %v3674
  %v4769 = vunpack.c.h.b16 %v3674
  %v4770 = vunpack.c.l.b16 %v3675
  %v4771 = vunpack.c.h.b16 %v3675
  %v4772 = vunpack.c.l.b16 %v3676
  %v4773 = vunpack.c.h.b16 %v3676
  %v4774 = vunpack.c.l.b16 %v3677
  %v4775 = vunpack.c.h.b16 %v3677
  %v4776 = vunpack.c.l.b16 %v3678
  %v4777 = vunpack.c.h.b16 %v3678
  %v4778 = vunpack.c.l.b16 %v3679
  %v4779 = vunpack.c.h.b16 %v3679
  %v4780 = vunpack.c.l.b16 %v3680
  %v4781 = vunpack.c.h.b16 %v3680
  %v4782 = vunpack.c.l.b16 %v3681
  %v4783 = vunpack.c.h.b16 %v3681
  %v4784 = vunpack.c.l.b16 %v3682
  %v4785 = vunpack.c.h.b16 %v3682
  %v4786 = vunpack.c.l.b16 %v3683
  %v4787 = vunpack.c.h.b16 %v3683
  %v4788 = vunpack.c.l.b16 %v3684
  %v4789 = vunpack.c.h.b16 %v3684
  %v4790 = vunpack.c.l.b16 %v3685
  %v4791 = vunpack.c.h.b16 %v3685
  %v4792 = vunpack.c.l.b16 %v3686
  %v4793 = vunpack.c.h.b16 %v3686
  %v4794 = vunpack.c.l.b16 %v3687
  %v4795 = vunpack.c.h.b16 %v3687
  %v4796 = vunpack.c.l.b16 %v3688
  %v4797 = vunpack.c.h.b16 %v3688
  %v4798 = vunpack.c.l.b16 %v3689
  %v4799 = vunpack.c.h.b16 %v3689
  %v4800 = vunpack.c.l.b16 %v3690
  %v4801 = vunpack.c.h.b16 %v3690
  %v4802 = vunpack.c.l.b16 %v3691
  %v4803 = vunpack.c.h.b16 %v3691
  %v4804 = vunpack.c.l.b16 %v3692
  %v4805 = vunpack.c.h.b16 %v3692
  %v4806 = vunpack.c.l.b16 %v3693
  %v4807 = vunpack.c.h.b16 %v3693
  %v4808 = vunpack.c.l.b16 %v3694
  %v4809 = vunpack.c.h.b16 %v3694
  %v4810 = vunpack.c.l.b16 %v3695
  %v4811 = vunpack.c.h.b16 %v3695
  %v4812 = vunpack.c.l.b16 %v3696
  %v4813 = vunpack.c.h.b16 %v3696
  %v4814 = vunpack.c.l.b16 %v3697
  %v4815 = vunpack.c.h.b16 %v3697
  %v4816 = vunpack.c.l.b16 %v3698
  %v4817 = vunpack.c.h.b16 %v3698
  %v4818 = vunpack.c.l.b16 %v3699
  %v4819 = vunpack.c.h.b16 %v3699
  %v4820 = vunpack.c.l.b16 %v3700
  %v4821 = vunpack.c.h.b16 %v3700
  %v4822 = vunpack.c.l.b16 %v3701
  %v4823 = vunpack.c.h.b16 %v3701
  %v4824 = vunpack.c.l.b16 %v3702
  %v4825 = vunpack.c.h.b16 %v3702
  %v4826 = vunpack.c.l.b16 %v3703
  %v4827 = vunpack.c.h.b16 %v3703
  %v4828 = vunpack.c.l.b16 %v3704
  %v4829 = vunpack.c.h.b16 %v3704
  %v4830 = vunpack.c.l.b16 %v3705
  %v4831 = vunpack.c.h.b16 %v3705
  %v4832 = vunpack.c.l.b16 %v3706
  %v4833 = vunpack.c.h.b16 %v3706
  %v4834 = vunpack.c.l.b16 %v3707
  %v4835 = vunpack.c.h.b16 %v3707
  %v4836 = vunpack.c.l.b16 %v3708
  %v4837 = vunpack.c.h.b16 %v3708
  %v4838 = vunpack.c.l.b16 %v3709
  %v4839 = vunpack.c.h.b16 %v3709
  %v4840 = vunpack.c.l.b16 %v3710
  %v4841 = vunpack.c.h.b16 %v3710
  %v4842 = vunpack.c.l.b16 %v3711
  %v4843 = vunpack.c.h.b16 %v3711
  %v4844 = vunpack.c.l.b16 %v3712
  %v4845 = vunpack.c.h.b16 %v3712
  %v4846 = vunpack.c.l.b16 %v3713
  %v4847 = vunpack.c.h.b16 %v3713
  %v4848 = vunpack.c.l.b16 %v3714
  %v4849 = vunpack.c.h.b16 %v3714
  %v4850 = vunpack.c.l.b16 %v3715
  %v4851 = vunpack.c.h.b16 %v3715
  %v4852 = vunpack.c.l.b16 %v3716
  %v4853 = vunpack.c.h.b16 %v3716
  %v4854 = vunpack.c.l.b16 %v3717
  %v4855 = vunpack.c.h.b16 %v3717
  %v4856 = vunpack.c.l.b16 %v3718
  %v4857 = vunpack.c.h.b16 %v3718
  %v4858 = vunpack.c.l.b16 %v3719
  %v4859 = vunpack.c.h.b16 %v3719
  %v4860 = vunpack.c.l.b16 %v3720
  %v4861 = vunpack.c.h.b16 %v3720
  %v4862 = vunpack.c.l.b16 %v3721
  %v4863 = vunpack.c.h.b16 %v3721
  %v4864 = vunpack.c.l.b16 %v3722
  %v4865 = vunpack.c.h.b16 %v3722
  %v4866 = vunpack.c.l.b16 %v3723
  %v4867 = vunpack.c.h.b16 %v3723
  %v4868 = vunpack.c.l.b16 %v3724
  %v4869 = vunpack.c.h.b16 %v3724
  %v4870 = vunpack.c.l.b16 %v3725
  %v4871 = vunpack.c.h.b16 %v3725
  %v4872 = vunpack.c.l.b16 %v3726
  %v4873 = vunpack.c.h.b16 %v3726
  %v4874 = vunpack.c.l.b16 %v3727
  %v4875 = vunpack.c.h.b16 %v3727
  %v4876 = vunpack.c.l.b16 %v3728
  %v4877 = vunpack.c.h.b16 %v3728
  %v4878 = vunpack.c.l.b16 %v3729
  %v4879 = vunpack.c.h.b16 %v3729
  %v4880 = vunpack.c.l.b16 %v3730
  %v4881 = vunpack.c.h.b16 %v3730
  %v4882 = vunpack.c.l.b16 %v3731
  %v4883 = vunpack.c.h.b16 %v3731
  %v4884 = vunpack.c.l.b16 %v3732
  %v4885 = vunpack.c.h.b16 %v3732
  %v4886 = vunpack.c.l.b16 %v3733
  %v4887 = vunpack.c.h.b16 %v3733
  %v4888 = vunpack.c.l.b16 %v3734
  %v4889 = vunpack.c.h.b16 %v3734
  %v4890 = vunpack.c.l.b16 %v3735
  %v4891 = vunpack.c.h.b16 %v3735
  %v4892 = vunpack.c.l.b16 %v3736
  %v4893 = vunpack.c.h.b16 %v3736
  %v4894 = vunpack.c.l.b16 %v3737
  %v4895 = vunpack.c.h.b16 %v3737
  %v4896 = vunpack.c.l.b16 %v3738
  %v4897 = vunpack.c.h.b16 %v3738
  %v4898 = vunpack.c.l.b16 %v3739
  %v4899 = vunpack.c.h.b16 %v3739
  %v4900 = vunpack.c.l.b16 %v3740
  %v4901 = vunpack.c.h.b16 %v3740
  %v4902 = vunpack.c.l.b16 %v3741
  %v4903 = vunpack.c.h.b16 %v3741
  %v4904 = vunpack.c.l.b16 %v3742
  %v4905 = vunpack.c.h.b16 %v3742
  %v4906 = vunpack.c.l.b16 %v3743
  %v4907 = vunpack.c.h.b16 %v3743
  %v4908 = vunpack.c.l.b16 %v3744
  %v4909 = vunpack.c.h.b16 %v3744
  %v4910 = vunpack.c.l.b16 %v3745
  %v4911 = vunpack.c.h.b16 %v3745
  %v4912 = vunpack.c.l.b16 %v3746
  %v4913 = vunpack.c.h.b16 %v3746
  %v4914 = vunpack.c.l.b16 %v3747
  %v4915 = vunpack.c.h.b16 %v3747
  %v4916 = vunpack.c.l.b16 %v3748
  %v4917 = vunpack.c.h.b16 %v3748
  %v4918 = vunpack.c.l.b16 %v3749
  %v4919 = vunpack.c.h.b16 %v3749
  %v4920 = vunpack.c.l.b16 %v3750
  %v4921 = vunpack.c.h.b16 %v3750
  %v4922 = vunpack.c.l.b16 %v3751
  %v4923 = vunpack.c.h.b16 %v3751
  %v4924 = vunpack.c.l.b16 %v3752
  %v4925 = vunpack.c.h.b16 %v3752
  %v4926 = vunpack.c.l.b16 %v3753
  %v4927 = vunpack.c.h.b16 %v3753
  %v4928 = vunpack.c.l.b16 %v3754
  %v4929 = vunpack.c.h.b16 %v3754
  %v4930 = vunpack.c.l.b16 %v3755
  %v4931 = vunpack.c.h.b16 %v3755
  %v4932 = vunpack.c.l.b16 %v3756
  %v4933 = vunpack.c.h.b16 %v3756
  %v4934 = vunpack.c.l.b16 %v3757
  %v4935 = vunpack.c.h.b16 %v3757
  %v4936 = vunpack.c.l.b16 %v3758
  %v4937 = vunpack.c.h.b16 %v3758
  %v4938 = vunpack.c.l.b16 %v3759
  %v4939 = vunpack.c.h.b16 %v3759
  %v4940 = vunpack.c.l.b16 %v3760
  %v4941 = vunpack.c.h.b16 %v3760
  %v4942 = vunpack.c.l.b16 %v3761
  %v4943 = vunpack.c.h.b16 %v3761
  %v4944 = vunpack.c.l.b16 %v3762
  %v4945 = vunpack.c.h.b16 %v3762
  %v4946 = vunpack.c.l.b16 %v3763
  %v4947 = vunpack.c.h.b16 %v3763
  %v4948 = vunpack.c.l.b16 %v3764
  %v4949 = vunpack.c.h.b16 %v3764
  %v4950 = vunpack.c.l.b16 %v3765
  %v4951 = vunpack.c.h.b16 %v3765
  %v4952 = vunpack.c.l.b16 %v3766
  %v4953 = vunpack.c.h.b16 %v3766
  %v4954 = vunpack.c.l.b16 %v3767
  %v4955 = vunpack.c.h.b16 %v3767
  %v4956 = vunpack.c.l.b16 %v3768
  %v4957 = vunpack.c.h.b16 %v3768
  %v4958 = vunpack.c.l.b16 %v3769
  %v4959 = vunpack.c.h.b16 %v3769
  %v4960 = vunpack.c.l.b16 %v3770
  %v4961 = vunpack.c.h.b16 %v3770
  %v4962 = vunpack.c.l.b16 %v3771
  %v4963 = vunpack.c.h.b16 %v3771
  %v4964 = vunpack.c.l.b16 %v3772
  %v4965 = vunpack.c.h.b16 %v3772
  %v4966 = vunpack.c.l.b16 %v3773
  %v4967 = vunpack.c.h.b16 %v3773
  %v4968 = vunpack.c.l.b16 %v3774
  %v4969 = vunpack.c.h.b16 %v3774
  %v4970 = vunpack.c.l.b16 %v3775
  %v4971 = vunpack.c.h.b16 %v3775
  %v4972 = vunpack.c.l.b16 %v3776
  %v4973 = vunpack.c.h.b16 %v3776
  %v4974 = vunpack.c.l.b16 %v3777
  %v4975 = vunpack.c.h.b16 %v3777
  %v4976 = vunpack.c.l.b16 %v3778
  %v4977 = vunpack.c.h.b16 %v3778
  %v4978 = vunpack.c.l.b16 %v3779
  %v4979 = vunpack.c.h.b16 %v3779
  %v4980 = vunpack.c.l.b16 %v3780
  %v4981 = vunpack.c.h.b16 %v3780
  %v4982 = vunpack.c.l.b16 %v3781
  %v4983 = vunpack.c.h.b16 %v3781
  %v4984 = vunpack.c.l.b16 %v3782
  %v4985 = vunpack.c.h.b16 %v3782
  %v4986 = vunpack.c.l.b16 %v3783
  %v4987 = vunpack.c.h.b16 %v3783
  %v4988 = vunpack.c.l.b16 %v3784
  %v4989 = vunpack.c.h.b16 %v3784
  %v4990 = vunpack.c.l.b16 %v3785
  %v4991 = vunpack.c.h.b16 %v3785
  %v4992 = vunpack.c.l.b16 %v3786
  %v4993 = vunpack.c.h.b16 %v3786
  %v4994 = vunpack.c.l.b16 %v3787
  %v4995 = vunpack.c.h.b16 %v3787
  %v4996 = vunpack.c.l.b16 %v3788
  %v4997 = vunpack.c.h.b16 %v3788
  %v4998 = vunpack.c.l.b16 %v3789
  %v4999 = vunpack.c.h.b16 %v3789
  %v5000 = vunpack.c.l.b16 %v3790
  %v5001 = vunpack.c.h.b16 %v3790
  %v5002 = vunpack.c.l.b16 %v3791
  %v5003 = vunpack.c.h.b16 %v3791
  %v5004 = vunpack.c.l.b16 %v3792
  %v5005 = vunpack.c.h.b16 %v3792
  %v5006 = vunpack.c.l.b16 %v3793
  %v5007 = vunpack.c.h.b16 %v3793
  %v5008 = vunpack.c.l.b16 %v3794
  %v5009 = vunpack.c.h.b16 %v3794
  %v5010 = vunpack.c.l.b16 %v3795
  %v5011 = vunpack.c.h.b16 %v3795
  %v5012 = vunpack.c.l.b16 %v3796
  %v5013 = vunpack.c.h.b16 %v3796
  %v5014 = vunpack.c.l.b16 %v3797
  %v5015 = vunpack.c.h.b16 %v3797
  %v5016 = vunpack.c.l.b16 %v3798
  %v5017 = vunpack.c.h.b16 %v3798
  %v5018 = vunpack.c.l.b16 %v3799
  %v5019 = vunpack.c.h.b16 %v3799
  %v5020 = vunpack.c.l.b16 %v3800
  %v5021 = vunpack.c.h.b16 %v3800
  %v5022 = vunpack.c.l.b16 %v3801
  %v5023 = vunpack.c.h.b16 %v3801
  %v5024 = vunpack.c.l.b16 %v3802
  %v5025 = vunpack.c.h.b16 %v3802
  %v5026 = vunpack.c.l.b16 %v3803
  %v5027 = vunpack.c.h.b16 %v3803
  %v5028 = vunpack.c.l.b16 %v3804
  %v5029 = vunpack.c.h.b16 %v3804
  %v5030 = vunpack.c.l.b16 %v3805
  %v5031 = vunpack.c.h.b16 %v3805
  %v5032 = vunpack.c.l.b16 %v3806
  %v5033 = vunpack.c.h.b16 %v3806
  %v5034 = vunpack.c.l.b16 %v3807
  %v5035 = vunpack.c.h.b16 %v3807
  %v5036 = vunpack.c.l.b16 %v3808
  %v5037 = vunpack.c.h.b16 %v3808
  %v5038 = vunpack.c.l.b16 %v3809
  %v5039 = vunpack.c.h.b16 %v3809
  %v5040 = vunpack.c.l.b16 %v3810
  %v5041 = vunpack.c.h.b16 %v3810
  %v5042 = vunpack.c.l.b16 %v3811
  %v5043 = vunpack.c.h.b16 %v3811
  %v5044 = vunpack.c.l.b16 %v3812
  %v5045 = vunpack.c.h.b16 %v3812
  %v5046 = vunpack.c.l.b16 %v3813
  %v5047 = vunpack.c.h.b16 %v3813
  %v5048 = vunpack.c.l.b16 %v3814
  %v5049 = vunpack.c.h.b16 %v3814
  %v5050 = vunpack.c.l.b16 %v3815
  %v5051 = vunpack.c.h.b16 %v3815
  %v5052 = vunpack.c.l.b16 %v3816
  %v5053 = vunpack.c.h.b16 %v3816
  %v5054 = vunpack.c.l.b16 %v3817
  %v5055 = vunpack.c.h.b16 %v3817
  %v5056 = vunpack.c.l.b16 %v3818
  %v5057 = vunpack.c.h.b16 %v3818
  %v5058 = vunpack.c.l.b16 %v3819
  %v5059 = vunpack.c.h.b16 %v3819
  %v5060 = vunpack.c.l.b16 %v3820
  %v5061 = vunpack.c.h.b16 %v3820
  %v5062 = vunpack.c.l.b16 %v3821
  %v5063 = vunpack.c.h.b16 %v3821
  %v5064 = vunpack.c.l.b16 %v3822
  %v5065 = vunpack.c.h.b16 %v3822
  %v5066 = vunpack.c.l.b16 %v3823
  %v5067 = vunpack.c.h.b16 %v3823
  %v5068 = vunpack.c.l.b16 %v3824
  %v5069 = vunpack.c.h.b16 %v3824
  %v5070 = vunpack.c.l.b16 %v3825
  %v5071 = vunpack.c.h.b16 %v3825
  %v5072 = vunpack.c.l.b16 %v3826
  %v5073 = vunpack.c.h.b16 %v3826
  %v5074 = vunpack.c.l.b16 %v3827
  %v5075 = vunpack.c.h.b16 %v3827
  %v5076 = vunpack.c.l.b16 %v3828
  %v5077 = vunpack.c.h.b16 %v3828
  %v5078 = vunpack.c.l.b16 %v3829
  %v5079 = vunpack.c.h.b16 %v3829
  %v5080 = vunpack.c.l.b16 %v3830
  %v5081 = vunpack.c.h.b16 %v3830
  %v5082 = vunpack.c.l.b16 %v3831
  %v5083 = vunpack.c.h.b16 %v3831
  %v5084 = vunpack.c.l.b16 %v3832
  %v5085 = vunpack.c.h.b16 %v3832
  %v5086 = vunpack.c.l.b16 %v3833
  %v5087 = vunpack.c.h.b16 %v3833
  %v5088 = vunpack.c.l.b16 %v3834
  %v5089 = vunpack.c.h.b16 %v3834
  %v5090 = vunpack.c.l.b16 %v3835
  %v5091 = vunpack.c.h.b16 %v3835
  %v5092 = vunpack.c.l.b16 %v3836
  %v5093 = vunpack.c.h.b16 %v3836
  %v5094 = vunpack.c.l.b16 %v3837
  %v5095 = vunpack.c.h.b16 %v3837
  %v5096 = vunpack.c.l.b16 %v3838
  %v5097 = vunpack.c.h.b16 %v3838
  %v5098 = vunpack.c.l.b16 %v3839
  %v5099 = vunpack.c.h.b16 %v3839
  %v5100 = vpack.c.b16 %v4302, %v4300
  %v5101 = vpack.c.b16 %v4303, %v4301
  %v5102 = vpack.c.b16 %v4306, %v4304
  %v5103 = vpack.c.b16 %v4307, %v4305
  %v5104 = vpack.c.b16 %v4310, %v4308
  %v5105 = vpack.c.b16 %v4311, %v4309
  %v5106 = vpack.c.b16 %v4314, %v4312
  %v5107 = vpack.c.b16 %v4315, %v4313
  %v5108 = vpack.c.b16 %v4318, %v4316
  %v5109 = vpack.c.b16 %v4319, %v4317
  %v5110 = vpack.c.b16 %v4322, %v4320
  %v5111 = vpack.c.b16 %v4323, %v4321
  %v5112 = vpack.c.b16 %v4326, %v4324
  %v5113 = vpack.c.b16 %v4327, %v4325
  %v5114 = vpack.c.b16 %v4330, %v4328
  %v5115 = vpack.c.b16 %v4331, %v4329
  %v5116 = vpack.c.b16 %v4334, %v4332
  %v5117 = vpack.c.b16 %v4335, %v4333
  %v5118 = vpack.c.b16 %v4338, %v4336
  %v5119 = vpack.c.b16 %v4339, %v4337
  %v5120 = vpack.c.b16 %v4342, %v4340
  %v5121 = vpack.c.b16 %v4343, %v4341
  %v5122 = vpack.c.b16 %v4346, %v4344
  %v5123 = vpack.c.b16 %v4347, %v4345
  %v5124 = vpack.c.b16 %v4350, %v4348
  %v5125 = vpack.c.b16 %v4351, %v4349
  %v5126 = vpack.c.b16 %v4354, %v4352
  %v5127 = vpack.c.b16 %v4355, %v4353
  %v5128 = vpack.c.b16 %v4358, %v4356
  %v5129 = vpack.c.b16 %v4359, %v4357
  %v5130 = vpack.c.b16 %v4362, %v4360
  %v5131 = vpack.c.b16 %v4363, %v4361
  %v5132 = vpack.c.b16 %v4366, %v4364
  %v5133 = vpack.c.b16 %v4367, %v4365
  %v5134 = vpack.c.b16 %v4370, %v4368
  %v5135 = vpack.c.b16 %v4371, %v4369
  %v5136 = vpack.c.b16 %v4374, %v4372
  %v5137 = vpack.c.b16 %v4375, %v4373
  %v5138 = vpack.c.b16 %v4378, %v4376
  %v5139 = vpack.c.b16 %v4379, %v4377
  %v5140 = vpack.c.b16 %v4382, %v4380
  %v5141 = vpack.c.b16 %v4383, %v4381
  %v5142 = vpack.c.b16 %v4386, %v4384
  %v5143 = vpack.c.b16 %v4387, %v4385
  %v5144 = vpack.c.b16 %v4390, %v4388
  %v5145 = vpack.c.b16 %v4391, %v4389
  %v5146 = vpack.c.b16 %v4394, %v4392
  %v5147 = vpack.c.b16 %v4395, %v4393
  %v5148 = vpack.c.b16 %v4398, %v4396
  %v5149 = vpack.c.b16 %v4399, %v4397
  %v5150 = vpack.c.b16 %v4402, %v4400
  %v5151 = vpack.c.b16 %v4403, %v4401
  %v5152 = vpack.c.b16 %v4406, %v4404
  %v5153 = vpack.c.b16 %v4407, %v4405
  %v5154 = vpack.c.b16 %v4410, %v4408
  %v5155 = vpack.c.b16 %v4411, %v4409
  %v5156 = vpack.c.b16 %v4414, %v4412
  %v5157 = vpack.c.b16 %v4415, %v4413
  %v5158 = vpack.c.b16 %v4418, %v4416
  %v5159 = vpack.c.b16 %v4419, %v4417
  %v5160 = vpack.c.b16 %v4422, %v4420
  %v5161 = vpack.c.b16 %v4423, %v4421
  %v5162 = vpack.c.b16 %v4426, %v4424
  %v5163 = vpack.c.b16 %v4427, %v4425
  %v5164 = vpack.c.b16 %v4430, %v4428
  %v5165 = vpack.c.b16 %v4431, %v4429
  %v5166 = vpack.c.b16 %v4434, %v4432
  %v5167 = vpack.c.b16 %v4435, %v4433
  %v5168 = vpack.c.b16 %v4438, %v4436
  %v5169 = vpack.c.b16 %v4439, %v4437
  %v5170 = vpack.c.b16 %v4442, %v4440
  %v5171 = vpack.c.b16 %v4443, %v4441
  %v5172 = vpack.c.b16 %v4446, %v4444
  %v5173 = vpack.c.b16 %v4447, %v4445
  %v5174 = vpack.c.b16 %v4450, %v4448
  %v5175 = vpack.c.b16 %v4451, %v4449
  %v5176 = vpack.c.b16 %v4454, %v4452
  %v5177 = vpack.c.b16 %v4455, %v4453
  %v5178 = vpack.c.b16 %v4458, %v4456
  %v5179 = vpack.c.b16 %v4459, %v4457
  %v5180 = vpack.c.b16 %v4462, %v4460
  %v5181 = vpack.c.b16 %v4463, %v4461
  %v5182 = vpack.c.b16 %v4466, %v4464
  %v5183 = vpack.c.b16 %v4467, %v4465
  %v5184 = vpack.c.b16 %v4470, %v4468
  %v5185 = vpack.c.b16 %v4471, %v4469
  %v5186 = vpack.c.b16 %v4474, %v4472
  %v5187 = vpack.c.b16 %v4475, %v4473
  %v5188 = vpack.c.b16 %v4478, %v4476
  %v5189 = vpack.c.b16 %v4479, %v4477
  %v5190 = vpack.c.b16 %v4482, %v4480
  %v5191 = vpack.c.b16 %v4483, %v4481
  %v5192 = vpack.c.b16 %v4486, %v4484
  %v5193 = vpack.c.b16 %v4487, %v4485
  %v5194 = vpack.c.b16 %v4490, %v4488
  %v5195 = vpack.c.b16 %v4491, %v4489
  %v5196 = vpack.c.b16 %v4494, %v4492
  %v5197 = vpack.c.b16 %v4495, %v4493
  %v5198 = vpack.c.b16 %v4498, %v4496
  %v5199 = vpack.c.b16 %v4499, %v4497
  %v5200 = vpack.c.b16 %v4502, %v4500
  %v5201 = vpack.c.b16 %v4503, %v4501
  %v5202 = vpack.c.b16 %v4506, %v4504
  %v5203 = vpack.c.b16 %v4507, %v4505
  %v5204 = vpack.c.b16 %v4510, %v4508
  %v5205 = vpack.c.b16 %v4511, %v4509
  %v5206 = vpack.c.b16 %v4514, %v4512
  %v5207 = vpack.c.b16 %v4515, %v4513
  %v5208 = vpack.c.b16 %v4518, %v4516
  %v5209 = vpack.c.b16 %v4519, %v4517
  %v5210 = vpack.c.b16 %v4522, %v4520
  %v5211 = vpack.c.b16 %v4523, %v4521
  %v5212 = vpack.c.b16 %v4526, %v4524
  %v5213 = vpack.c.b16 %v4527, %v4525
  %v5214 = vpack.c.b16 %v4530, %v4528
  %v5215 = vpack.c.b16 %v4531, %v4529
  %v5216 = vpack.c.b16 %v4534, %v4532
  %v5217 = vpack.c.b16 %v4535, %v4533
  %v5218 = vpack.c.b16 %v4538, %v4536
  %v5219 = vpack.c.b16 %v4539, %v4537
  %v5220 = vpack.c.b16 %v4542, %v4540
  %v5221 = vpack.c.b16 %v4543, %v4541
  %v5222 = vpack.c.b16 %v4546, %v4544
  %v5223 = vpack.c.b16 %v4547, %v4545
  %v5224 = vpack.c.b16 %v4550, %v4548
  %v5225 = vpack.c.b16 %v4551, %v4549
  %v5226 = vpack.c.b16 %v4554, %v4552
  %v5227 = vpack.c.b16 %v4555, %v4553
  %v5228 = vpack.c.b16 %v4558, %v4556
  %v5229 = vpack.c.b16 %v4559, %v4557
  %v5230 = vpack.c.b16 %v4562, %v4560
  %v5231 = vpack.c.b16 %v4563, %v4561
  %v5232 = vpack.c.b16 %v4566, %v4564
  %v5233 = vpack.c.b16 %v4567, %v4565
  %v5234 = vpack.c.b16 %v4570, %v4568
  %v5235 = vpack.c.b16 %v4571, %v4569
  %v5236 = vpack.c.b16 %v4574, %v4572
  %v5237 = vpack.c.b16 %v4575, %v4573
  %v5238 = vpack.c.b16 %v4578, %v4576
  %v5239 = vpack.c.b16 %v4579, %v4577
  %v5240 = vpack.c.b16 %v4582, %v4580
  %v5241 = vpack.c.b16 %v4583, %v4581
  %v5242 = vpack.c.b16 %v4586, %v4584
  %v5243 = vpack.c.b16 %v4587, %v4585
  %v5244 = vpack.c.b16 %v4590, %v4588
  %v5245 = vpack.c.b16 %v4591, %v4589
  %v5246 = vpack.c.b16 %v4594, %v4592
  %v5247 = vpack.c.b16 %v4595, %v4593
  %v5248 = vpack.c.b16 %v4598, %v4596
  %v5249 = vpack.c.b16 %v4599, %v4597
  %v5250 = vpack.c.b16 %v4602, %v4600
  %v5251 = vpack.c.b16 %v4603, %v4601
  %v5252 = vpack.c.b16 %v4606, %v4604
  %v5253 = vpack.c.b16 %v4607, %v4605
  %v5254 = vpack.c.b16 %v4610, %v4608
  %v5255 = vpack.c.b16 %v4611, %v4609
  %v5256 = vpack.c.b16 %v4614, %v4612
  %v5257 = vpack.c.b16 %v4615, %v4613
  %v5258 = vpack.c.b16 %v4618, %v4616
  %v5259 = vpack.c.b16 %v4619, %v4617
  %v5260 = vpack.c.b16 %v4622, %v4620
  %v5261 = vpack.c.b16 %v4623, %v4621
  %v5262 = vpack.c.b16 %v4626, %v4624
  %v5263 = vpack.c.b16 %v4627, %v4625
  %v5264 = vpack.c.b16 %v4630, %v4628
  %v5265 = vpack.c.b16 %v4631, %v4629
  %v5266 = vpack.c.b16 %v4634, %v4632
  %v5267 = vpack.c.b16 %v4635, %v4633
  %v5268 = vpack.c.b16 %v4638, %v4636
  %v5269 = vpack.c.b16 %v4639, %v4637
  %v5270 = vpack.c.b16 %v4642, %v4640
  %v5271 = vpack.c.b16 %v4643, %v4641
  %v5272 = vpack.c.b16 %v4646, %v4644
  %v5273 = vpack.c.b16 %v4647, %v4645
  %v5274 = vpack.c.b16 %v4650, %v4648
  %v5275 = vpack.c.b16 %v4651, %v4649
  %v5276 = vpack.c.b16 %v4654, %v4652
  %v5277 = vpack.c.b16 %v4655, %v4653
  %v5278 = vpack.c.b16 %v4658, %v4656
  %v5279 = vpack.c.b16 %v4659, %v4657
  %v5280 = vpack.c.b16 %v4662, %v4660
  %v5281 = vpack.c.b16 %v4663, %v4661
  %v5282 = vpack.c.b16 %v4666, %v4664
  %v5283 = vpack.c.b16 %v4667, %v4665
  %v5284 = vpack.c.b16 %v4670, %v4668
  %v5285 = vpack.c.b16 %v4671, %v4669
  %v5286 = vpack.c.b16 %v4674, %v4672
  %v5287 = vpack.c.b16 %v4675, %v4673
  %v5288 = vpack.c.b16 %v4678, %v4676
  %v5289 = vpack.c.b16 %v4679, %v4677
  %v5290 = vpack.c.b16 %v4682, %v4680
  %v5291 = vpack.c.b16 %v4683, %v4681
  %v5292 = vpack.c.b16 %v4686, %v4684
  %v5293 = vpack.c.b16 %v4687, %v4685
  %v5294 = vpack.c.b16 %v4690, %v4688
  %v5295 = vpack.c.b16 %v4691, %v4689
  %v5296 = vpack.c.b16 %v4694, %v4692
  %v5297 = vpack.c.b16 %v4695, %v4693
  %v5298 = vpack.c.b16 %v4698, %v4696
  %v5299 = vpack.c.b16 %v4699, %v4697
  %v5300 = vpack.c.b16 %v4702, %v4700
  %v5301 = vpack.c.b16 %v4703, %v4701
  %v5302 = vpack.c.b16 %v4706, %v4704
  %v5303 = vpack.c.b16 %v4707, %v4705
  %v5304 = vpack.c.b16 %v4710, %v4708
  %v5305 = vpack.c.b16 %v4711, %v4709
  %v5306 = vpack.c.b16 %v4714, %v4712
  %v5307 = vpack.c.b16 %v4715, %v4713
  %v5308 = vpack.c.b16 %v4718, %v4716
  %v5309 = vpack.c.b16 %v4719, %v4717
  %v5310 = vpack.c.b16 %v4722, %v4720
  %v5311 = vpack.c.b16 %v4723, %v4721
  %v5312 = vpack.c.b16 %v4726, %v4724
  %v5313 = vpack.c.b16 %v4727, %v4725
  %v5314 = vpack.c.b16 %v4730, %v4728
  %v5315 = vpack.c.b16 %v4731, %v4729
  %v5316 = vpack.c.b16 %v4734, %v4732
  %v5317 = vpack.c.b16 %v4735, %v4733
  %v5318 = vpack.c.b16 %v4738, %v4736
  %v5319 = vpack.c.b16 %v4739, %v4737
  %v5320 = vpack.c.b16 %v4742, %v4740
  %v5321 = vpack.c.b16 %v4743, %v4741
  %v5322 = vpack.c.b16 %v4746, %v4744
  %v5323 = vpack.c.b16 %v4747, %v4745
  %v5324 = vpack.c.b16 %v4750, %v4748
  %v5325 = vpack.c.b16 %v4751, %v4749
  %v5326 = vpack.c.b16 %v4754, %v4752
  %v5327 = vpack.c.b16 %v4755, %v4753
  %v5328 = vpack.c.b16 %v4758, %v4756
  %v5329 = vpack.c.b16 %v4759, %v4757
  %v5330 = vpack.c.b16 %v4762, %v4760
  %v5331 = vpack.c.b16 %v4763, %v4761
  %v5332 = vpack.c.b16 %v4766, %v4764
  %v5333 = vpack.c.b16 %v4767, %v4765
  %v5334 = vpack.c.b16 %v4770, %v4768
  %v5335 = vpack.c.b16 %v4771, %v4769
  %v5336 = vpack.c.b16 %v4774, %v4772
  %v5337 = vpack.c.b16 %v4775, %v4773
  %v5338 = vpack.c.b16 %v4778, %v4776
  %v5339 = vpack.c.b16 %v4779, %v4777
  %v5340 = vpack.c.b16 %v4782, %v4780
  %v5341 = vpack.c.b16 %v4783, %v4781
  %v5342 = vpack.c.b16 %v4786, %v4784
  %v5343 = vpack.c.b16 %v4787, %v4785
  %v5344 = vpack.c.b16 %v4790, %v4788
  %v5345 = vpack.c.b16 %v4791, %v4789
  %v5346 = vpack.c.b16 %v4794, %v4792
  %v5347 = vpack.c.b16 %v4795, %v4793
  %v5348 = vpack.c.b16 %v4798, %v4796
  %v5349 = vpack.c.b16 %v4799, %v4797
  %v5350 = vpack.c.b16 %v4802, %v4800
  %v5351 = vpack.c.b16 %v4803, %v4801
  %v5352 = vpack.c.b16 %v4806, %v4804
  %v5353 = vpack.c.b16 %v4807, %v4805
  %v5354 = vpack.c.b16 %v4810, %v4808
  %v5355 = vpack.c.b16 %v4811, %v4809
  %v5356 = vpack.c.b16 %v4814, %v4812
  %v5357 = vpack.c.b16 %v4815, %v4813
  %v5358 = vpack.c.b16 %v4818, %v4816
  %v5359 = vpack.c.b16 %v4819, %v4817
  %v5360 = vpack.c.b16 %v4822, %v4820
  %v5361 = vpack.c.b16 %v4823, %v4821
  %v5362 = vpack.c.b16 %v4826, %v4824
  %v5363 = vpack.c.b16 %v4827, %v4825
  %v5364 = vpack.c.b16 %v4830, %v4828
  %v5365 = vpack.c.b16 %v4831, %v4829
  %v5366 = vpack.c.b16 %v4834, %v4832
  %v5367 = vpack.c.b16 %v4835, %v4833
  %v5368 = vpack.c.b16 %v4838, %v4836
  %v5369 = vpack.c.b16 %v4839, %v4837
  %v5370 = vpack.c.b16 %v4842, %v4840
  %v5371 = vpack.c.b16 %v4843, %v4841
  %v5372 = vpack.c.b16 %v4846, %v4844
  %v5373 = vpack.c.b16 %v4847, %v4845
  %v5374 = vpack.c.b16 %v4850, %v4848
  %v5375 = vpack.c.b16 %v4851, %v4849
  %v5376 = vpack.c.b16 %v4854, %v4852
  %v5377 = vpack.c.b16 %v4855, %v4853
  %v5378 = vpack.c.b16 %v4858, %v4856
  %v5379 = vpack.c.b16 %v4859, %v4857
  %v5380 = vpack.c.b16 %v4862, %v4860
  %v5381 = vpack.c.b16 %v4863, %v4861
  %v5382 = vpack.c.b16 %v4866, %v4864
  %v5383 = vpack.c.b16 %v4867, %v4865
  %v5384 = vpack.c.b16 %v4870, %v4868
  %v5385 = vpack.c.b16 %v4871, %v4869
  %v5386 = vpack.c.b16 %v4874, %v4872
  %v5387 = vpack.c.b16 %v4875, %v4873
  %v5388 = vpack.c.b16 %v4878, %v4876
  %v5389 = vpack.c.b16 %v4879, %v4877
  %v5390 = vpack.c.b16 %v4882, %v4880
  %v5391 = vpack.c.b16 %v4883, %v4881
  %v5392 = vpack.c.b16 %v4886, %v4884
  %v5393 = vpack.c.b16 %v4887, %v4885
  %v5394 = vpack.c.b16 %v4890, %v4888
  %v5395 = vpack.c.b16 %v4891, %v4889
  %v5396 = vpack.c.b16 %v4894, %v4892
  %v5397 = vpack.c.b16 %v4895, %v4893
  %v5398 = vpack.c.b16 %v4898, %v4896
  %v5399 = vpack.c.b16 %v4899, %v4897
  %v5400 = vpack.c.b16 %v4902, %v4900
  %v5401 = vpack.c.b16 %v4903, %v4901
  %v5402 = vpack.c.b16 %v4906, %v4904
  %v5403 = vpack.c.b16 %v4907, %v4905
  %v5404 = vpack.c.b16 %v4910, %v4908
  %v5405 = vpack.c.b16 %v4911, %v4909
  %v5406 = vpack.c.b16 %v4914, %v4912
  %v5407 = vpack.c.b16 %v4915, %v4913
  %v5408 = vpack.c.b16 %v4918, %v4916
  %v5409 = vpack.c.b16 %v4919, %v4917
  %v5410 = vpack.c.b16 %v4922, %v4920
  %v5411 = vpack.c.b16 %v4923, %v4921
  %v5412 = vpack.c.b16 %v4926, %v4924
  %v5413 = vpack.c.b16 %v4927, %v4925
  %v5414 = vpack.c.b16 %v4930, %v4928
  %v5415 = vpack.c.b16 %v4931, %v4929
  %v5416 = vpack.c.b16 %v4934, %v4932
  %v5417 = vpack.c.b16 %v4935, %v4933
  %v5418 = vpack.c.b16 %v4938, %v4936
  %v5419 = vpack.c.b16 %v4939, %v4937
  %v5420 = vpack.c.b16 %v4942, %v4940
  %v5421 = vpack.c.b16 %v4943, %v4941
  %v5422 = vpack.c.b16 %v4946, %v4944
  %v5423 = vpack.c.b16 %v4947, %v4945
  %v5424 = vpack.c.b16 %v4950, %v4948
  %v5425 = vpack.c.b16 %v4951, %v4949
  %v5426 = vpack.c.b16 %v4954, %v4952
  %v5427 = vpack.c.b16 %v4955, %v4953
  %v5428 = vpack.c.b16 %v4958, %v4956
  %v5429 = vpack.c.b16 %v4959, %v4957
  %v5430 = vpack.c.b16 %v4962, %v4960
  %v5431 = vpack.c.b16 %v4963, %v4961
  %v5432 = vpack.c.b16 %v4966, %v4964
  %v5433 = vpack.c.b16 %v4967, %v4965
  %v5434 = vpack.c.b16 %v4970, %v4968
  %v5435 = vpack.c.b16 %v4971, %v4969
  %v5436 = vpack.c.b16 %v4974, %v4972
  %v5437 = vpack.c.b16 %v4975, %v4973
  %v5438 = vpack.c.b16 %v4978, %v4976
  %v5439 = vpack.c.b16 %v4979, %v4977
  %v5440 = vpack.c.b16 %v4982, %v4980
  %v5441 = vpack.c.b16 %v4983, %v4981
  %v5442 = vpack.c.b16 %v4986, %v4984
  %v5443 = vpack.c.b16 %v4987, %v4985
  %v5444 = vpack.c.b16 %v4990, %v4988
  %v5445 = vpack.c.b16 %v4991, %v4989
  %v5446 = vpack.c.b16 %v4994, %v4992
  %v5447 = vpack.c.b16 %v4995, %v4993
  %v5448 = vpack.c.b16 %v4998, %v4996
  %v5449 = vpack.c.b16 %v4999, %v4997
  %v5450 = vpack.c.b16 %v5002, %v5000
  %v5451 = vpack.c.b16 %v5003, %v5001
  %v5452 = vpack.c.b16 %v5006, %v5004
  %v5453 = vpack.c.b16 %v5007, %v5005
  %v5454 = vpack.c.b16 %v5010, %v5008
  %v5455 = vpack.c.b16 %v5011, %v5009
  %v5456 = vpack.c.b16 %v5014, %v5012
  %v5457 = vpack.c.b16 %v5015, %v5013
  %v5458 = vpack.c.b16 %v5018, %v5016
  %v5459 = vpack.c.b16 %v5019, %v5017
  %v5460 = vpack.c.b16 %v5022, %v5020
  %v5461 = vpack.c.b16 %v5023, %v5021
  %v5462 = vpack.c.b16 %v5026, %v5024
  %v5463 = vpack.c.b16 %v5027, %v5025
  %v5464 = vpack.c.b16 %v5030, %v5028
  %v5465 = vpack.c.b16 %v5031, %v5029
  %v5466 = vpack.c.b16 %v5034, %v5032
  %v5467 = vpack.c.b16 %v5035, %v5033
  %v5468 = vpack.c.b16 %v5038, %v5036
  %v5469 = vpack.c.b16 %v5039, %v5037
  %v5470 = vpack.c.b16 %v5042, %v5040
  %v5471 = vpack.c.b16 %v5043, %v5041
  %v5472 = vpack.c.b16 %v5046, %v5044
  %v5473 = vpack.c.b16 %v5047, %v5045
  %v5474 = vpack.c.b16 %v5050, %v5048
  %v5475 = vpack.c.b16 %v5051, %v5049
  %v5476 = vpack.c.b16 %v5054, %v5052
  %v5477 = vpack.c.b16 %v5055, %v5053
  %v5478 = vpack.c.b16 %v5058, %v5056
  %v5479 = vpack.c.b16 %v5059, %v5057
  %v5480 = vpack.c.b16 %v5062, %v5060
  %v5481 = vpack.c.b16 %v5063, %v5061
  %v5482 = vpack.c.b16 %v5066, %v5064
  %v5483 = vpack.c.b16 %v5067, %v5065
  %v5484 = vpack.c.b16 %v5070, %v5068
  %v5485 = vpack.c.b16 %v5071, %v5069
  %v5486 = vpack.c.b16 %v5074, %v5072
  %v5487 = vpack.c.b16 %v5075, %v5073
  %v5488 = vpack.c.b16 %v5078, %v5076
  %v5489 = vpack.c.b16 %v5079, %v5077
  %v5490 = vpack.c.b16 %v5082, %v5080
  %v5491 = vpack.c.b16 %v5083, %v5081
  %v5492 = vpack.c.b16 %v5086, %v5084
  %v5493 = vpack.c.b16 %v5087, %v5085
  %v5494 = vpack.c.b16 %v5090, %v5088
  %v5495 = vpack.c.b16 %v5091, %v5089
  %v5496 = vpack.c.b16 %v5094, %v5092
  %v5497 = vpack.c.b16 %v5095, %v5093
  %v5498 = vpack.c.b16 %v5098, %v5096
  %v5499 = vpack.c.b16 %v5099, %v5097
  %5900 = vmatpush.bf16.msra.mxu0 %v5114
  %5901 = vmatpush.bf16.msra.mxu0 %v5112
  %5902 = vmatpush.bf16.msra.mxu0 %v5110
  %5903 = vmatpush.bf16.msra.mxu0 %v5108
  %5904 = vmatpush.bf16.msra.mxu0 %v5106
  %5905 = vmatpush.bf16.msra.mxu0 %v5104
  %5906 = vmatpush.bf16.msra.mxu0 %v5102
  %5907 = vmatpush.bf16.msra.mxu0 %v5100
  %5908 = vmatmul.bf16.gmra.mxu0 0
  %v5909 = vpop.f32.mrf.mxu0
  %v5910 = vadd.f32 %v3896, %v5909
  %v5911 = vpop.f32.mrf.mxu0
  %v5912 = vadd.f32 %v3896, %v5911
  %5913 = vdwg.mxu0
  %5914 = vmatpush.bf16.msra.mxu0 %v5130
  %5915 = vmatpush.bf16.msra.mxu0 %v5128
  %5916 = vmatpush.bf16.msra.mxu0 %v5126
  %5917 = vmatpush.bf16.msra.mxu0 %v5124
  %5918 = vmatpush.bf16.msra.mxu0 %v5122
  %5919 = vmatpush.bf16.msra.mxu0 %v5120
  %5920 = vmatpush.bf16.msra.mxu0 %v5118
  %5921 = vmatpush.bf16.msra.mxu0 %v5116
  %5922 = vmatmul.bf16.gmra.mxu0 0
  %v5923 = vpop.f32.mrf.mxu0
  %v5924 = vadd.f32 %v5910, %v5923
  %v5925 = vpop.f32.mrf.mxu0
  %v5926 = vadd.f32 %v5912, %v5925
  %5927 = vdwg.mxu0
  %5928 = vmatpush.bf16.msra.mxu0 %v5146
  %5929 = vmatpush.bf16.msra.mxu0 %v5144
  %5930 = vmatpush.bf16.msra.mxu0 %v5142
  %5931 = vmatpush.bf16.msra.mxu0 %v5140
  %5932 = vmatpush.bf16.msra.mxu0 %v5138
  %5933 = vmatpush.bf16.msra.mxu0 %v5136
  %5934 = vmatpush.bf16.msra.mxu0 %v5134
  %5935 = vmatpush.bf16.msra.mxu0 %v5132
  %5936 = vmatmul.bf16.gmra.mxu0 0
  %v5937 = vpop.f32.mrf.mxu0
  %v5938 = vadd.f32 %v5924, %v5937
  %v5939 = vpop.f32.mrf.mxu0
  %v5940 = vadd.f32 %v5926, %v5939
  %5941 = vdwg.mxu0
  %5942 = vmatpush.bf16.msra.mxu0 %v5162
  %5943 = vmatpush.bf16.msra.mxu0 %v5160
  %5944 = vmatpush.bf16.msra.mxu0 %v5158
  %5945 = vmatpush.bf16.msra.mxu0 %v5156
  %5946 = vmatpush.bf16.msra.mxu0 %v5154
  %5947 = vmatpush.bf16.msra.mxu0 %v5152
  %5948 = vmatpush.bf16.msra.mxu0 %v5150
  %5949 = vmatpush.bf16.msra.mxu0 %v5148
  %5950 = vmatmul.bf16.gmra.mxu0 0
  %v5951 = vpop.f32.mrf.mxu0
  %v5952 = vadd.f32 %v5938, %v5951
  %v5953 = vpop.f32.mrf.mxu0
  %v5954 = vadd.f32 %v5940, %v5953
  %5955 = vdwg.mxu0
  %5956 = vmatpush.bf16.msra.mxu0 %v5178
  %5957 = vmatpush.bf16.msra.mxu0 %v5176
  %5958 = vmatpush.bf16.msra.mxu0 %v5174
  %5959 = vmatpush.bf16.msra.mxu0 %v5172
  %5960 = vmatpush.bf16.msra.mxu0 %v5170
  %5961 = vmatpush.bf16.msra.mxu0 %v5168
  %5962 = vmatpush.bf16.msra.mxu0 %v5166
  %5963 = vmatpush.bf16.msra.mxu0 %v5164
  %5964 = vmatmul.bf16.gmra.mxu0 0
  %v5965 = vpop.f32.mrf.mxu0
  %v5966 = vadd.f32 %v5952, %v5965
  %v5967 = vpop.f32.mrf.mxu0
  %v5968 = vadd.f32 %v5954, %v5967
  %5969 = vdwg.mxu0
  %5970 = vmatpush.bf16.msra.mxu0 %v5194
  %5971 = vmatpush.bf16.msra.mxu0 %v5192
  %5972 = vmatpush.bf16.msra.mxu0 %v5190
  %5973 = vmatpush.bf16.msra.mxu0 %v5188
  %5974 = vmatpush.bf16.msra.mxu0 %v5186
  %5975 = vmatpush.bf16.msra.mxu0 %v5184
  %5976 = vmatpush.bf16.msra.mxu0 %v5182
  %5977 = vmatpush.bf16.msra.mxu0 %v5180
  %5978 = vmatmul.bf16.gmra.mxu0 0
  %v5979 = vpop.f32.mrf.mxu0
  %v5980 = vadd.f32 %v5966, %v5979
  %v5981 = vpop.f32.mrf.mxu0
  %v5982 = vadd.f32 %v5968, %v5981
  %5983 = vdwg.mxu0
  %5984 = vmatpush.bf16.msra.mxu0 %v5210
  %5985 = vmatpush.bf16.msra.mxu0 %v5208
  %5986 = vmatpush.bf16.msra.mxu0 %v5206
  %5987 = vmatpush.bf16.msra.mxu0 %v5204
  %5988 = vmatpush.bf16.msra.mxu0 %v5202
  %5989 = vmatpush.bf16.msra.mxu0 %v5200
  %5990 = vmatpush.bf16.msra.mxu0 %v5198
  %5991 = vmatpush.bf16.msra.mxu0 %v5196
  %5992 = vmatmul.bf16.gmra.mxu0 0
  %v5993 = vpop.f32.mrf.mxu0
  %v5994 = vadd.f32 %v5980, %v5993
  %v5995 = vpop.f32.mrf.mxu0
  %v5996 = vadd.f32 %v5982, %v5995
  %5997 = vdwg.mxu0
  %5998 = vmatpush.bf16.msra.mxu0 %v5226
  %5999 = vmatpush.bf16.msra.mxu0 %v5224
  %6000 = vmatpush.bf16.msra.mxu0 %v5222
  %6001 = vmatpush.bf16.msra.mxu0 %v5220
  %6002 = vmatpush.bf16.msra.mxu0 %v5218
  %6003 = vmatpush.bf16.msra.mxu0 %v5216
  %6004 = vmatpush.bf16.msra.mxu0 %v5214
  %6005 = vmatpush.bf16.msra.mxu0 %v5212
  %6006 = vmatmul.bf16.gmra.mxu0 0
  %v6007 = vpop.f32.mrf.mxu0
  %v6008 = vadd.f32 %v5994, %v6007
  %v6009 = vpop.f32.mrf.mxu0
  %v6010 = vadd.f32 %v5996, %v6009
  %6011 = vdwg.mxu0
  %6012 = vmatpush.bf16.msra.mxu0 %v5242
  %6013 = vmatpush.bf16.msra.mxu0 %v5240
  %6014 = vmatpush.bf16.msra.mxu0 %v5238
  %6015 = vmatpush.bf16.msra.mxu0 %v5236
  %6016 = vmatpush.bf16.msra.mxu0 %v5234
  %6017 = vmatpush.bf16.msra.mxu0 %v5232
  %6018 = vmatpush.bf16.msra.mxu0 %v5230
  %6019 = vmatpush.bf16.msra.mxu0 %v5228
  %6020 = vmatmul.bf16.gmra.mxu0 0
  %v6021 = vpop.f32.mrf.mxu0
  %v6022 = vadd.f32 %v6008, %v6021
  %v6023 = vpop.f32.mrf.mxu0
  %v6024 = vadd.f32 %v6010, %v6023
  %6025 = vdwg.mxu0
  %6026 = vmatpush.bf16.msra.mxu0 %v5258
  %6027 = vmatpush.bf16.msra.mxu0 %v5256
  %6028 = vmatpush.bf16.msra.mxu0 %v5254
  %6029 = vmatpush.bf16.msra.mxu0 %v5252
  %6030 = vmatpush.bf16.msra.mxu0 %v5250
  %6031 = vmatpush.bf16.msra.mxu0 %v5248
  %6032 = vmatpush.bf16.msra.mxu0 %v5246
  %6033 = vmatpush.bf16.msra.mxu0 %v5244
  %6034 = vmatmul.bf16.gmra.mxu0 0
  %v6035 = vpop.f32.mrf.mxu0
  %v6036 = vadd.f32 %v6022, %v6035
  %v6037 = vpop.f32.mrf.mxu0
  %v6038 = vadd.f32 %v6024, %v6037
  %6039 = vdwg.mxu0
  %6040 = vmatpush.bf16.msra.mxu0 %v5274
  %6041 = vmatpush.bf16.msra.mxu0 %v5272
  %6042 = vmatpush.bf16.msra.mxu0 %v5270
  %6043 = vmatpush.bf16.msra.mxu0 %v5268
  %6044 = vmatpush.bf16.msra.mxu0 %v5266
  %6045 = vmatpush.bf16.msra.mxu0 %v5264
  %6046 = vmatpush.bf16.msra.mxu0 %v5262
  %6047 = vmatpush.bf16.msra.mxu0 %v5260
  %6048 = vmatmul.bf16.gmra.mxu0 0
  %v6049 = vpop.f32.mrf.mxu0
  %v6050 = vadd.f32 %v6036, %v6049
  %v6051 = vpop.f32.mrf.mxu0
  %v6052 = vadd.f32 %v6038, %v6051
  %6053 = vdwg.mxu0
  %6054 = vmatpush.bf16.msra.mxu0 %v5290
  %6055 = vmatpush.bf16.msra.mxu0 %v5288
  %6056 = vmatpush.bf16.msra.mxu0 %v5286
  %6057 = vmatpush.bf16.msra.mxu0 %v5284
  %6058 = vmatpush.bf16.msra.mxu0 %v5282
  %6059 = vmatpush.bf16.msra.mxu0 %v5280
  %6060 = vmatpush.bf16.msra.mxu0 %v5278
  %6061 = vmatpush.bf16.msra.mxu0 %v5276
  %6062 = vmatmul.bf16.gmra.mxu0 0
  %v6063 = vpop.f32.mrf.mxu0
  %v6064 = vadd.f32 %v6050, %v6063
  %v6065 = vpop.f32.mrf.mxu0
  %v6066 = vadd.f32 %v6052, %v6065
  %6067 = vdwg.mxu0
  %6068 = vmatpush.bf16.msra.mxu0 %v5306
  %6069 = vmatpush.bf16.msra.mxu0 %v5304
  %6070 = vmatpush.bf16.msra.mxu0 %v5302
  %6071 = vmatpush.bf16.msra.mxu0 %v5300
  %6072 = vmatpush.bf16.msra.mxu0 %v5298
  %6073 = vmatpush.bf16.msra.mxu0 %v5296
  %6074 = vmatpush.bf16.msra.mxu0 %v5294
  %6075 = vmatpush.bf16.msra.mxu0 %v5292
  %6076 = vmatmul.bf16.gmra.mxu0 %v3845
  %v6077 = vpop.f32.mrf.mxu0
  %v6078 = vadd.f32 %v6064, %v6077
  %v6079 = vpop.f32.mrf.mxu0
  %v6080 = vadd.f32 %v6066, %v6079
  %6081 = vdwg.mxu0
  %6082 = vmatpush.bf16.msra.mxu0 %v5322
  %6083 = vmatpush.bf16.msra.mxu0 %v5320
  %6084 = vmatpush.bf16.msra.mxu0 %v5318
  %6085 = vmatpush.bf16.msra.mxu0 %v5316
  %6086 = vmatpush.bf16.msra.mxu0 %v5314
  %6087 = vmatpush.bf16.msra.mxu0 %v5312
  %6088 = vmatpush.bf16.msra.mxu0 %v5310
  %6089 = vmatpush.bf16.msra.mxu0 %v5308
  %6090 = vmatmul.bf16.gmra.mxu0 %v3851
  %v6091 = vpop.f32.mrf.mxu0
  %v6092 = vadd.f32 %v6078, %v6091
  %v6093 = vpop.f32.mrf.mxu0
  %v6094 = vadd.f32 %v6080, %v6093
  %6095 = vdwg.mxu0
  %6096 = vmatpush.bf16.msra.mxu0 %v5338
  %6097 = vmatpush.bf16.msra.mxu0 %v5336
  %6098 = vmatpush.bf16.msra.mxu0 %v5334
  %6099 = vmatpush.bf16.msra.mxu0 %v5332
  %6100 = vmatpush.bf16.msra.mxu0 %v5330
  %6101 = vmatpush.bf16.msra.mxu0 %v5328
  %6102 = vmatpush.bf16.msra.mxu0 %v5326
  %6103 = vmatpush.bf16.msra.mxu0 %v5324
  %6104 = vmatmul.bf16.gmra.mxu0 %v3857
  %v6105 = vpop.f32.mrf.mxu0
  %v6106 = vadd.f32 %v6092, %v6105
  %v6107 = vpop.f32.mrf.mxu0
  %v6108 = vadd.f32 %v6094, %v6107
  %6109 = vdwg.mxu0
  %6110 = vmatpush.bf16.msra.mxu0 %v5354
  %6111 = vmatpush.bf16.msra.mxu0 %v5352
  %6112 = vmatpush.bf16.msra.mxu0 %v5350
  %6113 = vmatpush.bf16.msra.mxu0 %v5348
  %6114 = vmatpush.bf16.msra.mxu0 %v5346
  %6115 = vmatpush.bf16.msra.mxu0 %v5344
  %6116 = vmatpush.bf16.msra.mxu0 %v5342
  %6117 = vmatpush.bf16.msra.mxu0 %v5340
  %6118 = vmatmul.bf16.gmra.mxu0 0
  %v6119 = vpop.f32.mrf.mxu0
  %v6120 = vadd.f32 %v6106, %v6119
  %v6121 = vpop.f32.mrf.mxu0
  %v6122 = vadd.f32 %v6108, %v6121
  %6123 = vdwg.mxu0
  %6124 = vmatpush.bf16.msra.mxu0 %v5370
  %6125 = vmatpush.bf16.msra.mxu0 %v5368
  %6126 = vmatpush.bf16.msra.mxu0 %v5366
  %6127 = vmatpush.bf16.msra.mxu0 %v5364
  %6128 = vmatpush.bf16.msra.mxu0 %v5362
  %6129 = vmatpush.bf16.msra.mxu0 %v5360
  %6130 = vmatpush.bf16.msra.mxu0 %v5358
  %6131 = vmatpush.bf16.msra.mxu0 %v5356
  %6132 = vmatmul.bf16.gmra.mxu0 0
  %v6133 = vpop.f32.mrf.mxu0
  %v6134 = vadd.f32 %v6120, %v6133
  %v6135 = vpop.f32.mrf.mxu0
  %v6136 = vadd.f32 %v6122, %v6135
  %6137 = vdwg.mxu0
  %6138 = vmatpush.bf16.msra.mxu0 %v5386
  %6139 = vmatpush.bf16.msra.mxu0 %v5384
  %6140 = vmatpush.bf16.msra.mxu0 %v5382
  %6141 = vmatpush.bf16.msra.mxu0 %v5380
  %6142 = vmatpush.bf16.msra.mxu0 %v5378
  %6143 = vmatpush.bf16.msra.mxu0 %v5376
  %6144 = vmatpush.bf16.msra.mxu0 %v5374
  %6145 = vmatpush.bf16.msra.mxu0 %v5372
  %6146 = vmatmul.bf16.gmra.mxu0 %v3863
  %v6147 = vpop.f32.mrf.mxu0
  %v6148 = vadd.f32 %v6134, %v6147
  %v6149 = vpop.f32.mrf.mxu0
  %v6150 = vadd.f32 %v6136, %v6149
  %6151 = vdwg.mxu0
  %6152 = vmatpush.bf16.msra.mxu0 %v5402
  %6153 = vmatpush.bf16.msra.mxu0 %v5400
  %6154 = vmatpush.bf16.msra.mxu0 %v5398
  %6155 = vmatpush.bf16.msra.mxu0 %v5396
  %6156 = vmatpush.bf16.msra.mxu0 %v5394
  %6157 = vmatpush.bf16.msra.mxu0 %v5392
  %6158 = vmatpush.bf16.msra.mxu0 %v5390
  %6159 = vmatpush.bf16.msra.mxu0 %v5388
  %6160 = vmatmul.bf16.gmra.mxu0 %v3869
  %v6161 = vpop.f32.mrf.mxu0
  %v6162 = vadd.f32 %v6148, %v6161
  %v6163 = vpop.f32.mrf.mxu0
  %v6164 = vadd.f32 %v6150, %v6163
  %6165 = vdwg.mxu0
  %6166 = vmatpush.bf16.msra.mxu0 %v5418
  %6167 = vmatpush.bf16.msra.mxu0 %v5416
  %6168 = vmatpush.bf16.msra.mxu0 %v5414
  %6169 = vmatpush.bf16.msra.mxu0 %v5412
  %6170 = vmatpush.bf16.msra.mxu0 %v5410
  %6171 = vmatpush.bf16.msra.mxu0 %v5408
  %6172 = vmatpush.bf16.msra.mxu0 %v5406
  %6173 = vmatpush.bf16.msra.mxu0 %v5404
  %6174 = vmatmul.bf16.gmra.mxu0 %v3875
  %v6175 = vpop.f32.mrf.mxu0
  %v6176 = vadd.f32 %v6162, %v6175
  %v6177 = vpop.f32.mrf.mxu0
  %v6178 = vadd.f32 %v6164, %v6177
  %6179 = vdwg.mxu0
  %6180 = vmatpush.bf16.msra.mxu0 %v5434
  %6181 = vmatpush.bf16.msra.mxu0 %v5432
  %6182 = vmatpush.bf16.msra.mxu0 %v5430
  %6183 = vmatpush.bf16.msra.mxu0 %v5428
  %6184 = vmatpush.bf16.msra.mxu0 %v5426
  %6185 = vmatpush.bf16.msra.mxu0 %v5424
  %6186 = vmatpush.bf16.msra.mxu0 %v5422
  %6187 = vmatpush.bf16.msra.mxu0 %v5420
  %6188 = vmatmul.bf16.gmra.mxu0 0
  %v6189 = vpop.f32.mrf.mxu0
  %v6190 = vadd.f32 %v6176, %v6189
  %v6191 = vpop.f32.mrf.mxu0
  %v6192 = vadd.f32 %v6178, %v6191
  %6193 = vdwg.mxu0
  %6194 = vmatpush.bf16.msra.mxu0 %v5450
  %6195 = vmatpush.bf16.msra.mxu0 %v5448
  %6196 = vmatpush.bf16.msra.mxu0 %v5446
  %6197 = vmatpush.bf16.msra.mxu0 %v5444
  %6198 = vmatpush.bf16.msra.mxu0 %v5442
  %6199 = vmatpush.bf16.msra.mxu0 %v5440
  %6200 = vmatpush.bf16.msra.mxu0 %v5438
  %6201 = vmatpush.bf16.msra.mxu0 %v5436
  %6202 = vmatmul.bf16.gmra.mxu0 0
  %v6203 = vpop.f32.mrf.mxu0
  %v6204 = vadd.f32 %v6190, %v6203
  %v6205 = vpop.f32.mrf.mxu0
  %v6206 = vadd.f32 %v6192, %v6205
  %6207 = vdwg.mxu0
  %6208 = vmatpush.bf16.msra.mxu0 %v5466
  %6209 = vmatpush.bf16.msra.mxu0 %v5464
  %6210 = vmatpush.bf16.msra.mxu0 %v5462
  %6211 = vmatpush.bf16.msra.mxu0 %v5460
  %6212 = vmatpush.bf16.msra.mxu0 %v5458
  %6213 = vmatpush.bf16.msra.mxu0 %v5456
  %6214 = vmatpush.bf16.msra.mxu0 %v5454
  %6215 = vmatpush.bf16.msra.mxu0 %v5452
  %6216 = vmatmul.bf16.gmra.mxu0 %v3881
  %v6217 = vpop.f32.mrf.mxu0
  %v6218 = vadd.f32 %v6204, %v6217
  %v6219 = vpop.f32.mrf.mxu0
  %v6220 = vadd.f32 %v6206, %v6219
  %6221 = vdwg.mxu0
  %6222 = vmatpush.bf16.msra.mxu0 %v5482
  %6223 = vmatpush.bf16.msra.mxu0 %v5480
  %6224 = vmatpush.bf16.msra.mxu0 %v5478
  %6225 = vmatpush.bf16.msra.mxu0 %v5476
  %6226 = vmatpush.bf16.msra.mxu0 %v5474
  %6227 = vmatpush.bf16.msra.mxu0 %v5472
  %6228 = vmatpush.bf16.msra.mxu0 %v5470
  %6229 = vmatpush.bf16.msra.mxu0 %v5468
  %6230 = vmatmul.bf16.gmra.mxu0 %v3887
  %v6231 = vpop.f32.mrf.mxu0
  %v6232 = vadd.f32 %v6218, %v6231
  %v6233 = vpop.f32.mrf.mxu0
  %v6234 = vadd.f32 %v6220, %v6233
  %6235 = vdwg.mxu0
  %6236 = vmatpush.bf16.msra.mxu0 %v5498
  %6237 = vmatpush.bf16.msra.mxu0 %v5496
  %6238 = vmatpush.bf16.msra.mxu0 %v5494
  %6239 = vmatpush.bf16.msra.mxu0 %v5492
  %6240 = vmatpush.bf16.msra.mxu0 %v5490
  %6241 = vmatpush.bf16.msra.mxu0 %v5488
  %6242 = vmatpush.bf16.msra.mxu0 %v5486
  %6243 = vmatpush.bf16.msra.mxu0 %v5484
  %6244 = vmatmul.bf16.gmra.mxu0 %v3893
  %v6245 = vpop.f32.mrf.mxu0
  %v6246 = vadd.f32 %v6232, %v6245
  %v6247 = vpop.f32.mrf.mxu0
  %v6248 = vadd.f32 %v6234, %v6247
  %6249 = vdwg.mxu0
  %6250 = vmatpush.bf16.msra.mxu0 %v5115
  %6251 = vmatpush.bf16.msra.mxu0 %v5113
  %6252 = vmatpush.bf16.msra.mxu0 %v5111
  %6253 = vmatpush.bf16.msra.mxu0 %v5109
  %6254 = vmatpush.bf16.msra.mxu0 %v5107
  %6255 = vmatpush.bf16.msra.mxu0 %v5105
  %6256 = vmatpush.bf16.msra.mxu0 %v5103
  %6257 = vmatpush.bf16.msra.mxu0 %v5101
  %6258 = vmatmul.bf16.gmra.mxu0 0
  %v6259 = vpop.f32.mrf.mxu0
  %v6260 = vadd.f32 %v3897, %v6259
  %v6261 = vpop.f32.mrf.mxu0
  %v6262 = vadd.f32 %v3897, %v6261
  %6263 = vdwg.mxu0
  %6264 = vmatpush.bf16.msra.mxu0 %v5131
  %6265 = vmatpush.bf16.msra.mxu0 %v5129
  %6266 = vmatpush.bf16.msra.mxu0 %v5127
  %6267 = vmatpush.bf16.msra.mxu0 %v5125
  %6268 = vmatpush.bf16.msra.mxu0 %v5123
  %6269 = vmatpush.bf16.msra.mxu0 %v5121
  %6270 = vmatpush.bf16.msra.mxu0 %v5119
  %6271 = vmatpush.bf16.msra.mxu0 %v5117
  %6272 = vmatmul.bf16.gmra.mxu0 0
  %v6273 = vpop.f32.mrf.mxu0
  %v6274 = vadd.f32 %v6260, %v6273
  %v6275 = vpop.f32.mrf.mxu0
  %v6276 = vadd.f32 %v6262, %v6275
  %6277 = vdwg.mxu0
  %6278 = vmatpush.bf16.msra.mxu0 %v5147
  %6279 = vmatpush.bf16.msra.mxu0 %v5145
  %6280 = vmatpush.bf16.msra.mxu0 %v5143
  %6281 = vmatpush.bf16.msra.mxu0 %v5141
  %6282 = vmatpush.bf16.msra.mxu0 %v5139
  %6283 = vmatpush.bf16.msra.mxu0 %v5137
  %6284 = vmatpush.bf16.msra.mxu0 %v5135
  %6285 = vmatpush.bf16.msra.mxu0 %v5133
  %6286 = vmatmul.bf16.gmra.mxu0 0
  %v6287 = vpop.f32.mrf.mxu0
  %v6288 = vadd.f32 %v6274, %v6287
  %v6289 = vpop.f32.mrf.mxu0
  %v6290 = vadd.f32 %v6276, %v6289
  %6291 = vdwg.mxu0
  %6292 = vmatpush.bf16.msra.mxu0 %v5163
  %6293 = vmatpush.bf16.msra.mxu0 %v5161
  %6294 = vmatpush.bf16.msra.mxu0 %v5159
  %6295 = vmatpush.bf16.msra.mxu0 %v5157
  %6296 = vmatpush.bf16.msra.mxu0 %v5155
  %6297 = vmatpush.bf16.msra.mxu0 %v5153
  %6298 = vmatpush.bf16.msra.mxu0 %v5151
  %6299 = vmatpush.bf16.msra.mxu0 %v5149
  %6300 = vmatmul.bf16.gmra.mxu0 0
  %v6301 = vpop.f32.mrf.mxu0
  %v6302 = vadd.f32 %v6288, %v6301
  %v6303 = vpop.f32.mrf.mxu0
  %v6304 = vadd.f32 %v6290, %v6303
  %6305 = vdwg.mxu0
  %6306 = vmatpush.bf16.msra.mxu0 %v5179
  %6307 = vmatpush.bf16.msra.mxu0 %v5177
  %6308 = vmatpush.bf16.msra.mxu0 %v5175
  %6309 = vmatpush.bf16.msra.mxu0 %v5173
  %6310 = vmatpush.bf16.msra.mxu0 %v5171
  %6311 = vmatpush.bf16.msra.mxu0 %v5169
  %6312 = vmatpush.bf16.msra.mxu0 %v5167
  %6313 = vmatpush.bf16.msra.mxu0 %v5165
  %6314 = vmatmul.bf16.gmra.mxu0 0
  %v6315 = vpop.f32.mrf.mxu0
  %v6316 = vadd.f32 %v6302, %v6315
  %v6317 = vpop.f32.mrf.mxu0
  %v6318 = vadd.f32 %v6304, %v6317
  %6319 = vdwg.mxu0
  %6320 = vmatpush.bf16.msra.mxu0 %v5195
  %6321 = vmatpush.bf16.msra.mxu0 %v5193
  %6322 = vmatpush.bf16.msra.mxu0 %v5191
  %6323 = vmatpush.bf16.msra.mxu0 %v5189
  %6324 = vmatpush.bf16.msra.mxu0 %v5187
  %6325 = vmatpush.bf16.msra.mxu0 %v5185
  %6326 = vmatpush.bf16.msra.mxu0 %v5183
  %6327 = vmatpush.bf16.msra.mxu0 %v5181
  %6328 = vmatmul.bf16.gmra.mxu0 0
  %v6329 = vpop.f32.mrf.mxu0
  %v6330 = vadd.f32 %v6316, %v6329
  %v6331 = vpop.f32.mrf.mxu0
  %v6332 = vadd.f32 %v6318, %v6331
  %6333 = vdwg.mxu0
  %6334 = vmatpush.bf16.msra.mxu0 %v5211
  %6335 = vmatpush.bf16.msra.mxu0 %v5209
  %6336 = vmatpush.bf16.msra.mxu0 %v5207
  %6337 = vmatpush.bf16.msra.mxu0 %v5205
  %6338 = vmatpush.bf16.msra.mxu0 %v5203
  %6339 = vmatpush.bf16.msra.mxu0 %v5201
  %6340 = vmatpush.bf16.msra.mxu0 %v5199
  %6341 = vmatpush.bf16.msra.mxu0 %v5197
  %6342 = vmatmul.bf16.gmra.mxu0 0
  %v6343 = vpop.f32.mrf.mxu0
  %v6344 = vadd.f32 %v6330, %v6343
  %v6345 = vpop.f32.mrf.mxu0
  %v6346 = vadd.f32 %v6332, %v6345
  %6347 = vdwg.mxu0
  %6348 = vmatpush.bf16.msra.mxu0 %v5227
  %6349 = vmatpush.bf16.msra.mxu0 %v5225
  %6350 = vmatpush.bf16.msra.mxu0 %v5223
  %6351 = vmatpush.bf16.msra.mxu0 %v5221
  %6352 = vmatpush.bf16.msra.mxu0 %v5219
  %6353 = vmatpush.bf16.msra.mxu0 %v5217
  %6354 = vmatpush.bf16.msra.mxu0 %v5215
  %6355 = vmatpush.bf16.msra.mxu0 %v5213
  %6356 = vmatmul.bf16.gmra.mxu0 0
  %v6357 = vpop.f32.mrf.mxu0
  %v6358 = vadd.f32 %v6344, %v6357
  %v6359 = vpop.f32.mrf.mxu0
  %v6360 = vadd.f32 %v6346, %v6359
  %6361 = vdwg.mxu0
  %6362 = vmatpush.bf16.msra.mxu0 %v5243
  %6363 = vmatpush.bf16.msra.mxu0 %v5241
  %6364 = vmatpush.bf16.msra.mxu0 %v5239
  %6365 = vmatpush.bf16.msra.mxu0 %v5237
  %6366 = vmatpush.bf16.msra.mxu0 %v5235
  %6367 = vmatpush.bf16.msra.mxu0 %v5233
  %6368 = vmatpush.bf16.msra.mxu0 %v5231
  %6369 = vmatpush.bf16.msra.mxu0 %v5229
  %6370 = vmatmul.bf16.gmra.mxu0 0
  %v6371 = vpop.f32.mrf.mxu0
  %v6372 = vadd.f32 %v6358, %v6371
  %v6373 = vpop.f32.mrf.mxu0
  %v6374 = vadd.f32 %v6360, %v6373
  %6375 = vdwg.mxu0
  %6376 = vmatpush.bf16.msra.mxu0 %v5259
  %6377 = vmatpush.bf16.msra.mxu0 %v5257
  %6378 = vmatpush.bf16.msra.mxu0 %v5255
  %6379 = vmatpush.bf16.msra.mxu0 %v5253
  %6380 = vmatpush.bf16.msra.mxu0 %v5251
  %6381 = vmatpush.bf16.msra.mxu0 %v5249
  %6382 = vmatpush.bf16.msra.mxu0 %v5247
  %6383 = vmatpush.bf16.msra.mxu0 %v5245
  %6384 = vmatmul.bf16.gmra.mxu0 0
  %v6385 = vpop.f32.mrf.mxu0
  %v6386 = vadd.f32 %v6372, %v6385
  %v6387 = vpop.f32.mrf.mxu0
  %v6388 = vadd.f32 %v6374, %v6387
  %6389 = vdwg.mxu0
  %6390 = vmatpush.bf16.msra.mxu0 %v5275
  %6391 = vmatpush.bf16.msra.mxu0 %v5273
  %6392 = vmatpush.bf16.msra.mxu0 %v5271
  %6393 = vmatpush.bf16.msra.mxu0 %v5269
  %6394 = vmatpush.bf16.msra.mxu0 %v5267
  %6395 = vmatpush.bf16.msra.mxu0 %v5265
  %6396 = vmatpush.bf16.msra.mxu0 %v5263
  %6397 = vmatpush.bf16.msra.mxu0 %v5261
  %6398 = vmatmul.bf16.gmra.mxu0 0
  %v6399 = vpop.f32.mrf.mxu0
  %v6400 = vadd.f32 %v6386, %v6399
  %v6401 = vpop.f32.mrf.mxu0
  %v6402 = vadd.f32 %v6388, %v6401
  %6403 = vdwg.mxu0
  %6404 = vmatpush.bf16.msra.mxu0 %v5291
  %6405 = vmatpush.bf16.msra.mxu0 %v5289
  %6406 = vmatpush.bf16.msra.mxu0 %v5287
  %6407 = vmatpush.bf16.msra.mxu0 %v5285
  %6408 = vmatpush.bf16.msra.mxu0 %v5283
  %6409 = vmatpush.bf16.msra.mxu0 %v5281
  %6410 = vmatpush.bf16.msra.mxu0 %v5279
  %6411 = vmatpush.bf16.msra.mxu0 %v5277
  %6412 = vmatmul.bf16.gmra.mxu0 0
  %v6413 = vpop.f32.mrf.mxu0
  %v6414 = vadd.f32 %v6400, %v6413
  %v6415 = vpop.f32.mrf.mxu0
  %v6416 = vadd.f32 %v6402, %v6415
  %6417 = vdwg.mxu0
  %6418 = vmatpush.bf16.msra.mxu0 %v5307
  %6419 = vmatpush.bf16.msra.mxu0 %v5305
  %6420 = vmatpush.bf16.msra.mxu0 %v5303
  %6421 = vmatpush.bf16.msra.mxu0 %v5301
  %6422 = vmatpush.bf16.msra.mxu0 %v5299
  %6423 = vmatpush.bf16.msra.mxu0 %v5297
  %6424 = vmatpush.bf16.msra.mxu0 %v5295
  %6425 = vmatpush.bf16.msra.mxu0 %v5293
  %6426 = vmatmul.bf16.gmra.mxu0 %v3845
  %v6427 = vpop.f32.mrf.mxu0
  %v6428 = vadd.f32 %v6414, %v6427
  %v6429 = vpop.f32.mrf.mxu0
  %v6430 = vadd.f32 %v6416, %v6429
  %6431 = vdwg.mxu0
  %6432 = vmatpush.bf16.msra.mxu0 %v5323
  %6433 = vmatpush.bf16.msra.mxu0 %v5321
  %6434 = vmatpush.bf16.msra.mxu0 %v5319
  %6435 = vmatpush.bf16.msra.mxu0 %v5317
  %6436 = vmatpush.bf16.msra.mxu0 %v5315
  %6437 = vmatpush.bf16.msra.mxu0 %v5313
  %6438 = vmatpush.bf16.msra.mxu0 %v5311
  %6439 = vmatpush.bf16.msra.mxu0 %v5309
  %6440 = vmatmul.bf16.gmra.mxu0 %v3851
  %v6441 = vpop.f32.mrf.mxu0
  %v6442 = vadd.f32 %v6428, %v6441
  %v6443 = vpop.f32.mrf.mxu0
  %v6444 = vadd.f32 %v6430, %v6443
  %6445 = vdwg.mxu0
  %6446 = vmatpush.bf16.msra.mxu0 %v5339
  %6447 = vmatpush.bf16.msra.mxu0 %v5337
  %6448 = vmatpush.bf16.msra.mxu0 %v5335
  %6449 = vmatpush.bf16.msra.mxu0 %v5333
  %6450 = vmatpush.bf16.msra.mxu0 %v5331
  %6451 = vmatpush.bf16.msra.mxu0 %v5329
  %6452 = vmatpush.bf16.msra.mxu0 %v5327
  %6453 = vmatpush.bf16.msra.mxu0 %v5325
  %6454 = vmatmul.bf16.gmra.mxu0 %v3857
  %v6455 = vpop.f32.mrf.mxu0
  %v6456 = vadd.f32 %v6442, %v6455
  %v6457 = vpop.f32.mrf.mxu0
  %v6458 = vadd.f32 %v6444, %v6457
  %6459 = vdwg.mxu0
  %6460 = vmatpush.bf16.msra.mxu0 %v5355
  %6461 = vmatpush.bf16.msra.mxu0 %v5353
  %6462 = vmatpush.bf16.msra.mxu0 %v5351
  %6463 = vmatpush.bf16.msra.mxu0 %v5349
  %6464 = vmatpush.bf16.msra.mxu0 %v5347
  %6465 = vmatpush.bf16.msra.mxu0 %v5345
  %6466 = vmatpush.bf16.msra.mxu0 %v5343
  %6467 = vmatpush.bf16.msra.mxu0 %v5341
  %6468 = vmatmul.bf16.gmra.mxu0 0
  %v6469 = vpop.f32.mrf.mxu0
  %v6470 = vadd.f32 %v6456, %v6469
  %v6471 = vpop.f32.mrf.mxu0
  %v6472 = vadd.f32 %v6458, %v6471
  %6473 = vdwg.mxu0
  %6474 = vmatpush.bf16.msra.mxu0 %v5371
  %6475 = vmatpush.bf16.msra.mxu0 %v5369
  %6476 = vmatpush.bf16.msra.mxu0 %v5367
  %6477 = vmatpush.bf16.msra.mxu0 %v5365
  %6478 = vmatpush.bf16.msra.mxu0 %v5363
  %6479 = vmatpush.bf16.msra.mxu0 %v5361
  %6480 = vmatpush.bf16.msra.mxu0 %v5359
  %6481 = vmatpush.bf16.msra.mxu0 %v5357
  %6482 = vmatmul.bf16.gmra.mxu0 0
  %v6483 = vpop.f32.mrf.mxu0
  %v6484 = vadd.f32 %v6470, %v6483
  %v6485 = vpop.f32.mrf.mxu0
  %v6486 = vadd.f32 %v6472, %v6485
  %6487 = vdwg.mxu0
  %6488 = vmatpush.bf16.msra.mxu0 %v5387
  %6489 = vmatpush.bf16.msra.mxu0 %v5385
  %6490 = vmatpush.bf16.msra.mxu0 %v5383
  %6491 = vmatpush.bf16.msra.mxu0 %v5381
  %6492 = vmatpush.bf16.msra.mxu0 %v5379
  %6493 = vmatpush.bf16.msra.mxu0 %v5377
  %6494 = vmatpush.bf16.msra.mxu0 %v5375
  %6495 = vmatpush.bf16.msra.mxu0 %v5373
  %6496 = vmatmul.bf16.gmra.mxu0 %v3863
  %v6497 = vpop.f32.mrf.mxu0
  %v6498 = vadd.f32 %v6484, %v6497
  %v6499 = vpop.f32.mrf.mxu0
  %v6500 = vadd.f32 %v6486, %v6499
  %6501 = vdwg.mxu0
  %6502 = vmatpush.bf16.msra.mxu0 %v5403
  %6503 = vmatpush.bf16.msra.mxu0 %v5401
  %6504 = vmatpush.bf16.msra.mxu0 %v5399
  %6505 = vmatpush.bf16.msra.mxu0 %v5397
  %6506 = vmatpush.bf16.msra.mxu0 %v5395
  %6507 = vmatpush.bf16.msra.mxu0 %v5393
  %6508 = vmatpush.bf16.msra.mxu0 %v5391
  %6509 = vmatpush.bf16.msra.mxu0 %v5389
  %6510 = vmatmul.bf16.gmra.mxu0 %v3869
  %v6511 = vpop.f32.mrf.mxu0
  %v6512 = vadd.f32 %v6498, %v6511
  %v6513 = vpop.f32.mrf.mxu0
  %v6514 = vadd.f32 %v6500, %v6513
  %6515 = vdwg.mxu0
  %6516 = vmatpush.bf16.msra.mxu0 %v5419
  %6517 = vmatpush.bf16.msra.mxu0 %v5417
  %6518 = vmatpush.bf16.msra.mxu0 %v5415
  %6519 = vmatpush.bf16.msra.mxu0 %v5413
  %6520 = vmatpush.bf16.msra.mxu0 %v5411
  %6521 = vmatpush.bf16.msra.mxu0 %v5409
  %6522 = vmatpush.bf16.msra.mxu0 %v5407
  %6523 = vmatpush.bf16.msra.mxu0 %v5405
  %6524 = vmatmul.bf16.gmra.mxu0 %v3875
  %v6525 = vpop.f32.mrf.mxu0
  %v6526 = vadd.f32 %v6512, %v6525
  %v6527 = vpop.f32.mrf.mxu0
  %v6528 = vadd.f32 %v6514, %v6527
  %6529 = vdwg.mxu0
  %6530 = vmatpush.bf16.msra.mxu0 %v5435
  %6531 = vmatpush.bf16.msra.mxu0 %v5433
  %6532 = vmatpush.bf16.msra.mxu0 %v5431
  %6533 = vmatpush.bf16.msra.mxu0 %v5429
  %6534 = vmatpush.bf16.msra.mxu0 %v5427
  %6535 = vmatpush.bf16.msra.mxu0 %v5425
  %6536 = vmatpush.bf16.msra.mxu0 %v5423
  %6537 = vmatpush.bf16.msra.mxu0 %v5421
  %6538 = vmatmul.bf16.gmra.mxu0 0
  %v6539 = vpop.f32.mrf.mxu0
  %v6540 = vadd.f32 %v6526, %v6539
  %v6541 = vpop.f32.mrf.mxu0
  %v6542 = vadd.f32 %v6528, %v6541
  %6543 = vdwg.mxu0
  %6544 = vmatpush.bf16.msra.mxu0 %v5451
  %6545 = vmatpush.bf16.msra.mxu0 %v5449
  %6546 = vmatpush.bf16.msra.mxu0 %v5447
  %6547 = vmatpush.bf16.msra.mxu0 %v5445
  %6548 = vmatpush.bf16.msra.mxu0 %v5443
  %6549 = vmatpush.bf16.msra.mxu0 %v5441
  %6550 = vmatpush.bf16.msra.mxu0 %v5439
  %6551 = vmatpush.bf16.msra.mxu0 %v5437
  %6552 = vmatmul.bf16.gmra.mxu0 0
  %v6553 = vpop.f32.mrf.mxu0
  %v6554 = vadd.f32 %v6540, %v6553
  %v6555 = vpop.f32.mrf.mxu0
  %v6556 = vadd.f32 %v6542, %v6555
  %6557 = vdwg.mxu0
  %6558 = vmatpush.bf16.msra.mxu0 %v5467
  %6559 = vmatpush.bf16.msra.mxu0 %v5465
  %6560 = vmatpush.bf16.msra.mxu0 %v5463
  %6561 = vmatpush.bf16.msra.mxu0 %v5461
  %6562 = vmatpush.bf16.msra.mxu0 %v5459
  %6563 = vmatpush.bf16.msra.mxu0 %v5457
  %6564 = vmatpush.bf16.msra.mxu0 %v5455
  %6565 = vmatpush.bf16.msra.mxu0 %v5453
  %6566 = vmatmul.bf16.gmra.mxu0 %v3881
  %v6567 = vpop.f32.mrf.mxu0
  %v6568 = vadd.f32 %v6554, %v6567
  %v6569 = vpop.f32.mrf.mxu0
  %v6570 = vadd.f32 %v6556, %v6569
  %6571 = vdwg.mxu0
  %6572 = vmatpush.bf16.msra.mxu0 %v5483
  %6573 = vmatpush.bf16.msra.mxu0 %v5481
  %6574 = vmatpush.bf16.msra.mxu0 %v5479
  %6575 = vmatpush.bf16.msra.mxu0 %v5477
  %6576 = vmatpush.bf16.msra.mxu0 %v5475
  %6577 = vmatpush.bf16.msra.mxu0 %v5473
  %6578 = vmatpush.bf16.msra.mxu0 %v5471
  %6579 = vmatpush.bf16.msra.mxu0 %v5469
  %6580 = vmatmul.bf16.gmra.mxu0 %v3887
  %v6581 = vpop.f32.mrf.mxu0
  %v6582 = vadd.f32 %v6568, %v6581
  %v6583 = vpop.f32.mrf.mxu0
  %v6584 = vadd.f32 %v6570, %v6583
  %6585 = vdwg.mxu0
  %6586 = vmatpush.bf16.msra.mxu0 %v5499
  %6587 = vmatpush.bf16.msra.mxu0 %v5497
  %6588 = vmatpush.bf16.msra.mxu0 %v5495
  %6589 = vmatpush.bf16.msra.mxu0 %v5493
  %6590 = vmatpush.bf16.msra.mxu0 %v5491
  %6591 = vmatpush.bf16.msra.mxu0 %v5489
  %6592 = vmatpush.bf16.msra.mxu0 %v5487
  %6593 = vmatpush.bf16.msra.mxu0 %v5485
  %6594 = vmatmul.bf16.gmra.mxu0 %v3893
  %v6595 = vpop.f32.mrf.mxu0
  %v6596 = vadd.f32 %v6582, %v6595
  %v6597 = vpop.f32.mrf.mxu0
  %v6598 = vadd.f32 %v6584, %v6597
  %6599 = vdwg.mxu0
  %vm6600 = vcmp.ge.f32.partialorder %v6246, 0.0
  %vm6601 = vcmp.ge.f32.partialorder %v6596, 0.0
  %vm6602 = vcmp.ge.f32.partialorder %v6248, 0.0
  %vm6603 = vcmp.ge.f32.partialorder %v6598, 0.0
  %v6604 = vmul.f32 %v6246, 0.2
  %v6605 = vmul.f32 %v6596, 0.2
  %v6606 = vmul.f32 %v6248, 0.2
  %v6607 = vmul.f32 %v6598, 0.2
  %v6608 = vsel %vm6600, %v6246, %v6604
  %v6609 = vsel %vm6601, %v6596, %v6605
  %v6610 = vsel %vm6602, %v6248, %v6606
  %v6611 = vsel %vm6603, %v6598, %v6607
  %v6612 = vpack.c.bf16 %v6609, %v6608
  %v6613 = vpack.c.bf16 %v6611, %v6610
  %v6616 = vunpack.c.l.b16 %v3414
  %v6617 = vunpack.c.l.b16 %v3415
  %v6618 = vpack.c.b16 %v6617, %v6616
  %v6622 = vunpack.c.l.b16 %v3422
  %v6623 = vunpack.c.l.b16 %v3423
  %v6624 = vpack.c.b16 %v6623, %v6622
  %v6628 = vunpack.c.l.b16 %v3430
  %v6629 = vunpack.c.l.b16 %v3431
  %v6630 = vpack.c.b16 %v6629, %v6628
  %6632 = vmatpush.bf16.msra.mxu0 %v5274
  %6633 = vmatpush.bf16.msra.mxu0 %v5272
  %6634 = vmatpush.bf16.msra.mxu0 %v5270
  %6635 = vmatpush.bf16.msra.mxu0 %v5268
  %6636 = vmatpush.bf16.msra.mxu0 %v5266
  %6637 = vmatpush.bf16.msra.mxu0 %v5264
  %6638 = vmatpush.bf16.msra.mxu0 %v5262
  %6639 = vmatpush.bf16.msra.mxu0 %v5260
  %6640 = vmatmul.bf16.gmra.mxu0 %v3845
  %v6641 = vpop.f32.mrf.mxu0
  %v6642 = vadd.f32 %v6036, %v6641
  %v6643 = vpop.f32.mrf.mxu0
  %v6644 = vadd.f32 %v6038, %v6643
  %6645 = vdwg.mxu0
  %6646 = vmatpush.bf16.msra.mxu0 %v5290
  %6647 = vmatpush.bf16.msra.mxu0 %v5288
  %6648 = vmatpush.bf16.msra.mxu0 %v5286
  %6649 = vmatpush.bf16.msra.mxu0 %v5284
  %6650 = vmatpush.bf16.msra.mxu0 %v5282
  %6651 = vmatpush.bf16.msra.mxu0 %v5280
  %6652 = vmatpush.bf16.msra.mxu0 %v5278
  %6653 = vmatpush.bf16.msra.mxu0 %v5276
  %6654 = vmatmul.bf16.gmra.mxu0 %v3851
  %v6655 = vpop.f32.mrf.mxu0
  %v6656 = vadd.f32 %v6642, %v6655
  %v6657 = vpop.f32.mrf.mxu0
  %v6658 = vadd.f32 %v6644, %v6657
  %6659 = vdwg.mxu0
  %6660 = vmatpush.bf16.msra.mxu0 %v5306
  %6661 = vmatpush.bf16.msra.mxu0 %v5304
  %6662 = vmatpush.bf16.msra.mxu0 %v5302
  %6663 = vmatpush.bf16.msra.mxu0 %v5300
  %6664 = vmatpush.bf16.msra.mxu0 %v5298
  %6665 = vmatpush.bf16.msra.mxu0 %v5296
  %6666 = vmatpush.bf16.msra.mxu0 %v5294
  %6667 = vmatpush.bf16.msra.mxu0 %v5292
  %6668 = vmatmul.bf16.gmra.mxu0 %v3857
  %v6669 = vpop.f32.mrf.mxu0
  %v6670 = vadd.f32 %v6656, %v6669
  %v6671 = vpop.f32.mrf.mxu0
  %v6672 = vadd.f32 %v6658, %v6671
  %6673 = vdwg.mxu0
  %6674 = vmatpush.bf16.msra.mxu0 %v5322
  %6675 = vmatpush.bf16.msra.mxu0 %v5320
  %6676 = vmatpush.bf16.msra.mxu0 %v5318
  %6677 = vmatpush.bf16.msra.mxu0 %v5316
  %6678 = vmatpush.bf16.msra.mxu0 %v5314
  %6679 = vmatpush.bf16.msra.mxu0 %v5312
  %6680 = vmatpush.bf16.msra.mxu0 %v5310
  %6681 = vmatpush.bf16.msra.mxu0 %v5308
  %6682 = vmatmul.bf16.gmra.mxu0 %v6618
  %v6683 = vpop.f32.mrf.mxu0
  %v6684 = vadd.f32 %v6670, %v6683
  %v6685 = vpop.f32.mrf.mxu0
  %v6686 = vadd.f32 %v6672, %v6685
  %6687 = vdwg.mxu0
  %6688 = vmatpush.bf16.msra.mxu0 %v5338
  %6689 = vmatpush.bf16.msra.mxu0 %v5336
  %6690 = vmatpush.bf16.msra.mxu0 %v5334
  %6691 = vmatpush.bf16.msra.mxu0 %v5332
  %6692 = vmatpush.bf16.msra.mxu0 %v5330
  %6693 = vmatpush.bf16.msra.mxu0 %v5328
  %6694 = vmatpush.bf16.msra.mxu0 %v5326
  %6695 = vmatpush.bf16.msra.mxu0 %v5324
  %6696 = vmatmul.bf16.gmra.mxu0 0
  %v6697 = vpop.f32.mrf.mxu0
  %v6698 = vadd.f32 %v6684, %v6697
  %v6699 = vpop.f32.mrf.mxu0
  %v6700 = vadd.f32 %v6686, %v6699
  %6701 = vdwg.mxu0
  %6702 = vmatpush.bf16.msra.mxu0 %v5354
  %6703 = vmatpush.bf16.msra.mxu0 %v5352
  %6704 = vmatpush.bf16.msra.mxu0 %v5350
  %6705 = vmatpush.bf16.msra.mxu0 %v5348
  %6706 = vmatpush.bf16.msra.mxu0 %v5346
  %6707 = vmatpush.bf16.msra.mxu0 %v5344
  %6708 = vmatpush.bf16.msra.mxu0 %v5342
  %6709 = vmatpush.bf16.msra.mxu0 %v5340
  %6710 = vmatmul.bf16.gmra.mxu0 %v3863
  %v6711 = vpop.f32.mrf.mxu0
  %v6712 = vadd.f32 %v6698, %v6711
  %v6713 = vpop.f32.mrf.mxu0
  %v6714 = vadd.f32 %v6700, %v6713
  %6715 = vdwg.mxu0
  %6716 = vmatpush.bf16.msra.mxu0 %v5370
  %6717 = vmatpush.bf16.msra.mxu0 %v5368
  %6718 = vmatpush.bf16.msra.mxu0 %v5366
  %6719 = vmatpush.bf16.msra.mxu0 %v5364
  %6720 = vmatpush.bf16.msra.mxu0 %v5362
  %6721 = vmatpush.bf16.msra.mxu0 %v5360
  %6722 = vmatpush.bf16.msra.mxu0 %v5358
  %6723 = vmatpush.bf16.msra.mxu0 %v5356
  %6724 = vmatmul.bf16.gmra.mxu0 %v3869
  %v6725 = vpop.f32.mrf.mxu0
  %v6726 = vadd.f32 %v6712, %v6725
  %v6727 = vpop.f32.mrf.mxu0
  %v6728 = vadd.f32 %v6714, %v6727
  %6729 = vdwg.mxu0
  %6730 = vmatpush.bf16.msra.mxu0 %v5386
  %6731 = vmatpush.bf16.msra.mxu0 %v5384
  %6732 = vmatpush.bf16.msra.mxu0 %v5382
  %6733 = vmatpush.bf16.msra.mxu0 %v5380
  %6734 = vmatpush.bf16.msra.mxu0 %v5378
  %6735 = vmatpush.bf16.msra.mxu0 %v5376
  %6736 = vmatpush.bf16.msra.mxu0 %v5374
  %6737 = vmatpush.bf16.msra.mxu0 %v5372
  %6738 = vmatmul.bf16.gmra.mxu0 %v3875
  %v6739 = vpop.f32.mrf.mxu0
  %v6740 = vadd.f32 %v6726, %v6739
  %v6741 = vpop.f32.mrf.mxu0
  %v6742 = vadd.f32 %v6728, %v6741
  %6743 = vdwg.mxu0
  %6744 = vmatpush.bf16.msra.mxu0 %v5402
  %6745 = vmatpush.bf16.msra.mxu0 %v5400
  %6746 = vmatpush.bf16.msra.mxu0 %v5398
  %6747 = vmatpush.bf16.msra.mxu0 %v5396
  %6748 = vmatpush.bf16.msra.mxu0 %v5394
  %6749 = vmatpush.bf16.msra.mxu0 %v5392
  %6750 = vmatpush.bf16.msra.mxu0 %v5390
  %6751 = vmatpush.bf16.msra.mxu0 %v5388
  %6752 = vmatmul.bf16.gmra.mxu0 %v6624
  %v6753 = vpop.f32.mrf.mxu0
  %v6754 = vadd.f32 %v6740, %v6753
  %v6755 = vpop.f32.mrf.mxu0
  %v6756 = vadd.f32 %v6742, %v6755
  %6757 = vdwg.mxu0
  %6758 = vmatpush.bf16.msra.mxu0 %v5418
  %6759 = vmatpush.bf16.msra.mxu0 %v5416
  %6760 = vmatpush.bf16.msra.mxu0 %v5414
  %6761 = vmatpush.bf16.msra.mxu0 %v5412
  %6762 = vmatpush.bf16.msra.mxu0 %v5410
  %6763 = vmatpush.bf16.msra.mxu0 %v5408
  %6764 = vmatpush.bf16.msra.mxu0 %v5406
  %6765 = vmatpush.bf16.msra.mxu0 %v5404
  %6766 = vmatmul.bf16.gmra.mxu0 0
  %v6767 = vpop.f32.mrf.mxu0
  %v6768 = vadd.f32 %v6754, %v6767
  %v6769 = vpop.f32.mrf.mxu0
  %v6770 = vadd.f32 %v6756, %v6769
  %6771 = vdwg.mxu0
  %6772 = vmatpush.bf16.msra.mxu0 %v5434
  %6773 = vmatpush.bf16.msra.mxu0 %v5432
  %6774 = vmatpush.bf16.msra.mxu0 %v5430
  %6775 = vmatpush.bf16.msra.mxu0 %v5428
  %6776 = vmatpush.bf16.msra.mxu0 %v5426
  %6777 = vmatpush.bf16.msra.mxu0 %v5424
  %6778 = vmatpush.bf16.msra.mxu0 %v5422
  %6779 = vmatpush.bf16.msra.mxu0 %v5420
  %6780 = vmatmul.bf16.gmra.mxu0 %v3881
  %v6781 = vpop.f32.mrf.mxu0
  %v6782 = vadd.f32 %v6768, %v6781
  %v6783 = vpop.f32.mrf.mxu0
  %v6784 = vadd.f32 %v6770, %v6783
  %6785 = vdwg.mxu0
  %6786 = vmatpush.bf16.msra.mxu0 %v5450
  %6787 = vmatpush.bf16.msra.mxu0 %v5448
  %6788 = vmatpush.bf16.msra.mxu0 %v5446
  %6789 = vmatpush.bf16.msra.mxu0 %v5444
  %6790 = vmatpush.bf16.msra.mxu0 %v5442
  %6791 = vmatpush.bf16.msra.mxu0 %v5440
  %6792 = vmatpush.bf16.msra.mxu0 %v5438
  %6793 = vmatpush.bf16.msra.mxu0 %v5436
  %6794 = vmatmul.bf16.gmra.mxu0 %v3887
  %v6795 = vpop.f32.mrf.mxu0
  %v6796 = vadd.f32 %v6782, %v6795
  %v6797 = vpop.f32.mrf.mxu0
  %v6798 = vadd.f32 %v6784, %v6797
  %6799 = vdwg.mxu0
  %6800 = vmatpush.bf16.msra.mxu0 %v5466
  %6801 = vmatpush.bf16.msra.mxu0 %v5464
  %6802 = vmatpush.bf16.msra.mxu0 %v5462
  %6803 = vmatpush.bf16.msra.mxu0 %v5460
  %6804 = vmatpush.bf16.msra.mxu0 %v5458
  %6805 = vmatpush.bf16.msra.mxu0 %v5456
  %6806 = vmatpush.bf16.msra.mxu0 %v5454
  %6807 = vmatpush.bf16.msra.mxu0 %v5452
  %6808 = vmatmul.bf16.gmra.mxu0 %v3893
  %v6809 = vpop.f32.mrf.mxu0
  %v6810 = vadd.f32 %v6796, %v6809
  %v6811 = vpop.f32.mrf.mxu0
  %v6812 = vadd.f32 %v6798, %v6811
  %6813 = vdwg.mxu0
  %6814 = vmatpush.bf16.msra.mxu0 %v5482
  %6815 = vmatpush.bf16.msra.mxu0 %v5480
  %6816 = vmatpush.bf16.msra.mxu0 %v5478
  %6817 = vmatpush.bf16.msra.mxu0 %v5476
  %6818 = vmatpush.bf16.msra.mxu0 %v5474
  %6819 = vmatpush.bf16.msra.mxu0 %v5472
  %6820 = vmatpush.bf16.msra.mxu0 %v5470
  %6821 = vmatpush.bf16.msra.mxu0 %v5468
  %6822 = vmatmul.bf16.gmra.mxu0 %v6630
  %v6823 = vpop.f32.mrf.mxu0
  %v6824 = vadd.f32 %v6810, %v6823
  %v6825 = vpop.f32.mrf.mxu0
  %v6826 = vadd.f32 %v6812, %v6825
  %6827 = vdwg.mxu0
  %6828 = vmatpush.bf16.msra.mxu0 %v5498
  %6829 = vmatpush.bf16.msra.mxu0 %v5496
  %6830 = vmatpush.bf16.msra.mxu0 %v5494
  %6831 = vmatpush.bf16.msra.mxu0 %v5492
  %6832 = vmatpush.bf16.msra.mxu0 %v5490
  %6833 = vmatpush.bf16.msra.mxu0 %v5488
  %6834 = vmatpush.bf16.msra.mxu0 %v5486
  %6835 = vmatpush.bf16.msra.mxu0 %v5484
  %6836 = vmatmul.bf16.gmra.mxu0 0
  %v6837 = vpop.f32.mrf.mxu0
  %v6838 = vadd.f32 %v6824, %v6837
  %v6839 = vpop.f32.mrf.mxu0
  %v6840 = vadd.f32 %v6826, %v6839
  %6841 = vdwg.mxu0
  %6842 = vmatpush.bf16.msra.mxu0 %v5275
  %6843 = vmatpush.bf16.msra.mxu0 %v5273
  %6844 = vmatpush.bf16.msra.mxu0 %v5271
  %6845 = vmatpush.bf16.msra.mxu0 %v5269
  %6846 = vmatpush.bf16.msra.mxu0 %v5267
  %6847 = vmatpush.bf16.msra.mxu0 %v5265
  %6848 = vmatpush.bf16.msra.mxu0 %v5263
  %6849 = vmatpush.bf16.msra.mxu0 %v5261
  %6850 = vmatmul.bf16.gmra.mxu0 %v3845
  %v6851 = vpop.f32.mrf.mxu0
  %v6852 = vadd.f32 %v6386, %v6851
  %v6853 = vpop.f32.mrf.mxu0
  %v6854 = vadd.f32 %v6388, %v6853
  %6855 = vdwg.mxu0
  %6856 = vmatpush.bf16.msra.mxu0 %v5291
  %6857 = vmatpush.bf16.msra.mxu0 %v5289
  %6858 = vmatpush.bf16.msra.mxu0 %v5287
  %6859 = vmatpush.bf16.msra.mxu0 %v5285
  %6860 = vmatpush.bf16.msra.mxu0 %v5283
  %6861 = vmatpush.bf16.msra.mxu0 %v5281
  %6862 = vmatpush.bf16.msra.mxu0 %v5279
  %6863 = vmatpush.bf16.msra.mxu0 %v5277
  %6864 = vmatmul.bf16.gmra.mxu0 %v3851
  %v6865 = vpop.f32.mrf.mxu0
  %v6866 = vadd.f32 %v6852, %v6865
  %v6867 = vpop.f32.mrf.mxu0
  %v6868 = vadd.f32 %v6854, %v6867
  %6869 = vdwg.mxu0
  %6870 = vmatpush.bf16.msra.mxu0 %v5307
  %6871 = vmatpush.bf16.msra.mxu0 %v5305
  %6872 = vmatpush.bf16.msra.mxu0 %v5303
  %6873 = vmatpush.bf16.msra.mxu0 %v5301
  %6874 = vmatpush.bf16.msra.mxu0 %v5299
  %6875 = vmatpush.bf16.msra.mxu0 %v5297
  %6876 = vmatpush.bf16.msra.mxu0 %v5295
  %6877 = vmatpush.bf16.msra.mxu0 %v5293
  %6878 = vmatmul.bf16.gmra.mxu0 %v3857
  %v6879 = vpop.f32.mrf.mxu0
  %v6880 = vadd.f32 %v6866, %v6879
  %v6881 = vpop.f32.mrf.mxu0
  %v6882 = vadd.f32 %v6868, %v6881
  %6883 = vdwg.mxu0
  %6884 = vmatpush.bf16.msra.mxu0 %v5323
  %6885 = vmatpush.bf16.msra.mxu0 %v5321
  %6886 = vmatpush.bf16.msra.mxu0 %v5319
  %6887 = vmatpush.bf16.msra.mxu0 %v5317
  %6888 = vmatpush.bf16.msra.mxu0 %v5315
  %6889 = vmatpush.bf16.msra.mxu0 %v5313
  %6890 = vmatpush.bf16.msra.mxu0 %v5311
  %6891 = vmatpush.bf16.msra.mxu0 %v5309
  %6892 = vmatmul.bf16.gmra.mxu0 %v6618
  %v6893 = vpop.f32.mrf.mxu0
  %v6894 = vadd.f32 %v6880, %v6893
  %v6895 = vpop.f32.mrf.mxu0
  %v6896 = vadd.f32 %v6882, %v6895
  %6897 = vdwg.mxu0
  %6898 = vmatpush.bf16.msra.mxu0 %v5339
  %6899 = vmatpush.bf16.msra.mxu0 %v5337
  %6900 = vmatpush.bf16.msra.mxu0 %v5335
  %6901 = vmatpush.bf16.msra.mxu0 %v5333
  %6902 = vmatpush.bf16.msra.mxu0 %v5331
  %6903 = vmatpush.bf16.msra.mxu0 %v5329
  %6904 = vmatpush.bf16.msra.mxu0 %v5327
  %6905 = vmatpush.bf16.msra.mxu0 %v5325
  %6906 = vmatmul.bf16.gmra.mxu0 0
  %v6907 = vpop.f32.mrf.mxu0
  %v6908 = vadd.f32 %v6894, %v6907
  %v6909 = vpop.f32.mrf.mxu0
  %v6910 = vadd.f32 %v6896, %v6909
  %6911 = vdwg.mxu0
  %6912 = vmatpush.bf16.msra.mxu0 %v5355
  %6913 = vmatpush.bf16.msra.mxu0 %v5353
  %6914 = vmatpush.bf16.msra.mxu0 %v5351
  %6915 = vmatpush.bf16.msra.mxu0 %v5349
  %6916 = vmatpush.bf16.msra.mxu0 %v5347
  %6917 = vmatpush.bf16.msra.mxu0 %v5345
  %6918 = vmatpush.bf16.msra.mxu0 %v5343
  %6919 = vmatpush.bf16.msra.mxu0 %v5341
  %6920 = vmatmul.bf16.gmra.mxu0 %v3863
  %v6921 = vpop.f32.mrf.mxu0
  %v6922 = vadd.f32 %v6908, %v6921
  %v6923 = vpop.f32.mrf.mxu0
  %v6924 = vadd.f32 %v6910, %v6923
  %6925 = vdwg.mxu0
  %6926 = vmatpush.bf16.msra.mxu0 %v5371
  %6927 = vmatpush.bf16.msra.mxu0 %v5369
  %6928 = vmatpush.bf16.msra.mxu0 %v5367
  %6929 = vmatpush.bf16.msra.mxu0 %v5365
  %6930 = vmatpush.bf16.msra.mxu0 %v5363
  %6931 = vmatpush.bf16.msra.mxu0 %v5361
  %6932 = vmatpush.bf16.msra.mxu0 %v5359
  %6933 = vmatpush.bf16.msra.mxu0 %v5357
  %6934 = vmatmul.bf16.gmra.mxu0 %v3869
  %v6935 = vpop.f32.mrf.mxu0
  %v6936 = vadd.f32 %v6922, %v6935
  %v6937 = vpop.f32.mrf.mxu0
  %v6938 = vadd.f32 %v6924, %v6937
  %6939 = vdwg.mxu0
  %6940 = vmatpush.bf16.msra.mxu0 %v5387
  %6941 = vmatpush.bf16.msra.mxu0 %v5385
  %6942 = vmatpush.bf16.msra.mxu0 %v5383
  %6943 = vmatpush.bf16.msra.mxu0 %v5381
  %6944 = vmatpush.bf16.msra.mxu0 %v5379
  %6945 = vmatpush.bf16.msra.mxu0 %v5377
  %6946 = vmatpush.bf16.msra.mxu0 %v5375
  %6947 = vmatpush.bf16.msra.mxu0 %v5373
  %6948 = vmatmul.bf16.gmra.mxu0 %v3875
  %v6949 = vpop.f32.mrf.mxu0
  %v6950 = vadd.f32 %v6936, %v6949
  %v6951 = vpop.f32.mrf.mxu0
  %v6952 = vadd.f32 %v6938, %v6951
  %6953 = vdwg.mxu0
  %6954 = vmatpush.bf16.msra.mxu0 %v5403
  %6955 = vmatpush.bf16.msra.mxu0 %v5401
  %6956 = vmatpush.bf16.msra.mxu0 %v5399
  %6957 = vmatpush.bf16.msra.mxu0 %v5397
  %6958 = vmatpush.bf16.msra.mxu0 %v5395
  %6959 = vmatpush.bf16.msra.mxu0 %v5393
  %6960 = vmatpush.bf16.msra.mxu0 %v5391
  %6961 = vmatpush.bf16.msra.mxu0 %v5389
  %6962 = vmatmul.bf16.gmra.mxu0 %v6624
  %v6963 = vpop.f32.mrf.mxu0
  %v6964 = vadd.f32 %v6950, %v6963
  %v6965 = vpop.f32.mrf.mxu0
  %v6966 = vadd.f32 %v6952, %v6965
  %6967 = vdwg.mxu0
  %6968 = vmatpush.bf16.msra.mxu0 %v5419
  %6969 = vmatpush.bf16.msra.mxu0 %v5417
  %6970 = vmatpush.bf16.msra.mxu0 %v5415
  %6971 = vmatpush.bf16.msra.mxu0 %v5413
  %6972 = vmatpush.bf16.msra.mxu0 %v5411
  %6973 = vmatpush.bf16.msra.mxu0 %v5409
  %6974 = vmatpush.bf16.msra.mxu0 %v5407
  %6975 = vmatpush.bf16.msra.mxu0 %v5405
  %6976 = vmatmul.bf16.gmra.mxu0 0
  %v6977 = vpop.f32.mrf.mxu0
  %v6978 = vadd.f32 %v6964, %v6977
  %v6979 = vpop.f32.mrf.mxu0
  %v6980 = vadd.f32 %v6966, %v6979
  %6981 = vdwg.mxu0
  %6982 = vmatpush.bf16.msra.mxu0 %v5435
  %6983 = vmatpush.bf16.msra.mxu0 %v5433
  %6984 = vmatpush.bf16.msra.mxu0 %v5431
  %6985 = vmatpush.bf16.msra.mxu0 %v5429
  %6986 = vmatpush.bf16.msra.mxu0 %v5427
  %6987 = vmatpush.bf16.msra.mxu0 %v5425
  %6988 = vmatpush.bf16.msra.mxu0 %v5423
  %6989 = vmatpush.bf16.msra.mxu0 %v5421
  %6990 = vmatmul.bf16.gmra.mxu0 %v3881
  %v6991 = vpop.f32.mrf.mxu0
  %v6992 = vadd.f32 %v6978, %v6991
  %v6993 = vpop.f32.mrf.mxu0
  %v6994 = vadd.f32 %v6980, %v6993
  %6995 = vdwg.mxu0
  %6996 = vmatpush.bf16.msra.mxu0 %v5451
  %6997 = vmatpush.bf16.msra.mxu0 %v5449
  %6998 = vmatpush.bf16.msra.mxu0 %v5447
  %6999 = vmatpush.bf16.msra.mxu0 %v5445
  %7000 = vmatpush.bf16.msra.mxu0 %v5443
  %7001 = vmatpush.bf16.msra.mxu0 %v5441
  %7002 = vmatpush.bf16.msra.mxu0 %v5439
  %7003 = vmatpush.bf16.msra.mxu0 %v5437
  %7004 = vmatmul.bf16.gmra.mxu0 %v3887
  %v7005 = vpop.f32.mrf.mxu0
  %v7006 = vadd.f32 %v6992, %v7005
  %v7007 = vpop.f32.mrf.mxu0
  %v7008 = vadd.f32 %v6994, %v7007
  %7009 = vdwg.mxu0
  %7010 = vmatpush.bf16.msra.mxu0 %v5467
  %7011 = vmatpush.bf16.msra.mxu0 %v5465
  %7012 = vmatpush.bf16.msra.mxu0 %v5463
  %7013 = vmatpush.bf16.msra.mxu0 %v5461
  %7014 = vmatpush.bf16.msra.mxu0 %v5459
  %7015 = vmatpush.bf16.msra.mxu0 %v5457
  %7016 = vmatpush.bf16.msra.mxu0 %v5455
  %7017 = vmatpush.bf16.msra.mxu0 %v5453
  %7018 = vmatmul.bf16.gmra.mxu0 %v3893
  %v7019 = vpop.f32.mrf.mxu0
  %v7020 = vadd.f32 %v7006, %v7019
  %v7021 = vpop.f32.mrf.mxu0
  %v7022 = vadd.f32 %v7008, %v7021
  %7023 = vdwg.mxu0
  %7024 = vmatpush.bf16.msra.mxu0 %v5483
  %7025 = vmatpush.bf16.msra.mxu0 %v5481
  %7026 = vmatpush.bf16.msra.mxu0 %v5479
  %7027 = vmatpush.bf16.msra.mxu0 %v5477
  %7028 = vmatpush.bf16.msra.mxu0 %v5475
  %7029 = vmatpush.bf16.msra.mxu0 %v5473
  %7030 = vmatpush.bf16.msra.mxu0 %v5471
  %7031 = vmatpush.bf16.msra.mxu0 %v5469
  %7032 = vmatmul.bf16.gmra.mxu0 %v6630
  %v7033 = vpop.f32.mrf.mxu0
  %v7034 = vadd.f32 %v7020, %v7033
  %v7035 = vpop.f32.mrf.mxu0
  %v7036 = vadd.f32 %v7022, %v7035
  %7037 = vdwg.mxu0
  %7038 = vmatpush.bf16.msra.mxu0 %v5499
  %7039 = vmatpush.bf16.msra.mxu0 %v5497
  %7040 = vmatpush.bf16.msra.mxu0 %v5495
  %7041 = vmatpush.bf16.msra.mxu0 %v5493
  %7042 = vmatpush.bf16.msra.mxu0 %v5491
  %7043 = vmatpush.bf16.msra.mxu0 %v5489
  %7044 = vmatpush.bf16.msra.mxu0 %v5487
  %7045 = vmatpush.bf16.msra.mxu0 %v5485
  %7046 = vmatmul.bf16.gmra.mxu0 0
  %v7047 = vpop.f32.mrf.mxu0
  %v7048 = vadd.f32 %v7034, %v7047
  %v7049 = vpop.f32.mrf.mxu0
  %v7050 = vadd.f32 %v7036, %v7049
  %7051 = vdwg.mxu0
  %vm7052 = vcmp.ge.f32.partialorder %v6838, 0.0
  %vm7053 = vcmp.ge.f32.partialorder %v7048, 0.0
  %vm7054 = vcmp.ge.f32.partialorder %v6840, 0.0
  %vm7055 = vcmp.ge.f32.partialorder %v7050, 0.0
  %v7056 = vmul.f32 %v6838, 0.2
  %v7057 = vmul.f32 %v7048, 0.2
  %v7058 = vmul.f32 %v6840, 0.2
  %v7059 = vmul.f32 %v7050, 0.2
  %v7060 = vsel %vm7052, %v6838, %v7056
  %v7061 = vsel %vm7053, %v7048, %v7057
  %v7062 = vsel %vm7054, %v6840, %v7058
  %v7063 = vsel %vm7055, %v7050, %v7059
  %v7064 = vpack.c.bf16 %v7061, %v7060
  %v7065 = vpack.c.bf16 %v7063, %v7062
  %v7068 = vunpack.c.l.b16 %v3432
  %v7069 = vunpack.c.l.b16 %v3433
  %v7070 = vpack.c.b16 %v7069, %v7068
  %v7074 = vunpack.c.l.b16 %v3434
  %v7075 = vunpack.c.l.b16 %v3435
  %v7076 = vpack.c.b16 %v7075, %v7074
  %v7080 = vunpack.c.l.b16 %v3436
  %v7081 = vunpack.c.l.b16 %v3437
  %v7082 = vpack.c.b16 %v7081, %v7080
  %7084 = vmatpush.bf16.msra.mxu0 %v5146
  %7085 = vmatpush.bf16.msra.mxu0 %v5144
  %7086 = vmatpush.bf16.msra.mxu0 %v5142
  %7087 = vmatpush.bf16.msra.mxu0 %v5140
  %7088 = vmatpush.bf16.msra.mxu0 %v5138
  %7089 = vmatpush.bf16.msra.mxu0 %v5136
  %7090 = vmatpush.bf16.msra.mxu0 %v5134
  %7091 = vmatpush.bf16.msra.mxu0 %v5132
  %7092 = vmatmul.bf16.gmra.mxu0 %v3845
  %v7093 = vpop.f32.mrf.mxu0
  %v7094 = vadd.f32 %v5924, %v7093
  %v7095 = vpop.f32.mrf.mxu0
  %v7096 = vadd.f32 %v5926, %v7095
  %7097 = vdwg.mxu0
  %7098 = vmatpush.bf16.msra.mxu0 %v5162
  %7099 = vmatpush.bf16.msra.mxu0 %v5160
  %7100 = vmatpush.bf16.msra.mxu0 %v5158
  %7101 = vmatpush.bf16.msra.mxu0 %v5156
  %7102 = vmatpush.bf16.msra.mxu0 %v5154
  %7103 = vmatpush.bf16.msra.mxu0 %v5152
  %7104 = vmatpush.bf16.msra.mxu0 %v5150
  %7105 = vmatpush.bf16.msra.mxu0 %v5148
  %7106 = vmatmul.bf16.gmra.mxu0 %v3851
  %v7107 = vpop.f32.mrf.mxu0
  %v7108 = vadd.f32 %v7094, %v7107
  %v7109 = vpop.f32.mrf.mxu0
  %v7110 = vadd.f32 %v7096, %v7109
  %7111 = vdwg.mxu0
  %7112 = vmatpush.bf16.msra.mxu0 %v5178
  %7113 = vmatpush.bf16.msra.mxu0 %v5176
  %7114 = vmatpush.bf16.msra.mxu0 %v5174
  %7115 = vmatpush.bf16.msra.mxu0 %v5172
  %7116 = vmatpush.bf16.msra.mxu0 %v5170
  %7117 = vmatpush.bf16.msra.mxu0 %v5168
  %7118 = vmatpush.bf16.msra.mxu0 %v5166
  %7119 = vmatpush.bf16.msra.mxu0 %v5164
  %7120 = vmatmul.bf16.gmra.mxu0 %v3857
  %v7121 = vpop.f32.mrf.mxu0
  %v7122 = vadd.f32 %v7108, %v7121
  %v7123 = vpop.f32.mrf.mxu0
  %v7124 = vadd.f32 %v7110, %v7123
  %7125 = vdwg.mxu0
  %7126 = vmatpush.bf16.msra.mxu0 %v5194
  %7127 = vmatpush.bf16.msra.mxu0 %v5192
  %7128 = vmatpush.bf16.msra.mxu0 %v5190
  %7129 = vmatpush.bf16.msra.mxu0 %v5188
  %7130 = vmatpush.bf16.msra.mxu0 %v5186
  %7131 = vmatpush.bf16.msra.mxu0 %v5184
  %7132 = vmatpush.bf16.msra.mxu0 %v5182
  %7133 = vmatpush.bf16.msra.mxu0 %v5180
  %7134 = vmatmul.bf16.gmra.mxu0 0
  %v7135 = vpop.f32.mrf.mxu0
  %v7136 = vadd.f32 %v7122, %v7135
  %v7137 = vpop.f32.mrf.mxu0
  %v7138 = vadd.f32 %v7124, %v7137
  %7139 = vdwg.mxu0
  %7140 = vmatpush.bf16.msra.mxu0 %v5210
  %7141 = vmatpush.bf16.msra.mxu0 %v5208
  %7142 = vmatpush.bf16.msra.mxu0 %v5206
  %7143 = vmatpush.bf16.msra.mxu0 %v5204
  %7144 = vmatpush.bf16.msra.mxu0 %v5202
  %7145 = vmatpush.bf16.msra.mxu0 %v5200
  %7146 = vmatpush.bf16.msra.mxu0 %v5198
  %7147 = vmatpush.bf16.msra.mxu0 %v5196
  %7148 = vmatmul.bf16.gmra.mxu0 0
  %v7149 = vpop.f32.mrf.mxu0
  %v7150 = vadd.f32 %v7136, %v7149
  %v7151 = vpop.f32.mrf.mxu0
  %v7152 = vadd.f32 %v7138, %v7151
  %7153 = vdwg.mxu0
  %7154 = vmatpush.bf16.msra.mxu0 %v5226
  %7155 = vmatpush.bf16.msra.mxu0 %v5224
  %7156 = vmatpush.bf16.msra.mxu0 %v5222
  %7157 = vmatpush.bf16.msra.mxu0 %v5220
  %7158 = vmatpush.bf16.msra.mxu0 %v5218
  %7159 = vmatpush.bf16.msra.mxu0 %v5216
  %7160 = vmatpush.bf16.msra.mxu0 %v5214
  %7161 = vmatpush.bf16.msra.mxu0 %v5212
  %7162 = vmatmul.bf16.gmra.mxu0 %v3863
  %v7163 = vpop.f32.mrf.mxu0
  %v7164 = vadd.f32 %v7150, %v7163
  %v7165 = vpop.f32.mrf.mxu0
  %v7166 = vadd.f32 %v7152, %v7165
  %7167 = vdwg.mxu0
  %7168 = vmatpush.bf16.msra.mxu0 %v5242
  %7169 = vmatpush.bf16.msra.mxu0 %v5240
  %7170 = vmatpush.bf16.msra.mxu0 %v5238
  %7171 = vmatpush.bf16.msra.mxu0 %v5236
  %7172 = vmatpush.bf16.msra.mxu0 %v5234
  %7173 = vmatpush.bf16.msra.mxu0 %v5232
  %7174 = vmatpush.bf16.msra.mxu0 %v5230
  %7175 = vmatpush.bf16.msra.mxu0 %v5228
  %7176 = vmatmul.bf16.gmra.mxu0 %v3869
  %v7177 = vpop.f32.mrf.mxu0
  %v7178 = vadd.f32 %v7164, %v7177
  %v7179 = vpop.f32.mrf.mxu0
  %v7180 = vadd.f32 %v7166, %v7179
  %7181 = vdwg.mxu0
  %7182 = vmatpush.bf16.msra.mxu0 %v5258
  %7183 = vmatpush.bf16.msra.mxu0 %v5256
  %7184 = vmatpush.bf16.msra.mxu0 %v5254
  %7185 = vmatpush.bf16.msra.mxu0 %v5252
  %7186 = vmatpush.bf16.msra.mxu0 %v5250
  %7187 = vmatpush.bf16.msra.mxu0 %v5248
  %7188 = vmatpush.bf16.msra.mxu0 %v5246
  %7189 = vmatpush.bf16.msra.mxu0 %v5244
  %7190 = vmatmul.bf16.gmra.mxu0 %v3875
  %v7191 = vpop.f32.mrf.mxu0
  %v7192 = vadd.f32 %v7178, %v7191
  %v7193 = vpop.f32.mrf.mxu0
  %v7194 = vadd.f32 %v7180, %v7193
  %7195 = vdwg.mxu0
  %7196 = vmatpush.bf16.msra.mxu0 %v5274
  %7197 = vmatpush.bf16.msra.mxu0 %v5272
  %7198 = vmatpush.bf16.msra.mxu0 %v5270
  %7199 = vmatpush.bf16.msra.mxu0 %v5268
  %7200 = vmatpush.bf16.msra.mxu0 %v5266
  %7201 = vmatpush.bf16.msra.mxu0 %v5264
  %7202 = vmatpush.bf16.msra.mxu0 %v5262
  %7203 = vmatpush.bf16.msra.mxu0 %v5260
  %7204 = vmatmul.bf16.gmra.mxu0 0
  %v7205 = vpop.f32.mrf.mxu0
  %v7206 = vadd.f32 %v7192, %v7205
  %v7207 = vpop.f32.mrf.mxu0
  %v7208 = vadd.f32 %v7194, %v7207
  %7209 = vdwg.mxu0
  %7210 = vmatpush.bf16.msra.mxu0 %v5290
  %7211 = vmatpush.bf16.msra.mxu0 %v5288
  %7212 = vmatpush.bf16.msra.mxu0 %v5286
  %7213 = vmatpush.bf16.msra.mxu0 %v5284
  %7214 = vmatpush.bf16.msra.mxu0 %v5282
  %7215 = vmatpush.bf16.msra.mxu0 %v5280
  %7216 = vmatpush.bf16.msra.mxu0 %v5278
  %7217 = vmatpush.bf16.msra.mxu0 %v5276
  %7218 = vmatmul.bf16.gmra.mxu0 0
  %v7219 = vpop.f32.mrf.mxu0
  %v7220 = vadd.f32 %v7206, %v7219
  %v7221 = vpop.f32.mrf.mxu0
  %v7222 = vadd.f32 %v7208, %v7221
  %7223 = vdwg.mxu0
  %7224 = vmatpush.bf16.msra.mxu0 %v5306
  %7225 = vmatpush.bf16.msra.mxu0 %v5304
  %7226 = vmatpush.bf16.msra.mxu0 %v5302
  %7227 = vmatpush.bf16.msra.mxu0 %v5300
  %7228 = vmatpush.bf16.msra.mxu0 %v5298
  %7229 = vmatpush.bf16.msra.mxu0 %v5296
  %7230 = vmatpush.bf16.msra.mxu0 %v5294
  %7231 = vmatpush.bf16.msra.mxu0 %v5292
  %7232 = vmatmul.bf16.gmra.mxu0 %v3881
  %v7233 = vpop.f32.mrf.mxu0
  %v7234 = vadd.f32 %v7220, %v7233
  %v7235 = vpop.f32.mrf.mxu0
  %v7236 = vadd.f32 %v7222, %v7235
  %7237 = vdwg.mxu0
  %7238 = vmatpush.bf16.msra.mxu0 %v5322
  %7239 = vmatpush.bf16.msra.mxu0 %v5320
  %7240 = vmatpush.bf16.msra.mxu0 %v5318
  %7241 = vmatpush.bf16.msra.mxu0 %v5316
  %7242 = vmatpush.bf16.msra.mxu0 %v5314
  %7243 = vmatpush.bf16.msra.mxu0 %v5312
  %7244 = vmatpush.bf16.msra.mxu0 %v5310
  %7245 = vmatpush.bf16.msra.mxu0 %v5308
  %7246 = vmatmul.bf16.gmra.mxu0 %v3887
  %v7247 = vpop.f32.mrf.mxu0
  %v7248 = vadd.f32 %v7234, %v7247
  %v7249 = vpop.f32.mrf.mxu0
  %v7250 = vadd.f32 %v7236, %v7249
  %7251 = vdwg.mxu0
  %7252 = vmatpush.bf16.msra.mxu0 %v5338
  %7253 = vmatpush.bf16.msra.mxu0 %v5336
  %7254 = vmatpush.bf16.msra.mxu0 %v5334
  %7255 = vmatpush.bf16.msra.mxu0 %v5332
  %7256 = vmatpush.bf16.msra.mxu0 %v5330
  %7257 = vmatpush.bf16.msra.mxu0 %v5328
  %7258 = vmatpush.bf16.msra.mxu0 %v5326
  %7259 = vmatpush.bf16.msra.mxu0 %v5324
  %7260 = vmatmul.bf16.gmra.mxu0 %v3893
  %v7261 = vpop.f32.mrf.mxu0
  %v7262 = vadd.f32 %v7248, %v7261
  %v7263 = vpop.f32.mrf.mxu0
  %v7264 = vadd.f32 %v7250, %v7263
  %7265 = vdwg.mxu0
  %7266 = vmatpush.bf16.msra.mxu0 %v5354
  %7267 = vmatpush.bf16.msra.mxu0 %v5352
  %7268 = vmatpush.bf16.msra.mxu0 %v5350
  %7269 = vmatpush.bf16.msra.mxu0 %v5348
  %7270 = vmatpush.bf16.msra.mxu0 %v5346
  %7271 = vmatpush.bf16.msra.mxu0 %v5344
  %7272 = vmatpush.bf16.msra.mxu0 %v5342
  %7273 = vmatpush.bf16.msra.mxu0 %v5340
  %7274 = vmatmul.bf16.gmra.mxu0 0
  %v7275 = vpop.f32.mrf.mxu0
  %v7276 = vadd.f32 %v7262, %v7275
  %v7277 = vpop.f32.mrf.mxu0
  %v7278 = vadd.f32 %v7264, %v7277
  %7279 = vdwg.mxu0
  %7280 = vmatpush.bf16.msra.mxu0 %v5370
  %7281 = vmatpush.bf16.msra.mxu0 %v5368
  %7282 = vmatpush.bf16.msra.mxu0 %v5366
  %7283 = vmatpush.bf16.msra.mxu0 %v5364
  %7284 = vmatpush.bf16.msra.mxu0 %v5362
  %7285 = vmatpush.bf16.msra.mxu0 %v5360
  %7286 = vmatpush.bf16.msra.mxu0 %v5358
  %7287 = vmatpush.bf16.msra.mxu0 %v5356
  %7288 = vmatmul.bf16.gmra.mxu0 0
  %v7289 = vpop.f32.mrf.mxu0
  %v7290 = vadd.f32 %v7276, %v7289
  %v7291 = vpop.f32.mrf.mxu0
  %v7292 = vadd.f32 %v7278, %v7291
  %7293 = vdwg.mxu0
  %7294 = vmatpush.bf16.msra.mxu0 %v5386
  %7295 = vmatpush.bf16.msra.mxu0 %v5384
  %7296 = vmatpush.bf16.msra.mxu0 %v5382
  %7297 = vmatpush.bf16.msra.mxu0 %v5380
  %7298 = vmatpush.bf16.msra.mxu0 %v5378
  %7299 = vmatpush.bf16.msra.mxu0 %v5376
  %7300 = vmatpush.bf16.msra.mxu0 %v5374
  %7301 = vmatpush.bf16.msra.mxu0 %v5372
  %7302 = vmatmul.bf16.gmra.mxu0 %v7070
  %v7303 = vpop.f32.mrf.mxu0
  %v7304 = vadd.f32 %v7290, %v7303
  %v7305 = vpop.f32.mrf.mxu0
  %v7306 = vadd.f32 %v7292, %v7305
  %7307 = vdwg.mxu0
  %7308 = vmatpush.bf16.msra.mxu0 %v5402
  %7309 = vmatpush.bf16.msra.mxu0 %v5400
  %7310 = vmatpush.bf16.msra.mxu0 %v5398
  %7311 = vmatpush.bf16.msra.mxu0 %v5396
  %7312 = vmatpush.bf16.msra.mxu0 %v5394
  %7313 = vmatpush.bf16.msra.mxu0 %v5392
  %7314 = vmatpush.bf16.msra.mxu0 %v5390
  %7315 = vmatpush.bf16.msra.mxu0 %v5388
  %7316 = vmatmul.bf16.gmra.mxu0 %v7076
  %v7317 = vpop.f32.mrf.mxu0
  %v7318 = vadd.f32 %v7304, %v7317
  %v7319 = vpop.f32.mrf.mxu0
  %v7320 = vadd.f32 %v7306, %v7319
  %7321 = vdwg.mxu0
  %7322 = vmatpush.bf16.msra.mxu0 %v5418
  %7323 = vmatpush.bf16.msra.mxu0 %v5416
  %7324 = vmatpush.bf16.msra.mxu0 %v5414
  %7325 = vmatpush.bf16.msra.mxu0 %v5412
  %7326 = vmatpush.bf16.msra.mxu0 %v5410
  %7327 = vmatpush.bf16.msra.mxu0 %v5408
  %7328 = vmatpush.bf16.msra.mxu0 %v5406
  %7329 = vmatpush.bf16.msra.mxu0 %v5404
  %7330 = vmatmul.bf16.gmra.mxu0 %v7082
  %v7331 = vpop.f32.mrf.mxu0
  %v7332 = vadd.f32 %v7318, %v7331
  %v7333 = vpop.f32.mrf.mxu0
  %v7334 = vadd.f32 %v7320, %v7333
  %7335 = vdwg.mxu0
  %7336 = vmatpush.bf16.msra.mxu0 %v5434
  %7337 = vmatpush.bf16.msra.mxu0 %v5432
  %7338 = vmatpush.bf16.msra.mxu0 %v5430
  %7339 = vmatpush.bf16.msra.mxu0 %v5428
  %7340 = vmatpush.bf16.msra.mxu0 %v5426
  %7341 = vmatpush.bf16.msra.mxu0 %v5424
  %7342 = vmatpush.bf16.msra.mxu0 %v5422
  %7343 = vmatpush.bf16.msra.mxu0 %v5420
  %7344 = vmatmul.bf16.gmra.mxu0 0
  %v7345 = vpop.f32.mrf.mxu0
  %v7346 = vadd.f32 %v7332, %v7345
  %v7347 = vpop.f32.mrf.mxu0
  %v7348 = vadd.f32 %v7334, %v7347
  %7349 = vdwg.mxu0
  %7350 = vmatpush.bf16.msra.mxu0 %v5450
  %7351 = vmatpush.bf16.msra.mxu0 %v5448
  %7352 = vmatpush.bf16.msra.mxu0 %v5446
  %7353 = vmatpush.bf16.msra.mxu0 %v5444
  %7354 = vmatpush.bf16.msra.mxu0 %v5442
  %7355 = vmatpush.bf16.msra.mxu0 %v5440
  %7356 = vmatpush.bf16.msra.mxu0 %v5438
  %7357 = vmatpush.bf16.msra.mxu0 %v5436
  %7358 = vmatmul.bf16.gmra.mxu0 0
  %v7359 = vpop.f32.mrf.mxu0
  %v7360 = vadd.f32 %v7346, %v7359
  %v7361 = vpop.f32.mrf.mxu0
  %v7362 = vadd.f32 %v7348, %v7361
  %7363 = vdwg.mxu0
  %7364 = vmatpush.bf16.msra.mxu0 %v5466
  %7365 = vmatpush.bf16.msra.mxu0 %v5464
  %7366 = vmatpush.bf16.msra.mxu0 %v5462
  %7367 = vmatpush.bf16.msra.mxu0 %v5460
  %7368 = vmatpush.bf16.msra.mxu0 %v5458
  %7369 = vmatpush.bf16.msra.mxu0 %v5456
  %7370 = vmatpush.bf16.msra.mxu0 %v5454
  %7371 = vmatpush.bf16.msra.mxu0 %v5452
  %7372 = vmatmul.bf16.gmra.mxu0 0
  %v7373 = vpop.f32.mrf.mxu0
  %v7374 = vadd.f32 %v7360, %v7373
  %v7375 = vpop.f32.mrf.mxu0
  %v7376 = vadd.f32 %v7362, %v7375
  %7377 = vdwg.mxu0
  %7378 = vmatpush.bf16.msra.mxu0 %v5482
  %7379 = vmatpush.bf16.msra.mxu0 %v5480
  %7380 = vmatpush.bf16.msra.mxu0 %v5478
  %7381 = vmatpush.bf16.msra.mxu0 %v5476
  %7382 = vmatpush.bf16.msra.mxu0 %v5474
  %7383 = vmatpush.bf16.msra.mxu0 %v5472
  %7384 = vmatpush.bf16.msra.mxu0 %v5470
  %7385 = vmatpush.bf16.msra.mxu0 %v5468
  %7386 = vmatmul.bf16.gmra.mxu0 0
  %v7387 = vpop.f32.mrf.mxu0
  %v7388 = vadd.f32 %v7374, %v7387
  %v7389 = vpop.f32.mrf.mxu0
  %v7390 = vadd.f32 %v7376, %v7389
  %7391 = vdwg.mxu0
  %7392 = vmatpush.bf16.msra.mxu0 %v5498
  %7393 = vmatpush.bf16.msra.mxu0 %v5496
  %7394 = vmatpush.bf16.msra.mxu0 %v5494
  %7395 = vmatpush.bf16.msra.mxu0 %v5492
  %7396 = vmatpush.bf16.msra.mxu0 %v5490
  %7397 = vmatpush.bf16.msra.mxu0 %v5488
  %7398 = vmatpush.bf16.msra.mxu0 %v5486
  %7399 = vmatpush.bf16.msra.mxu0 %v5484
  %7400 = vmatmul.bf16.gmra.mxu0 0
  %v7401 = vpop.f32.mrf.mxu0
  %v7402 = vadd.f32 %v7388, %v7401
  %v7403 = vpop.f32.mrf.mxu0
  %v7404 = vadd.f32 %v7390, %v7403
  %7405 = vdwg.mxu0
  %7406 = vmatpush.bf16.msra.mxu0 %v5147
  %7407 = vmatpush.bf16.msra.mxu0 %v5145
  %7408 = vmatpush.bf16.msra.mxu0 %v5143
  %7409 = vmatpush.bf16.msra.mxu0 %v5141
  %7410 = vmatpush.bf16.msra.mxu0 %v5139
  %7411 = vmatpush.bf16.msra.mxu0 %v5137
  %7412 = vmatpush.bf16.msra.mxu0 %v5135
  %7413 = vmatpush.bf16.msra.mxu0 %v5133
  %7414 = vmatmul.bf16.gmra.mxu0 %v3845
  %v7415 = vpop.f32.mrf.mxu0
  %v7416 = vadd.f32 %v6274, %v7415
  %v7417 = vpop.f32.mrf.mxu0
  %v7418 = vadd.f32 %v6276, %v7417
  %7419 = vdwg.mxu0
  %7420 = vmatpush.bf16.msra.mxu0 %v5163
  %7421 = vmatpush.bf16.msra.mxu0 %v5161
  %7422 = vmatpush.bf16.msra.mxu0 %v5159
  %7423 = vmatpush.bf16.msra.mxu0 %v5157
  %7424 = vmatpush.bf16.msra.mxu0 %v5155
  %7425 = vmatpush.bf16.msra.mxu0 %v5153
  %7426 = vmatpush.bf16.msra.mxu0 %v5151
  %7427 = vmatpush.bf16.msra.mxu0 %v5149
  %7428 = vmatmul.bf16.gmra.mxu0 %v3851
  %v7429 = vpop.f32.mrf.mxu0
  %v7430 = vadd.f32 %v7416, %v7429
  %v7431 = vpop.f32.mrf.mxu0
  %v7432 = vadd.f32 %v7418, %v7431
  %7433 = vdwg.mxu0
  %7434 = vmatpush.bf16.msra.mxu0 %v5179
  %7435 = vmatpush.bf16.msra.mxu0 %v5177
  %7436 = vmatpush.bf16.msra.mxu0 %v5175
  %7437 = vmatpush.bf16.msra.mxu0 %v5173
  %7438 = vmatpush.bf16.msra.mxu0 %v5171
  %7439 = vmatpush.bf16.msra.mxu0 %v5169
  %7440 = vmatpush.bf16.msra.mxu0 %v5167
  %7441 = vmatpush.bf16.msra.mxu0 %v5165
  %7442 = vmatmul.bf16.gmra.mxu0 %v3857
  %v7443 = vpop.f32.mrf.mxu0
  %v7444 = vadd.f32 %v7430, %v7443
  %v7445 = vpop.f32.mrf.mxu0
  %v7446 = vadd.f32 %v7432, %v7445
  %7447 = vdwg.mxu0
  %7448 = vmatpush.bf16.msra.mxu0 %v5195
  %7449 = vmatpush.bf16.msra.mxu0 %v5193
  %7450 = vmatpush.bf16.msra.mxu0 %v5191
  %7451 = vmatpush.bf16.msra.mxu0 %v5189
  %7452 = vmatpush.bf16.msra.mxu0 %v5187
  %7453 = vmatpush.bf16.msra.mxu0 %v5185
  %7454 = vmatpush.bf16.msra.mxu0 %v5183
  %7455 = vmatpush.bf16.msra.mxu0 %v5181
  %7456 = vmatmul.bf16.gmra.mxu0 0
  %v7457 = vpop.f32.mrf.mxu0
  %v7458 = vadd.f32 %v7444, %v7457
  %v7459 = vpop.f32.mrf.mxu0
  %v7460 = vadd.f32 %v7446, %v7459
  %7461 = vdwg.mxu0
  %7462 = vmatpush.bf16.msra.mxu0 %v5211
  %7463 = vmatpush.bf16.msra.mxu0 %v5209
  %7464 = vmatpush.bf16.msra.mxu0 %v5207
  %7465 = vmatpush.bf16.msra.mxu0 %v5205
  %7466 = vmatpush.bf16.msra.mxu0 %v5203
  %7467 = vmatpush.bf16.msra.mxu0 %v5201
  %7468 = vmatpush.bf16.msra.mxu0 %v5199
  %7469 = vmatpush.bf16.msra.mxu0 %v5197
  %7470 = vmatmul.bf16.gmra.mxu0 0
  %v7471 = vpop.f32.mrf.mxu0
  %v7472 = vadd.f32 %v7458, %v7471
  %v7473 = vpop.f32.mrf.mxu0
  %v7474 = vadd.f32 %v7460, %v7473
  %7475 = vdwg.mxu0
  %7476 = vmatpush.bf16.msra.mxu0 %v5227
  %7477 = vmatpush.bf16.msra.mxu0 %v5225
  %7478 = vmatpush.bf16.msra.mxu0 %v5223
  %7479 = vmatpush.bf16.msra.mxu0 %v5221
  %7480 = vmatpush.bf16.msra.mxu0 %v5219
  %7481 = vmatpush.bf16.msra.mxu0 %v5217
  %7482 = vmatpush.bf16.msra.mxu0 %v5215
  %7483 = vmatpush.bf16.msra.mxu0 %v5213
  %7484 = vmatmul.bf16.gmra.mxu0 %v3863
  %v7485 = vpop.f32.mrf.mxu0
  %v7486 = vadd.f32 %v7472, %v7485
  %v7487 = vpop.f32.mrf.mxu0
  %v7488 = vadd.f32 %v7474, %v7487
  %7489 = vdwg.mxu0
  %7490 = vmatpush.bf16.msra.mxu0 %v5243
  %7491 = vmatpush.bf16.msra.mxu0 %v5241
  %7492 = vmatpush.bf16.msra.mxu0 %v5239
  %7493 = vmatpush.bf16.msra.mxu0 %v5237
  %7494 = vmatpush.bf16.msra.mxu0 %v5235
  %7495 = vmatpush.bf16.msra.mxu0 %v5233
  %7496 = vmatpush.bf16.msra.mxu0 %v5231
  %7497 = vmatpush.bf16.msra.mxu0 %v5229
  %7498 = vmatmul.bf16.gmra.mxu0 %v3869
  %v7499 = vpop.f32.mrf.mxu0
  %v7500 = vadd.f32 %v7486, %v7499
  %v7501 = vpop.f32.mrf.mxu0
  %v7502 = vadd.f32 %v7488, %v7501
  %7503 = vdwg.mxu0
  %7504 = vmatpush.bf16.msra.mxu0 %v5259
  %7505 = vmatpush.bf16.msra.mxu0 %v5257
  %7506 = vmatpush.bf16.msra.mxu0 %v5255
  %7507 = vmatpush.bf16.msra.mxu0 %v5253
  %7508 = vmatpush.bf16.msra.mxu0 %v5251
  %7509 = vmatpush.bf16.msra.mxu0 %v5249
  %7510 = vmatpush.bf16.msra.mxu0 %v5247
  %7511 = vmatpush.bf16.msra.mxu0 %v5245
  %7512 = vmatmul.bf16.gmra.mxu0 %v3875
  %v7513 = vpop.f32.mrf.mxu0
  %v7514 = vadd.f32 %v7500, %v7513
  %v7515 = vpop.f32.mrf.mxu0
  %v7516 = vadd.f32 %v7502, %v7515
  %7517 = vdwg.mxu0
  %7518 = vmatpush.bf16.msra.mxu0 %v5275
  %7519 = vmatpush.bf16.msra.mxu0 %v5273
  %7520 = vmatpush.bf16.msra.mxu0 %v5271
  %7521 = vmatpush.bf16.msra.mxu0 %v5269
  %7522 = vmatpush.bf16.msra.mxu0 %v5267
  %7523 = vmatpush.bf16.msra.mxu0 %v5265
  %7524 = vmatpush.bf16.msra.mxu0 %v5263
  %7525 = vmatpush.bf16.msra.mxu0 %v5261
  %7526 = vmatmul.bf16.gmra.mxu0 0
  %v7527 = vpop.f32.mrf.mxu0
  %v7528 = vadd.f32 %v7514, %v7527
  %v7529 = vpop.f32.mrf.mxu0
  %v7530 = vadd.f32 %v7516, %v7529
  %7531 = vdwg.mxu0
  %7532 = vmatpush.bf16.msra.mxu0 %v5291
  %7533 = vmatpush.bf16.msra.mxu0 %v5289
  %7534 = vmatpush.bf16.msra.mxu0 %v5287
  %7535 = vmatpush.bf16.msra.mxu0 %v5285
  %7536 = vmatpush.bf16.msra.mxu0 %v5283
  %7537 = vmatpush.bf16.msra.mxu0 %v5281
  %7538 = vmatpush.bf16.msra.mxu0 %v5279
  %7539 = vmatpush.bf16.msra.mxu0 %v5277
  %7540 = vmatmul.bf16.gmra.mxu0 0
  %v7541 = vpop.f32.mrf.mxu0
  %v7542 = vadd.f32 %v7528, %v7541
  %v7543 = vpop.f32.mrf.mxu0
  %v7544 = vadd.f32 %v7530, %v7543
  %7545 = vdwg.mxu0
  %7546 = vmatpush.bf16.msra.mxu0 %v5307
  %7547 = vmatpush.bf16.msra.mxu0 %v5305
  %7548 = vmatpush.bf16.msra.mxu0 %v5303
  %7549 = vmatpush.bf16.msra.mxu0 %v5301
  %7550 = vmatpush.bf16.msra.mxu0 %v5299
  %7551 = vmatpush.bf16.msra.mxu0 %v5297
  %7552 = vmatpush.bf16.msra.mxu0 %v5295
  %7553 = vmatpush.bf16.msra.mxu0 %v5293
  %7554 = vmatmul.bf16.gmra.mxu0 %v3881
  %v7555 = vpop.f32.mrf.mxu0
  %v7556 = vadd.f32 %v7542, %v7555
  %v7557 = vpop.f32.mrf.mxu0
  %v7558 = vadd.f32 %v7544, %v7557
  %7559 = vdwg.mxu0
  %7560 = vmatpush.bf16.msra.mxu0 %v5323
  %7561 = vmatpush.bf16.msra.mxu0 %v5321
  %7562 = vmatpush.bf16.msra.mxu0 %v5319
  %7563 = vmatpush.bf16.msra.mxu0 %v5317
  %7564 = vmatpush.bf16.msra.mxu0 %v5315
  %7565 = vmatpush.bf16.msra.mxu0 %v5313
  %7566 = vmatpush.bf16.msra.mxu0 %v5311
  %7567 = vmatpush.bf16.msra.mxu0 %v5309
  %7568 = vmatmul.bf16.gmra.mxu0 %v3887
  %v7569 = vpop.f32.mrf.mxu0
  %v7570 = vadd.f32 %v7556, %v7569
  %v7571 = vpop.f32.mrf.mxu0
  %v7572 = vadd.f32 %v7558, %v7571
  %7573 = vdwg.mxu0
  %7574 = vmatpush.bf16.msra.mxu0 %v5339
  %7575 = vmatpush.bf16.msra.mxu0 %v5337
  %7576 = vmatpush.bf16.msra.mxu0 %v5335
  %7577 = vmatpush.bf16.msra.mxu0 %v5333
  %7578 = vmatpush.bf16.msra.mxu0 %v5331
  %7579 = vmatpush.bf16.msra.mxu0 %v5329
  %7580 = vmatpush.bf16.msra.mxu0 %v5327
  %7581 = vmatpush.bf16.msra.mxu0 %v5325
  %7582 = vmatmul.bf16.gmra.mxu0 %v3893
  %v7583 = vpop.f32.mrf.mxu0
  %v7584 = vadd.f32 %v7570, %v7583
  %v7585 = vpop.f32.mrf.mxu0
  %v7586 = vadd.f32 %v7572, %v7585
  %7587 = vdwg.mxu0
  %7588 = vmatpush.bf16.msra.mxu0 %v5355
  %7589 = vmatpush.bf16.msra.mxu0 %v5353
  %7590 = vmatpush.bf16.msra.mxu0 %v5351
  %7591 = vmatpush.bf16.msra.mxu0 %v5349
  %7592 = vmatpush.bf16.msra.mxu0 %v5347
  %7593 = vmatpush.bf16.msra.mxu0 %v5345
  %7594 = vmatpush.bf16.msra.mxu0 %v5343
  %7595 = vmatpush.bf16.msra.mxu0 %v5341
  %7596 = vmatmul.bf16.gmra.mxu0 0
  %v7597 = vpop.f32.mrf.mxu0
  %v7598 = vadd.f32 %v7584, %v7597
  %v7599 = vpop.f32.mrf.mxu0
  %v7600 = vadd.f32 %v7586, %v7599
  %7601 = vdwg.mxu0
  %7602 = vmatpush.bf16.msra.mxu0 %v5371
  %7603 = vmatpush.bf16.msra.mxu0 %v5369
  %7604 = vmatpush.bf16.msra.mxu0 %v5367
  %7605 = vmatpush.bf16.msra.mxu0 %v5365
  %7606 = vmatpush.bf16.msra.mxu0 %v5363
  %7607 = vmatpush.bf16.msra.mxu0 %v5361
  %7608 = vmatpush.bf16.msra.mxu0 %v5359
  %7609 = vmatpush.bf16.msra.mxu0 %v5357
  %7610 = vmatmul.bf16.gmra.mxu0 0
  %v7611 = vpop.f32.mrf.mxu0
  %v7612 = vadd.f32 %v7598, %v7611
  %v7613 = vpop.f32.mrf.mxu0
  %v7614 = vadd.f32 %v7600, %v7613
  %7615 = vdwg.mxu0
  %7616 = vmatpush.bf16.msra.mxu0 %v5387
  %7617 = vmatpush.bf16.msra.mxu0 %v5385
  %7618 = vmatpush.bf16.msra.mxu0 %v5383
  %7619 = vmatpush.bf16.msra.mxu0 %v5381
  %7620 = vmatpush.bf16.msra.mxu0 %v5379
  %7621 = vmatpush.bf16.msra.mxu0 %v5377
  %7622 = vmatpush.bf16.msra.mxu0 %v5375
  %7623 = vmatpush.bf16.msra.mxu0 %v5373
  %7624 = vmatmul.bf16.gmra.mxu0 %v7070
  %v7625 = vpop.f32.mrf.mxu0
  %v7626 = vadd.f32 %v7612, %v7625
  %v7627 = vpop.f32.mrf.mxu0
  %v7628 = vadd.f32 %v7614, %v7627
  %7629 = vdwg.mxu0
  %7630 = vmatpush.bf16.msra.mxu0 %v5403
  %7631 = vmatpush.bf16.msra.mxu0 %v5401
  %7632 = vmatpush.bf16.msra.mxu0 %v5399
  %7633 = vmatpush.bf16.msra.mxu0 %v5397
  %7634 = vmatpush.bf16.msra.mxu0 %v5395
  %7635 = vmatpush.bf16.msra.mxu0 %v5393
  %7636 = vmatpush.bf16.msra.mxu0 %v5391
  %7637 = vmatpush.bf16.msra.mxu0 %v5389
  %7638 = vmatmul.bf16.gmra.mxu0 %v7076
  %v7639 = vpop.f32.mrf.mxu0
  %v7640 = vadd.f32 %v7626, %v7639
  %v7641 = vpop.f32.mrf.mxu0
  %v7642 = vadd.f32 %v7628, %v7641
  %7643 = vdwg.mxu0
  %7644 = vmatpush.bf16.msra.mxu0 %v5419
  %7645 = vmatpush.bf16.msra.mxu0 %v5417
  %7646 = vmatpush.bf16.msra.mxu0 %v5415
  %7647 = vmatpush.bf16.msra.mxu0 %v5413
  %7648 = vmatpush.bf16.msra.mxu0 %v5411
  %7649 = vmatpush.bf16.msra.mxu0 %v5409
  %7650 = vmatpush.bf16.msra.mxu0 %v5407
  %7651 = vmatpush.bf16.msra.mxu0 %v5405
  %7652 = vmatmul.bf16.gmra.mxu0 %v7082
  %v7653 = vpop.f32.mrf.mxu0
  %v7654 = vadd.f32 %v7640, %v7653
  %v7655 = vpop.f32.mrf.mxu0
  %v7656 = vadd.f32 %v7642, %v7655
  %7657 = vdwg.mxu0
  %7658 = vmatpush.bf16.msra.mxu0 %v5435
  %7659 = vmatpush.bf16.msra.mxu0 %v5433
  %7660 = vmatpush.bf16.msra.mxu0 %v5431
  %7661 = vmatpush.bf16.msra.mxu0 %v5429
  %7662 = vmatpush.bf16.msra.mxu0 %v5427
  %7663 = vmatpush.bf16.msra.mxu0 %v5425
  %7664 = vmatpush.bf16.msra.mxu0 %v5423
  %7665 = vmatpush.bf16.msra.mxu0 %v5421
  %7666 = vmatmul.bf16.gmra.mxu0 0
  %v7667 = vpop.f32.mrf.mxu0
  %v7668 = vadd.f32 %v7654, %v7667
  %v7669 = vpop.f32.mrf.mxu0
  %v7670 = vadd.f32 %v7656, %v7669
  %7671 = vdwg.mxu0
  %7672 = vmatpush.bf16.msra.mxu0 %v5451
  %7673 = vmatpush.bf16.msra.mxu0 %v5449
  %7674 = vmatpush.bf16.msra.mxu0 %v5447
  %7675 = vmatpush.bf16.msra.mxu0 %v5445
  %7676 = vmatpush.bf16.msra.mxu0 %v5443
  %7677 = vmatpush.bf16.msra.mxu0 %v5441
  %7678 = vmatpush.bf16.msra.mxu0 %v5439
  %7679 = vmatpush.bf16.msra.mxu0 %v5437
  %7680 = vmatmul.bf16.gmra.mxu0 0
  %v7681 = vpop.f32.mrf.mxu0
  %v7682 = vadd.f32 %v7668, %v7681
  %v7683 = vpop.f32.mrf.mxu0
  %v7684 = vadd.f32 %v7670, %v7683
  %7685 = vdwg.mxu0
  %7686 = vmatpush.bf16.msra.mxu0 %v5467
  %7687 = vmatpush.bf16.msra.mxu0 %v5465
  %7688 = vmatpush.bf16.msra.mxu0 %v5463
  %7689 = vmatpush.bf16.msra.mxu0 %v5461
  %7690 = vmatpush.bf16.msra.mxu0 %v5459
  %7691 = vmatpush.bf16.msra.mxu0 %v5457
  %7692 = vmatpush.bf16.msra.mxu0 %v5455
  %7693 = vmatpush.bf16.msra.mxu0 %v5453
  %7694 = vmatmul.bf16.gmra.mxu0 0
  %v7695 = vpop.f32.mrf.mxu0
  %v7696 = vadd.f32 %v7682, %v7695
  %v7697 = vpop.f32.mrf.mxu0
  %v7698 = vadd.f32 %v7684, %v7697
  %7699 = vdwg.mxu0
  %7700 = vmatpush.bf16.msra.mxu0 %v5483
  %7701 = vmatpush.bf16.msra.mxu0 %v5481
  %7702 = vmatpush.bf16.msra.mxu0 %v5479
  %7703 = vmatpush.bf16.msra.mxu0 %v5477
  %7704 = vmatpush.bf16.msra.mxu0 %v5475
  %7705 = vmatpush.bf16.msra.mxu0 %v5473
  %7706 = vmatpush.bf16.msra.mxu0 %v5471
  %7707 = vmatpush.bf16.msra.mxu0 %v5469
  %7708 = vmatmul.bf16.gmra.mxu0 0
  %v7709 = vpop.f32.mrf.mxu0
  %v7710 = vadd.f32 %v7696, %v7709
  %v7711 = vpop.f32.mrf.mxu0
  %v7712 = vadd.f32 %v7698, %v7711
  %7713 = vdwg.mxu0
  %7714 = vmatpush.bf16.msra.mxu0 %v5499
  %7715 = vmatpush.bf16.msra.mxu0 %v5497
  %7716 = vmatpush.bf16.msra.mxu0 %v5495
  %7717 = vmatpush.bf16.msra.mxu0 %v5493
  %7718 = vmatpush.bf16.msra.mxu0 %v5491
  %7719 = vmatpush.bf16.msra.mxu0 %v5489
  %7720 = vmatpush.bf16.msra.mxu0 %v5487
  %7721 = vmatpush.bf16.msra.mxu0 %v5485
  %7722 = vmatmul.bf16.gmra.mxu0 0
  %v7723 = vpop.f32.mrf.mxu0
  %v7724 = vadd.f32 %v7710, %v7723
  %v7725 = vpop.f32.mrf.mxu0
  %v7726 = vadd.f32 %v7712, %v7725
  %7727 = vdwg.mxu0
  %vm7728 = vcmp.ge.f32.partialorder %v7402, 0.0
  %vm7729 = vcmp.ge.f32.partialorder %v7724, 0.0
  %vm7730 = vcmp.ge.f32.partialorder %v7404, 0.0
  %vm7731 = vcmp.ge.f32.partialorder %v7726, 0.0
  %v7732 = vmul.f32 %v7402, 0.2
  %v7733 = vmul.f32 %v7724, 0.2
  %v7734 = vmul.f32 %v7404, 0.2
  %v7735 = vmul.f32 %v7726, 0.2
  %v7736 = vsel %vm7728, %v7402, %v7732
  %v7737 = vsel %vm7729, %v7724, %v7733
  %v7738 = vsel %vm7730, %v7404, %v7734
  %v7739 = vsel %vm7731, %v7726, %v7735
  %v7740 = vpack.c.bf16 %v7737, %v7736
  %v7741 = vpack.c.bf16 %v7739, %v7738
  %v7744 = vunpack.c.l.b16 %v3438
  %v7745 = vunpack.c.l.b16 %v3439
  %v7746 = vpack.c.b16 %v7745, %v7744
  %7748 = vmatpush.bf16.msra.mxu0 %v5114
  %7749 = vmatpush.bf16.msra.mxu0 %v5112
  %7750 = vmatpush.bf16.msra.mxu0 %v5110
  %7751 = vmatpush.bf16.msra.mxu0 %v5108
  %7752 = vmatpush.bf16.msra.mxu0 %v5106
  %7753 = vmatpush.bf16.msra.mxu0 %v5104
  %7754 = vmatpush.bf16.msra.mxu0 %v5102
  %7755 = vmatpush.bf16.msra.mxu0 %v5100
  %7756 = vmatmul.bf16.gmra.mxu0 %v3845
  %v7757 = vpop.f32.mrf.mxu0
  %v7758 = vadd.f32 %v3896, %v7757
  %v7759 = vpop.f32.mrf.mxu0
  %v7760 = vadd.f32 %v3896, %v7759
  %7761 = vdwg.mxu0
  %7762 = vmatpush.bf16.msra.mxu0 %v5130
  %7763 = vmatpush.bf16.msra.mxu0 %v5128
  %7764 = vmatpush.bf16.msra.mxu0 %v5126
  %7765 = vmatpush.bf16.msra.mxu0 %v5124
  %7766 = vmatpush.bf16.msra.mxu0 %v5122
  %7767 = vmatpush.bf16.msra.mxu0 %v5120
  %7768 = vmatpush.bf16.msra.mxu0 %v5118
  %7769 = vmatpush.bf16.msra.mxu0 %v5116
  %7770 = vmatmul.bf16.gmra.mxu0 %v3851
  %v7771 = vpop.f32.mrf.mxu0
  %v7772 = vadd.f32 %v7758, %v7771
  %v7773 = vpop.f32.mrf.mxu0
  %v7774 = vadd.f32 %v7760, %v7773
  %7775 = vdwg.mxu0
  %7776 = vmatpush.bf16.msra.mxu0 %v5146
  %7777 = vmatpush.bf16.msra.mxu0 %v5144
  %7778 = vmatpush.bf16.msra.mxu0 %v5142
  %7779 = vmatpush.bf16.msra.mxu0 %v5140
  %7780 = vmatpush.bf16.msra.mxu0 %v5138
  %7781 = vmatpush.bf16.msra.mxu0 %v5136
  %7782 = vmatpush.bf16.msra.mxu0 %v5134
  %7783 = vmatpush.bf16.msra.mxu0 %v5132
  %7784 = vmatmul.bf16.gmra.mxu0 %v3857
  %v7785 = vpop.f32.mrf.mxu0
  %v7786 = vadd.f32 %v7772, %v7785
  %v7787 = vpop.f32.mrf.mxu0
  %v7788 = vadd.f32 %v7774, %v7787
  %7789 = vdwg.mxu0
  %7790 = vmatpush.bf16.msra.mxu0 %v5162
  %7791 = vmatpush.bf16.msra.mxu0 %v5160
  %7792 = vmatpush.bf16.msra.mxu0 %v5158
  %7793 = vmatpush.bf16.msra.mxu0 %v5156
  %7794 = vmatpush.bf16.msra.mxu0 %v5154
  %7795 = vmatpush.bf16.msra.mxu0 %v5152
  %7796 = vmatpush.bf16.msra.mxu0 %v5150
  %7797 = vmatpush.bf16.msra.mxu0 %v5148
  %7798 = vmatmul.bf16.gmra.mxu0 %v6618
  %v7799 = vpop.f32.mrf.mxu0
  %v7800 = vadd.f32 %v7786, %v7799
  %v7801 = vpop.f32.mrf.mxu0
  %v7802 = vadd.f32 %v7788, %v7801
  %7803 = vdwg.mxu0
  %7804 = vmatpush.bf16.msra.mxu0 %v5178
  %7805 = vmatpush.bf16.msra.mxu0 %v5176
  %7806 = vmatpush.bf16.msra.mxu0 %v5174
  %7807 = vmatpush.bf16.msra.mxu0 %v5172
  %7808 = vmatpush.bf16.msra.mxu0 %v5170
  %7809 = vmatpush.bf16.msra.mxu0 %v5168
  %7810 = vmatpush.bf16.msra.mxu0 %v5166
  %7811 = vmatpush.bf16.msra.mxu0 %v5164
  %7812 = vmatmul.bf16.gmra.mxu0 0
  %v7813 = vpop.f32.mrf.mxu0
  %v7814 = vadd.f32 %v7800, %v7813
  %v7815 = vpop.f32.mrf.mxu0
  %v7816 = vadd.f32 %v7802, %v7815
  %7817 = vdwg.mxu0
  %7818 = vmatpush.bf16.msra.mxu0 %v5194
  %7819 = vmatpush.bf16.msra.mxu0 %v5192
  %7820 = vmatpush.bf16.msra.mxu0 %v5190
  %7821 = vmatpush.bf16.msra.mxu0 %v5188
  %7822 = vmatpush.bf16.msra.mxu0 %v5186
  %7823 = vmatpush.bf16.msra.mxu0 %v5184
  %7824 = vmatpush.bf16.msra.mxu0 %v5182
  %7825 = vmatpush.bf16.msra.mxu0 %v5180
  %7826 = vmatmul.bf16.gmra.mxu0 %v3863
  %v7827 = vpop.f32.mrf.mxu0
  %v7828 = vadd.f32 %v7814, %v7827
  %v7829 = vpop.f32.mrf.mxu0
  %v7830 = vadd.f32 %v7816, %v7829
  %7831 = vdwg.mxu0
  %7832 = vmatpush.bf16.msra.mxu0 %v5210
  %7833 = vmatpush.bf16.msra.mxu0 %v5208
  %7834 = vmatpush.bf16.msra.mxu0 %v5206
  %7835 = vmatpush.bf16.msra.mxu0 %v5204
  %7836 = vmatpush.bf16.msra.mxu0 %v5202
  %7837 = vmatpush.bf16.msra.mxu0 %v5200
  %7838 = vmatpush.bf16.msra.mxu0 %v5198
  %7839 = vmatpush.bf16.msra.mxu0 %v5196
  %7840 = vmatmul.bf16.gmra.mxu0 %v3869
  %v7841 = vpop.f32.mrf.mxu0
  %v7842 = vadd.f32 %v7828, %v7841
  %v7843 = vpop.f32.mrf.mxu0
  %v7844 = vadd.f32 %v7830, %v7843
  %7845 = vdwg.mxu0
  %7846 = vmatpush.bf16.msra.mxu0 %v5226
  %7847 = vmatpush.bf16.msra.mxu0 %v5224
  %7848 = vmatpush.bf16.msra.mxu0 %v5222
  %7849 = vmatpush.bf16.msra.mxu0 %v5220
  %7850 = vmatpush.bf16.msra.mxu0 %v5218
  %7851 = vmatpush.bf16.msra.mxu0 %v5216
  %7852 = vmatpush.bf16.msra.mxu0 %v5214
  %7853 = vmatpush.bf16.msra.mxu0 %v5212
  %7854 = vmatmul.bf16.gmra.mxu0 %v3875
  %v7855 = vpop.f32.mrf.mxu0
  %v7856 = vadd.f32 %v7842, %v7855
  %v7857 = vpop.f32.mrf.mxu0
  %v7858 = vadd.f32 %v7844, %v7857
  %7859 = vdwg.mxu0
  %7860 = vmatpush.bf16.msra.mxu0 %v5242
  %7861 = vmatpush.bf16.msra.mxu0 %v5240
  %7862 = vmatpush.bf16.msra.mxu0 %v5238
  %7863 = vmatpush.bf16.msra.mxu0 %v5236
  %7864 = vmatpush.bf16.msra.mxu0 %v5234
  %7865 = vmatpush.bf16.msra.mxu0 %v5232
  %7866 = vmatpush.bf16.msra.mxu0 %v5230
  %7867 = vmatpush.bf16.msra.mxu0 %v5228
  %7868 = vmatmul.bf16.gmra.mxu0 %v6624
  %v7869 = vpop.f32.mrf.mxu0
  %v7870 = vadd.f32 %v7856, %v7869
  %v7871 = vpop.f32.mrf.mxu0
  %v7872 = vadd.f32 %v7858, %v7871
  %7873 = vdwg.mxu0
  %7874 = vmatpush.bf16.msra.mxu0 %v5258
  %7875 = vmatpush.bf16.msra.mxu0 %v5256
  %7876 = vmatpush.bf16.msra.mxu0 %v5254
  %7877 = vmatpush.bf16.msra.mxu0 %v5252
  %7878 = vmatpush.bf16.msra.mxu0 %v5250
  %7879 = vmatpush.bf16.msra.mxu0 %v5248
  %7880 = vmatpush.bf16.msra.mxu0 %v5246
  %7881 = vmatpush.bf16.msra.mxu0 %v5244
  %7882 = vmatmul.bf16.gmra.mxu0 0
  %v7883 = vpop.f32.mrf.mxu0
  %v7884 = vadd.f32 %v7870, %v7883
  %v7885 = vpop.f32.mrf.mxu0
  %v7886 = vadd.f32 %v7872, %v7885
  %7887 = vdwg.mxu0
  %7888 = vmatpush.bf16.msra.mxu0 %v5274
  %7889 = vmatpush.bf16.msra.mxu0 %v5272
  %7890 = vmatpush.bf16.msra.mxu0 %v5270
  %7891 = vmatpush.bf16.msra.mxu0 %v5268
  %7892 = vmatpush.bf16.msra.mxu0 %v5266
  %7893 = vmatpush.bf16.msra.mxu0 %v5264
  %7894 = vmatpush.bf16.msra.mxu0 %v5262
  %7895 = vmatpush.bf16.msra.mxu0 %v5260
  %7896 = vmatmul.bf16.gmra.mxu0 %v3881
  %v7897 = vpop.f32.mrf.mxu0
  %v7898 = vadd.f32 %v7884, %v7897
  %v7899 = vpop.f32.mrf.mxu0
  %v7900 = vadd.f32 %v7886, %v7899
  %7901 = vdwg.mxu0
  %7902 = vmatpush.bf16.msra.mxu0 %v5290
  %7903 = vmatpush.bf16.msra.mxu0 %v5288
  %7904 = vmatpush.bf16.msra.mxu0 %v5286
  %7905 = vmatpush.bf16.msra.mxu0 %v5284
  %7906 = vmatpush.bf16.msra.mxu0 %v5282
  %7907 = vmatpush.bf16.msra.mxu0 %v5280
  %7908 = vmatpush.bf16.msra.mxu0 %v5278
  %7909 = vmatpush.bf16.msra.mxu0 %v5276
  %7910 = vmatmul.bf16.gmra.mxu0 %v3887
  %v7911 = vpop.f32.mrf.mxu0
  %v7912 = vadd.f32 %v7898, %v7911
  %v7913 = vpop.f32.mrf.mxu0
  %v7914 = vadd.f32 %v7900, %v7913
  %7915 = vdwg.mxu0
  %7916 = vmatpush.bf16.msra.mxu0 %v5306
  %7917 = vmatpush.bf16.msra.mxu0 %v5304
  %7918 = vmatpush.bf16.msra.mxu0 %v5302
  %7919 = vmatpush.bf16.msra.mxu0 %v5300
  %7920 = vmatpush.bf16.msra.mxu0 %v5298
  %7921 = vmatpush.bf16.msra.mxu0 %v5296
  %7922 = vmatpush.bf16.msra.mxu0 %v5294
  %7923 = vmatpush.bf16.msra.mxu0 %v5292
  %7924 = vmatmul.bf16.gmra.mxu0 %v3893
  %v7925 = vpop.f32.mrf.mxu0
  %v7926 = vadd.f32 %v7912, %v7925
  %v7927 = vpop.f32.mrf.mxu0
  %v7928 = vadd.f32 %v7914, %v7927
  %7929 = vdwg.mxu0
  %7930 = vmatpush.bf16.msra.mxu0 %v5322
  %7931 = vmatpush.bf16.msra.mxu0 %v5320
  %7932 = vmatpush.bf16.msra.mxu0 %v5318
  %7933 = vmatpush.bf16.msra.mxu0 %v5316
  %7934 = vmatpush.bf16.msra.mxu0 %v5314
  %7935 = vmatpush.bf16.msra.mxu0 %v5312
  %7936 = vmatpush.bf16.msra.mxu0 %v5310
  %7937 = vmatpush.bf16.msra.mxu0 %v5308
  %7938 = vmatmul.bf16.gmra.mxu0 %v6630
  %v7939 = vpop.f32.mrf.mxu0
  %v7940 = vadd.f32 %v7926, %v7939
  %v7941 = vpop.f32.mrf.mxu0
  %v7942 = vadd.f32 %v7928, %v7941
  %7943 = vdwg.mxu0
  %7944 = vmatpush.bf16.msra.mxu0 %v5338
  %7945 = vmatpush.bf16.msra.mxu0 %v5336
  %7946 = vmatpush.bf16.msra.mxu0 %v5334
  %7947 = vmatpush.bf16.msra.mxu0 %v5332
  %7948 = vmatpush.bf16.msra.mxu0 %v5330
  %7949 = vmatpush.bf16.msra.mxu0 %v5328
  %7950 = vmatpush.bf16.msra.mxu0 %v5326
  %7951 = vmatpush.bf16.msra.mxu0 %v5324
  %7952 = vmatmul.bf16.gmra.mxu0 0
  %v7953 = vpop.f32.mrf.mxu0
  %v7954 = vadd.f32 %v7940, %v7953
  %v7955 = vpop.f32.mrf.mxu0
  %v7956 = vadd.f32 %v7942, %v7955
  %7957 = vdwg.mxu0
  %7958 = vmatpush.bf16.msra.mxu0 %v5354
  %7959 = vmatpush.bf16.msra.mxu0 %v5352
  %7960 = vmatpush.bf16.msra.mxu0 %v5350
  %7961 = vmatpush.bf16.msra.mxu0 %v5348
  %7962 = vmatpush.bf16.msra.mxu0 %v5346
  %7963 = vmatpush.bf16.msra.mxu0 %v5344
  %7964 = vmatpush.bf16.msra.mxu0 %v5342
  %7965 = vmatpush.bf16.msra.mxu0 %v5340
  %7966 = vmatmul.bf16.gmra.mxu0 %v7070
  %v7967 = vpop.f32.mrf.mxu0
  %v7968 = vadd.f32 %v7954, %v7967
  %v7969 = vpop.f32.mrf.mxu0
  %v7970 = vadd.f32 %v7956, %v7969
  %7971 = vdwg.mxu0
  %7972 = vmatpush.bf16.msra.mxu0 %v5370
  %7973 = vmatpush.bf16.msra.mxu0 %v5368
  %7974 = vmatpush.bf16.msra.mxu0 %v5366
  %7975 = vmatpush.bf16.msra.mxu0 %v5364
  %7976 = vmatpush.bf16.msra.mxu0 %v5362
  %7977 = vmatpush.bf16.msra.mxu0 %v5360
  %7978 = vmatpush.bf16.msra.mxu0 %v5358
  %7979 = vmatpush.bf16.msra.mxu0 %v5356
  %7980 = vmatmul.bf16.gmra.mxu0 %v7076
  %v7981 = vpop.f32.mrf.mxu0
  %v7982 = vadd.f32 %v7968, %v7981
  %v7983 = vpop.f32.mrf.mxu0
  %v7984 = vadd.f32 %v7970, %v7983
  %7985 = vdwg.mxu0
  %7986 = vmatpush.bf16.msra.mxu0 %v5386
  %7987 = vmatpush.bf16.msra.mxu0 %v5384
  %7988 = vmatpush.bf16.msra.mxu0 %v5382
  %7989 = vmatpush.bf16.msra.mxu0 %v5380
  %7990 = vmatpush.bf16.msra.mxu0 %v5378
  %7991 = vmatpush.bf16.msra.mxu0 %v5376
  %7992 = vmatpush.bf16.msra.mxu0 %v5374
  %7993 = vmatpush.bf16.msra.mxu0 %v5372
  %7994 = vmatmul.bf16.gmra.mxu0 %v7082
  %v7995 = vpop.f32.mrf.mxu0
  %v7996 = vadd.f32 %v7982, %v7995
  %v7997 = vpop.f32.mrf.mxu0
  %v7998 = vadd.f32 %v7984, %v7997
  %7999 = vdwg.mxu0
  %8000 = vmatpush.bf16.msra.mxu0 %v5402
  %8001 = vmatpush.bf16.msra.mxu0 %v5400
  %8002 = vmatpush.bf16.msra.mxu0 %v5398
  %8003 = vmatpush.bf16.msra.mxu0 %v5396
  %8004 = vmatpush.bf16.msra.mxu0 %v5394
  %8005 = vmatpush.bf16.msra.mxu0 %v5392
  %8006 = vmatpush.bf16.msra.mxu0 %v5390
  %8007 = vmatpush.bf16.msra.mxu0 %v5388
  %8008 = vmatmul.bf16.gmra.mxu0 %v7746
  %v8009 = vpop.f32.mrf.mxu0
  %v8010 = vadd.f32 %v7996, %v8009
  %v8011 = vpop.f32.mrf.mxu0
  %v8012 = vadd.f32 %v7998, %v8011
  %8013 = vdwg.mxu0
  %8014 = vmatpush.bf16.msra.mxu0 %v5418
  %8015 = vmatpush.bf16.msra.mxu0 %v5416
  %8016 = vmatpush.bf16.msra.mxu0 %v5414
  %8017 = vmatpush.bf16.msra.mxu0 %v5412
  %8018 = vmatpush.bf16.msra.mxu0 %v5410
  %8019 = vmatpush.bf16.msra.mxu0 %v5408
  %8020 = vmatpush.bf16.msra.mxu0 %v5406
  %8021 = vmatpush.bf16.msra.mxu0 %v5404
  %8022 = vmatmul.bf16.gmra.mxu0 0
  %v8023 = vpop.f32.mrf.mxu0
  %v8024 = vadd.f32 %v8010, %v8023
  %v8025 = vpop.f32.mrf.mxu0
  %v8026 = vadd.f32 %v8012, %v8025
  %8027 = vdwg.mxu0
  %8028 = vmatpush.bf16.msra.mxu0 %v5434
  %8029 = vmatpush.bf16.msra.mxu0 %v5432
  %8030 = vmatpush.bf16.msra.mxu0 %v5430
  %8031 = vmatpush.bf16.msra.mxu0 %v5428
  %8032 = vmatpush.bf16.msra.mxu0 %v5426
  %8033 = vmatpush.bf16.msra.mxu0 %v5424
  %8034 = vmatpush.bf16.msra.mxu0 %v5422
  %8035 = vmatpush.bf16.msra.mxu0 %v5420
  %8036 = vmatmul.bf16.gmra.mxu0 0
  %v8037 = vpop.f32.mrf.mxu0
  %v8038 = vadd.f32 %v8024, %v8037
  %v8039 = vpop.f32.mrf.mxu0
  %v8040 = vadd.f32 %v8026, %v8039
  %8041 = vdwg.mxu0
  %8042 = vmatpush.bf16.msra.mxu0 %v5450
  %8043 = vmatpush.bf16.msra.mxu0 %v5448
  %8044 = vmatpush.bf16.msra.mxu0 %v5446
  %8045 = vmatpush.bf16.msra.mxu0 %v5444
  %8046 = vmatpush.bf16.msra.mxu0 %v5442
  %8047 = vmatpush.bf16.msra.mxu0 %v5440
  %8048 = vmatpush.bf16.msra.mxu0 %v5438
  %8049 = vmatpush.bf16.msra.mxu0 %v5436
  %8050 = vmatmul.bf16.gmra.mxu0 0
  %v8051 = vpop.f32.mrf.mxu0
  %v8052 = vadd.f32 %v8038, %v8051
  %v8053 = vpop.f32.mrf.mxu0
  %v8054 = vadd.f32 %v8040, %v8053
  %8055 = vdwg.mxu0
  %8056 = vmatpush.bf16.msra.mxu0 %v5466
  %8057 = vmatpush.bf16.msra.mxu0 %v5464
  %8058 = vmatpush.bf16.msra.mxu0 %v5462
  %8059 = vmatpush.bf16.msra.mxu0 %v5460
  %8060 = vmatpush.bf16.msra.mxu0 %v5458
  %8061 = vmatpush.bf16.msra.mxu0 %v5456
  %8062 = vmatpush.bf16.msra.mxu0 %v5454
  %8063 = vmatpush.bf16.msra.mxu0 %v5452
  %8064 = vmatmul.bf16.gmra.mxu0 0
  %v8065 = vpop.f32.mrf.mxu0
  %v8066 = vadd.f32 %v8052, %v8065
  %v8067 = vpop.f32.mrf.mxu0
  %v8068 = vadd.f32 %v8054, %v8067
  %8069 = vdwg.mxu0
  %8070 = vmatpush.bf16.msra.mxu0 %v5482
  %8071 = vmatpush.bf16.msra.mxu0 %v5480
  %8072 = vmatpush.bf16.msra.mxu0 %v5478
  %8073 = vmatpush.bf16.msra.mxu0 %v5476
  %8074 = vmatpush.bf16.msra.mxu0 %v5474
  %8075 = vmatpush.bf16.msra.mxu0 %v5472
  %8076 = vmatpush.bf16.msra.mxu0 %v5470
  %8077 = vmatpush.bf16.msra.mxu0 %v5468
  %8078 = vmatmul.bf16.gmra.mxu0 0
  %v8079 = vpop.f32.mrf.mxu0
  %v8080 = vadd.f32 %v8066, %v8079
  %v8081 = vpop.f32.mrf.mxu0
  %v8082 = vadd.f32 %v8068, %v8081
  %8083 = vdwg.mxu0
  %8084 = vmatpush.bf16.msra.mxu0 %v5498
  %8085 = vmatpush.bf16.msra.mxu0 %v5496
  %8086 = vmatpush.bf16.msra.mxu0 %v5494
  %8087 = vmatpush.bf16.msra.mxu0 %v5492
  %8088 = vmatpush.bf16.msra.mxu0 %v5490
  %8089 = vmatpush.bf16.msra.mxu0 %v5488
  %8090 = vmatpush.bf16.msra.mxu0 %v5486
  %8091 = vmatpush.bf16.msra.mxu0 %v5484
  %8092 = vmatmul.bf16.gmra.mxu0 0
  %v8093 = vpop.f32.mrf.mxu0
  %v8094 = vadd.f32 %v8080, %v8093
  %v8095 = vpop.f32.mrf.mxu0
  %v8096 = vadd.f32 %v8082, %v8095
  %8097 = vdwg.mxu0
  %8098 = vmatpush.bf16.msra.mxu0 %v5115
  %8099 = vmatpush.bf16.msra.mxu0 %v5113
  %8100 = vmatpush.bf16.msra.mxu0 %v5111
  %8101 = vmatpush.bf16.msra.mxu0 %v5109
  %8102 = vmatpush.bf16.msra.mxu0 %v5107
  %8103 = vmatpush.bf16.msra.mxu0 %v5105
  %8104 = vmatpush.bf16.msra.mxu0 %v5103
  %8105 = vmatpush.bf16.msra.mxu0 %v5101
  %8106 = vmatmul.bf16.gmra.mxu0 %v3845
  %v8107 = vpop.f32.mrf.mxu0
  %v8108 = vadd.f32 %v3897, %v8107
  %v8109 = vpop.f32.mrf.mxu0
  %v8110 = vadd.f32 %v3897, %v8109
  %8111 = vdwg.mxu0
  %8112 = vmatpush.bf16.msra.mxu0 %v5131
  %8113 = vmatpush.bf16.msra.mxu0 %v5129
  %8114 = vmatpush.bf16.msra.mxu0 %v5127
  %8115 = vmatpush.bf16.msra.mxu0 %v5125
  %8116 = vmatpush.bf16.msra.mxu0 %v5123
  %8117 = vmatpush.bf16.msra.mxu0 %v5121
  %8118 = vmatpush.bf16.msra.mxu0 %v5119
  %8119 = vmatpush.bf16.msra.mxu0 %v5117
  %8120 = vmatmul.bf16.gmra.mxu0 %v3851
  %v8121 = vpop.f32.mrf.mxu0
  %v8122 = vadd.f32 %v8108, %v8121
  %v8123 = vpop.f32.mrf.mxu0
  %v8124 = vadd.f32 %v8110, %v8123
  %8125 = vdwg.mxu0
  %8126 = vmatpush.bf16.msra.mxu0 %v5147
  %8127 = vmatpush.bf16.msra.mxu0 %v5145
  %8128 = vmatpush.bf16.msra.mxu0 %v5143
  %8129 = vmatpush.bf16.msra.mxu0 %v5141
  %8130 = vmatpush.bf16.msra.mxu0 %v5139
  %8131 = vmatpush.bf16.msra.mxu0 %v5137
  %8132 = vmatpush.bf16.msra.mxu0 %v5135
  %8133 = vmatpush.bf16.msra.mxu0 %v5133
  %8134 = vmatmul.bf16.gmra.mxu0 %v3857
  %v8135 = vpop.f32.mrf.mxu0
  %v8136 = vadd.f32 %v8122, %v8135
  %v8137 = vpop.f32.mrf.mxu0
  %v8138 = vadd.f32 %v8124, %v8137
  %8139 = vdwg.mxu0
  %8140 = vmatpush.bf16.msra.mxu0 %v5163
  %8141 = vmatpush.bf16.msra.mxu0 %v5161
  %8142 = vmatpush.bf16.msra.mxu0 %v5159
  %8143 = vmatpush.bf16.msra.mxu0 %v5157
  %8144 = vmatpush.bf16.msra.mxu0 %v5155
  %8145 = vmatpush.bf16.msra.mxu0 %v5153
  %8146 = vmatpush.bf16.msra.mxu0 %v5151
  %8147 = vmatpush.bf16.msra.mxu0 %v5149
  %8148 = vmatmul.bf16.gmra.mxu0 %v6618
  %v8149 = vpop.f32.mrf.mxu0
  %v8150 = vadd.f32 %v8136, %v8149
  %v8151 = vpop.f32.mrf.mxu0
  %v8152 = vadd.f32 %v8138, %v8151
  %8153 = vdwg.mxu0
  %8154 = vmatpush.bf16.msra.mxu0 %v5179
  %8155 = vmatpush.bf16.msra.mxu0 %v5177
  %8156 = vmatpush.bf16.msra.mxu0 %v5175
  %8157 = vmatpush.bf16.msra.mxu0 %v5173
  %8158 = vmatpush.bf16.msra.mxu0 %v5171
  %8159 = vmatpush.bf16.msra.mxu0 %v5169
  %8160 = vmatpush.bf16.msra.mxu0 %v5167
  %8161 = vmatpush.bf16.msra.mxu0 %v5165
  %8162 = vmatmul.bf16.gmra.mxu0 0
  %v8163 = vpop.f32.mrf.mxu0
  %v8164 = vadd.f32 %v8150, %v8163
  %v8165 = vpop.f32.mrf.mxu0
  %v8166 = vadd.f32 %v8152, %v8165
  %8167 = vdwg.mxu0
  %8168 = vmatpush.bf16.msra.mxu0 %v5195
  %8169 = vmatpush.bf16.msra.mxu0 %v5193
  %8170 = vmatpush.bf16.msra.mxu0 %v5191
  %8171 = vmatpush.bf16.msra.mxu0 %v5189
  %8172 = vmatpush.bf16.msra.mxu0 %v5187
  %8173 = vmatpush.bf16.msra.mxu0 %v5185
  %8174 = vmatpush.bf16.msra.mxu0 %v5183
  %8175 = vmatpush.bf16.msra.mxu0 %v5181
  %8176 = vmatmul.bf16.gmra.mxu0 %v3863
  %v8177 = vpop.f32.mrf.mxu0
  %v8178 = vadd.f32 %v8164, %v8177
  %v8179 = vpop.f32.mrf.mxu0
  %v8180 = vadd.f32 %v8166, %v8179
  %8181 = vdwg.mxu0
  %8182 = vmatpush.bf16.msra.mxu0 %v5211
  %8183 = vmatpush.bf16.msra.mxu0 %v5209
  %8184 = vmatpush.bf16.msra.mxu0 %v5207
  %8185 = vmatpush.bf16.msra.mxu0 %v5205
  %8186 = vmatpush.bf16.msra.mxu0 %v5203
  %8187 = vmatpush.bf16.msra.mxu0 %v5201
  %8188 = vmatpush.bf16.msra.mxu0 %v5199
  %8189 = vmatpush.bf16.msra.mxu0 %v5197
  %8190 = vmatmul.bf16.gmra.mxu0 %v3869
  %v8191 = vpop.f32.mrf.mxu0
  %v8192 = vadd.f32 %v8178, %v8191
  %v8193 = vpop.f32.mrf.mxu0
  %v8194 = vadd.f32 %v8180, %v8193
  %8195 = vdwg.mxu0
  %8196 = vmatpush.bf16.msra.mxu0 %v5227
  %8197 = vmatpush.bf16.msra.mxu0 %v5225
  %8198 = vmatpush.bf16.msra.mxu0 %v5223
  %8199 = vmatpush.bf16.msra.mxu0 %v5221
  %8200 = vmatpush.bf16.msra.mxu0 %v5219
  %8201 = vmatpush.bf16.msra.mxu0 %v5217
  %8202 = vmatpush.bf16.msra.mxu0 %v5215
  %8203 = vmatpush.bf16.msra.mxu0 %v5213
  %8204 = vmatmul.bf16.gmra.mxu0 %v3875
  %v8205 = vpop.f32.mrf.mxu0
  %v8206 = vadd.f32 %v8192, %v8205
  %v8207 = vpop.f32.mrf.mxu0
  %v8208 = vadd.f32 %v8194, %v8207
  %8209 = vdwg.mxu0
  %8210 = vmatpush.bf16.msra.mxu0 %v5243
  %8211 = vmatpush.bf16.msra.mxu0 %v5241
  %8212 = vmatpush.bf16.msra.mxu0 %v5239
  %8213 = vmatpush.bf16.msra.mxu0 %v5237
  %8214 = vmatpush.bf16.msra.mxu0 %v5235
  %8215 = vmatpush.bf16.msra.mxu0 %v5233
  %8216 = vmatpush.bf16.msra.mxu0 %v5231
  %8217 = vmatpush.bf16.msra.mxu0 %v5229
  %8218 = vmatmul.bf16.gmra.mxu0 %v6624
  %v8219 = vpop.f32.mrf.mxu0
  %v8220 = vadd.f32 %v8206, %v8219
  %v8221 = vpop.f32.mrf.mxu0
  %v8222 = vadd.f32 %v8208, %v8221
  %8223 = vdwg.mxu0
  %8224 = vmatpush.bf16.msra.mxu0 %v5259
  %8225 = vmatpush.bf16.msra.mxu0 %v5257
  %8226 = vmatpush.bf16.msra.mxu0 %v5255
  %8227 = vmatpush.bf16.msra.mxu0 %v5253
  %8228 = vmatpush.bf16.msra.mxu0 %v5251
  %8229 = vmatpush.bf16.msra.mxu0 %v5249
  %8230 = vmatpush.bf16.msra.mxu0 %v5247
  %8231 = vmatpush.bf16.msra.mxu0 %v5245
  %8232 = vmatmul.bf16.gmra.mxu0 0
  %v8233 = vpop.f32.mrf.mxu0
  %v8234 = vadd.f32 %v8220, %v8233
  %v8235 = vpop.f32.mrf.mxu0
  %v8236 = vadd.f32 %v8222, %v8235
  %8237 = vdwg.mxu0
  %8238 = vmatpush.bf16.msra.mxu0 %v5275
  %8239 = vmatpush.bf16.msra.mxu0 %v5273
  %8240 = vmatpush.bf16.msra.mxu0 %v5271
  %8241 = vmatpush.bf16.msra.mxu0 %v5269
  %8242 = vmatpush.bf16.msra.mxu0 %v5267
  %8243 = vmatpush.bf16.msra.mxu0 %v5265
  %8244 = vmatpush.bf16.msra.mxu0 %v5263
  %8245 = vmatpush.bf16.msra.mxu0 %v5261
  %8246 = vmatmul.bf16.gmra.mxu0 %v3881
  %v8247 = vpop.f32.mrf.mxu0
  %v8248 = vadd.f32 %v8234, %v8247
  %v8249 = vpop.f32.mrf.mxu0
  %v8250 = vadd.f32 %v8236, %v8249
  %8251 = vdwg.mxu0
  %8252 = vmatpush.bf16.msra.mxu0 %v5291
  %8253 = vmatpush.bf16.msra.mxu0 %v5289
  %8254 = vmatpush.bf16.msra.mxu0 %v5287
  %8255 = vmatpush.bf16.msra.mxu0 %v5285
  %8256 = vmatpush.bf16.msra.mxu0 %v5283
  %8257 = vmatpush.bf16.msra.mxu0 %v5281
  %8258 = vmatpush.bf16.msra.mxu0 %v5279
  %8259 = vmatpush.bf16.msra.mxu0 %v5277
  %8260 = vmatmul.bf16.gmra.mxu0 %v3887
  %v8261 = vpop.f32.mrf.mxu0
  %v8262 = vadd.f32 %v8248, %v8261
  %v8263 = vpop.f32.mrf.mxu0
  %v8264 = vadd.f32 %v8250, %v8263
  %8265 = vdwg.mxu0
  %8266 = vmatpush.bf16.msra.mxu0 %v5307
  %8267 = vmatpush.bf16.msra.mxu0 %v5305
  %8268 = vmatpush.bf16.msra.mxu0 %v5303
  %8269 = vmatpush.bf16.msra.mxu0 %v5301
  %8270 = vmatpush.bf16.msra.mxu0 %v5299
  %8271 = vmatpush.bf16.msra.mxu0 %v5297
  %8272 = vmatpush.bf16.msra.mxu0 %v5295
  %8273 = vmatpush.bf16.msra.mxu0 %v5293
  %8274 = vmatmul.bf16.gmra.mxu0 %v3893
  %v8275 = vpop.f32.mrf.mxu0
  %v8276 = vadd.f32 %v8262, %v8275
  %v8277 = vpop.f32.mrf.mxu0
  %v8278 = vadd.f32 %v8264, %v8277
  %8279 = vdwg.mxu0
  %8280 = vmatpush.bf16.msra.mxu0 %v5323
  %8281 = vmatpush.bf16.msra.mxu0 %v5321
  %8282 = vmatpush.bf16.msra.mxu0 %v5319
  %8283 = vmatpush.bf16.msra.mxu0 %v5317
  %8284 = vmatpush.bf16.msra.mxu0 %v5315
  %8285 = vmatpush.bf16.msra.mxu0 %v5313
  %8286 = vmatpush.bf16.msra.mxu0 %v5311
  %8287 = vmatpush.bf16.msra.mxu0 %v5309
  %8288 = vmatmul.bf16.gmra.mxu0 %v6630
  %v8289 = vpop.f32.mrf.mxu0
  %v8290 = vadd.f32 %v8276, %v8289
  %v8291 = vpop.f32.mrf.mxu0
  %v8292 = vadd.f32 %v8278, %v8291
  %8293 = vdwg.mxu0
  %8294 = vmatpush.bf16.msra.mxu0 %v5339
  %8295 = vmatpush.bf16.msra.mxu0 %v5337
  %8296 = vmatpush.bf16.msra.mxu0 %v5335
  %8297 = vmatpush.bf16.msra.mxu0 %v5333
  %8298 = vmatpush.bf16.msra.mxu0 %v5331
  %8299 = vmatpush.bf16.msra.mxu0 %v5329
  %8300 = vmatpush.bf16.msra.mxu0 %v5327
  %8301 = vmatpush.bf16.msra.mxu0 %v5325
  %8302 = vmatmul.bf16.gmra.mxu0 0
  %v8303 = vpop.f32.mrf.mxu0
  %v8304 = vadd.f32 %v8290, %v8303
  %v8305 = vpop.f32.mrf.mxu0
  %v8306 = vadd.f32 %v8292, %v8305
  %8307 = vdwg.mxu0
  %8308 = vmatpush.bf16.msra.mxu0 %v5355
  %8309 = vmatpush.bf16.msra.mxu0 %v5353
  %8310 = vmatpush.bf16.msra.mxu0 %v5351
  %8311 = vmatpush.bf16.msra.mxu0 %v5349
  %8312 = vmatpush.bf16.msra.mxu0 %v5347
  %8313 = vmatpush.bf16.msra.mxu0 %v5345
  %8314 = vmatpush.bf16.msra.mxu0 %v5343
  %8315 = vmatpush.bf16.msra.mxu0 %v5341
  %8316 = vmatmul.bf16.gmra.mxu0 %v7070
  %v8317 = vpop.f32.mrf.mxu0
  %v8318 = vadd.f32 %v8304, %v8317
  %v8319 = vpop.f32.mrf.mxu0
  %v8320 = vadd.f32 %v8306, %v8319
  %8321 = vdwg.mxu0
  %8322 = vmatpush.bf16.msra.mxu0 %v5371
  %8323 = vmatpush.bf16.msra.mxu0 %v5369
  %8324 = vmatpush.bf16.msra.mxu0 %v5367
  %8325 = vmatpush.bf16.msra.mxu0 %v5365
  %8326 = vmatpush.bf16.msra.mxu0 %v5363
  %8327 = vmatpush.bf16.msra.mxu0 %v5361
  %8328 = vmatpush.bf16.msra.mxu0 %v5359
  %8329 = vmatpush.bf16.msra.mxu0 %v5357
  %8330 = vmatmul.bf16.gmra.mxu0 %v7076
  %v8331 = vpop.f32.mrf.mxu0
  %v8332 = vadd.f32 %v8318, %v8331
  %v8333 = vpop.f32.mrf.mxu0
  %v8334 = vadd.f32 %v8320, %v8333
  %8335 = vdwg.mxu0
  %8336 = vmatpush.bf16.msra.mxu0 %v5387
  %8337 = vmatpush.bf16.msra.mxu0 %v5385
  %8338 = vmatpush.bf16.msra.mxu0 %v5383
  %8339 = vmatpush.bf16.msra.mxu0 %v5381
  %8340 = vmatpush.bf16.msra.mxu0 %v5379
  %8341 = vmatpush.bf16.msra.mxu0 %v5377
  %8342 = vmatpush.bf16.msra.mxu0 %v5375
  %8343 = vmatpush.bf16.msra.mxu0 %v5373
  %8344 = vmatmul.bf16.gmra.mxu0 %v7082
  %v8345 = vpop.f32.mrf.mxu0
  %v8346 = vadd.f32 %v8332, %v8345
  %v8347 = vpop.f32.mrf.mxu0
  %v8348 = vadd.f32 %v8334, %v8347
  %8349 = vdwg.mxu0
  %8350 = vmatpush.bf16.msra.mxu0 %v5403
  %8351 = vmatpush.bf16.msra.mxu0 %v5401
  %8352 = vmatpush.bf16.msra.mxu0 %v5399
  %8353 = vmatpush.bf16.msra.mxu0 %v5397
  %8354 = vmatpush.bf16.msra.mxu0 %v5395
  %8355 = vmatpush.bf16.msra.mxu0 %v5393
  %8356 = vmatpush.bf16.msra.mxu0 %v5391
  %8357 = vmatpush.bf16.msra.mxu0 %v5389
  %8358 = vmatmul.bf16.gmra.mxu0 %v7746
  %v8359 = vpop.f32.mrf.mxu0
  %v8360 = vadd.f32 %v8346, %v8359
  %v8361 = vpop.f32.mrf.mxu0
  %v8362 = vadd.f32 %v8348, %v8361
  %8363 = vdwg.mxu0
  %8364 = vmatpush.bf16.msra.mxu0 %v5419
  %8365 = vmatpush.bf16.msra.mxu0 %v5417
  %8366 = vmatpush.bf16.msra.mxu0 %v5415
  %8367 = vmatpush.bf16.msra.mxu0 %v5413
  %8368 = vmatpush.bf16.msra.mxu0 %v5411
  %8369 = vmatpush.bf16.msra.mxu0 %v5409
  %8370 = vmatpush.bf16.msra.mxu0 %v5407
  %8371 = vmatpush.bf16.msra.mxu0 %v5405
  %8372 = vmatmul.bf16.gmra.mxu0 0
  %v8373 = vpop.f32.mrf.mxu0
  %v8374 = vadd.f32 %v8360, %v8373
  %v8375 = vpop.f32.mrf.mxu0
  %v8376 = vadd.f32 %v8362, %v8375
  %8377 = vdwg.mxu0
  %8378 = vmatpush.bf16.msra.mxu0 %v5435
  %8379 = vmatpush.bf16.msra.mxu0 %v5433
  %8380 = vmatpush.bf16.msra.mxu0 %v5431
  %8381 = vmatpush.bf16.msra.mxu0 %v5429
  %8382 = vmatpush.bf16.msra.mxu0 %v5427
  %8383 = vmatpush.bf16.msra.mxu0 %v5425
  %8384 = vmatpush.bf16.msra.mxu0 %v5423
  %8385 = vmatpush.bf16.msra.mxu0 %v5421
  %8386 = vmatmul.bf16.gmra.mxu0 0
  %v8387 = vpop.f32.mrf.mxu0
  %v8388 = vadd.f32 %v8374, %v8387
  %v8389 = vpop.f32.mrf.mxu0
  %v8390 = vadd.f32 %v8376, %v8389
  %8391 = vdwg.mxu0
  %8392 = vmatpush.bf16.msra.mxu0 %v5451
  %8393 = vmatpush.bf16.msra.mxu0 %v5449
  %8394 = vmatpush.bf16.msra.mxu0 %v5447
  %8395 = vmatpush.bf16.msra.mxu0 %v5445
  %8396 = vmatpush.bf16.msra.mxu0 %v5443
  %8397 = vmatpush.bf16.msra.mxu0 %v5441
  %8398 = vmatpush.bf16.msra.mxu0 %v5439
  %8399 = vmatpush.bf16.msra.mxu0 %v5437
  %8400 = vmatmul.bf16.gmra.mxu0 0
  %v8401 = vpop.f32.mrf.mxu0
  %v8402 = vadd.f32 %v8388, %v8401
  %v8403 = vpop.f32.mrf.mxu0
  %v8404 = vadd.f32 %v8390, %v8403
  %8405 = vdwg.mxu0
  %8406 = vmatpush.bf16.msra.mxu0 %v5467
  %8407 = vmatpush.bf16.msra.mxu0 %v5465
  %8408 = vmatpush.bf16.msra.mxu0 %v5463
  %8409 = vmatpush.bf16.msra.mxu0 %v5461
  %8410 = vmatpush.bf16.msra.mxu0 %v5459
  %8411 = vmatpush.bf16.msra.mxu0 %v5457
  %8412 = vmatpush.bf16.msra.mxu0 %v5455
  %8413 = vmatpush.bf16.msra.mxu0 %v5453
  %8414 = vmatmul.bf16.gmra.mxu0 0
  %v8415 = vpop.f32.mrf.mxu0
  %v8416 = vadd.f32 %v8402, %v8415
  %v8417 = vpop.f32.mrf.mxu0
  %v8418 = vadd.f32 %v8404, %v8417
  %8419 = vdwg.mxu0
  %8420 = vmatpush.bf16.msra.mxu0 %v5483
  %8421 = vmatpush.bf16.msra.mxu0 %v5481
  %8422 = vmatpush.bf16.msra.mxu0 %v5479
  %8423 = vmatpush.bf16.msra.mxu0 %v5477
  %8424 = vmatpush.bf16.msra.mxu0 %v5475
  %8425 = vmatpush.bf16.msra.mxu0 %v5473
  %8426 = vmatpush.bf16.msra.mxu0 %v5471
  %8427 = vmatpush.bf16.msra.mxu0 %v5469
  %8428 = vmatmul.bf16.gmra.mxu0 0
  %v8429 = vpop.f32.mrf.mxu0
  %v8430 = vadd.f32 %v8416, %v8429
  %v8431 = vpop.f32.mrf.mxu0
  %v8432 = vadd.f32 %v8418, %v8431
  %8433 = vdwg.mxu0
  %8434 = vmatpush.bf16.msra.mxu0 %v5499
  %8435 = vmatpush.bf16.msra.mxu0 %v5497
  %8436 = vmatpush.bf16.msra.mxu0 %v5495
  %8437 = vmatpush.bf16.msra.mxu0 %v5493
  %8438 = vmatpush.bf16.msra.mxu0 %v5491
  %8439 = vmatpush.bf16.msra.mxu0 %v5489
  %8440 = vmatpush.bf16.msra.mxu0 %v5487
  %8441 = vmatpush.bf16.msra.mxu0 %v5485
  %8442 = vmatmul.bf16.gmra.mxu0 0
  %v8443 = vpop.f32.mrf.mxu0
  %v8444 = vadd.f32 %v8430, %v8443
  %v8445 = vpop.f32.mrf.mxu0
  %v8446 = vadd.f32 %v8432, %v8445
  %8447 = vdwg.mxu0
  %vm8448 = vcmp.ge.f32.partialorder %v8094, 0.0
  %vm8449 = vcmp.ge.f32.partialorder %v8444, 0.0
  %vm8450 = vcmp.ge.f32.partialorder %v8096, 0.0
  %vm8451 = vcmp.ge.f32.partialorder %v8446, 0.0
  %v8452 = vmul.f32 %v8094, 0.2
  %v8453 = vmul.f32 %v8444, 0.2
  %v8454 = vmul.f32 %v8096, 0.2
  %v8455 = vmul.f32 %v8446, 0.2
  %v8456 = vsel %vm8448, %v8094, %v8452
  %v8457 = vsel %vm8449, %v8444, %v8453
  %v8458 = vsel %vm8450, %v8096, %v8454
  %v8459 = vsel %vm8451, %v8446, %v8455
  %v8460 = vpack.c.bf16 %v8457, %v8456
  %v8461 = vpack.c.bf16 %v8459, %v8458
  %v8462 = vld [vmem:[%s5] sm:$0xff]
  %v8463 = vld [vmem:[%s5 + $0x8] sm:$0xff]
  %v8464 = vld [vmem:[%s5 + $0x10] sm:$0xff]
  %v8465 = vld [vmem:[%s5 + $0x18] sm:$0xff]
  %v8466 = vld [vmem:[%s5 + $0x20] sm:$0xff]
  %v8467 = vld [vmem:[%s5 + $0x28] sm:$0xff]
  %v8468 = vld [vmem:[%s5 + $0x30] sm:$0xff]
  %v8469 = vld [vmem:[%s5 + $0x38] sm:$0xff]
  %v8470 = vld [vmem:[%s5 + $0x40] sm:$0xff]
  %v8471 = vld [vmem:[%s5 + $0x48] sm:$0xff]
  %v8472 = vld [vmem:[%s5 + $0x50] sm:$0xff]
  %v8473 = vld [vmem:[%s5 + $0x58] sm:$0xff]
  %v8474 = vld [vmem:[%s5 + $0x60] sm:$0xff]
  %v8475 = vld [vmem:[%s5 + $0x68] sm:$0xff]
  %v8476 = vld [vmem:[%s5 + $0x70] sm:$0xff]
  %v8477 = vld [vmem:[%s5 + $0x78] sm:$0xff]
  %v8478 = vld [vmem:[%s5 + $0x80] sm:$0xff]
  %v8479 = vld [vmem:[%s5 + $0x88] sm:$0xff]
  %v8480 = vld [vmem:[%s5 + $0x90] sm:$0xff]
  %v8481 = vld [vmem:[%s5 + $0x98] sm:$0xff]
  %v8482 = vld [vmem:[%s5 + $0xa0] sm:$0xff]
  %v8483 = vld [vmem:[%s5 + $0xa8] sm:$0xff]
  %v8484 = vld [vmem:[%s5 + $0xb0] sm:$0xff]
  %v8485 = vld [vmem:[%s5 + $0xb8] sm:$0xff]
  %v8486 = vld [vmem:[%s5 + $0xc0] sm:$0xff]
  %v8487 = vld [vmem:[%s5 + $0xc8] sm:$0xff]
  %v8488 = vld [vmem:[%s5 + $0xd0] sm:$0xff]
  %v8489 = vld [vmem:[%s5 + $0xd8] sm:$0xff]
  %v8490 = vld [vmem:[%s5 + $0xe0] sm:$0xff]
  %v8491 = vld [vmem:[%s5 + $0xe8] sm:$0xff]
  %v8492 = vld [vmem:[%s5 + $0xf0] sm:$0xff]
  %v8493 = vld [vmem:[%s5 + $0xf8] sm:$0xff]
  %v8494 = vld [vmem:[%s5 + $0x100] sm:$0xff]
  %v8495 = vld [vmem:[%s5 + $0x108] sm:$0xff]
  %v8496 = vld [vmem:[%s5 + $0x110] sm:$0xff]
  %v8497 = vld [vmem:[%s5 + $0x118] sm:$0xff]
  %v8498 = vld [vmem:[%s5 + $0x120] sm:$0xff]
  %v8499 = vld [vmem:[%s5 + $0x128] sm:$0xff]
  %v8500 = vld [vmem:[%s5 + $0x130] sm:$0xff]
  %v8501 = vld [vmem:[%s5 + $0x138] sm:$0xff]
  %v8502 = vld [vmem:[%s5 + $0x140] sm:$0xff]
  %v8503 = vld [vmem:[%s5 + $0x148] sm:$0xff]
  %v8504 = vld [vmem:[%s5 + $0x150] sm:$0xff]
  %v8505 = vld [vmem:[%s5 + $0x158] sm:$0xff]
  %v8506 = vld [vmem:[%s5 + $0x160] sm:$0xff]
  %v8507 = vld [vmem:[%s5 + $0x168] sm:$0xff]
  %v8508 = vld [vmem:[%s5 + $0x170] sm:$0xff]
  %v8509 = vld [vmem:[%s5 + $0x178] sm:$0xff]
  %v8510 = vld [vmem:[%s5 + $0x180] sm:$0xff]
  %v8511 = vld [vmem:[%s5 + $0x188] sm:$0xff]
  %v8512 = vld [vmem:[%s5 + $0x190] sm:$0xff]
  %v8513 = vld [vmem:[%s5 + $0x198] sm:$0xff]
  %v8514 = vld [vmem:[%s5 + $0x1a0] sm:$0xff]
  %v8515 = vld [vmem:[%s5 + $0x1a8] sm:$0xff]
  %v8516 = vld [vmem:[%s5 + $0x1b0] sm:$0xff]
  %v8517 = vld [vmem:[%s5 + $0x1b8] sm:$0xff]
  %v8518 = vld [vmem:[%s5 + $0x1c0] sm:$0xff]
  %v8519 = vld [vmem:[%s5 + $0x1c8] sm:$0xff]
  %v8520 = vld [vmem:[%s5 + $0x1d0] sm:$0xff]
  %v8521 = vld [vmem:[%s5 + $0x1d8] sm:$0xff]
  %v8522 = vld [vmem:[%s5 + $0x1e0] sm:$0xff]
  %v8523 = vld [vmem:[%s5 + $0x1e8] sm:$0xff]
  %v8524 = vld [vmem:[%s5 + $0x1f0] sm:$0xff]
  %v8525 = vld [vmem:[%s5 + $0x1f8] sm:$0xff]
  %v8526 = vld [vmem:[%s5 + $0x200] sm:$0xff]
  %v8527 = vld [vmem:[%s5 + $0x208] sm:$0xff]
  %v8528 = vld [vmem:[%s5 + $0x210] sm:$0xff]
  %v8529 = vld [vmem:[%s5 + $0x218] sm:$0xff]
  %v8530 = vld [vmem:[%s5 + $0x220] sm:$0xff]
  %v8531 = vld [vmem:[%s5 + $0x228] sm:$0xff]
  %v8532 = vld [vmem:[%s5 + $0x230] sm:$0xff]
  %v8533 = vld [vmem:[%s5 + $0x238] sm:$0xff]
  %v8534 = vld [vmem:[%s5 + $0x240] sm:$0xff]
  %v8535 = vld [vmem:[%s5 + $0x248] sm:$0xff]
  %v8536 = vld [vmem:[%s5 + $0x250] sm:$0xff]
  %v8537 = vld [vmem:[%s5 + $0x258] sm:$0xff]
  %v8538 = vld [vmem:[%s5 + $0x260] sm:$0xff]
  %v8539 = vld [vmem:[%s5 + $0x268] sm:$0xff]
  %v8540 = vld [vmem:[%s5 + $0x270] sm:$0xff]
  %v8541 = vld [vmem:[%s5 + $0x278] sm:$0xff]
  %v8542 = vld [vmem:[%s5 + $0x280] sm:$0xff]
  %v8543 = vld [vmem:[%s5 + $0x288] sm:$0xff]
  %v8544 = vld [vmem:[%s5 + $0x290] sm:$0xff]
  %v8545 = vld [vmem:[%s5 + $0x298] sm:$0xff]
  %v8546 = vld [vmem:[%s5 + $0x2a0] sm:$0xff]
  %v8547 = vld [vmem:[%s5 + $0x2a8] sm:$0xff]
  %v8548 = vld [vmem:[%s5 + $0x2b0] sm:$0xff]
  %v8549 = vld [vmem:[%s5 + $0x2b8] sm:$0xff]
  %v8550 = vld [vmem:[%s5 + $0x2c0] sm:$0xff]
  %v8551 = vld [vmem:[%s5 + $0x2c8] sm:$0xff]
  %v8552 = vld [vmem:[%s5 + $0x2d0] sm:$0xff]
  %v8553 = vld [vmem:[%s5 + $0x2d8] sm:$0xff]
  %v8554 = vld [vmem:[%s5 + $0x2e0] sm:$0xff]
  %v8555 = vld [vmem:[%s5 + $0x2e8] sm:$0xff]
  %v8556 = vld [vmem:[%s5 + $0x2f0] sm:$0xff]
  %v8557 = vld [vmem:[%s5 + $0x2f8] sm:$0xff]
  %v8558 = vld [vmem:[%s5 + $0x300] sm:$0xff]
  %v8559 = vld [vmem:[%s5 + $0x308] sm:$0xff]
  %v8560 = vld [vmem:[%s5 + $0x310] sm:$0xff]
  %v8561 = vld [vmem:[%s5 + $0x318] sm:$0xff]
  %v8562 = vld [vmem:[%s5 + $0x320] sm:$0xff]
  %v8563 = vld [vmem:[%s5 + $0x328] sm:$0xff]
  %v8564 = vld [vmem:[%s5 + $0x330] sm:$0xff]
  %v8565 = vld [vmem:[%s5 + $0x338] sm:$0xff]
  %v8566 = vld [vmem:[%s5 + $0x340] sm:$0xff]
  %v8567 = vld [vmem:[%s5 + $0x348] sm:$0xff]
  %v8568 = vld [vmem:[%s5 + $0x350] sm:$0xff]
  %v8569 = vld [vmem:[%s5 + $0x358] sm:$0xff]
  %v8570 = vld [vmem:[%s5 + $0x360] sm:$0xff]
  %v8571 = vld [vmem:[%s5 + $0x368] sm:$0xff]
  %v8572 = vld [vmem:[%s5 + $0x370] sm:$0xff]
  %v8573 = vld [vmem:[%s5 + $0x378] sm:$0xff]
  %v8574 = vld [vmem:[%s5 + $0x380] sm:$0xff]
  %v8575 = vld [vmem:[%s5 + $0x388] sm:$0xff]
  %v8576 = vld [vmem:[%s5 + $0x390] sm:$0xff]
  %v8577 = vld [vmem:[%s5 + $0x398] sm:$0xff]
  %v8578 = vld [vmem:[%s5 + $0x3a0] sm:$0xff]
  %v8579 = vld [vmem:[%s5 + $0x3a8] sm:$0xff]
  %v8580 = vld [vmem:[%s5 + $0x3b0] sm:$0xff]
  %v8581 = vld [vmem:[%s5 + $0x3b8] sm:$0xff]
  %v8582 = vld [vmem:[%s5 + $0x3c0] sm:$0xff]
  %v8583 = vld [vmem:[%s5 + $0x3c8] sm:$0xff]
  %v8584 = vld [vmem:[%s5 + $0x3d0] sm:$0xff]
  %v8585 = vld [vmem:[%s5 + $0x3d8] sm:$0xff]
  %v8586 = vld [vmem:[%s5 + $0x3e0] sm:$0xff]
  %v8587 = vld [vmem:[%s5 + $0x3e8] sm:$0xff]
  %v8588 = vld [vmem:[%s5 + $0x3f0] sm:$0xff]
  %v8589 = vld [vmem:[%s5 + $0x3f8] sm:$0xff]
  %v8590 = vld [vmem:[%s6] sm:$0x3]
  %v8593 = vunpack.c.l.b16 %v6612
  %v8594 = vunpack.c.h.b16 %v6612
  %v8595 = vunpack.c.l.b16 %v6613
  %v8596 = vunpack.c.h.b16 %v6613
  %v8597 = vpack.c.b16 %v8595, %v8593
  %v8598 = vpack.c.b16 %v8596, %v8594
  %v8603 = vunpack.c.l.b16 %v7064
  %v8604 = vunpack.c.h.b16 %v7064
  %v8605 = vunpack.c.l.b16 %v7065
  %v8606 = vunpack.c.h.b16 %v7065
  %v8607 = vpack.c.b16 %v8605, %v8603
  %v8608 = vpack.c.b16 %v8606, %v8604
  %v8613 = vunpack.c.l.b16 %v7740
  %v8614 = vunpack.c.h.b16 %v7740
  %v8615 = vunpack.c.l.b16 %v7741
  %v8616 = vunpack.c.h.b16 %v7741
  %v8617 = vpack.c.b16 %v8615, %v8613
  %v8618 = vpack.c.b16 %v8616, %v8614
  %v8623 = vunpack.c.l.b16 %v8460
  %v8624 = vunpack.c.h.b16 %v8460
  %v8625 = vunpack.c.l.b16 %v8461
  %v8626 = vunpack.c.h.b16 %v8461
  %v8627 = vpack.c.b16 %v8625, %v8623
  %v8628 = vpack.c.b16 %v8626, %v8624
  %v8632 = vperm.slane %v8590, 0
  %v8633 = vperm.slane %v8590, 1
  %v8764 = vunpack.c.l.b16 %v8462
  %v8765 = vunpack.c.h.b16 %v8462
  %v8766 = vunpack.c.l.b16 %v8463
  %v8767 = vunpack.c.h.b16 %v8463
  %v8768 = vunpack.c.l.b16 %v8464
  %v8769 = vunpack.c.h.b16 %v8464
  %v8770 = vunpack.c.l.b16 %v8465
  %v8771 = vunpack.c.h.b16 %v8465
  %v8772 = vunpack.c.l.b16 %v8466
  %v8773 = vunpack.c.h.b16 %v8466
  %v8774 = vunpack.c.l.b16 %v8467
  %v8775 = vunpack.c.h.b16 %v8467
  %v8776 = vunpack.c.l.b16 %v8468
  %v8777 = vunpack.c.h.b16 %v8468
  %v8778 = vunpack.c.l.b16 %v8469
  %v8779 = vunpack.c.h.b16 %v8469
  %v8780 = vunpack.c.l.b16 %v8470
  %v8781 = vunpack.c.h.b16 %v8470
  %v8782 = vunpack.c.l.b16 %v8471
  %v8783 = vunpack.c.h.b16 %v8471
  %v8784 = vunpack.c.l.b16 %v8472
  %v8785 = vunpack.c.h.b16 %v8472
  %v8786 = vunpack.c.l.b16 %v8473
  %v8787 = vunpack.c.h.b16 %v8473
  %v8788 = vunpack.c.l.b16 %v8474
  %v8789 = vunpack.c.h.b16 %v8474
  %v8790 = vunpack.c.l.b16 %v8475
  %v8791 = vunpack.c.h.b16 %v8475
  %v8792 = vunpack.c.l.b16 %v8476
  %v8793 = vunpack.c.h.b16 %v8476
  %v8794 = vunpack.c.l.b16 %v8477
  %v8795 = vunpack.c.h.b16 %v8477
  %v8796 = vunpack.c.l.b16 %v8478
  %v8797 = vunpack.c.h.b16 %v8478
  %v8798 = vunpack.c.l.b16 %v8479
  %v8799 = vunpack.c.h.b16 %v8479
  %v8800 = vunpack.c.l.b16 %v8480
  %v8801 = vunpack.c.h.b16 %v8480
  %v8802 = vunpack.c.l.b16 %v8481
  %v8803 = vunpack.c.h.b16 %v8481
  %v8804 = vunpack.c.l.b16 %v8482
  %v8805 = vunpack.c.h.b16 %v8482
  %v8806 = vunpack.c.l.b16 %v8483
  %v8807 = vunpack.c.h.b16 %v8483
  %v8808 = vunpack.c.l.b16 %v8484
  %v8809 = vunpack.c.h.b16 %v8484
  %v8810 = vunpack.c.l.b16 %v8485
  %v8811 = vunpack.c.h.b16 %v8485
  %v8812 = vunpack.c.l.b16 %v8486
  %v8813 = vunpack.c.h.b16 %v8486
  %v8814 = vunpack.c.l.b16 %v8487
  %v8815 = vunpack.c.h.b16 %v8487
  %v8816 = vunpack.c.l.b16 %v8488
  %v8817 = vunpack.c.h.b16 %v8488
  %v8818 = vunpack.c.l.b16 %v8489
  %v8819 = vunpack.c.h.b16 %v8489
  %v8820 = vunpack.c.l.b16 %v8490
  %v8821 = vunpack.c.h.b16 %v8490
  %v8822 = vunpack.c.l.b16 %v8491
  %v8823 = vunpack.c.h.b16 %v8491
  %v8824 = vunpack.c.l.b16 %v8492
  %v8825 = vunpack.c.h.b16 %v8492
  %v8826 = vunpack.c.l.b16 %v8493
  %v8827 = vunpack.c.h.b16 %v8493
  %v8828 = vunpack.c.l.b16 %v8494
  %v8829 = vunpack.c.h.b16 %v8494
  %v8830 = vunpack.c.l.b16 %v8495
  %v8831 = vunpack.c.h.b16 %v8495
  %v8832 = vunpack.c.l.b16 %v8496
  %v8833 = vunpack.c.h.b16 %v8496
  %v8834 = vunpack.c.l.b16 %v8497
  %v8835 = vunpack.c.h.b16 %v8497
  %v8836 = vunpack.c.l.b16 %v8498
  %v8837 = vunpack.c.h.b16 %v8498
  %v8838 = vunpack.c.l.b16 %v8499
  %v8839 = vunpack.c.h.b16 %v8499
  %v8840 = vunpack.c.l.b16 %v8500
  %v8841 = vunpack.c.h.b16 %v8500
  %v8842 = vunpack.c.l.b16 %v8501
  %v8843 = vunpack.c.h.b16 %v8501
  %v8844 = vunpack.c.l.b16 %v8502
  %v8845 = vunpack.c.h.b16 %v8502
  %v8846 = vunpack.c.l.b16 %v8503
  %v8847 = vunpack.c.h.b16 %v8503
  %v8848 = vunpack.c.l.b16 %v8504
  %v8849 = vunpack.c.h.b16 %v8504
  %v8850 = vunpack.c.l.b16 %v8505
  %v8851 = vunpack.c.h.b16 %v8505
  %v8852 = vunpack.c.l.b16 %v8506
  %v8853 = vunpack.c.h.b16 %v8506
  %v8854 = vunpack.c.l.b16 %v8507
  %v8855 = vunpack.c.h.b16 %v8507
  %v8856 = vunpack.c.l.b16 %v8508
  %v8857 = vunpack.c.h.b16 %v8508
  %v8858 = vunpack.c.l.b16 %v8509
  %v8859 = vunpack.c.h.b16 %v8509
  %v8860 = vunpack.c.l.b16 %v8510
  %v8861 = vunpack.c.h.b16 %v8510
  %v8862 = vunpack.c.l.b16 %v8511
  %v8863 = vunpack.c.h.b16 %v8511
  %v8864 = vunpack.c.l.b16 %v8512
  %v8865 = vunpack.c.h.b16 %v8512
  %v8866 = vunpack.c.l.b16 %v8513
  %v8867 = vunpack.c.h.b16 %v8513
  %v8868 = vunpack.c.l.b16 %v8514
  %v8869 = vunpack.c.h.b16 %v8514
  %v8870 = vunpack.c.l.b16 %v8515
  %v8871 = vunpack.c.h.b16 %v8515
  %v8872 = vunpack.c.l.b16 %v8516
  %v8873 = vunpack.c.h.b16 %v8516
  %v8874 = vunpack.c.l.b16 %v8517
  %v8875 = vunpack.c.h.b16 %v8517
  %v8876 = vunpack.c.l.b16 %v8518
  %v8877 = vunpack.c.h.b16 %v8518
  %v8878 = vunpack.c.l.b16 %v8519
  %v8879 = vunpack.c.h.b16 %v8519
  %v8880 = vunpack.c.l.b16 %v8520
  %v8881 = vunpack.c.h.b16 %v8520
  %v8882 = vunpack.c.l.b16 %v8521
  %v8883 = vunpack.c.h.b16 %v8521
  %v8884 = vunpack.c.l.b16 %v8522
  %v8885 = vunpack.c.h.b16 %v8522
  %v8886 = vunpack.c.l.b16 %v8523
  %v8887 = vunpack.c.h.b16 %v8523
  %v8888 = vunpack.c.l.b16 %v8524
  %v8889 = vunpack.c.h.b16 %v8524
  %v8890 = vunpack.c.l.b16 %v8525
  %v8891 = vunpack.c.h.b16 %v8525
  %v8892 = vunpack.c.l.b16 %v8526
  %v8893 = vunpack.c.h.b16 %v8526
  %v8894 = vunpack.c.l.b16 %v8527
  %v8895 = vunpack.c.h.b16 %v8527
  %v8896 = vunpack.c.l.b16 %v8528
  %v8897 = vunpack.c.h.b16 %v8528
  %v8898 = vunpack.c.l.b16 %v8529
  %v8899 = vunpack.c.h.b16 %v8529
  %v8900 = vunpack.c.l.b16 %v8530
  %v8901 = vunpack.c.h.b16 %v8530
  %v8902 = vunpack.c.l.b16 %v8531
  %v8903 = vunpack.c.h.b16 %v8531
  %v8904 = vunpack.c.l.b16 %v8532
  %v8905 = vunpack.c.h.b16 %v8532
  %v8906 = vunpack.c.l.b16 %v8533
  %v8907 = vunpack.c.h.b16 %v8533
  %v8908 = vunpack.c.l.b16 %v8534
  %v8909 = vunpack.c.h.b16 %v8534
  %v8910 = vunpack.c.l.b16 %v8535
  %v8911 = vunpack.c.h.b16 %v8535
  %v8912 = vunpack.c.l.b16 %v8536
  %v8913 = vunpack.c.h.b16 %v8536
  %v8914 = vunpack.c.l.b16 %v8537
  %v8915 = vunpack.c.h.b16 %v8537
  %v8916 = vunpack.c.l.b16 %v8538
  %v8917 = vunpack.c.h.b16 %v8538
  %v8918 = vunpack.c.l.b16 %v8539
  %v8919 = vunpack.c.h.b16 %v8539
  %v8920 = vunpack.c.l.b16 %v8540
  %v8921 = vunpack.c.h.b16 %v8540
  %v8922 = vunpack.c.l.b16 %v8541
  %v8923 = vunpack.c.h.b16 %v8541
  %v8924 = vunpack.c.l.b16 %v8542
  %v8925 = vunpack.c.h.b16 %v8542
  %v8926 = vunpack.c.l.b16 %v8543
  %v8927 = vunpack.c.h.b16 %v8543
  %v8928 = vunpack.c.l.b16 %v8544
  %v8929 = vunpack.c.h.b16 %v8544
  %v8930 = vunpack.c.l.b16 %v8545
  %v8931 = vunpack.c.h.b16 %v8545
  %v8932 = vunpack.c.l.b16 %v8546
  %v8933 = vunpack.c.h.b16 %v8546
  %v8934 = vunpack.c.l.b16 %v8547
  %v8935 = vunpack.c.h.b16 %v8547
  %v8936 = vunpack.c.l.b16 %v8548
  %v8937 = vunpack.c.h.b16 %v8548
  %v8938 = vunpack.c.l.b16 %v8549
  %v8939 = vunpack.c.h.b16 %v8549
  %v8940 = vunpack.c.l.b16 %v8550
  %v8941 = vunpack.c.h.b16 %v8550
  %v8942 = vunpack.c.l.b16 %v8551
  %v8943 = vunpack.c.h.b16 %v8551
  %v8944 = vunpack.c.l.b16 %v8552
  %v8945 = vunpack.c.h.b16 %v8552
  %v8946 = vunpack.c.l.b16 %v8553
  %v8947 = vunpack.c.h.b16 %v8553
  %v8948 = vunpack.c.l.b16 %v8554
  %v8949 = vunpack.c.h.b16 %v8554
  %v8950 = vunpack.c.l.b16 %v8555
  %v8951 = vunpack.c.h.b16 %v8555
  %v8952 = vunpack.c.l.b16 %v8556
  %v8953 = vunpack.c.h.b16 %v8556
  %v8954 = vunpack.c.l.b16 %v8557
  %v8955 = vunpack.c.h.b16 %v8557
  %v8956 = vunpack.c.l.b16 %v8558
  %v8957 = vunpack.c.h.b16 %v8558
  %v8958 = vunpack.c.l.b16 %v8559
  %v8959 = vunpack.c.h.b16 %v8559
  %v8960 = vunpack.c.l.b16 %v8560
  %v8961 = vunpack.c.h.b16 %v8560
  %v8962 = vunpack.c.l.b16 %v8561
  %v8963 = vunpack.c.h.b16 %v8561
  %v8964 = vunpack.c.l.b16 %v8562
  %v8965 = vunpack.c.h.b16 %v8562
  %v8966 = vunpack.c.l.b16 %v8563
  %v8967 = vunpack.c.h.b16 %v8563
  %v8968 = vunpack.c.l.b16 %v8564
  %v8969 = vunpack.c.h.b16 %v8564
  %v8970 = vunpack.c.l.b16 %v8565
  %v8971 = vunpack.c.h.b16 %v8565
  %v8972 = vunpack.c.l.b16 %v8566
  %v8973 = vunpack.c.h.b16 %v8566
  %v8974 = vunpack.c.l.b16 %v8567
  %v8975 = vunpack.c.h.b16 %v8567
  %v8976 = vunpack.c.l.b16 %v8568
  %v8977 = vunpack.c.h.b16 %v8568
  %v8978 = vunpack.c.l.b16 %v8569
  %v8979 = vunpack.c.h.b16 %v8569
  %v8980 = vunpack.c.l.b16 %v8570
  %v8981 = vunpack.c.h.b16 %v8570
  %v8982 = vunpack.c.l.b16 %v8571
  %v8983 = vunpack.c.h.b16 %v8571
  %v8984 = vunpack.c.l.b16 %v8572
  %v8985 = vunpack.c.h.b16 %v8572
  %v8986 = vunpack.c.l.b16 %v8573
  %v8987 = vunpack.c.h.b16 %v8573
  %v8988 = vunpack.c.l.b16 %v8574
  %v8989 = vunpack.c.h.b16 %v8574
  %v8990 = vunpack.c.l.b16 %v8575
  %v8991 = vunpack.c.h.b16 %v8575
  %v8992 = vunpack.c.l.b16 %v8576
  %v8993 = vunpack.c.h.b16 %v8576
  %v8994 = vunpack.c.l.b16 %v8577
  %v8995 = vunpack.c.h.b16 %v8577
  %v8996 = vunpack.c.l.b16 %v8578
  %v8997 = vunpack.c.h.b16 %v8578
  %v8998 = vunpack.c.l.b16 %v8579
  %v8999 = vunpack.c.h.b16 %v8579
  %v9000 = vunpack.c.l.b16 %v8580
  %v9001 = vunpack.c.h.b16 %v8580
  %v9002 = vunpack.c.l.b16 %v8581
  %v9003 = vunpack.c.h.b16 %v8581
  %v9004 = vunpack.c.l.b16 %v8582
  %v9005 = vunpack.c.h.b16 %v8582
  %v9006 = vunpack.c.l.b16 %v8583
  %v9007 = vunpack.c.h.b16 %v8583
  %v9008 = vunpack.c.l.b16 %v8584
  %v9009 = vunpack.c.h.b16 %v8584
  %v9010 = vunpack.c.l.b16 %v8585
  %v9011 = vunpack.c.h.b16 %v8585
  %v9012 = vunpack.c.l.b16 %v8586
  %v9013 = vunpack.c.h.b16 %v8586
  %v9014 = vunpack.c.l.b16 %v8587
  %v9015 = vunpack.c.h.b16 %v8587
  %v9016 = vunpack.c.l.b16 %v8588
  %v9017 = vunpack.c.h.b16 %v8588
  %v9018 = vunpack.c.l.b16 %v8589
  %v9019 = vunpack.c.h.b16 %v8589
  %v9020 = vpack.c.b16 %v8766, %v8764
  %v9021 = vpack.c.b16 %v8767, %v8765
  %v9022 = vpack.c.b16 %v8770, %v8768
  %v9023 = vpack.c.b16 %v8771, %v8769
  %v9024 = vpack.c.b16 %v8774, %v8772
  %v9025 = vpack.c.b16 %v8775, %v8773
  %v9026 = vpack.c.b16 %v8778, %v8776
  %v9027 = vpack.c.b16 %v8779, %v8777
  %v9028 = vpack.c.b16 %v8782, %v8780
  %v9029 = vpack.c.b16 %v8783, %v8781
  %v9030 = vpack.c.b16 %v8786, %v8784
  %v9031 = vpack.c.b16 %v8787, %v8785
  %v9032 = vpack.c.b16 %v8790, %v8788
  %v9033 = vpack.c.b16 %v8791, %v8789
  %v9034 = vpack.c.b16 %v8794, %v8792
  %v9035 = vpack.c.b16 %v8795, %v8793
  %v9036 = vpack.c.b16 %v8798, %v8796
  %v9037 = vpack.c.b16 %v8799, %v8797
  %v9038 = vpack.c.b16 %v8802, %v8800
  %v9039 = vpack.c.b16 %v8803, %v8801
  %v9040 = vpack.c.b16 %v8806, %v8804
  %v9041 = vpack.c.b16 %v8807, %v8805
  %v9042 = vpack.c.b16 %v8810, %v8808
  %v9043 = vpack.c.b16 %v8811, %v8809
  %v9044 = vpack.c.b16 %v8814, %v8812
  %v9045 = vpack.c.b16 %v8815, %v8813
  %v9046 = vpack.c.b16 %v8818, %v8816
  %v9047 = vpack.c.b16 %v8819, %v8817
  %v9048 = vpack.c.b16 %v8822, %v8820
  %v9049 = vpack.c.b16 %v8823, %v8821
  %v9050 = vpack.c.b16 %v8826, %v8824
  %v9051 = vpack.c.b16 %v8827, %v8825
  %v9052 = vpack.c.b16 %v8830, %v8828
  %v9053 = vpack.c.b16 %v8831, %v8829
  %v9054 = vpack.c.b16 %v8834, %v8832
  %v9055 = vpack.c.b16 %v8835, %v8833
  %v9056 = vpack.c.b16 %v8838, %v8836
  %v9057 = vpack.c.b16 %v8839, %v8837
  %v9058 = vpack.c.b16 %v8842, %v8840
  %v9059 = vpack.c.b16 %v8843, %v8841
  %v9060 = vpack.c.b16 %v8846, %v8844
  %v9061 = vpack.c.b16 %v8847, %v8845
  %v9062 = vpack.c.b16 %v8850, %v8848
  %v9063 = vpack.c.b16 %v8851, %v8849
  %v9064 = vpack.c.b16 %v8854, %v8852
  %v9065 = vpack.c.b16 %v8855, %v8853
  %v9066 = vpack.c.b16 %v8858, %v8856
  %v9067 = vpack.c.b16 %v8859, %v8857
  %v9068 = vpack.c.b16 %v8862, %v8860
  %v9069 = vpack.c.b16 %v8863, %v8861
  %v9070 = vpack.c.b16 %v8866, %v8864
  %v9071 = vpack.c.b16 %v8867, %v8865
  %v9072 = vpack.c.b16 %v8870, %v8868
  %v9073 = vpack.c.b16 %v8871, %v8869
  %v9074 = vpack.c.b16 %v8874, %v8872
  %v9075 = vpack.c.b16 %v8875, %v8873
  %v9076 = vpack.c.b16 %v8878, %v8876
  %v9077 = vpack.c.b16 %v8879, %v8877
  %v9078 = vpack.c.b16 %v8882, %v8880
  %v9079 = vpack.c.b16 %v8883, %v8881
  %v9080 = vpack.c.b16 %v8886, %v8884
  %v9081 = vpack.c.b16 %v8887, %v8885
  %v9082 = vpack.c.b16 %v8890, %v8888
  %v9083 = vpack.c.b16 %v8891, %v8889
  %v9084 = vpack.c.b16 %v8894, %v8892
  %v9085 = vpack.c.b16 %v8895, %v8893
  %v9086 = vpack.c.b16 %v8898, %v8896
  %v9087 = vpack.c.b16 %v8899, %v8897
  %v9088 = vpack.c.b16 %v8902, %v8900
  %v9089 = vpack.c.b16 %v8903, %v8901
  %v9090 = vpack.c.b16 %v8906, %v8904
  %v9091 = vpack.c.b16 %v8907, %v8905
  %v9092 = vpack.c.b16 %v8910, %v8908
  %v9093 = vpack.c.b16 %v8911, %v8909
  %v9094 = vpack.c.b16 %v8914, %v8912
  %v9095 = vpack.c.b16 %v8915, %v8913
  %v9096 = vpack.c.b16 %v8918, %v8916
  %v9097 = vpack.c.b16 %v8919, %v8917
  %v9098 = vpack.c.b16 %v8922, %v8920
  %v9099 = vpack.c.b16 %v8923, %v8921
  %v9100 = vpack.c.b16 %v8926, %v8924
  %v9101 = vpack.c.b16 %v8927, %v8925
  %v9102 = vpack.c.b16 %v8930, %v8928
  %v9103 = vpack.c.b16 %v8931, %v8929
  %v9104 = vpack.c.b16 %v8934, %v8932
  %v9105 = vpack.c.b16 %v8935, %v8933
  %v9106 = vpack.c.b16 %v8938, %v8936
  %v9107 = vpack.c.b16 %v8939, %v8937
  %v9108 = vpack.c.b16 %v8942, %v8940
  %v9109 = vpack.c.b16 %v8943, %v8941
  %v9110 = vpack.c.b16 %v8946, %v8944
  %v9111 = vpack.c.b16 %v8947, %v8945
  %v9112 = vpack.c.b16 %v8950, %v8948
  %v9113 = vpack.c.b16 %v8951, %v8949
  %v9114 = vpack.c.b16 %v8954, %v8952
  %v9115 = vpack.c.b16 %v8955, %v8953
  %v9116 = vpack.c.b16 %v8958, %v8956
  %v9117 = vpack.c.b16 %v8959, %v8957
  %v9118 = vpack.c.b16 %v8962, %v8960
  %v9119 = vpack.c.b16 %v8963, %v8961
  %v9120 = vpack.c.b16 %v8966, %v8964
  %v9121 = vpack.c.b16 %v8967, %v8965
  %v9122 = vpack.c.b16 %v8970, %v8968
  %v9123 = vpack.c.b16 %v8971, %v8969
  %v9124 = vpack.c.b16 %v8974, %v8972
  %v9125 = vpack.c.b16 %v8975, %v8973
  %v9126 = vpack.c.b16 %v8978, %v8976
  %v9127 = vpack.c.b16 %v8979, %v8977
  %v9128 = vpack.c.b16 %v8982, %v8980
  %v9129 = vpack.c.b16 %v8983, %v8981
  %v9130 = vpack.c.b16 %v8986, %v8984
  %v9131 = vpack.c.b16 %v8987, %v8985
  %v9132 = vpack.c.b16 %v8990, %v8988
  %v9133 = vpack.c.b16 %v8991, %v8989
  %v9134 = vpack.c.b16 %v8994, %v8992
  %v9135 = vpack.c.b16 %v8995, %v8993
  %v9136 = vpack.c.b16 %v8998, %v8996
  %v9137 = vpack.c.b16 %v8999, %v8997
  %v9138 = vpack.c.b16 %v9002, %v9000
  %v9139 = vpack.c.b16 %v9003, %v9001
  %v9140 = vpack.c.b16 %v9006, %v9004
  %v9141 = vpack.c.b16 %v9007, %v9005
  %v9142 = vpack.c.b16 %v9010, %v9008
  %v9143 = vpack.c.b16 %v9011, %v9009
  %v9144 = vpack.c.b16 %v9014, %v9012
  %v9145 = vpack.c.b16 %v9015, %v9013
  %v9146 = vpack.c.b16 %v9018, %v9016
  %v9147 = vpack.c.b16 %v9019, %v9017
  %9276 = vmatpush.bf16.msra.mxu0 %v9034
  %9277 = vmatpush.bf16.msra.mxu0 %v9032
  %9278 = vmatpush.bf16.msra.mxu0 %v9030
  %9279 = vmatpush.bf16.msra.mxu0 %v9028
  %9280 = vmatpush.bf16.msra.mxu0 %v9026
  %9281 = vmatpush.bf16.msra.mxu0 %v9024
  %9282 = vmatpush.bf16.msra.mxu0 %v9022
  %9283 = vmatpush.bf16.msra.mxu0 %v9020
  %9284 = vmatmul.bf16.gmra.mxu0 %v8597
  %v9285 = vpop.f32.mrf.mxu0
  %v9286 = vadd.f32 %v8632, %v9285
  %v9287 = vpop.f32.mrf.mxu0
  %v9288 = vadd.f32 %v8632, %v9287
  %9289 = vdwg.mxu0
  %9290 = vmatpush.bf16.msra.mxu0 %v9050
  %9291 = vmatpush.bf16.msra.mxu0 %v9048
  %9292 = vmatpush.bf16.msra.mxu0 %v9046
  %9293 = vmatpush.bf16.msra.mxu0 %v9044
  %9294 = vmatpush.bf16.msra.mxu0 %v9042
  %9295 = vmatpush.bf16.msra.mxu0 %v9040
  %9296 = vmatpush.bf16.msra.mxu0 %v9038
  %9297 = vmatpush.bf16.msra.mxu0 %v9036
  %9298 = vmatmul.bf16.gmra.mxu0 %v8598
  %v9299 = vpop.f32.mrf.mxu0
  %v9300 = vadd.f32 %v9286, %v9299
  %v9301 = vpop.f32.mrf.mxu0
  %v9302 = vadd.f32 %v9288, %v9301
  %9303 = vdwg.mxu0
  %9304 = vmatpush.bf16.msra.mxu0 %v9066
  %9305 = vmatpush.bf16.msra.mxu0 %v9064
  %9306 = vmatpush.bf16.msra.mxu0 %v9062
  %9307 = vmatpush.bf16.msra.mxu0 %v9060
  %9308 = vmatpush.bf16.msra.mxu0 %v9058
  %9309 = vmatpush.bf16.msra.mxu0 %v9056
  %9310 = vmatpush.bf16.msra.mxu0 %v9054
  %9311 = vmatpush.bf16.msra.mxu0 %v9052
  %9312 = vmatmul.bf16.gmra.mxu0 %v8607
  %v9313 = vpop.f32.mrf.mxu0
  %v9314 = vadd.f32 %v9300, %v9313
  %v9315 = vpop.f32.mrf.mxu0
  %v9316 = vadd.f32 %v9302, %v9315
  %9317 = vdwg.mxu0
  %9318 = vmatpush.bf16.msra.mxu0 %v9082
  %9319 = vmatpush.bf16.msra.mxu0 %v9080
  %9320 = vmatpush.bf16.msra.mxu0 %v9078
  %9321 = vmatpush.bf16.msra.mxu0 %v9076
  %9322 = vmatpush.bf16.msra.mxu0 %v9074
  %9323 = vmatpush.bf16.msra.mxu0 %v9072
  %9324 = vmatpush.bf16.msra.mxu0 %v9070
  %9325 = vmatpush.bf16.msra.mxu0 %v9068
  %9326 = vmatmul.bf16.gmra.mxu0 %v8608
  %v9327 = vpop.f32.mrf.mxu0
  %v9328 = vadd.f32 %v9314, %v9327
  %v9329 = vpop.f32.mrf.mxu0
  %v9330 = vadd.f32 %v9316, %v9329
  %9331 = vdwg.mxu0
  %9332 = vmatpush.bf16.msra.mxu0 %v9098
  %9333 = vmatpush.bf16.msra.mxu0 %v9096
  %9334 = vmatpush.bf16.msra.mxu0 %v9094
  %9335 = vmatpush.bf16.msra.mxu0 %v9092
  %9336 = vmatpush.bf16.msra.mxu0 %v9090
  %9337 = vmatpush.bf16.msra.mxu0 %v9088
  %9338 = vmatpush.bf16.msra.mxu0 %v9086
  %9339 = vmatpush.bf16.msra.mxu0 %v9084
  %9340 = vmatmul.bf16.gmra.mxu0 %v8617
  %v9341 = vpop.f32.mrf.mxu0
  %v9342 = vadd.f32 %v9328, %v9341
  %v9343 = vpop.f32.mrf.mxu0
  %v9344 = vadd.f32 %v9330, %v9343
  %9345 = vdwg.mxu0
  %9346 = vmatpush.bf16.msra.mxu0 %v9114
  %9347 = vmatpush.bf16.msra.mxu0 %v9112
  %9348 = vmatpush.bf16.msra.mxu0 %v9110
  %9349 = vmatpush.bf16.msra.mxu0 %v9108
  %9350 = vmatpush.bf16.msra.mxu0 %v9106
  %9351 = vmatpush.bf16.msra.mxu0 %v9104
  %9352 = vmatpush.bf16.msra.mxu0 %v9102
  %9353 = vmatpush.bf16.msra.mxu0 %v9100
  %9354 = vmatmul.bf16.gmra.mxu0 %v8618
  %v9355 = vpop.f32.mrf.mxu0
  %v9356 = vadd.f32 %v9342, %v9355
  %v9357 = vpop.f32.mrf.mxu0
  %v9358 = vadd.f32 %v9344, %v9357
  %9359 = vdwg.mxu0
  %9360 = vmatpush.bf16.msra.mxu0 %v9130
  %9361 = vmatpush.bf16.msra.mxu0 %v9128
  %9362 = vmatpush.bf16.msra.mxu0 %v9126
  %9363 = vmatpush.bf16.msra.mxu0 %v9124
  %9364 = vmatpush.bf16.msra.mxu0 %v9122
  %9365 = vmatpush.bf16.msra.mxu0 %v9120
  %9366 = vmatpush.bf16.msra.mxu0 %v9118
  %9367 = vmatpush.bf16.msra.mxu0 %v9116
  %9368 = vmatmul.bf16.gmra.mxu0 %v8627
  %v9369 = vpop.f32.mrf.mxu0
  %v9370 = vadd.f32 %v9356, %v9369
  %v9371 = vpop.f32.mrf.mxu0
  %v9372 = vadd.f32 %v9358, %v9371
  %9373 = vdwg.mxu0
  %9374 = vmatpush.bf16.msra.mxu0 %v9146
  %9375 = vmatpush.bf16.msra.mxu0 %v9144
  %9376 = vmatpush.bf16.msra.mxu0 %v9142
  %9377 = vmatpush.bf16.msra.mxu0 %v9140
  %9378 = vmatpush.bf16.msra.mxu0 %v9138
  %9379 = vmatpush.bf16.msra.mxu0 %v9136
  %9380 = vmatpush.bf16.msra.mxu0 %v9134
  %9381 = vmatpush.bf16.msra.mxu0 %v9132
  %9382 = vmatmul.bf16.gmra.mxu0 %v8628
  %v9383 = vpop.f32.mrf.mxu0
  %v9384 = vadd.f32 %v9370, %v9383
  %v9385 = vpop.f32.mrf.mxu0
  %v9386 = vadd.f32 %v9372, %v9385
  %9387 = vdwg.mxu0
  %9388 = vmatpush.bf16.msra.mxu0 %v9035
  %9389 = vmatpush.bf16.msra.mxu0 %v9033
  %9390 = vmatpush.bf16.msra.mxu0 %v9031
  %9391 = vmatpush.bf16.msra.mxu0 %v9029
  %9392 = vmatpush.bf16.msra.mxu0 %v9027
  %9393 = vmatpush.bf16.msra.mxu0 %v9025
  %9394 = vmatpush.bf16.msra.mxu0 %v9023
  %9395 = vmatpush.bf16.msra.mxu0 %v9021
  %9396 = vmatmul.bf16.gmra.mxu0 %v8597
  %v9397 = vpop.f32.mrf.mxu0
  %v9398 = vadd.f32 %v8633, %v9397
  %v9399 = vpop.f32.mrf.mxu0
  %v9400 = vadd.f32 %v8633, %v9399
  %9401 = vdwg.mxu0
  %9402 = vmatpush.bf16.msra.mxu0 %v9051
  %9403 = vmatpush.bf16.msra.mxu0 %v9049
  %9404 = vmatpush.bf16.msra.mxu0 %v9047
  %9405 = vmatpush.bf16.msra.mxu0 %v9045
  %9406 = vmatpush.bf16.msra.mxu0 %v9043
  %9407 = vmatpush.bf16.msra.mxu0 %v9041
  %9408 = vmatpush.bf16.msra.mxu0 %v9039
  %9409 = vmatpush.bf16.msra.mxu0 %v9037
  %9410 = vmatmul.bf16.gmra.mxu0 %v8598
  %v9411 = vpop.f32.mrf.mxu0
  %v9412 = vadd.f32 %v9398, %v9411
  %v9413 = vpop.f32.mrf.mxu0
  %v9414 = vadd.f32 %v9400, %v9413
  %9415 = vdwg.mxu0
  %9416 = vmatpush.bf16.msra.mxu0 %v9067
  %9417 = vmatpush.bf16.msra.mxu0 %v9065
  %9418 = vmatpush.bf16.msra.mxu0 %v9063
  %9419 = vmatpush.bf16.msra.mxu0 %v9061
  %9420 = vmatpush.bf16.msra.mxu0 %v9059
  %9421 = vmatpush.bf16.msra.mxu0 %v9057
  %9422 = vmatpush.bf16.msra.mxu0 %v9055
  %9423 = vmatpush.bf16.msra.mxu0 %v9053
  %9424 = vmatmul.bf16.gmra.mxu0 %v8607
  %v9425 = vpop.f32.mrf.mxu0
  %v9426 = vadd.f32 %v9412, %v9425
  %v9427 = vpop.f32.mrf.mxu0
  %v9428 = vadd.f32 %v9414, %v9427
  %9429 = vdwg.mxu0
  %9430 = vmatpush.bf16.msra.mxu0 %v9083
  %9431 = vmatpush.bf16.msra.mxu0 %v9081
  %9432 = vmatpush.bf16.msra.mxu0 %v9079
  %9433 = vmatpush.bf16.msra.mxu0 %v9077
  %9434 = vmatpush.bf16.msra.mxu0 %v9075
  %9435 = vmatpush.bf16.msra.mxu0 %v9073
  %9436 = vmatpush.bf16.msra.mxu0 %v9071
  %9437 = vmatpush.bf16.msra.mxu0 %v9069
  %9438 = vmatmul.bf16.gmra.mxu0 %v8608
  %v9439 = vpop.f32.mrf.mxu0
  %v9440 = vadd.f32 %v9426, %v9439
  %v9441 = vpop.f32.mrf.mxu0
  %v9442 = vadd.f32 %v9428, %v9441
  %9443 = vdwg.mxu0
  %9444 = vmatpush.bf16.msra.mxu0 %v9099
  %9445 = vmatpush.bf16.msra.mxu0 %v9097
  %9446 = vmatpush.bf16.msra.mxu0 %v9095
  %9447 = vmatpush.bf16.msra.mxu0 %v9093
  %9448 = vmatpush.bf16.msra.mxu0 %v9091
  %9449 = vmatpush.bf16.msra.mxu0 %v9089
  %9450 = vmatpush.bf16.msra.mxu0 %v9087
  %9451 = vmatpush.bf16.msra.mxu0 %v9085
  %9452 = vmatmul.bf16.gmra.mxu0 %v8617
  %v9453 = vpop.f32.mrf.mxu0
  %v9454 = vadd.f32 %v9440, %v9453
  %v9455 = vpop.f32.mrf.mxu0
  %v9456 = vadd.f32 %v9442, %v9455
  %9457 = vdwg.mxu0
  %9458 = vmatpush.bf16.msra.mxu0 %v9115
  %9459 = vmatpush.bf16.msra.mxu0 %v9113
  %9460 = vmatpush.bf16.msra.mxu0 %v9111
  %9461 = vmatpush.bf16.msra.mxu0 %v9109
  %9462 = vmatpush.bf16.msra.mxu0 %v9107
  %9463 = vmatpush.bf16.msra.mxu0 %v9105
  %9464 = vmatpush.bf16.msra.mxu0 %v9103
  %9465 = vmatpush.bf16.msra.mxu0 %v9101
  %9466 = vmatmul.bf16.gmra.mxu0 %v8618
  %v9467 = vpop.f32.mrf.mxu0
  %v9468 = vadd.f32 %v9454, %v9467
  %v9469 = vpop.f32.mrf.mxu0
  %v9470 = vadd.f32 %v9456, %v9469
  %9471 = vdwg.mxu0
  %9472 = vmatpush.bf16.msra.mxu0 %v9131
  %9473 = vmatpush.bf16.msra.mxu0 %v9129
  %9474 = vmatpush.bf16.msra.mxu0 %v9127
  %9475 = vmatpush.bf16.msra.mxu0 %v9125
  %9476 = vmatpush.bf16.msra.mxu0 %v9123
  %9477 = vmatpush.bf16.msra.mxu0 %v9121
  %9478 = vmatpush.bf16.msra.mxu0 %v9119
  %9479 = vmatpush.bf16.msra.mxu0 %v9117
  %9480 = vmatmul.bf16.gmra.mxu0 %v8627
  %v9481 = vpop.f32.mrf.mxu0
  %v9482 = vadd.f32 %v9468, %v9481
  %v9483 = vpop.f32.mrf.mxu0
  %v9484 = vadd.f32 %v9470, %v9483
  %9485 = vdwg.mxu0
  %9486 = vmatpush.bf16.msra.mxu0 %v9147
  %9487 = vmatpush.bf16.msra.mxu0 %v9145
  %9488 = vmatpush.bf16.msra.mxu0 %v9143
  %9489 = vmatpush.bf16.msra.mxu0 %v9141
  %9490 = vmatpush.bf16.msra.mxu0 %v9139
  %9491 = vmatpush.bf16.msra.mxu0 %v9137
  %9492 = vmatpush.bf16.msra.mxu0 %v9135
  %9493 = vmatpush.bf16.msra.mxu0 %v9133
  %9494 = vmatmul.bf16.gmra.mxu0 %v8628
  %v9495 = vpop.f32.mrf.mxu0
  %v9496 = vadd.f32 %v9482, %v9495
  %v9497 = vpop.f32.mrf.mxu0
  %v9498 = vadd.f32 %v9484, %v9497
  %9499 = vdwg.mxu0
  %vm9500 = vcmp.ge.f32.partialorder %v9384, 0.0
  %vm9501 = vcmp.ge.f32.partialorder %v9496, 0.0
  %vm9502 = vcmp.ge.f32.partialorder %v9386, 0.0
  %vm9503 = vcmp.ge.f32.partialorder %v9498, 0.0
  %v9504 = vmul.f32 %v9384, 0.2
  %v9505 = vmul.f32 %v9496, 0.2
  %v9506 = vmul.f32 %v9386, 0.2
  %v9507 = vmul.f32 %v9498, 0.2
  %v9508 = vsel %vm9500, %v9384, %v9504
  %v9509 = vsel %vm9501, %v9496, %v9505
  %v9510 = vsel %vm9502, %v9386, %v9506
  %v9511 = vsel %vm9503, %v9498, %v9507
  %v9512 = vpack.c.bf16 %v9510, %v9508
  %v9513 = vpack.c.bf16 %v9511, %v9509
  %v9514 = vld [vmem:[%s7] sm:$0xff]
  %v9515 = vld [vmem:[%s7 + $0x8] sm:$0xff]
  %v9516 = vld [vmem:[%s7 + $0x10] sm:$0xff]
  %v9517 = vld [vmem:[%s7 + $0x18] sm:$0xff]
  %v9518 = vld [vmem:[%s7 + $0x20] sm:$0xff]
  %v9519 = vld [vmem:[%s7 + $0x28] sm:$0xff]
  %v9520 = vld [vmem:[%s7 + $0x30] sm:$0xff]
  %v9521 = vld [vmem:[%s7 + $0x38] sm:$0xff]
  %v9522 = vld [vmem:[%s7 + $0x40] sm:$0xff]
  %v9523 = vld [vmem:[%s7 + $0x48] sm:$0xff]
  %v9524 = vld [vmem:[%s7 + $0x50] sm:$0xff]
  %v9525 = vld [vmem:[%s7 + $0x58] sm:$0xff]
  %v9526 = vld [vmem:[%s7 + $0x60] sm:$0xff]
  %v9527 = vld [vmem:[%s7 + $0x68] sm:$0xff]
  %v9528 = vld [vmem:[%s7 + $0x70] sm:$0xff]
  %v9529 = vld [vmem:[%s7 + $0x78] sm:$0xff]
  %v9530 = vld [vmem:[%s7 + $0x80] sm:$0xff]
  %v9531 = vld [vmem:[%s7 + $0x88] sm:$0xff]
  %v9532 = vld [vmem:[%s7 + $0x90] sm:$0xff]
  %v9533 = vld [vmem:[%s7 + $0x98] sm:$0xff]
  %v9534 = vld [vmem:[%s7 + $0xa0] sm:$0xff]
  %v9535 = vld [vmem:[%s7 + $0xa8] sm:$0xff]
  %v9536 = vld [vmem:[%s7 + $0xb0] sm:$0xff]
  %v9537 = vld [vmem:[%s7 + $0xb8] sm:$0xff]
  %v9538 = vld [vmem:[%s7 + $0xc0] sm:$0xff]
  %v9539 = vld [vmem:[%s7 + $0xc8] sm:$0xff]
  %v9540 = vld [vmem:[%s7 + $0xd0] sm:$0xff]
  %v9541 = vld [vmem:[%s7 + $0xd8] sm:$0xff]
  %v9542 = vld [vmem:[%s7 + $0xe0] sm:$0xff]
  %v9543 = vld [vmem:[%s7 + $0xe8] sm:$0xff]
  %v9544 = vld [vmem:[%s7 + $0xf0] sm:$0xff]
  %v9545 = vld [vmem:[%s7 + $0xf8] sm:$0xff]
  %v9546 = vld [vmem:[%s8] sm:$0x3]
  %v9548 = vperm.slane %v9546, 0
  %v9549 = vperm.slane %v9546, 1
  %v9584 = vunpack.c.l.b16 %v9514
  %v9585 = vunpack.c.h.b16 %v9514
  %v9586 = vunpack.c.l.b16 %v9515
  %v9587 = vunpack.c.h.b16 %v9515
  %v9588 = vunpack.c.l.b16 %v9516
  %v9589 = vunpack.c.h.b16 %v9516
  %v9590 = vunpack.c.l.b16 %v9517
  %v9591 = vunpack.c.h.b16 %v9517
  %v9592 = vunpack.c.l.b16 %v9518
  %v9593 = vunpack.c.h.b16 %v9518
  %v9594 = vunpack.c.l.b16 %v9519
  %v9595 = vunpack.c.h.b16 %v9519
  %v9596 = vunpack.c.l.b16 %v9520
  %v9597 = vunpack.c.h.b16 %v9520
  %v9598 = vunpack.c.l.b16 %v9521
  %v9599 = vunpack.c.h.b16 %v9521
  %v9600 = vunpack.c.l.b16 %v9522
  %v9601 = vunpack.c.h.b16 %v9522
  %v9602 = vunpack.c.l.b16 %v9523
  %v9603 = vunpack.c.h.b16 %v9523
  %v9604 = vunpack.c.l.b16 %v9524
  %v9605 = vunpack.c.h.b16 %v9524
  %v9606 = vunpack.c.l.b16 %v9525
  %v9607 = vunpack.c.h.b16 %v9525
  %v9608 = vunpack.c.l.b16 %v9526
  %v9609 = vunpack.c.h.b16 %v9526
  %v9610 = vunpack.c.l.b16 %v9527
  %v9611 = vunpack.c.h.b16 %v9527
  %v9612 = vunpack.c.l.b16 %v9528
  %v9613 = vunpack.c.h.b16 %v9528
  %v9614 = vunpack.c.l.b16 %v9529
  %v9615 = vunpack.c.h.b16 %v9529
  %v9616 = vunpack.c.l.b16 %v9530
  %v9617 = vunpack.c.h.b16 %v9530
  %v9618 = vunpack.c.l.b16 %v9531
  %v9619 = vunpack.c.h.b16 %v9531
  %v9620 = vunpack.c.l.b16 %v9532
  %v9621 = vunpack.c.h.b16 %v9532
  %v9622 = vunpack.c.l.b16 %v9533
  %v9623 = vunpack.c.h.b16 %v9533
  %v9624 = vunpack.c.l.b16 %v9534
  %v9625 = vunpack.c.h.b16 %v9534
  %v9626 = vunpack.c.l.b16 %v9535
  %v9627 = vunpack.c.h.b16 %v9535
  %v9628 = vunpack.c.l.b16 %v9536
  %v9629 = vunpack.c.h.b16 %v9536
  %v9630 = vunpack.c.l.b16 %v9537
  %v9631 = vunpack.c.h.b16 %v9537
  %v9632 = vunpack.c.l.b16 %v9538
  %v9633 = vunpack.c.h.b16 %v9538
  %v9634 = vunpack.c.l.b16 %v9539
  %v9635 = vunpack.c.h.b16 %v9539
  %v9636 = vunpack.c.l.b16 %v9540
  %v9637 = vunpack.c.h.b16 %v9540
  %v9638 = vunpack.c.l.b16 %v9541
  %v9639 = vunpack.c.h.b16 %v9541
  %v9640 = vunpack.c.l.b16 %v9542
  %v9641 = vunpack.c.h.b16 %v9542
  %v9642 = vunpack.c.l.b16 %v9543
  %v9643 = vunpack.c.h.b16 %v9543
  %v9644 = vunpack.c.l.b16 %v9544
  %v9645 = vunpack.c.h.b16 %v9544
  %v9646 = vunpack.c.l.b16 %v9545
  %v9647 = vunpack.c.h.b16 %v9545
  %v9648 = vpack.c.b16 %v9586, %v9584
  %v9649 = vpack.c.b16 %v9587, %v9585
  %v9650 = vpack.c.b16 %v9590, %v9588
  %v9651 = vpack.c.b16 %v9591, %v9589
  %v9652 = vpack.c.b16 %v9594, %v9592
  %v9653 = vpack.c.b16 %v9595, %v9593
  %v9654 = vpack.c.b16 %v9598, %v9596
  %v9655 = vpack.c.b16 %v9599, %v9597
  %v9656 = vpack.c.b16 %v9602, %v9600
  %v9657 = vpack.c.b16 %v9603, %v9601
  %v9658 = vpack.c.b16 %v9606, %v9604
  %v9659 = vpack.c.b16 %v9607, %v9605
  %v9660 = vpack.c.b16 %v9610, %v9608
  %v9661 = vpack.c.b16 %v9611, %v9609
  %v9662 = vpack.c.b16 %v9614, %v9612
  %v9663 = vpack.c.b16 %v9615, %v9613
  %v9664 = vpack.c.b16 %v9618, %v9616
  %v9665 = vpack.c.b16 %v9619, %v9617
  %v9666 = vpack.c.b16 %v9622, %v9620
  %v9667 = vpack.c.b16 %v9623, %v9621
  %v9668 = vpack.c.b16 %v9626, %v9624
  %v9669 = vpack.c.b16 %v9627, %v9625
  %v9670 = vpack.c.b16 %v9630, %v9628
  %v9671 = vpack.c.b16 %v9631, %v9629
  %v9672 = vpack.c.b16 %v9634, %v9632
  %v9673 = vpack.c.b16 %v9635, %v9633
  %v9674 = vpack.c.b16 %v9638, %v9636
  %v9675 = vpack.c.b16 %v9639, %v9637
  %v9676 = vpack.c.b16 %v9642, %v9640
  %v9677 = vpack.c.b16 %v9643, %v9641
  %v9678 = vpack.c.b16 %v9646, %v9644
  %v9679 = vpack.c.b16 %v9647, %v9645
  %9712 = vmatpush.bf16.msra.mxu0 %v9662
  %9713 = vmatpush.bf16.msra.mxu0 %v9660
  %9714 = vmatpush.bf16.msra.mxu0 %v9658
  %9715 = vmatpush.bf16.msra.mxu0 %v9656
  %9716 = vmatpush.bf16.msra.mxu0 %v9654
  %9717 = vmatpush.bf16.msra.mxu0 %v9652
  %9718 = vmatpush.bf16.msra.mxu0 %v9650
  %9719 = vmatpush.bf16.msra.mxu0 %v9648
  %9720 = vmatmul.bf16.gmra.mxu0 %v9512
  %v9721 = vpop.f32.mrf.mxu0
  %v9722 = vadd.f32 %v9548, %v9721
  %v9723 = vpop.f32.mrf.mxu0
  %v9724 = vadd.f32 %v9548, %v9723
  %9725 = vdwg.mxu0
  %9726 = vmatpush.bf16.msra.mxu0 %v9678
  %9727 = vmatpush.bf16.msra.mxu0 %v9676
  %9728 = vmatpush.bf16.msra.mxu0 %v9674
  %9729 = vmatpush.bf16.msra.mxu0 %v9672
  %9730 = vmatpush.bf16.msra.mxu0 %v9670
  %9731 = vmatpush.bf16.msra.mxu0 %v9668
  %9732 = vmatpush.bf16.msra.mxu0 %v9666
  %9733 = vmatpush.bf16.msra.mxu0 %v9664
  %9734 = vmatmul.bf16.gmra.mxu0 %v9513
  %v9735 = vpop.f32.mrf.mxu0
  %v9736 = vadd.f32 %v9722, %v9735
  %v9737 = vpop.f32.mrf.mxu0
  %v9738 = vadd.f32 %v9724, %v9737
  %9739 = vdwg.mxu0
  %9740 = vmatpush.bf16.msra.mxu0 %v9663
  %9741 = vmatpush.bf16.msra.mxu0 %v9661
  %9742 = vmatpush.bf16.msra.mxu0 %v9659
  %9743 = vmatpush.bf16.msra.mxu0 %v9657
  %9744 = vmatpush.bf16.msra.mxu0 %v9655
  %9745 = vmatpush.bf16.msra.mxu0 %v9653
  %9746 = vmatpush.bf16.msra.mxu0 %v9651
  %9747 = vmatpush.bf16.msra.mxu0 %v9649
  %9748 = vmatmul.bf16.gmra.mxu0 %v9512
  %v9749 = vpop.f32.mrf.mxu0
  %v9750 = vadd.f32 %v9549, %v9749
  %v9751 = vpop.f32.mrf.mxu0
  %v9752 = vadd.f32 %v9549, %v9751
  %9753 = vdwg.mxu0
  %9754 = vmatpush.bf16.msra.mxu0 %v9679
  %9755 = vmatpush.bf16.msra.mxu0 %v9677
  %9756 = vmatpush.bf16.msra.mxu0 %v9675
  %9757 = vmatpush.bf16.msra.mxu0 %v9673
  %9758 = vmatpush.bf16.msra.mxu0 %v9671
  %9759 = vmatpush.bf16.msra.mxu0 %v9669
  %9760 = vmatpush.bf16.msra.mxu0 %v9667
  %9761 = vmatpush.bf16.msra.mxu0 %v9665
  %9762 = vmatmul.bf16.gmra.mxu0 %v9513
  %v9763 = vpop.f32.mrf.mxu0
  %v9764 = vadd.f32 %v9750, %v9763
  %v9765 = vpop.f32.mrf.mxu0
  %v9766 = vadd.f32 %v9752, %v9765
  %9767 = vdwg.mxu0
  %vm9768 = vcmp.ge.f32.partialorder %v9736, 0.0
  %vm9769 = vcmp.ge.f32.partialorder %v9764, 0.0
  %vm9770 = vcmp.ge.f32.partialorder %v9738, 0.0
  %vm9771 = vcmp.ge.f32.partialorder %v9766, 0.0
  %v9772 = vmul.f32 %v9736, 0.2
  %v9773 = vmul.f32 %v9764, 0.2
  %v9774 = vmul.f32 %v9738, 0.2
  %v9775 = vmul.f32 %v9766, 0.2
  %v9776 = vsel %vm9768, %v9736, %v9772
  %v9777 = vsel %vm9769, %v9764, %v9773
  %v9778 = vsel %vm9770, %v9738, %v9774
  %v9779 = vsel %vm9771, %v9766, %v9775
  %v9780 = vpack.c.bf16 %v9778, %v9776
  %v9781 = vpack.c.bf16 %v9779, %v9777
  %v9782 = vld [vmem:[%s9] sm:$0xff]
  %v9783 = vld [vmem:[%s9 + $0x8] sm:$0xff]
  %v9784 = vld [vmem:[%s9 + $0x10] sm:$0xff]
  %v9785 = vld [vmem:[%s9 + $0x18] sm:$0xff]
  %v9786 = vld [vmem:[%s9 + $0x20] sm:$0xff]
  %v9787 = vld [vmem:[%s9 + $0x28] sm:$0xff]
  %v9788 = vld [vmem:[%s9 + $0x30] sm:$0xff]
  %v9789 = vld [vmem:[%s9 + $0x38] sm:$0xff]
  %v9790 = vld [vmem:[%s9 + $0x40] sm:$0xff]
  %v9791 = vld [vmem:[%s9 + $0x48] sm:$0xff]
  %v9792 = vld [vmem:[%s9 + $0x50] sm:$0xff]
  %v9793 = vld [vmem:[%s9 + $0x58] sm:$0xff]
  %v9794 = vld [vmem:[%s9 + $0x60] sm:$0xff]
  %v9795 = vld [vmem:[%s9 + $0x68] sm:$0xff]
  %v9796 = vld [vmem:[%s9 + $0x70] sm:$0xff]
  %v9797 = vld [vmem:[%s9 + $0x78] sm:$0xff]
  %v9798 = vld [vmem:[%s9 + $0x80] sm:$0xff]
  %v9799 = vld [vmem:[%s9 + $0x88] sm:$0xff]
  %v9800 = vld [vmem:[%s9 + $0x90] sm:$0xff]
  %v9801 = vld [vmem:[%s9 + $0x98] sm:$0xff]
  %v9802 = vld [vmem:[%s9 + $0xa0] sm:$0xff]
  %v9803 = vld [vmem:[%s9 + $0xa8] sm:$0xff]
  %v9804 = vld [vmem:[%s9 + $0xb0] sm:$0xff]
  %v9805 = vld [vmem:[%s9 + $0xb8] sm:$0xff]
  %v9806 = vld [vmem:[%s9 + $0xc0] sm:$0xff]
  %v9807 = vld [vmem:[%s9 + $0xc8] sm:$0xff]
  %v9808 = vld [vmem:[%s9 + $0xd0] sm:$0xff]
  %v9809 = vld [vmem:[%s9 + $0xd8] sm:$0xff]
  %v9810 = vld [vmem:[%s9 + $0xe0] sm:$0xff]
  %v9811 = vld [vmem:[%s9 + $0xe8] sm:$0xff]
  %v9812 = vld [vmem:[%s9 + $0xf0] sm:$0xff]
  %v9813 = vld [vmem:[%s9 + $0xf8] sm:$0xff]
  %v9814 = vld [vmem:[%s10] sm:$0x3]
  %v9816 = vperm.slane %v9814, 0
  %v9817 = vperm.slane %v9814, 1
  %v9852 = vunpack.c.l.b16 %v9782
  %v9853 = vunpack.c.h.b16 %v9782
  %v9854 = vunpack.c.l.b16 %v9783
  %v9855 = vunpack.c.h.b16 %v9783
  %v9856 = vunpack.c.l.b16 %v9784
  %v9857 = vunpack.c.h.b16 %v9784
  %v9858 = vunpack.c.l.b16 %v9785
  %v9859 = vunpack.c.h.b16 %v9785
  %v9860 = vunpack.c.l.b16 %v9786
  %v9861 = vunpack.c.h.b16 %v9786
  %v9862 = vunpack.c.l.b16 %v9787
  %v9863 = vunpack.c.h.b16 %v9787
  %v9864 = vunpack.c.l.b16 %v9788
  %v9865 = vunpack.c.h.b16 %v9788
  %v9866 = vunpack.c.l.b16 %v9789
  %v9867 = vunpack.c.h.b16 %v9789
  %v9868 = vunpack.c.l.b16 %v9790
  %v9869 = vunpack.c.h.b16 %v9790
  %v9870 = vunpack.c.l.b16 %v9791
  %v9871 = vunpack.c.h.b16 %v9791
  %v9872 = vunpack.c.l.b16 %v9792
  %v9873 = vunpack.c.h.b16 %v9792
  %v9874 = vunpack.c.l.b16 %v9793
  %v9875 = vunpack.c.h.b16 %v9793
  %v9876 = vunpack.c.l.b16 %v9794
  %v9877 = vunpack.c.h.b16 %v9794
  %v9878 = vunpack.c.l.b16 %v9795
  %v9879 = vunpack.c.h.b16 %v9795
  %v9880 = vunpack.c.l.b16 %v9796
  %v9881 = vunpack.c.h.b16 %v9796
  %v9882 = vunpack.c.l.b16 %v9797
  %v9883 = vunpack.c.h.b16 %v9797
  %v9884 = vunpack.c.l.b16 %v9798
  %v9885 = vunpack.c.h.b16 %v9798
  %v9886 = vunpack.c.l.b16 %v9799
  %v9887 = vunpack.c.h.b16 %v9799
  %v9888 = vunpack.c.l.b16 %v9800
  %v9889 = vunpack.c.h.b16 %v9800
  %v9890 = vunpack.c.l.b16 %v9801
  %v9891 = vunpack.c.h.b16 %v9801
  %v9892 = vunpack.c.l.b16 %v9802
  %v9893 = vunpack.c.h.b16 %v9802
  %v9894 = vunpack.c.l.b16 %v9803
  %v9895 = vunpack.c.h.b16 %v9803
  %v9896 = vunpack.c.l.b16 %v9804
  %v9897 = vunpack.c.h.b16 %v9804
  %v9898 = vunpack.c.l.b16 %v9805
  %v9899 = vunpack.c.h.b16 %v9805
  %v9900 = vunpack.c.l.b16 %v9806
  %v9901 = vunpack.c.h.b16 %v9806
  %v9902 = vunpack.c.l.b16 %v9807
  %v9903 = vunpack.c.h.b16 %v9807
  %v9904 = vunpack.c.l.b16 %v9808
  %v9905 = vunpack.c.h.b16 %v9808
  %v9906 = vunpack.c.l.b16 %v9809
  %v9907 = vunpack.c.h.b16 %v9809
  %v9908 = vunpack.c.l.b16 %v9810
  %v9909 = vunpack.c.h.b16 %v9810
  %v9910 = vunpack.c.l.b16 %v9811
  %v9911 = vunpack.c.h.b16 %v9811
  %v9912 = vunpack.c.l.b16 %v9812
  %v9913 = vunpack.c.h.b16 %v9812
  %v9914 = vunpack.c.l.b16 %v9813
  %v9915 = vunpack.c.h.b16 %v9813
  %v9916 = vpack.c.b16 %v9854, %v9852
  %v9917 = vpack.c.b16 %v9855, %v9853
  %v9918 = vpack.c.b16 %v9858, %v9856
  %v9919 = vpack.c.b16 %v9859, %v9857
  %v9920 = vpack.c.b16 %v9862, %v9860
  %v9921 = vpack.c.b16 %v9863, %v9861
  %v9922 = vpack.c.b16 %v9866, %v9864
  %v9923 = vpack.c.b16 %v9867, %v9865
  %v9924 = vpack.c.b16 %v9870, %v9868
  %v9925 = vpack.c.b16 %v9871, %v9869
  %v9926 = vpack.c.b16 %v9874, %v9872
  %v9927 = vpack.c.b16 %v9875, %v9873
  %v9928 = vpack.c.b16 %v9878, %v9876
  %v9929 = vpack.c.b16 %v9879, %v9877
  %v9930 = vpack.c.b16 %v9882, %v9880
  %v9931 = vpack.c.b16 %v9883, %v9881
  %v9932 = vpack.c.b16 %v9886, %v9884
  %v9933 = vpack.c.b16 %v9887, %v9885
  %v9934 = vpack.c.b16 %v9890, %v9888
  %v9935 = vpack.c.b16 %v9891, %v9889
  %v9936 = vpack.c.b16 %v9894, %v9892
  %v9937 = vpack.c.b16 %v9895, %v9893
  %v9938 = vpack.c.b16 %v9898, %v9896
  %v9939 = vpack.c.b16 %v9899, %v9897
  %v9940 = vpack.c.b16 %v9902, %v9900
  %v9941 = vpack.c.b16 %v9903, %v9901
  %v9942 = vpack.c.b16 %v9906, %v9904
  %v9943 = vpack.c.b16 %v9907, %v9905
  %v9944 = vpack.c.b16 %v9910, %v9908
  %v9945 = vpack.c.b16 %v9911, %v9909
  %v9946 = vpack.c.b16 %v9914, %v9912
  %v9947 = vpack.c.b16 %v9915, %v9913
  %9980 = vmatpush.bf16.msra.mxu0 %v9930
  %9981 = vmatpush.bf16.msra.mxu0 %v9928
  %9982 = vmatpush.bf16.msra.mxu0 %v9926
  %9983 = vmatpush.bf16.msra.mxu0 %v9924
  %9984 = vmatpush.bf16.msra.mxu0 %v9922
  %9985 = vmatpush.bf16.msra.mxu0 %v9920
  %9986 = vmatpush.bf16.msra.mxu0 %v9918
  %9987 = vmatpush.bf16.msra.mxu0 %v9916
  %9988 = vmatmul.bf16.gmra.mxu0 %v9780
  %v9989 = vpop.f32.mrf.mxu0
  %v9990 = vadd.f32 %v9816, %v9989
  %v9991 = vpop.f32.mrf.mxu0
  %v9992 = vadd.f32 %v9816, %v9991
  %9993 = vdwg.mxu0
  %9994 = vmatpush.bf16.msra.mxu0 %v9946
  %9995 = vmatpush.bf16.msra.mxu0 %v9944
  %9996 = vmatpush.bf16.msra.mxu0 %v9942
  %9997 = vmatpush.bf16.msra.mxu0 %v9940
  %9998 = vmatpush.bf16.msra.mxu0 %v9938
  %9999 = vmatpush.bf16.msra.mxu0 %v9936
  %10000 = vmatpush.bf16.msra.mxu0 %v9934
  %10001 = vmatpush.bf16.msra.mxu0 %v9932
  %10002 = vmatmul.bf16.gmra.mxu0 %v9781
  %v10003 = vpop.f32.mrf.mxu0
  %v10004 = vadd.f32 %v9990, %v10003
  %v10005 = vpop.f32.mrf.mxu0
  %v10006 = vadd.f32 %v9992, %v10005
  %10007 = vdwg.mxu0
  %10008 = vmatpush.bf16.msra.mxu0 %v9931
  %10009 = vmatpush.bf16.msra.mxu0 %v9929
  %10010 = vmatpush.bf16.msra.mxu0 %v9927
  %10011 = vmatpush.bf16.msra.mxu0 %v9925
  %10012 = vmatpush.bf16.msra.mxu0 %v9923
  %10013 = vmatpush.bf16.msra.mxu0 %v9921
  %10014 = vmatpush.bf16.msra.mxu0 %v9919
  %10015 = vmatpush.bf16.msra.mxu0 %v9917
  %10016 = vmatmul.bf16.gmra.mxu0 %v9780
  %v10017 = vpop.f32.mrf.mxu0
  %v10018 = vadd.f32 %v9817, %v10017
  %v10019 = vpop.f32.mrf.mxu0
  %v10020 = vadd.f32 %v9817, %v10019
  %10021 = vdwg.mxu0
  %10022 = vmatpush.bf16.msra.mxu0 %v9947
  %10023 = vmatpush.bf16.msra.mxu0 %v9945
  %10024 = vmatpush.bf16.msra.mxu0 %v9943
  %10025 = vmatpush.bf16.msra.mxu0 %v9941
  %10026 = vmatpush.bf16.msra.mxu0 %v9939
  %10027 = vmatpush.bf16.msra.mxu0 %v9937
  %10028 = vmatpush.bf16.msra.mxu0 %v9935
  %10029 = vmatpush.bf16.msra.mxu0 %v9933
  %10030 = vmatmul.bf16.gmra.mxu0 %v9781
  %v10031 = vpop.f32.mrf.mxu0
  %v10032 = vadd.f32 %v10018, %v10031
  %v10033 = vpop.f32.mrf.mxu0
  %v10034 = vadd.f32 %v10020, %v10033
  %10035 = vdwg.mxu0
  %vm10036 = vcmp.ge.f32.partialorder %v10004, 0.0
  %vm10037 = vcmp.ge.f32.partialorder %v10032, 0.0
  %vm10038 = vcmp.ge.f32.partialorder %v10006, 0.0
  %vm10039 = vcmp.ge.f32.partialorder %v10034, 0.0
  %v10040 = vmul.f32 %v10004, 0.2
  %v10041 = vmul.f32 %v10032, 0.2
  %v10042 = vmul.f32 %v10006, 0.2
  %v10043 = vmul.f32 %v10034, 0.2
  %v10044 = vsel %vm10036, %v10004, %v10040
  %v10045 = vsel %vm10037, %v10032, %v10041
  %v10046 = vsel %vm10038, %v10006, %v10042
  %v10047 = vsel %vm10039, %v10034, %v10043
  %10048 = vst [vmem:[%s11] sm:$0xff] %v10044
  %10049 = vst [vmem:[%s11 + $0x8] sm:$0xff] %v10045
  %10050 = vst [vmem:[%s11 + $0x10] sm:$0xff] %v10046
  %10051 = vst [vmem:[%s11 + $0x18] sm:$0xff] %v10047
  // Predicated region
  $region46: #{sn_patchgan_discriminator.3} parent=0 // pred_check
    _
  $region47: #{sn_patchgan_discriminator.3} parent=0 // pred_check_branch
    %10053 = sbr.rel (0) target = $region49
  $region48: #{sn_patchgan_discriminator.3} parent=0 // pred_region
    _
  $region49: #{sn_patchgan_discriminator.3} parent=0 // pred_fallthru
    _
  // Predicated region
  $region50: #{sn_patchgan_discriminator.3} parent=0 // pred_check
    _
  $region51: #{sn_patchgan_discriminator.3} parent=0 // pred_check_branch
    %10055 = sbr.rel (0) target = $region53
  $region52: #{sn_patchgan_discriminator.3} parent=0 // pred_region
    _
  $region53: #{sn_patchgan_discriminator.3} parent=0 // pred_fallthru
    _

</llo_original>
